<compile_context>
chip_gen: v7x
topology: tpu7x:2x2x1
jax: 0.10.0
libtpu: 0.0.40
codegen_flags: <defaults>
</compile_context>

<pallas_src>
import functools
import math

import jax
import jax.numpy as jnp
from jax.experimental import pallas as pl
from jax.experimental.pallas import tpu as pltpu

LANE = 128                       # lane width / Cout padding target
TM_TARGET = 256                  # target rows (M) per in-kernel chunk (review: 128-256)
VMEM_LIMIT = 32 * 1024 * 1024    # explicit scoped-VMEM budget (safe on v5e/v6e/v7x)

VGG13_CFG = [8, 8, 'M', 16, 16, 'M', 32, 32, 'M', 32, 32, 'M', 64, 64, 'M']


def _round_up(x, m):
    return (x + m - 1) // m * m


# --------------------------- Pallas kernels ---------------------------

def _conv_kernel(x_ref, w_ref, b_ref, o_ref, ps_ref, *, W, TH, NT, n_chunks, pool):
    """Fused tap-packed-im2col conv3x3 + bias + ReLU [+ 2x2 maxpool] for one image.

    x_ref : (1, Ms, K)    bf16  staged input; rows are (h', w) flattened, lanes pack
                                (dw, cin) when NT == 3 or (dh, dw, cin) when NT == 1.
    w_ref : (NT, K, 128)  bf16  packed weights (rows match the staged lane order).
    b_ref : (1, 128)      f32
    o_ref : (1, H*W, 128)        bf16   when pool is False
            (1, H//2, W//2, 128) bf16   when pool is True
    ps_ref: (max(TH//2,1), W, 128) f32 scratch (only used when pool is True)
    """
    CO = o_ref.shape[-1]
    M = TH * W
    bias = b_ref[...]                                           # (1, CO) f32, loaded once
    for ci in range(n_chunks):
        m0 = ci * M
        # taps innermost: acc is a (M, CO) f32 chunk (vreg-resident for M <= 256),
        # accumulated over at most 3 chained matmuls.
        acc = None
        for t in range(NT):
            xt = x_ref[0, m0 + t * W: m0 + t * W + M, :]        # (M, K) contiguous slice
            d = jnp.dot(xt, w_ref[t], preferred_element_type=jnp.float32)
            acc = d if acc is None else acc + d
        y = jnp.maximum(acc + bias, 0.0)                        # (M, CO) f32
        if pool:
            TH2, W2 = TH // 2, W // 2
            # H-pool: split off the leading part of the sublane dim (free) and max rows.
            y = y.reshape(TH2, 2 * W, CO)
            ps_ref[...] = jnp.maximum(y[:, :W, :], y[:, W:, :])   # (TH2, W, CO) -> scratch
            # W-pool: stride-2 sublane reads of the scratch, then max. Lane-dense store.
            ev = ps_ref[:, pl.ds(0, W2, stride=2), :]
            od = ps_ref[:, pl.ds(1, W2, stride=2), :]
            o_ref[0, ci * TH2:(ci + 1) * TH2] = jnp.maximum(ev, od).astype(o_ref.dtype)
        else:
            o_ref[0, m0:m0 + M, :] = y.astype(o_ref.dtype)


def _classifier_kernel(x_ref, w0_ref, b0_ref, w1_ref, b1_ref, w2_ref, b2_ref, o_ref):
    """Fused Linear->ReLU->Linear->ReLU->Linear, all weights resident in VMEM.

    Fine at this toy size; a real 25088x4096 fc1 needs a K-tiled grid + VMEM accumulator.
    """
    h = jnp.dot(x_ref[...], w0_ref[...], preferred_element_type=jnp.float32) + b0_ref[...]
    h = jnp.maximum(h, 0.0)
    # TODO(synk): nn.Dropout is identity at inference; training-mode dropout not implemented.
    h = jnp.dot(h.astype(jnp.bfloat16), w1_ref[...],
                preferred_element_type=jnp.float32) + b1_ref[...]
    h = jnp.maximum(h, 0.0)
    h = jnp.dot(h.astype(jnp.bfloat16), w2_ref[...],
                preferred_element_type=jnp.float32) + b2_ref[...]
    o_ref[...] = h


# --------------------------- wrappers ---------------------------

def _stage_conv_input(x, cin, pack_dh):
    """Build the tap-packed, lane-dense matmul operand for a 3x3 / pad=1 conv.

    Only the REAL cin channels are packed into the contraction lanes (the main
    FLOP-efficiency lever at these channel counts); the dw (and optionally dh) shifts are
    pre-staged here so every in-kernel slice is a contiguous, aligned sublane window.
    This is one small XLA pass over an activation-sized array per layer.
    """
    N, H, W, _ = x.shape
    xr = x[..., :cin]
    xp = jnp.pad(xr, ((0, 0), (1, 1), (1, 1), (0, 0)))          # spatial halo (zeros)
    if pack_dh:
        taps = [xp[:, dh:dh + H, dw:dw + W, :] for dh in range(3) for dw in range(3)]
        st = jnp.concatenate(taps, axis=-1).reshape(N, H * W, 9 * cin)
    else:
        taps = [xp[:, :, dw:dw + W, :] for dw in range(3)]
        st = jnp.concatenate(taps, axis=-1).reshape(N, (H + 2) * W, 3 * cin)
    k = st.shape[-1]
    kpad = _round_up(k, LANE)
    st = jnp.pad(st, ((0, 0), (0, 0), (0, kpad - k)))
    return st.astype(jnp.bfloat16)


def conv3x3_relu_block(x, wp, bp, *, cin, pool):
    """x: (N,H,W,C) with real input channels in [..., :cin]. Returns NHWC bf16 output
    (H//2, W//2 if pool). Padded output channels stay exactly zero."""
    N, H, W, _ = x.shape
    pack_dh = (9 * cin <= LANE)
    NT = 1 if pack_dh else 3
    st = _stage_conv_input(x, cin, pack_dh)                     # (N, Ms, Kpad) bf16
    Ms, Kpad = st.shape[1], st.shape[2]
    assert wp.shape == (NT, Kpad, LANE), (wp.shape, NT, Kpad)

    TH = min(H, max(1, TM_TARGET // W))
    if pool and TH % 2:
        TH = max(2, TH - 1)
    assert H % TH == 0 and (not pool or TH % 2 == 0)
    n_chunks = H // TH

    if pool:
        Hout, Wout = H // 2, W // 2
        out_shape = jax.ShapeDtypeStruct((N, Hout, Wout, LANE), jnp.bfloat16)
        out_spec = pl.BlockSpec((1, Hout, Wout, LANE), lambda n: (n, 0, 0, 0))
        out_bytes = N * Hout * Wout * LANE * 2
    else:
        out_shape = jax.ShapeDtypeStruct((N, H * W, LANE), jnp.bfloat16)
        out_spec = pl.BlockSpec((1, H * W, LANE), lambda n: (n, 0, 0))
        out_bytes = N * H * W * LANE * 2

    kernel = functools.partial(_conv_kernel, W=W, TH=TH, NT=NT,
                               n_chunks=n_chunks, pool=pool)
    flops = 2 * N * H * W * Kpad * LANE * NT
    bytes_accessed = N * Ms * Kpad * 2 + NT * Kpad * LANE * 2 + LANE * 4 + out_bytes

    y = pl.pallas_call(
        kernel,
        out_shape=out_shape,
        grid=(N,),
        in_specs=[pl.BlockSpec((1, Ms, Kpad), lambda n: (n, 0, 0)),
                  pl.BlockSpec((NT, Kpad, LANE), lambda n: (0, 0, 0)),
                  pl.BlockSpec((1, LANE), lambda n: (0, 0))],
        out_specs=out_spec,
        scratch_shapes=[pltpu.VMEM((max(TH // 2, 1), W, LANE), jnp.float32)],
        compiler_params=pltpu.CompilerParams(
            dimension_semantics=("parallel",), vmem_limit_bytes=VMEM_LIMIT),
        cost_estimate=pl.CostEstimate(flops=int(flops), transcendentals=0,
                                      bytes_accessed=int(bytes_accessed)),
    )(st, wp, bp)

    if pool:
        return y
    return y.reshape(N, H, W, LANE)      # cheap XLA reshape for the next layer's staging


def classifier(x, lin_params):
    """x: (N, K0) bf16; three padded (Kin,Kout) bf16 weights + (1,Kout) f32 biases."""
    (w0, b0), (w1, b1), (w2, b2) = lin_params
    N = x.shape[0]
    OUTP = w2.shape[1]

    def c0(n):
        return (0, 0)

    return pl.pallas_call(
        _classifier_kernel,
        out_shape=jax.ShapeDtypeStruct((N, OUTP), jnp.float32),
        grid=(1,),
        in_specs=[pl.BlockSpec(x.shape, c0),
                  pl.BlockSpec(w0.shape, c0), pl.BlockSpec(b0.shape, c0),
                  pl.BlockSpec(w1.shape, c0), pl.BlockSpec(b1.shape, c0),
                  pl.BlockSpec(w2.shape, c0), pl.BlockSpec(b2.shape, c0)],
        out_specs=pl.BlockSpec((N, OUTP), c0),
        compiler_params=pltpu.CompilerParams(
            dimension_semantics=("arbitrary",), vmem_limit_bytes=VMEM_LIMIT),
    )(x, w0, b0, w1, b1, w2, b2)


# --------------------------- model definition ---------------------------

def build_plan(cfg, in_ch):
    """Per-conv-layer plan; the 2x2 maxpool is fused into the conv preceding each 'M'."""
    plan, c, i = [], in_ch, 0
    while i < len(cfg):
        v = cfg[i]
        assert v != 'M'
        pool = (i + 1 < len(cfg)) and cfg[i + 1] == 'M'
        plan.append({'cin': c, 'cout': v, 'pool': pool})
        c = v
        i += 2 if pool else 1
    return plan


def init_params(key, plan, fc, out_ch, flat_features):
    """Matches VGG._initialize_weights(): conv N(0, sqrt(2/(k*k*out_ch))), bias 0;
    linear N(0, 0.01), bias 0."""
    params = {'convs': [], 'linears': []}
    for layer in plan:
        key, k1 = jax.random.split(key)
        std = math.sqrt(2.0 / (3 * 3 * layer['cout']))
        w = std * jax.random.normal(k1, (3, 3, layer['cin'], layer['cout']), jnp.float32)
        params['convs'].append((w, jnp.zeros((layer['cout'],), jnp.float32)))
    for din, dout in [(flat_features, fc), (fc, fc), (fc, out_ch)]:
        key, k1 = jax.random.split(key)
        w = 0.01 * jax.random.normal(k1, (din, dout), jnp.float32)
        params['linears'].append((w, jnp.zeros((dout,), jnp.float32)))
    return params


def prepare_params(raw, plan):
    """Pack conv weights to (NT, Kpad, 128) matching the staged lane order (K = 9*cin or
    3*cin real channels, padded to 128 lanes); pad FC dims to 128; cast weights to bf16."""
    convs = []
    for (w, b), layer in zip(raw['convs'], plan):
        cin, cout = layer['cin'], layer['cout']
        pack_dh = (9 * cin <= LANE)
        wk = w.reshape(1, 9 * cin, cout) if pack_dh else w.reshape(3, 3 * cin, cout)
        nt, k, _ = wk.shape
        kpad = _round_up(k, LANE)
        wp = jnp.zeros((nt, kpad, LANE), jnp.float32).at[:, :k, :cout].set(wk)
        bp = jnp.zeros((1, LANE), jnp.float32).at[0, :cout].set(b)
        convs.append((wp.astype(jnp.bfloat16), bp))
    lins = []
    for w, b in raw['linears']:
        din, dout = w.shape
        dinp, doutp = _round_up(din, LANE), _round_up(dout, LANE)
        wp = jnp.zeros((dinp, doutp), jnp.float32).at[:din, :dout].set(w)
        bp = jnp.zeros((1, doutp), jnp.float32).at[0, :dout].set(b)
        lins.append((wp.astype(jnp.bfloat16), bp))
    return {'convs': convs, 'linears': lins}


def vgg_forward(x_nchw, params, *, plan, last_ch, out_ch):
    x = jnp.transpose(x_nchw, (0, 2, 3, 1))                     # NHWC, real channels
    for (wp, bp), layer in zip(params['convs'], plan):
        x = conv3x3_relu_block(x, wp, bp, cin=layer['cin'], pool=layer['pool'])

    # flatten: drop padded channels, NCHW (C,H,W) order to match torch x.view(x.size(0), -1)
    N = x.shape[0]
    feat = x[:, :, :, :last_ch]
    feat = jnp.transpose(feat, (0, 3, 1, 2)).reshape(N, -1)
    k0p = params['linears'][0][0].shape[0]
    feat = jnp.pad(feat, ((0, 0), (0, k0p - feat.shape[1]))).astype(jnp.bfloat16)

    logits_p = classifier(feat, params['linears'])
    return logits_p[:, :out_ch]


# --------------------------- main ---------------------------

if __name__ == "__main__":
    key = jax.random.PRNGKey(0)
    kx, kp = jax.random.split(key)

    N, Cin, H, W = 2, 3, 32, 32        # small NCHW input (PyTorch convention)
    fc = 128
    output_channels = 10

    plan = build_plan(VGG13_CFG, Cin)
    n_pools = sum(1 for l in plan if l['pool'])
    final_spatial = H // (2 ** n_pools)                 # 32 -> 1 after 5 pools
    last_ch = plan[-1]['cout']
    flat_features = last_ch * final_spatial * final_spatial

    x = jax.random.normal(kx, (N, Cin, H, W), jnp.float32)
    params = prepare_params(
        init_params(kp, plan, fc, output_channels, flat_features), plan)

    fwd = jax.jit(functools.partial(vgg_forward, plan=plan, last_ch=last_ch,
                                    out_ch=output_channels))
    out = fwd(x, params)
    jax.block_until_ready(out)

    assert out.shape == (N, output_channels), out.shape
    assert bool(jnp.all(jnp.isfinite(out)))
    print("KERNEL_OK")
</pallas_src>

<mosaic_0001>
module attributes {stable_mosaic.version = 11 : i64} {
  func.func @_conv_kernel(%arg0: i32, %arg1: memref<1x1024x128xbf16, #tpu.memory_space<vmem>>, %arg2: memref<1x128x128xbf16, #tpu.memory_space<vmem>>, %arg3: memref<1x128xf32, #tpu.memory_space<vmem>>, %arg4: memref<1x1024x128xbf16, #tpu.memory_space<vmem>>, %arg5: memref<4x32x128xf32, #tpu.memory_space<vmem>>) attributes {dimension_semantics = [#tpu.dimension_semantics<parallel>], iteration_bounds = array<i64: 2>, scalar_prefetch = 0 : i64, scratch_operands = 1 : i64, tpu.core_type = #tpu.core_type<tc>, window_params = [{transform_indices = @transform_0, window_bounds = array<i64: 1, 1024, 128>}, {pipeline_mode = #tpu.pipeline_mode<synchronous>, transform_indices = @transform_1, window_bounds = array<i64: 1, 128, 128>}, {pipeline_mode = #tpu.pipeline_mode<synchronous>, transform_indices = @transform_2, window_bounds = array<i64: 1, 128>}, {transform_indices = @transform_3, window_bounds = array<i64: 1, 1024, 128>}]} {
    %c0 = arith.constant 0 : index
    %c0_0 = arith.constant 0 : index
    %0 = vector.load %arg3[%c0, %c0_0] : memref<1x128xf32, #tpu.memory_space<vmem>>, vector<1x128xf32>
    %c0_1 = arith.constant 0 : index
    %c0_2 = arith.constant 0 : index
    %c0_3 = arith.constant 0 : index
    %1 = vector.load %arg1[%c0_1, %c0_2, %c0_3] : memref<1x1024x128xbf16, #tpu.memory_space<vmem>>, vector<1x256x128xbf16>
    %2 = vector.shape_cast %1 : vector<1x256x128xbf16> to vector<256x128xbf16>
    %c0_4 = arith.constant 0 : index
    %c0_5 = arith.constant 0 : index
    %c0_6 = arith.constant 0 : index
    %3 = vector.load %arg2[%c0_4, %c0_5, %c0_6] : memref<1x128x128xbf16, #tpu.memory_space<vmem>>, vector<1x128x128xbf16>
    %4 = vector.shape_cast %3 : vector<1x128x128xbf16> to vector<128x128xbf16>
    %cst = arith.constant dense<0.000000e+00> : vector<256x128xf32>
    %5 = tpu.matmul %2, %4, %cst {dimension_numbers = #tpu.dot_dimension_numbers<[1], [0], [0], [1], [0, 0, 1, 1], [], []>} : vector<256x128xbf16>, vector<128x128xbf16>, vector<256x128xf32> -> vector<256x128xf32>
    %6 = vector.broadcast %0 : vector<1x128xf32> to vector<256x128xf32>
    %7 = arith.addf %5, %6 : vector<256x128xf32>
    %cst_7 = arith.constant 0.000000e+00 : f32
    %8 = vector.broadcast %cst_7 : f32 to vector<256x128xf32>
    %9 = arith.maximumf %7, %8 : vector<256x128xf32>
    %10 = arith.truncf %9 : vector<256x128xf32> to vector<256x128xbf16>
    %c0_8 = arith.constant 0 : index
    %c0_9 = arith.constant 0 : index
    %c0_10 = arith.constant 0 : index
    %11 = vector.load %arg4[%c0_8, %c0_9, %c0_10] : memref<1x1024x128xbf16, #tpu.memory_space<vmem>>, vector<1x256x128xbf16>
    %12 = vector.shape_cast %11 : vector<1x256x128xbf16> to vector<256x128xbf16>
    %13 = vector.shape_cast %10 : vector<256x128xbf16> to vector<1x256x128xbf16>
    tpu.vector_store %arg4[%c0_8, %c0_9, %c0_10], %13 {strides = array<i32>} : memref<1x1024x128xbf16, #tpu.memory_space<vmem>>, vector<1x256x128xbf16>,
    %c0_11 = arith.constant 0 : index
    %c256 = arith.constant 256 : index
    %c0_12 = arith.constant 0 : index
    %14 = vector.load %arg1[%c0_11, %c256, %c0_12] : memref<1x1024x128xbf16, #tpu.memory_space<vmem>>, vector<1x256x128xbf16>
    %15 = vector.shape_cast %14 : vector<1x256x128xbf16> to vector<256x128xbf16>
    %c0_13 = arith.constant 0 : index
    %c0_14 = arith.constant 0 : index
    %c0_15 = arith.constant 0 : index
    %16 = vector.load %arg2[%c0_13, %c0_14, %c0_15] : memref<1x128x128xbf16, #tpu.memory_space<vmem>>, vector<1x128x128xbf16>
    %17 = vector.shape_cast %16 : vector<1x128x128xbf16> to vector<128x128xbf16>
    %cst_16 = arith.constant dense<0.000000e+00> : vector<256x128xf32>
    %18 = tpu.matmul %15, %17, %cst_16 {dimension_numbers = #tpu.dot_dimension_numbers<[1], [0], [0], [1], [0, 0, 1, 1], [], []>} : vector<256x128xbf16>, vector<128x128xbf16>, vector<256x128xf32> -> vector<256x128xf32>
    %19 = vector.broadcast %0 : vector<1x128xf32> to vector<256x128xf32>
    %20 = arith.addf %18, %19 : vector<256x128xf32>
    %cst_17 = arith.constant 0.000000e+00 : f32
    %21 = vector.broadcast %cst_17 : f32 to vector<256x128xf32>
    %22 = arith.maximumf %20, %21 : vector<256x128xf32>
    %23 = arith.truncf %22 : vector<256x128xf32> to vector<256x128xbf16>
    %c0_18 = arith.constant 0 : index
    %c256_19 = arith.constant 256 : index
    %c0_20 = arith.constant 0 : index
    %24 = vector.load %arg4[%c0_18, %c256_19, %c0_20] : memref<1x1024x128xbf16, #tpu.memory_space<vmem>>, vector<1x256x128xbf16>
    %25 = vector.shape_cast %24 : vector<1x256x128xbf16> to vector<256x128xbf16>
    %26 = vector.shape_cast %23 : vector<256x128xbf16> to vector<1x256x128xbf16>
    tpu.vector_store %arg4[%c0_18, %c256_19, %c0_20], %26 {strides = array<i32>} : memref<1x1024x128xbf16, #tpu.memory_space<vmem>>, vector<1x256x128xbf16>,
    %c0_21 = arith.constant 0 : index
    %c512 = arith.constant 512 : index
    %c0_22 = arith.constant 0 : index
    %27 = vector.load %arg1[%c0_21, %c512, %c0_22] : memref<1x1024x128xbf16, #tpu.memory_space<vmem>>, vector<1x256x128xbf16>
    %28 = vector.shape_cast %27 : vector<1x256x128xbf16> to vector<256x128xbf16>
    %c0_23 = arith.constant 0 : index
    %c0_24 = arith.constant 0 : index
    %c0_25 = arith.constant 0 : index
    %29 = vector.load %arg2[%c0_23, %c0_24, %c0_25] : memref<1x128x128xbf16, #tpu.memory_space<vmem>>, vector<1x128x128xbf16>
    %30 = vector.shape_cast %29 : vector<1x128x128xbf16> to vector<128x128xbf16>
    %cst_26 = arith.constant dense<0.000000e+00> : vector<256x128xf32>
    %31 = tpu.matmul %28, %30, %cst_26 {dimension_numbers = #tpu.dot_dimension_numbers<[1], [0], [0], [1], [0, 0, 1, 1], [], []>} : vector<256x128xbf16>, vector<128x128xbf16>, vector<256x128xf32> -> vector<256x128xf32>
    %32 = vector.broadcast %0 : vector<1x128xf32> to vector<256x128xf32>
    %33 = arith.addf %31, %32 : vector<256x128xf32>
    %cst_27 = arith.constant 0.000000e+00 : f32
    %34 = vector.broadcast %cst_27 : f32 to vector<256x128xf32>
    %35 = arith.maximumf %33, %34 : vector<256x128xf32>
    %36 = arith.truncf %35 : vector<256x128xf32> to vector<256x128xbf16>
    %c0_28 = arith.constant 0 : index
    %c512_29 = arith.constant 512 : index
    %c0_30 = arith.constant 0 : index
    %37 = vector.load %arg4[%c0_28, %c512_29, %c0_30] : memref<1x1024x128xbf16, #tpu.memory_space<vmem>>, vector<1x256x128xbf16>
    %38 = vector.shape_cast %37 : vector<1x256x128xbf16> to vector<256x128xbf16>
    %39 = vector.shape_cast %36 : vector<256x128xbf16> to vector<1x256x128xbf16>
    tpu.vector_store %arg4[%c0_28, %c512_29, %c0_30], %39 {strides = array<i32>} : memref<1x1024x128xbf16, #tpu.memory_space<vmem>>, vector<1x256x128xbf16>,
    %c0_31 = arith.constant 0 : index
    %c768 = arith.constant 768 : index
    %c0_32 = arith.constant 0 : index
    %40 = vector.load %arg1[%c0_31, %c768, %c0_32] : memref<1x1024x128xbf16, #tpu.memory_space<vmem>>, vector<1x256x128xbf16>
    %41 = vector.shape_cast %40 : vector<1x256x128xbf16> to vector<256x128xbf16>
    %c0_33 = arith.constant 0 : index
    %c0_34 = arith.constant 0 : index
    %c0_35 = arith.constant 0 : index
    %42 = vector.load %arg2[%c0_33, %c0_34, %c0_35] : memref<1x128x128xbf16, #tpu.memory_space<vmem>>, vector<1x128x128xbf16>
    %43 = vector.shape_cast %42 : vector<1x128x128xbf16> to vector<128x128xbf16>
    %cst_36 = arith.constant dense<0.000000e+00> : vector<256x128xf32>
    %44 = tpu.matmul %41, %43, %cst_36 {dimension_numbers = #tpu.dot_dimension_numbers<[1], [0], [0], [1], [0, 0, 1, 1], [], []>} : vector<256x128xbf16>, vector<128x128xbf16>, vector<256x128xf32> -> vector<256x128xf32>
    %45 = vector.broadcast %0 : vector<1x128xf32> to vector<256x128xf32>
    %46 = arith.addf %44, %45 : vector<256x128xf32>
    %cst_37 = arith.constant 0.000000e+00 : f32
    %47 = vector.broadcast %cst_37 : f32 to vector<256x128xf32>
    %48 = arith.maximumf %46, %47 : vector<256x128xf32>
    %49 = arith.truncf %48 : vector<256x128xf32> to vector<256x128xbf16>
    %c0_38 = arith.constant 0 : index
    %c768_39 = arith.constant 768 : index
    %c0_40 = arith.constant 0 : index
    %50 = vector.load %arg4[%c0_38, %c768_39, %c0_40] : memref<1x1024x128xbf16, #tpu.memory_space<vmem>>, vector<1x256x128xbf16>
    %51 = vector.shape_cast %50 : vector<1x256x128xbf16> to vector<256x128xbf16>
    %52 = vector.shape_cast %49 : vector<256x128xbf16> to vector<1x256x128xbf16>
    tpu.vector_store %arg4[%c0_38, %c768_39, %c0_40], %52 {strides = array<i32>} : memref<1x1024x128xbf16, #tpu.memory_space<vmem>>, vector<1x256x128xbf16>,
    return
  }
  func.func @transform_0(%arg0: i32) -> (i32, i32, i32) {
    %c0_i32 = arith.constant 0 : i32
    %c0_i32_0 = arith.constant 0 : i32
    %c0_i32_1 = arith.constant 0 : i32
    return %arg0, %c0_i32, %c0_i32_0 : i32, i32, i32
  }
  func.func @transform_1(%arg0: i32) -> (i32, i32, i32) {
    %c0_i32 = arith.constant 0 : i32
    %c0_i32_0 = arith.constant 0 : i32
    %c0_i32_1 = arith.constant 0 : i32
    %c0_i32_2 = arith.constant 0 : i32
    return %c0_i32, %c0_i32_0, %c0_i32_1 : i32, i32, i32
  }
  func.func @transform_2(%arg0: i32) -> (i32, i32) {
    %c0_i32 = arith.constant 0 : i32
    %c0_i32_0 = arith.constant 0 : i32
    %c0_i32_1 = arith.constant 0 : i32
    return %c0_i32, %c0_i32_0 : i32, i32
  }
  func.func @transform_3(%arg0: i32) -> (i32, i32, i32) {
    %c0_i32 = arith.constant 0 : i32
    %c0_i32_0 = arith.constant 0 : i32
    %c0_i32_1 = arith.constant 0 : i32
    return %arg0, %c0_i32, %c0_i32_0 : i32, i32, i32
  }
}

module attributes {stable_mosaic.version = 11 : i64} {
  func.func @_conv_kernel(%arg0: i32, %arg1: memref<1x1024x128xbf16, #tpu.memory_space<vmem>>, %arg2: memref<1x128x128xbf16, #tpu.memory_space<vmem>>, %arg3: memref<1x128xf32, #tpu.memory_space<vmem>>, %arg4: memref<1x16x16x128xbf16, #tpu.memory_space<vmem>>, %arg5: memref<4x32x128xf32, #tpu.memory_space<vmem>>) attributes {dimension_semantics = [#tpu.dimension_semantics<parallel>], iteration_bounds = array<i64: 2>, scalar_prefetch = 0 : i64, scratch_operands = 1 : i64, tpu.core_type = #tpu.core_type<tc>, window_params = [{transform_indices = @transform_0, window_bounds = array<i64: 1, 1024, 128>}, {pipeline_mode = #tpu.pipeline_mode<synchronous>, transform_indices = @transform_1, window_bounds = array<i64: 1, 128, 128>}, {pipeline_mode = #tpu.pipeline_mode<synchronous>, transform_indices = @transform_2, window_bounds = array<i64: 1, 128>}, {transform_indices = @transform_3, window_bounds = array<i64: 1, 16, 16, 128>}]} {
    %c0 = arith.constant 0 : index
    %c0_0 = arith.constant 0 : index
    %0 = vector.load %arg3[%c0, %c0_0] : memref<1x128xf32, #tpu.memory_space<vmem>>, vector<1x128xf32>
    %c0_1 = arith.constant 0 : index
    %c0_2 = arith.constant 0 : index
    %c0_3 = arith.constant 0 : index
    %1 = vector.load %arg1[%c0_1, %c0_2, %c0_3] : memref<1x1024x128xbf16, #tpu.memory_space<vmem>>, vector<1x256x128xbf16>
    %2 = vector.shape_cast %1 : vector<1x256x128xbf16> to vector<256x128xbf16>
    %c0_4 = arith.constant 0 : index
    %c0_5 = arith.constant 0 : index
    %c0_6 = arith.constant 0 : index
    %3 = vector.load %arg2[%c0_4, %c0_5, %c0_6] : memref<1x128x128xbf16, #tpu.memory_space<vmem>>, vector<1x128x128xbf16>
    %4 = vector.shape_cast %3 : vector<1x128x128xbf16> to vector<128x128xbf16>
    %cst = arith.constant dense<0.000000e+00> : vector<256x128xf32>
    %5 = tpu.matmul %2, %4, %cst {dimension_numbers = #tpu.dot_dimension_numbers<[1], [0], [0], [1], [0, 0, 1, 1], [], []>} : vector<256x128xbf16>, vector<128x128xbf16>, vector<256x128xf32> -> vector<256x128xf32>
    %6 = vector.broadcast %0 : vector<1x128xf32> to vector<256x128xf32>
    %7 = arith.addf %5, %6 : vector<256x128xf32>
    %cst_7 = arith.constant 0.000000e+00 : f32
    %8 = vector.broadcast %cst_7 : f32 to vector<256x128xf32>
    %9 = arith.maximumf %7, %8 : vector<256x128xf32>
    %10 = vector.shape_cast %9 : vector<256x128xf32> to vector<4x64x128xf32>
    %11 = vector.extract_strided_slice %10 {offsets = [0, 0, 0], sizes = [4, 32, 128], strides = [1, 1, 1]} : vector<4x64x128xf32> to vector<4x32x128xf32>
    %12 = vector.extract_strided_slice %10 {offsets = [0, 32, 0], sizes = [4, 32, 128], strides = [1, 1, 1]} : vector<4x64x128xf32> to vector<4x32x128xf32>
    %13 = arith.maximumf %11, %12 : vector<4x32x128xf32>
    %c0_8 = arith.constant 0 : index
    %c0_9 = arith.constant 0 : index
    %c0_10 = arith.constant 0 : index
    %14 = vector.load %arg5[%c0_8, %c0_9, %c0_10] : memref<4x32x128xf32, #tpu.memory_space<vmem>>, vector<4x32x128xf32>
    tpu.vector_store %arg5[%c0_8, %c0_9, %c0_10], %13 {strides = array<i32>} : memref<4x32x128xf32, #tpu.memory_space<vmem>>, vector<4x32x128xf32>,
    %c0_11 = arith.constant 0 : index
    %c0_12 = arith.constant 0 : index
    %c0_13 = arith.constant 0 : index
    %15 = tpu.strided_load %arg5[%c0_11, %c0_12, %c0_13] {strides = array<i32: 1, 2, 1>} : memref<4x32x128xf32, #tpu.memory_space<vmem>>, vector<4x16x128xf32>
    %c0_14 = arith.constant 0 : index
    %c1 = arith.constant 1 : index
    %c0_15 = arith.constant 0 : index
    %16 = tpu.strided_load %arg5[%c0_14, %c1, %c0_15] {strides = array<i32: 1, 2, 1>} : memref<4x32x128xf32, #tpu.memory_space<vmem>>, vector<4x16x128xf32>
    %17 = arith.maximumf %15, %16 : vector<4x16x128xf32>
    %18 = arith.truncf %17 : vector<4x16x128xf32> to vector<4x16x128xbf16>
    %c0_16 = arith.constant 0 : index
    %c0_17 = arith.constant 0 : index
    %c0_18 = arith.constant 0 : index
    %c0_19 = arith.constant 0 : index
    %19 = vector.load %arg4[%c0_16, %c0_17, %c0_18, %c0_19] : memref<1x16x16x128xbf16, #tpu.memory_space<vmem>>, vector<1x4x16x128xbf16>
    %20 = vector.shape_cast %19 : vector<1x4x16x128xbf16> to vector<4x16x128xbf16>
    %21 = vector.shape_cast %18 : vector<4x16x128xbf16> to vector<1x4x16x128xbf16>
    tpu.vector_store %arg4[%c0_16, %c0_17, %c0_18, %c0_19], %21 {strides = array<i32>} : memref<1x16x16x128xbf16, #tpu.memory_space<vmem>>, vector<1x4x16x128xbf16>,
    %c0_20 = arith.constant 0 : index
    %c256 = arith.constant 256 : index
    %c0_21 = arith.constant 0 : index
    %22 = vector.load %arg1[%c0_20, %c256, %c0_21] : memref<1x1024x128xbf16, #tpu.memory_space<vmem>>, vector<1x256x128xbf16>
    %23 = vector.shape_cast %22 : vector<1x256x128xbf16> to vector<256x128xbf16>
    %c0_22 = arith.constant 0 : index
    %c0_23 = arith.constant 0 : index
    %c0_24 = arith.constant 0 : index
    %24 = vector.load %arg2[%c0_22, %c0_23, %c0_24] : memref<1x128x128xbf16, #tpu.memory_space<vmem>>, vector<1x128x128xbf16>
    %25 = vector.shape_cast %24 : vector<1x128x128xbf16> to vector<128x128xbf16>
    %cst_25 = arith.constant dense<0.000000e+00> : vector<256x128xf32>
    %26 = tpu.matmul %23, %25, %cst_25 {dimension_numbers = #tpu.dot_dimension_numbers<[1], [0], [0], [1], [0, 0, 1, 1], [], []>} : vector<256x128xbf16>, vector<128x128xbf16>, vector<256x128xf32> -> vector<256x128xf32>
    %27 = vector.broadcast %0 : vector<1x128xf32> to vector<256x128xf32>
    %28 = arith.addf %26, %27 : vector<256x128xf32>
    %cst_26 = arith.constant 0.000000e+00 : f32
    %29 = vector.broadcast %cst_26 : f32 to vector<256x128xf32>
    %30 = arith.maximumf %28, %29 : vector<256x128xf32>
    %31 = vector.shape_cast %30 : vector<256x128xf32> to vector<4x64x128xf32>
    %32 = vector.extract_strided_slice %31 {offsets = [0, 0, 0], sizes = [4, 32, 128], strides = [1, 1, 1]} : vector<4x64x128xf32> to vector<4x32x128xf32>
    %33 = vector.extract_strided_slice %31 {offsets = [0, 32, 0], sizes = [4, 32, 128], strides = [1, 1, 1]} : vector<4x64x128xf32> to vector<4x32x128xf32>
    %34 = arith.maximumf %32, %33 : vector<4x32x128xf32>
    %c0_27 = arith.constant 0 : index
    %c0_28 = arith.constant 0 : index
    %c0_29 = arith.constant 0 : index
    %35 = vector.load %arg5[%c0_27, %c0_28, %c0_29] : memref<4x32x128xf32, #tpu.memory_space<vmem>>, vector<4x32x128xf32>
    tpu.vector_store %arg5[%c0_27, %c0_28, %c0_29], %34 {strides = array<i32>} : memref<4x32x128xf32, #tpu.memory_space<vmem>>, vector<4x32x128xf32>,
    %c0_30 = arith.constant 0 : index
    %c0_31 = arith.constant 0 : index
    %c0_32 = arith.constant 0 : index
    %36 = tpu.strided_load %arg5[%c0_30, %c0_31, %c0_32] {strides = array<i32: 1, 2, 1>} : memref<4x32x128xf32, #tpu.memory_space<vmem>>, vector<4x16x128xf32>
    %c0_33 = arith.constant 0 : index
    %c1_34 = arith.constant 1 : index
    %c0_35 = arith.constant 0 : index
    %37 = tpu.strided_load %arg5[%c0_33, %c1_34, %c0_35] {strides = array<i32: 1, 2, 1>} : memref<4x32x128xf32, #tpu.memory_space<vmem>>, vector<4x16x128xf32>
    %38 = arith.maximumf %36, %37 : vector<4x16x128xf32>
    %39 = arith.truncf %38 : vector<4x16x128xf32> to vector<4x16x128xbf16>
    %c0_36 = arith.constant 0 : index
    %c4 = arith.constant 4 : index
    %c0_37 = arith.constant 0 : index
    %c0_38 = arith.constant 0 : index
    %40 = vector.load %arg4[%c0_36, %c4, %c0_37, %c0_38] : memref<1x16x16x128xbf16, #tpu.memory_space<vmem>>, vector<1x4x16x128xbf16>
    %41 = vector.shape_cast %40 : vector<1x4x16x128xbf16> to vector<4x16x128xbf16>
    %42 = vector.shape_cast %39 : vector<4x16x128xbf16> to vector<1x4x16x128xbf16>
    tpu.vector_store %arg4[%c0_36, %c4, %c0_37, %c0_38], %42 {strides = array<i32>} : memref<1x16x16x128xbf16, #tpu.memory_space<vmem>>, vector<1x4x16x128xbf16>,
    %c0_39 = arith.constant 0 : index
    %c512 = arith.constant 512 : index
    %c0_40 = arith.constant 0 : index
    %43 = vector.load %arg1[%c0_39, %c512, %c0_40] : memref<1x1024x128xbf16, #tpu.memory_space<vmem>>, vector<1x256x128xbf16>
    %44 = vector.shape_cast %43 : vector<1x256x128xbf16> to vector<256x128xbf16>
    %c0_41 = arith.constant 0 : index
    %c0_42 = arith.constant 0 : index
    %c0_43 = arith.constant 0 : index
    %45 = vector.load %arg2[%c0_41, %c0_42, %c0_43] : memref<1x128x128xbf16, #tpu.memory_space<vmem>>, vector<1x128x128xbf16>
    %46 = vector.shape_cast %45 : vector<1x128x128xbf16> to vector<128x128xbf16>
    %cst_44 = arith.constant dense<0.000000e+00> : vector<256x128xf32>
    %47 = tpu.matmul %44, %46, %cst_44 {dimension_numbers = #tpu.dot_dimension_numbers<[1], [0], [0], [1], [0, 0, 1, 1], [], []>} : vector<256x128xbf16>, vector<128x128xbf16>, vector<256x128xf32> -> vector<256x128xf32>
    %48 = vector.broadcast %0 : vector<1x128xf32> to vector<256x128xf32>
    %49 = arith.addf %47, %48 : vector<256x128xf32>
    %cst_45 = arith.constant 0.000000e+00 : f32
    %50 = vector.broadcast %cst_45 : f32 to vector<256x128xf32>
    %51 = arith.maximumf %49, %50 : vector<256x128xf32>
    %52 = vector.shape_cast %51 : vector<256x128xf32> to vector<4x64x128xf32>
    %53 = vector.extract_strided_slice %52 {offsets = [0, 0, 0], sizes = [4, 32, 128], strides = [1, 1, 1]} : vector<4x64x128xf32> to vector<4x32x128xf32>
    %54 = vector.extract_strided_slice %52 {offsets = [0, 32, 0], sizes = [4, 32, 128], strides = [1, 1, 1]} : vector<4x64x128xf32> to vector<4x32x128xf32>
    %55 = arith.maximumf %53, %54 : vector<4x32x128xf32>
    %c0_46 = arith.constant 0 : index
    %c0_47 = arith.constant 0 : index
    %c0_48 = arith.constant 0 : index
    %56 = vector.load %arg5[%c0_46, %c0_47, %c0_48] : memref<4x32x128xf32, #tpu.memory_space<vmem>>, vector<4x32x128xf32>
    tpu.vector_store %arg5[%c0_46, %c0_47, %c0_48], %55 {strides = array<i32>} : memref<4x32x128xf32, #tpu.memory_space<vmem>>, vector<4x32x128xf32>,
    %c0_49 = arith.constant 0 : index
    %c0_50 = arith.constant 0 : index
    %c0_51 = arith.constant 0 : index
    %57 = tpu.strided_load %arg5[%c0_49, %c0_50, %c0_51] {strides = array<i32: 1, 2, 1>} : memref<4x32x128xf32, #tpu.memory_space<vmem>>, vector<4x16x128xf32>
    %c0_52 = arith.constant 0 : index
    %c1_53 = arith.constant 1 : index
    %c0_54 = arith.constant 0 : index
    %58 = tpu.strided_load %arg5[%c0_52, %c1_53, %c0_54] {strides = array<i32: 1, 2, 1>} : memref<4x32x128xf32, #tpu.memory_space<vmem>>, vector<4x16x128xf32>
    %59 = arith.maximumf %57, %58 : vector<4x16x128xf32>
    %60 = arith.truncf %59 : vector<4x16x128xf32> to vector<4x16x128xbf16>
    %c0_55 = arith.constant 0 : index
    %c8 = arith.constant 8 : index
    %c0_56 = arith.constant 0 : index
    %c0_57 = arith.constant 0 : index
    %61 = vector.load %arg4[%c0_55, %c8, %c0_56, %c0_57] : memref<1x16x16x128xbf16, #tpu.memory_space<vmem>>, vector<1x4x16x128xbf16>
    %62 = vector.shape_cast %61 : vector<1x4x16x128xbf16> to vector<4x16x128xbf16>
    %63 = vector.shape_cast %60 : vector<4x16x128xbf16> to vector<1x4x16x128xbf16>
    tpu.vector_store %arg4[%c0_55, %c8, %c0_56, %c0_57], %63 {strides = array<i32>} : memref<1x16x16x128xbf16, #tpu.memory_space<vmem>>, vector<1x4x16x128xbf16>,
    %c0_58 = arith.constant 0 : index
    %c768 = arith.constant 768 : index
    %c0_59 = arith.constant 0 : index
    %64 = vector.load %arg1[%c0_58, %c768, %c0_59] : memref<1x1024x128xbf16, #tpu.memory_space<vmem>>, vector<1x256x128xbf16>
    %65 = vector.shape_cast %64 : vector<1x256x128xbf16> to vector<256x128xbf16>
    %c0_60 = arith.constant 0 : index
    %c0_61 = arith.constant 0 : index
    %c0_62 = arith.constant 0 : index
    %66 = vector.load %arg2[%c0_60, %c0_61, %c0_62] : memref<1x128x128xbf16, #tpu.memory_space<vmem>>, vector<1x128x128xbf16>
    %67 = vector.shape_cast %66 : vector<1x128x128xbf16> to vector<128x128xbf16>
    %cst_63 = arith.constant dense<0.000000e+00> : vector<256x128xf32>
    %68 = tpu.matmul %65, %67, %cst_63 {dimension_numbers = #tpu.dot_dimension_numbers<[1], [0], [0], [1], [0, 0, 1, 1], [], []>} : vector<256x128xbf16>, vector<128x128xbf16>, vector<256x128xf32> -> vector<256x128xf32>
    %69 = vector.broadcast %0 : vector<1x128xf32> to vector<256x128xf32>
    %70 = arith.addf %68, %69 : vector<256x128xf32>
    %cst_64 = arith.constant 0.000000e+00 : f32
    %71 = vector.broadcast %cst_64 : f32 to vector<256x128xf32>
    %72 = arith.maximumf %70, %71 : vector<256x128xf32>
    %73 = vector.shape_cast %72 : vector<256x128xf32> to vector<4x64x128xf32>
    %74 = vector.extract_strided_slice %73 {offsets = [0, 0, 0], sizes = [4, 32, 128], strides = [1, 1, 1]} : vector<4x64x128xf32> to vector<4x32x128xf32>
    %75 = vector.extract_strided_slice %73 {offsets = [0, 32, 0], sizes = [4, 32, 128], strides = [1, 1, 1]} : vector<4x64x128xf32> to vector<4x32x128xf32>
    %76 = arith.maximumf %74, %75 : vector<4x32x128xf32>
    %c0_65 = arith.constant 0 : index
    %c0_66 = arith.constant 0 : index
    %c0_67 = arith.constant 0 : index
    %77 = vector.load %arg5[%c0_65, %c0_66, %c0_67] : memref<4x32x128xf32, #tpu.memory_space<vmem>>, vector<4x32x128xf32>
    tpu.vector_store %arg5[%c0_65, %c0_66, %c0_67], %76 {strides = array<i32>} : memref<4x32x128xf32, #tpu.memory_space<vmem>>, vector<4x32x128xf32>,
    %c0_68 = arith.constant 0 : index
    %c0_69 = arith.constant 0 : index
    %c0_70 = arith.constant 0 : index
    %78 = tpu.strided_load %arg5[%c0_68, %c0_69, %c0_70] {strides = array<i32: 1, 2, 1>} : memref<4x32x128xf32, #tpu.memory_space<vmem>>, vector<4x16x128xf32>
    %c0_71 = arith.constant 0 : index
    %c1_72 = arith.constant 1 : index
    %c0_73 = arith.constant 0 : index
    %79 = tpu.strided_load %arg5[%c0_71, %c1_72, %c0_73] {strides = array<i32: 1, 2, 1>} : memref<4x32x128xf32, #tpu.memory_space<vmem>>, vector<4x16x128xf32>
    %80 = arith.maximumf %78, %79 : vector<4x16x128xf32>
    %81 = arith.truncf %80 : vector<4x16x128xf32> to vector<4x16x128xbf16>
    %c0_74 = arith.constant 0 : index
    %c12 = arith.constant 12 : index
    %c0_75 = arith.constant 0 : index
    %c0_76 = arith.constant 0 : index
    %82 = vector.load %arg4[%c0_74, %c12, %c0_75, %c0_76] : memref<1x16x16x128xbf16, #tpu.memory_space<vmem>>, vector<1x4x16x128xbf16>
    %83 = vector.shape_cast %82 : vector<1x4x16x128xbf16> to vector<4x16x128xbf16>
    %84 = vector.shape_cast %81 : vector<4x16x128xbf16> to vector<1x4x16x128xbf16>
    tpu.vector_store %arg4[%c0_74, %c12, %c0_75, %c0_76], %84 {strides = array<i32>} : memref<1x16x16x128xbf16, #tpu.memory_space<vmem>>, vector<1x4x16x128xbf16>,
    return
  }
  func.func @transform_0(%arg0: i32) -> (i32, i32, i32) {
    %c0_i32 = arith.constant 0 : i32
    %c0_i32_0 = arith.constant 0 : i32
    %c0_i32_1 = arith.constant 0 : i32
    return %arg0, %c0_i32, %c0_i32_0 : i32, i32, i32
  }
  func.func @transform_1(%arg0: i32) -> (i32, i32, i32) {
    %c0_i32 = arith.constant 0 : i32
    %c0_i32_0 = arith.constant 0 : i32
    %c0_i32_1 = arith.constant 0 : i32
    %c0_i32_2 = arith.constant 0 : i32
    return %c0_i32, %c0_i32_0, %c0_i32_1 : i32, i32, i32
  }
  func.func @transform_2(%arg0: i32) -> (i32, i32) {
    %c0_i32 = arith.constant 0 : i32
    %c0_i32_0 = arith.constant 0 : i32
    %c0_i32_1 = arith.constant 0 : i32
    return %c0_i32, %c0_i32_0 : i32, i32
  }
  func.func @transform_3(%arg0: i32) -> (i32, i32, i32, i32) {
    %c0_i32 = arith.constant 0 : i32
    %c0_i32_0 = arith.constant 0 : i32
    %c0_i32_1 = arith.constant 0 : i32
    %c0_i32_2 = arith.constant 0 : i32
    return %arg0, %c0_i32, %c0_i32_0, %c0_i32_1 : i32, i32, i32, i32
  }
}

module attributes {stable_mosaic.version = 11 : i64} {
  func.func @_conv_kernel(%arg0: i32, %arg1: memref<1x256x128xbf16, #tpu.memory_space<vmem>>, %arg2: memref<1x128x128xbf16, #tpu.memory_space<vmem>>, %arg3: memref<1x128xf32, #tpu.memory_space<vmem>>, %arg4: memref<1x256x128xbf16, #tpu.memory_space<vmem>>, %arg5: memref<8x16x128xf32, #tpu.memory_space<vmem>>) attributes {dimension_semantics = [#tpu.dimension_semantics<parallel>], iteration_bounds = array<i64: 2>, scalar_prefetch = 0 : i64, scratch_operands = 1 : i64, tpu.core_type = #tpu.core_type<tc>, window_params = [{transform_indices = @transform_0, window_bounds = array<i64: 1, 256, 128>}, {pipeline_mode = #tpu.pipeline_mode<synchronous>, transform_indices = @transform_1, window_bounds = array<i64: 1, 128, 128>}, {pipeline_mode = #tpu.pipeline_mode<synchronous>, transform_indices = @transform_2, window_bounds = array<i64: 1, 128>}, {transform_indices = @transform_3, window_bounds = array<i64: 1, 256, 128>}]} {
    %c0 = arith.constant 0 : index
    %c0_0 = arith.constant 0 : index
    %0 = vector.load %arg3[%c0, %c0_0] : memref<1x128xf32, #tpu.memory_space<vmem>>, vector<1x128xf32>
    %c0_1 = arith.constant 0 : index
    %c0_2 = arith.constant 0 : index
    %c0_3 = arith.constant 0 : index
    %1 = vector.load %arg1[%c0_1, %c0_2, %c0_3] : memref<1x256x128xbf16, #tpu.memory_space<vmem>>, vector<1x256x128xbf16>
    %2 = vector.shape_cast %1 : vector<1x256x128xbf16> to vector<256x128xbf16>
    %c0_4 = arith.constant 0 : index
    %c0_5 = arith.constant 0 : index
    %c0_6 = arith.constant 0 : index
    %3 = vector.load %arg2[%c0_4, %c0_5, %c0_6] : memref<1x128x128xbf16, #tpu.memory_space<vmem>>, vector<1x128x128xbf16>
    %4 = vector.shape_cast %3 : vector<1x128x128xbf16> to vector<128x128xbf16>
    %cst = arith.constant dense<0.000000e+00> : vector<256x128xf32>
    %5 = tpu.matmul %2, %4, %cst {dimension_numbers = #tpu.dot_dimension_numbers<[1], [0], [0], [1], [0, 0, 1, 1], [], []>} : vector<256x128xbf16>, vector<128x128xbf16>, vector<256x128xf32> -> vector<256x128xf32>
    %6 = vector.broadcast %0 : vector<1x128xf32> to vector<256x128xf32>
    %7 = arith.addf %5, %6 : vector<256x128xf32>
    %cst_7 = arith.constant 0.000000e+00 : f32
    %8 = vector.broadcast %cst_7 : f32 to vector<256x128xf32>
    %9 = arith.maximumf %7, %8 : vector<256x128xf32>
    %10 = arith.truncf %9 : vector<256x128xf32> to vector<256x128xbf16>
    %c0_8 = arith.constant 0 : index
    %c0_9 = arith.constant 0 : index
    %c0_10 = arith.constant 0 : index
    %11 = vector.load %arg4[%c0_8, %c0_9, %c0_10] : memref<1x256x128xbf16, #tpu.memory_space<vmem>>, vector<1x256x128xbf16>
    %12 = vector.shape_cast %11 : vector<1x256x128xbf16> to vector<256x128xbf16>
    %13 = vector.shape_cast %10 : vector<256x128xbf16> to vector<1x256x128xbf16>
    tpu.vector_store %arg4[%c0_8, %c0_9, %c0_10], %13 {strides = array<i32>} : memref<1x256x128xbf16, #tpu.memory_space<vmem>>, vector<1x256x128xbf16>,
    return
  }
  func.func @transform_0(%arg0: i32) -> (i32, i32, i32) {
    %c0_i32 = arith.constant 0 : i32
    %c0_i32_0 = arith.constant 0 : i32
    %c0_i32_1 = arith.constant 0 : i32
    return %arg0, %c0_i32, %c0_i32_0 : i32, i32, i32
  }
  func.func @transform_1(%arg0: i32) -> (i32, i32, i32) {
    %c0_i32 = arith.constant 0 : i32
    %c0_i32_0 = arith.constant 0 : i32
    %c0_i32_1 = arith.constant 0 : i32
    %c0_i32_2 = arith.constant 0 : i32
    return %c0_i32, %c0_i32_0, %c0_i32_1 : i32, i32, i32
  }
  func.func @transform_2(%arg0: i32) -> (i32, i32) {
    %c0_i32 = arith.constant 0 : i32
    %c0_i32_0 = arith.constant 0 : i32
    %c0_i32_1 = arith.constant 0 : i32
    return %c0_i32, %c0_i32_0 : i32, i32
  }
  func.func @transform_3(%arg0: i32) -> (i32, i32, i32) {
    %c0_i32 = arith.constant 0 : i32
    %c0_i32_0 = arith.constant 0 : i32
    %c0_i32_1 = arith.constant 0 : i32
    return %arg0, %c0_i32, %c0_i32_0 : i32, i32, i32
  }
}

module attributes {stable_mosaic.version = 11 : i64} {
  func.func @_conv_kernel(%arg0: i32, %arg1: memref<1x288x128xbf16, #tpu.memory_space<vmem>>, %arg2: memref<3x128x128xbf16, #tpu.memory_space<vmem>>, %arg3: memref<1x128xf32, #tpu.memory_space<vmem>>, %arg4: memref<1x8x8x128xbf16, #tpu.memory_space<vmem>>, %arg5: memref<8x16x128xf32, #tpu.memory_space<vmem>>) attributes {dimension_semantics = [#tpu.dimension_semantics<parallel>], iteration_bounds = array<i64: 2>, scalar_prefetch = 0 : i64, scratch_operands = 1 : i64, tpu.core_type = #tpu.core_type<tc>, window_params = [{transform_indices = @transform_0, window_bounds = array<i64: 1, 288, 128>}, {pipeline_mode = #tpu.pipeline_mode<synchronous>, transform_indices = @transform_1, window_bounds = array<i64: 3, 128, 128>}, {pipeline_mode = #tpu.pipeline_mode<synchronous>, transform_indices = @transform_2, window_bounds = array<i64: 1, 128>}, {transform_indices = @transform_3, window_bounds = array<i64: 1, 8, 8, 128>}]} {
    %c0 = arith.constant 0 : index
    %c0_0 = arith.constant 0 : index
    %0 = vector.load %arg3[%c0, %c0_0] : memref<1x128xf32, #tpu.memory_space<vmem>>, vector<1x128xf32>
    %c0_1 = arith.constant 0 : index
    %c0_2 = arith.constant 0 : index
    %c0_3 = arith.constant 0 : index
    %1 = vector.load %arg1[%c0_1, %c0_2, %c0_3] : memref<1x288x128xbf16, #tpu.memory_space<vmem>>, vector<1x256x128xbf16>
    %2 = vector.shape_cast %1 : vector<1x256x128xbf16> to vector<256x128xbf16>
    %c0_4 = arith.constant 0 : index
    %c0_5 = arith.constant 0 : index
    %c0_6 = arith.constant 0 : index
    %3 = vector.load %arg2[%c0_4, %c0_5, %c0_6] : memref<3x128x128xbf16, #tpu.memory_space<vmem>>, vector<1x128x128xbf16>
    %4 = vector.shape_cast %3 : vector<1x128x128xbf16> to vector<128x128xbf16>
    %cst = arith.constant dense<0.000000e+00> : vector<256x128xf32>
    %5 = tpu.matmul %2, %4, %cst {dimension_numbers = #tpu.dot_dimension_numbers<[1], [0], [0], [1], [0, 0, 1, 1], [], []>} : vector<256x128xbf16>, vector<128x128xbf16>, vector<256x128xf32> -> vector<256x128xf32>
    %c0_7 = arith.constant 0 : index
    %c16 = arith.constant 16 : index
    %c0_8 = arith.constant 0 : index
    %6 = vector.load %arg1[%c0_7, %c16, %c0_8] : memref<1x288x128xbf16, #tpu.memory_space<vmem>>, vector<1x256x128xbf16>
    %7 = vector.shape_cast %6 : vector<1x256x128xbf16> to vector<256x128xbf16>
    %c1 = arith.constant 1 : index
    %c0_9 = arith.constant 0 : index
    %c0_10 = arith.constant 0 : index
    %8 = vector.load %arg2[%c1, %c0_9, %c0_10] : memref<3x128x128xbf16, #tpu.memory_space<vmem>>, vector<1x128x128xbf16>
    %9 = vector.shape_cast %8 : vector<1x128x128xbf16> to vector<128x128xbf16>
    %cst_11 = arith.constant dense<0.000000e+00> : vector<256x128xf32>
    %10 = tpu.matmul %7, %9, %cst_11 {dimension_numbers = #tpu.dot_dimension_numbers<[1], [0], [0], [1], [0, 0, 1, 1], [], []>} : vector<256x128xbf16>, vector<128x128xbf16>, vector<256x128xf32> -> vector<256x128xf32>
    %11 = arith.addf %5, %10 : vector<256x128xf32>
    %c0_12 = arith.constant 0 : index
    %c32 = arith.constant 32 : index
    %c0_13 = arith.constant 0 : index
    %12 = vector.load %arg1[%c0_12, %c32, %c0_13] : memref<1x288x128xbf16, #tpu.memory_space<vmem>>, vector<1x256x128xbf16>
    %13 = vector.shape_cast %12 : vector<1x256x128xbf16> to vector<256x128xbf16>
    %c2 = arith.constant 2 : index
    %c0_14 = arith.constant 0 : index
    %c0_15 = arith.constant 0 : index
    %14 = vector.load %arg2[%c2, %c0_14, %c0_15] : memref<3x128x128xbf16, #tpu.memory_space<vmem>>, vector<1x128x128xbf16>
    %15 = vector.shape_cast %14 : vector<1x128x128xbf16> to vector<128x128xbf16>
    %cst_16 = arith.constant dense<0.000000e+00> : vector<256x128xf32>
    %16 = tpu.matmul %13, %15, %cst_16 {dimension_numbers = #tpu.dot_dimension_numbers<[1], [0], [0], [1], [0, 0, 1, 1], [], []>} : vector<256x128xbf16>, vector<128x128xbf16>, vector<256x128xf32> -> vector<256x128xf32>
    %17 = arith.addf %11, %16 : vector<256x128xf32>
    %18 = vector.broadcast %0 : vector<1x128xf32> to vector<256x128xf32>
    %19 = arith.addf %17, %18 : vector<256x128xf32>
    %cst_17 = arith.constant 0.000000e+00 : f32
    %20 = vector.broadcast %cst_17 : f32 to vector<256x128xf32>
    %21 = arith.maximumf %19, %20 : vector<256x128xf32>
    %22 = vector.shape_cast %21 : vector<256x128xf32> to vector<8x32x128xf32>
    %23 = vector.extract_strided_slice %22 {offsets = [0, 0, 0], sizes = [8, 16, 128], strides = [1, 1, 1]} : vector<8x32x128xf32> to vector<8x16x128xf32>
    %24 = vector.extract_strided_slice %22 {offsets = [0, 16, 0], sizes = [8, 16, 128], strides = [1, 1, 1]} : vector<8x32x128xf32> to vector<8x16x128xf32>
    %25 = arith.maximumf %23, %24 : vector<8x16x128xf32>
    %c0_18 = arith.constant 0 : index
    %c0_19 = arith.constant 0 : index
    %c0_20 = arith.constant 0 : index
    %26 = vector.load %arg5[%c0_18, %c0_19, %c0_20] : memref<8x16x128xf32, #tpu.memory_space<vmem>>, vector<8x16x128xf32>
    tpu.vector_store %arg5[%c0_18, %c0_19, %c0_20], %25 {strides = array<i32>} : memref<8x16x128xf32, #tpu.memory_space<vmem>>, vector<8x16x128xf32>,
    %c0_21 = arith.constant 0 : index
    %c0_22 = arith.constant 0 : index
    %c0_23 = arith.constant 0 : index
    %27 = tpu.strided_load %arg5[%c0_21, %c0_22, %c0_23] {strides = array<i32: 1, 2, 1>} : memref<8x16x128xf32, #tpu.memory_space<vmem>>, vector<8x8x128xf32>
    %c0_24 = arith.constant 0 : index
    %c1_25 = arith.constant 1 : index
    %c0_26 = arith.constant 0 : index
    %28 = tpu.strided_load %arg5[%c0_24, %c1_25, %c0_26] {strides = array<i32: 1, 2, 1>} : memref<8x16x128xf32, #tpu.memory_space<vmem>>, vector<8x8x128xf32>
    %29 = arith.maximumf %27, %28 : vector<8x8x128xf32>
    %30 = arith.truncf %29 : vector<8x8x128xf32> to vector<8x8x128xbf16>
    %c0_27 = arith.constant 0 : index
    %c0_28 = arith.constant 0 : index
    %c0_29 = arith.constant 0 : index
    %c0_30 = arith.constant 0 : index
    %31 = vector.load %arg4[%c0_27, %c0_28, %c0_29, %c0_30] : memref<1x8x8x128xbf16, #tpu.memory_space<vmem>>, vector<1x8x8x128xbf16>
    %32 = vector.shape_cast %31 : vector<1x8x8x128xbf16> to vector<8x8x128xbf16>
    %33 = vector.shape_cast %30 : vector<8x8x128xbf16> to vector<1x8x8x128xbf16>
    tpu.vector_store %arg4[%c0_27, %c0_28, %c0_29, %c0_30], %33 {strides = array<i32>} : memref<1x8x8x128xbf16, #tpu.memory_space<vmem>>, vector<1x8x8x128xbf16>,
    return
  }
  func.func @transform_0(%arg0: i32) -> (i32, i32, i32) {
    %c0_i32 = arith.constant 0 : i32
    %c0_i32_0 = arith.constant 0 : i32
    %c0_i32_1 = arith.constant 0 : i32
    return %arg0, %c0_i32, %c0_i32_0 : i32, i32, i32
  }
  func.func @transform_1(%arg0: i32) -> (i32, i32, i32) {
    %c0_i32 = arith.constant 0 : i32
    %c0_i32_0 = arith.constant 0 : i32
    %c0_i32_1 = arith.constant 0 : i32
    %c0_i32_2 = arith.constant 0 : i32
    return %c0_i32, %c0_i32_0, %c0_i32_1 : i32, i32, i32
  }
  func.func @transform_2(%arg0: i32) -> (i32, i32) {
    %c0_i32 = arith.constant 0 : i32
    %c0_i32_0 = arith.constant 0 : i32
    %c0_i32_1 = arith.constant 0 : i32
    return %c0_i32, %c0_i32_0 : i32, i32
  }
  func.func @transform_3(%arg0: i32) -> (i32, i32, i32, i32) {
    %c0_i32 = arith.constant 0 : i32
    %c0_i32_0 = arith.constant 0 : i32
    %c0_i32_1 = arith.constant 0 : i32
    %c0_i32_2 = arith.constant 0 : i32
    return %arg0, %c0_i32, %c0_i32_0, %c0_i32_1 : i32, i32, i32, i32
  }
}

module attributes {stable_mosaic.version = 11 : i64} {
  func.func @_conv_kernel(%arg0: i32, %arg1: memref<1x80x128xbf16, #tpu.memory_space<vmem>>, %arg2: memref<3x128x128xbf16, #tpu.memory_space<vmem>>, %arg3: memref<1x128xf32, #tpu.memory_space<vmem>>, %arg4: memref<1x64x128xbf16, #tpu.memory_space<vmem>>, %arg5: memref<4x8x128xf32, #tpu.memory_space<vmem>>) attributes {dimension_semantics = [#tpu.dimension_semantics<parallel>], iteration_bounds = array<i64: 2>, scalar_prefetch = 0 : i64, scratch_operands = 1 : i64, tpu.core_type = #tpu.core_type<tc>, window_params = [{transform_indices = @transform_0, window_bounds = array<i64: 1, 80, 128>}, {pipeline_mode = #tpu.pipeline_mode<synchronous>, transform_indices = @transform_1, window_bounds = array<i64: 3, 128, 128>}, {pipeline_mode = #tpu.pipeline_mode<synchronous>, transform_indices = @transform_2, window_bounds = array<i64: 1, 128>}, {transform_indices = @transform_3, window_bounds = array<i64: 1, 64, 128>}]} {
    %c0 = arith.constant 0 : index
    %c0_0 = arith.constant 0 : index
    %0 = vector.load %arg3[%c0, %c0_0] : memref<1x128xf32, #tpu.memory_space<vmem>>, vector<1x128xf32>
    %c0_1 = arith.constant 0 : index
    %c0_2 = arith.constant 0 : index
    %c0_3 = arith.constant 0 : index
    %1 = vector.load %arg1[%c0_1, %c0_2, %c0_3] : memref<1x80x128xbf16, #tpu.memory_space<vmem>>, vector<1x64x128xbf16>
    %2 = vector.shape_cast %1 : vector<1x64x128xbf16> to vector<64x128xbf16>
    %c0_4 = arith.constant 0 : index
    %c0_5 = arith.constant 0 : index
    %c0_6 = arith.constant 0 : index
    %3 = vector.load %arg2[%c0_4, %c0_5, %c0_6] : memref<3x128x128xbf16, #tpu.memory_space<vmem>>, vector<1x128x128xbf16>
    %4 = vector.shape_cast %3 : vector<1x128x128xbf16> to vector<128x128xbf16>
    %cst = arith.constant dense<0.000000e+00> : vector<64x128xf32>
    %5 = tpu.matmul %2, %4, %cst {dimension_numbers = #tpu.dot_dimension_numbers<[1], [0], [0], [1], [0, 0, 1, 1], [], []>} : vector<64x128xbf16>, vector<128x128xbf16>, vector<64x128xf32> -> vector<64x128xf32>
    %c0_7 = arith.constant 0 : index
    %c8 = arith.constant 8 : index
    %c0_8 = arith.constant 0 : index
    %6 = vector.load %arg1[%c0_7, %c8, %c0_8] : memref<1x80x128xbf16, #tpu.memory_space<vmem>>, vector<1x64x128xbf16>
    %7 = vector.shape_cast %6 : vector<1x64x128xbf16> to vector<64x128xbf16>
    %c1 = arith.constant 1 : index
    %c0_9 = arith.constant 0 : index
    %c0_10 = arith.constant 0 : index
    %8 = vector.load %arg2[%c1, %c0_9, %c0_10] : memref<3x128x128xbf16, #tpu.memory_space<vmem>>, vector<1x128x128xbf16>
    %9 = vector.shape_cast %8 : vector<1x128x128xbf16> to vector<128x128xbf16>
    %cst_11 = arith.constant dense<0.000000e+00> : vector<64x128xf32>
    %10 = tpu.matmul %7, %9, %cst_11 {dimension_numbers = #tpu.dot_dimension_numbers<[1], [0], [0], [1], [0, 0, 1, 1], [], []>} : vector<64x128xbf16>, vector<128x128xbf16>, vector<64x128xf32> -> vector<64x128xf32>
    %11 = arith.addf %5, %10 : vector<64x128xf32>
    %c0_12 = arith.constant 0 : index
    %c16 = arith.constant 16 : index
    %c0_13 = arith.constant 0 : index
    %12 = vector.load %arg1[%c0_12, %c16, %c0_13] : memref<1x80x128xbf16, #tpu.memory_space<vmem>>, vector<1x64x128xbf16>
    %13 = vector.shape_cast %12 : vector<1x64x128xbf16> to vector<64x128xbf16>
    %c2 = arith.constant 2 : index
    %c0_14 = arith.constant 0 : index
    %c0_15 = arith.constant 0 : index
    %14 = vector.load %arg2[%c2, %c0_14, %c0_15] : memref<3x128x128xbf16, #tpu.memory_space<vmem>>, vector<1x128x128xbf16>
    %15 = vector.shape_cast %14 : vector<1x128x128xbf16> to vector<128x128xbf16>
    %cst_16 = arith.constant dense<0.000000e+00> : vector<64x128xf32>
    %16 = tpu.matmul %13, %15, %cst_16 {dimension_numbers = #tpu.dot_dimension_numbers<[1], [0], [0], [1], [0, 0, 1, 1], [], []>} : vector<64x128xbf16>, vector<128x128xbf16>, vector<64x128xf32> -> vector<64x128xf32>
    %17 = arith.addf %11, %16 : vector<64x128xf32>
    %18 = vector.broadcast %0 : vector<1x128xf32> to vector<64x128xf32>
    %19 = arith.addf %17, %18 : vector<64x128xf32>
    %cst_17 = arith.constant 0.000000e+00 : f32
    %20 = vector.broadcast %cst_17 : f32 to vector<64x128xf32>
    %21 = arith.maximumf %19, %20 : vector<64x128xf32>
    %22 = arith.truncf %21 : vector<64x128xf32> to vector<64x128xbf16>
    %c0_18 = arith.constant 0 : index
    %c0_19 = arith.constant 0 : index
    %c0_20 = arith.constant 0 : index
    %23 = vector.load %arg4[%c0_18, %c0_19, %c0_20] : memref<1x64x128xbf16, #tpu.memory_space<vmem>>, vector<1x64x128xbf16>
    %24 = vector.shape_cast %23 : vector<1x64x128xbf16> to vector<64x128xbf16>
    %25 = vector.shape_cast %22 : vector<64x128xbf16> to vector<1x64x128xbf16>
    tpu.vector_store %arg4[%c0_18, %c0_19, %c0_20], %25 {strides = array<i32>} : memref<1x64x128xbf16, #tpu.memory_space<vmem>>, vector<1x64x128xbf16>,
    return
  }
  func.func @transform_0(%arg0: i32) -> (i32, i32, i32) {
    %c0_i32 = arith.constant 0 : i32
    %c0_i32_0 = arith.constant 0 : i32
    %c0_i32_1 = arith.constant 0 : i32
    return %arg0, %c0_i32, %c0_i32_0 : i32, i32, i32
  }
  func.func @transform_1(%arg0: i32) -> (i32, i32, i32) {
    %c0_i32 = arith.constant 0 : i32
    %c0_i32_0 = arith.constant 0 : i32
    %c0_i32_1 = arith.constant 0 : i32
    %c0_i32_2 = arith.constant 0 : i32
    return %c0_i32, %c0_i32_0, %c0_i32_1 : i32, i32, i32
  }
  func.func @transform_2(%arg0: i32) -> (i32, i32) {
    %c0_i32 = arith.constant 0 : i32
    %c0_i32_0 = arith.constant 0 : i32
    %c0_i32_1 = arith.constant 0 : i32
    return %c0_i32, %c0_i32_0 : i32, i32
  }
  func.func @transform_3(%arg0: i32) -> (i32, i32, i32) {
    %c0_i32 = arith.constant 0 : i32
    %c0_i32_0 = arith.constant 0 : i32
    %c0_i32_1 = arith.constant 0 : i32
    return %arg0, %c0_i32, %c0_i32_0 : i32, i32, i32
  }
}

module attributes {stable_mosaic.version = 11 : i64} {
  func.func @_conv_kernel(%arg0: i32, %arg1: memref<1x80x128xbf16, #tpu.memory_space<vmem>>, %arg2: memref<3x128x128xbf16, #tpu.memory_space<vmem>>, %arg3: memref<1x128xf32, #tpu.memory_space<vmem>>, %arg4: memref<1x4x4x128xbf16, #tpu.memory_space<vmem>>, %arg5: memref<4x8x128xf32, #tpu.memory_space<vmem>>) attributes {dimension_semantics = [#tpu.dimension_semantics<parallel>], iteration_bounds = array<i64: 2>, scalar_prefetch = 0 : i64, scratch_operands = 1 : i64, tpu.core_type = #tpu.core_type<tc>, window_params = [{transform_indices = @transform_0, window_bounds = array<i64: 1, 80, 128>}, {pipeline_mode = #tpu.pipeline_mode<synchronous>, transform_indices = @transform_1, window_bounds = array<i64: 3, 128, 128>}, {pipeline_mode = #tpu.pipeline_mode<synchronous>, transform_indices = @transform_2, window_bounds = array<i64: 1, 128>}, {transform_indices = @transform_3, window_bounds = array<i64: 1, 4, 4, 128>}]} {
    %c0 = arith.constant 0 : index
    %c0_0 = arith.constant 0 : index
    %0 = vector.load %arg3[%c0, %c0_0] : memref<1x128xf32, #tpu.memory_space<vmem>>, vector<1x128xf32>
    %c0_1 = arith.constant 0 : index
    %c0_2 = arith.constant 0 : index
    %c0_3 = arith.constant 0 : index
    %1 = vector.load %arg1[%c0_1, %c0_2, %c0_3] : memref<1x80x128xbf16, #tpu.memory_space<vmem>>, vector<1x64x128xbf16>
    %2 = vector.shape_cast %1 : vector<1x64x128xbf16> to vector<64x128xbf16>
    %c0_4 = arith.constant 0 : index
    %c0_5 = arith.constant 0 : index
    %c0_6 = arith.constant 0 : index
    %3 = vector.load %arg2[%c0_4, %c0_5, %c0_6] : memref<3x128x128xbf16, #tpu.memory_space<vmem>>, vector<1x128x128xbf16>
    %4 = vector.shape_cast %3 : vector<1x128x128xbf16> to vector<128x128xbf16>
    %cst = arith.constant dense<0.000000e+00> : vector<64x128xf32>
    %5 = tpu.matmul %2, %4, %cst {dimension_numbers = #tpu.dot_dimension_numbers<[1], [0], [0], [1], [0, 0, 1, 1], [], []>} : vector<64x128xbf16>, vector<128x128xbf16>, vector<64x128xf32> -> vector<64x128xf32>
    %c0_7 = arith.constant 0 : index
    %c8 = arith.constant 8 : index
    %c0_8 = arith.constant 0 : index
    %6 = vector.load %arg1[%c0_7, %c8, %c0_8] : memref<1x80x128xbf16, #tpu.memory_space<vmem>>, vector<1x64x128xbf16>
    %7 = vector.shape_cast %6 : vector<1x64x128xbf16> to vector<64x128xbf16>
    %c1 = arith.constant 1 : index
    %c0_9 = arith.constant 0 : index
    %c0_10 = arith.constant 0 : index
    %8 = vector.load %arg2[%c1, %c0_9, %c0_10] : memref<3x128x128xbf16, #tpu.memory_space<vmem>>, vector<1x128x128xbf16>
    %9 = vector.shape_cast %8 : vector<1x128x128xbf16> to vector<128x128xbf16>
    %cst_11 = arith.constant dense<0.000000e+00> : vector<64x128xf32>
    %10 = tpu.matmul %7, %9, %cst_11 {dimension_numbers = #tpu.dot_dimension_numbers<[1], [0], [0], [1], [0, 0, 1, 1], [], []>} : vector<64x128xbf16>, vector<128x128xbf16>, vector<64x128xf32> -> vector<64x128xf32>
    %11 = arith.addf %5, %10 : vector<64x128xf32>
    %c0_12 = arith.constant 0 : index
    %c16 = arith.constant 16 : index
    %c0_13 = arith.constant 0 : index
    %12 = vector.load %arg1[%c0_12, %c16, %c0_13] : memref<1x80x128xbf16, #tpu.memory_space<vmem>>, vector<1x64x128xbf16>
    %13 = vector.shape_cast %12 : vector<1x64x128xbf16> to vector<64x128xbf16>
    %c2 = arith.constant 2 : index
    %c0_14 = arith.constant 0 : index
    %c0_15 = arith.constant 0 : index
    %14 = vector.load %arg2[%c2, %c0_14, %c0_15] : memref<3x128x128xbf16, #tpu.memory_space<vmem>>, vector<1x128x128xbf16>
    %15 = vector.shape_cast %14 : vector<1x128x128xbf16> to vector<128x128xbf16>
    %cst_16 = arith.constant dense<0.000000e+00> : vector<64x128xf32>
    %16 = tpu.matmul %13, %15, %cst_16 {dimension_numbers = #tpu.dot_dimension_numbers<[1], [0], [0], [1], [0, 0, 1, 1], [], []>} : vector<64x128xbf16>, vector<128x128xbf16>, vector<64x128xf32> -> vector<64x128xf32>
    %17 = arith.addf %11, %16 : vector<64x128xf32>
    %18 = vector.broadcast %0 : vector<1x128xf32> to vector<64x128xf32>
    %19 = arith.addf %17, %18 : vector<64x128xf32>
    %cst_17 = arith.constant 0.000000e+00 : f32
    %20 = vector.broadcast %cst_17 : f32 to vector<64x128xf32>
    %21 = arith.maximumf %19, %20 : vector<64x128xf32>
    %22 = vector.shape_cast %21 : vector<64x128xf32> to vector<4x16x128xf32>
    %23 = vector.extract_strided_slice %22 {offsets = [0, 0, 0], sizes = [4, 8, 128], strides = [1, 1, 1]} : vector<4x16x128xf32> to vector<4x8x128xf32>
    %24 = vector.extract_strided_slice %22 {offsets = [0, 8, 0], sizes = [4, 8, 128], strides = [1, 1, 1]} : vector<4x16x128xf32> to vector<4x8x128xf32>
    %25 = arith.maximumf %23, %24 : vector<4x8x128xf32>
    %c0_18 = arith.constant 0 : index
    %c0_19 = arith.constant 0 : index
    %c0_20 = arith.constant 0 : index
    %26 = vector.load %arg5[%c0_18, %c0_19, %c0_20] : memref<4x8x128xf32, #tpu.memory_space<vmem>>, vector<4x8x128xf32>
    tpu.vector_store %arg5[%c0_18, %c0_19, %c0_20], %25 {strides = array<i32>} : memref<4x8x128xf32, #tpu.memory_space<vmem>>, vector<4x8x128xf32>,
    %c0_21 = arith.constant 0 : index
    %c0_22 = arith.constant 0 : index
    %c0_23 = arith.constant 0 : index
    %27 = tpu.strided_load %arg5[%c0_21, %c0_22, %c0_23] {strides = array<i32: 1, 2, 1>} : memref<4x8x128xf32, #tpu.memory_space<vmem>>, vector<4x4x128xf32>
    %c0_24 = arith.constant 0 : index
    %c1_25 = arith.constant 1 : index
    %c0_26 = arith.constant 0 : index
    %28 = tpu.strided_load %arg5[%c0_24, %c1_25, %c0_26] {strides = array<i32: 1, 2, 1>} : memref<4x8x128xf32, #tpu.memory_space<vmem>>, vector<4x4x128xf32>
    %29 = arith.maximumf %27, %28 : vector<4x4x128xf32>
    %30 = arith.truncf %29 : vector<4x4x128xf32> to vector<4x4x128xbf16>
    %c0_27 = arith.constant 0 : index
    %c0_28 = arith.constant 0 : index
    %c0_29 = arith.constant 0 : index
    %c0_30 = arith.constant 0 : index
    %31 = vector.load %arg4[%c0_27, %c0_28, %c0_29, %c0_30] : memref<1x4x4x128xbf16, #tpu.memory_space<vmem>>, vector<1x4x4x128xbf16>
    %32 = vector.shape_cast %31 : vector<1x4x4x128xbf16> to vector<4x4x128xbf16>
    %33 = vector.shape_cast %30 : vector<4x4x128xbf16> to vector<1x4x4x128xbf16>
    tpu.vector_store %arg4[%c0_27, %c0_28, %c0_29, %c0_30], %33 {strides = array<i32>} : memref<1x4x4x128xbf16, #tpu.memory_space<vmem>>, vector<1x4x4x128xbf16>,
    return
  }
  func.func @transform_0(%arg0: i32) -> (i32, i32, i32) {
    %c0_i32 = arith.constant 0 : i32
    %c0_i32_0 = arith.constant 0 : i32
    %c0_i32_1 = arith.constant 0 : i32
    return %arg0, %c0_i32, %c0_i32_0 : i32, i32, i32
  }
  func.func @transform_1(%arg0: i32) -> (i32, i32, i32) {
    %c0_i32 = arith.constant 0 : i32
    %c0_i32_0 = arith.constant 0 : i32
    %c0_i32_1 = arith.constant 0 : i32
    %c0_i32_2 = arith.constant 0 : i32
    return %c0_i32, %c0_i32_0, %c0_i32_1 : i32, i32, i32
  }
  func.func @transform_2(%arg0: i32) -> (i32, i32) {
    %c0_i32 = arith.constant 0 : i32
    %c0_i32_0 = arith.constant 0 : i32
    %c0_i32_1 = arith.constant 0 : i32
    return %c0_i32, %c0_i32_0 : i32, i32
  }
  func.func @transform_3(%arg0: i32) -> (i32, i32, i32, i32) {
    %c0_i32 = arith.constant 0 : i32
    %c0_i32_0 = arith.constant 0 : i32
    %c0_i32_1 = arith.constant 0 : i32
    %c0_i32_2 = arith.constant 0 : i32
    return %arg0, %c0_i32, %c0_i32_0, %c0_i32_1 : i32, i32, i32, i32
  }
}

module attributes {stable_mosaic.version = 11 : i64} {
  func.func @_conv_kernel(%arg0: i32, %arg1: memref<1x24x128xbf16, #tpu.memory_space<vmem>>, %arg2: memref<3x128x128xbf16, #tpu.memory_space<vmem>>, %arg3: memref<1x128xf32, #tpu.memory_space<vmem>>, %arg4: memref<1x2x2x128xbf16, #tpu.memory_space<vmem>>, %arg5: memref<2x4x128xf32, #tpu.memory_space<vmem>>) attributes {dimension_semantics = [#tpu.dimension_semantics<parallel>], iteration_bounds = array<i64: 2>, scalar_prefetch = 0 : i64, scratch_operands = 1 : i64, tpu.core_type = #tpu.core_type<tc>, window_params = [{transform_indices = @transform_0, window_bounds = array<i64: 1, 24, 128>}, {pipeline_mode = #tpu.pipeline_mode<synchronous>, transform_indices = @transform_1, window_bounds = array<i64: 3, 128, 128>}, {pipeline_mode = #tpu.pipeline_mode<synchronous>, transform_indices = @transform_2, window_bounds = array<i64: 1, 128>}, {transform_indices = @transform_3, window_bounds = array<i64: 1, 2, 2, 128>}]} {
    %c0 = arith.constant 0 : index
    %c0_0 = arith.constant 0 : index
    %0 = vector.load %arg3[%c0, %c0_0] : memref<1x128xf32, #tpu.memory_space<vmem>>, vector<1x128xf32>
    %c0_1 = arith.constant 0 : index
    %c0_2 = arith.constant 0 : index
    %c0_3 = arith.constant 0 : index
    %1 = vector.load %arg1[%c0_1, %c0_2, %c0_3] : memref<1x24x128xbf16, #tpu.memory_space<vmem>>, vector<1x16x128xbf16>
    %2 = vector.shape_cast %1 : vector<1x16x128xbf16> to vector<16x128xbf16>
    %c0_4 = arith.constant 0 : index
    %c0_5 = arith.constant 0 : index
    %c0_6 = arith.constant 0 : index
    %3 = vector.load %arg2[%c0_4, %c0_5, %c0_6] : memref<3x128x128xbf16, #tpu.memory_space<vmem>>, vector<1x128x128xbf16>
    %4 = vector.shape_cast %3 : vector<1x128x128xbf16> to vector<128x128xbf16>
    %cst = arith.constant dense<0.000000e+00> : vector<16x128xf32>
    %5 = tpu.matmul %2, %4, %cst {dimension_numbers = #tpu.dot_dimension_numbers<[1], [0], [0], [1], [0, 0, 1, 1], [], []>} : vector<16x128xbf16>, vector<128x128xbf16>, vector<16x128xf32> -> vector<16x128xf32>
    %c0_7 = arith.constant 0 : index
    %c4 = arith.constant 4 : index
    %c0_8 = arith.constant 0 : index
    %6 = vector.load %arg1[%c0_7, %c4, %c0_8] : memref<1x24x128xbf16, #tpu.memory_space<vmem>>, vector<1x16x128xbf16>
    %7 = vector.shape_cast %6 : vector<1x16x128xbf16> to vector<16x128xbf16>
    %c1 = arith.constant 1 : index
    %c0_9 = arith.constant 0 : index
    %c0_10 = arith.constant 0 : index
    %8 = vector.load %arg2[%c1, %c0_9, %c0_10] : memref<3x128x128xbf16, #tpu.memory_space<vmem>>, vector<1x128x128xbf16>
    %9 = vector.shape_cast %8 : vector<1x128x128xbf16> to vector<128x128xbf16>
    %cst_11 = arith.constant dense<0.000000e+00> : vector<16x128xf32>
    %10 = tpu.matmul %7, %9, %cst_11 {dimension_numbers = #tpu.dot_dimension_numbers<[1], [0], [0], [1], [0, 0, 1, 1], [], []>} : vector<16x128xbf16>, vector<128x128xbf16>, vector<16x128xf32> -> vector<16x128xf32>
    %11 = arith.addf %5, %10 : vector<16x128xf32>
    %c0_12 = arith.constant 0 : index
    %c8 = arith.constant 8 : index
    %c0_13 = arith.constant 0 : index
    %12 = vector.load %arg1[%c0_12, %c8, %c0_13] : memref<1x24x128xbf16, #tpu.memory_space<vmem>>, vector<1x16x128xbf16>
    %13 = vector.shape_cast %12 : vector<1x16x128xbf16> to vector<16x128xbf16>
    %c2 = arith.constant 2 : index
    %c0_14 = arith.constant 0 : index
    %c0_15 = arith.constant 0 : index
    %14 = vector.load %arg2[%c2, %c0_14, %c0_15] : memref<3x128x128xbf16, #tpu.memory_space<vmem>>, vector<1x128x128xbf16>
    %15 = vector.shape_cast %14 : vector<1x128x128xbf16> to vector<128x128xbf16>
    %cst_16 = arith.constant dense<0.000000e+00> : vector<16x128xf32>
    %16 = tpu.matmul %13, %15, %cst_16 {dimension_numbers = #tpu.dot_dimension_numbers<[1], [0], [0], [1], [0, 0, 1, 1], [], []>} : vector<16x128xbf16>, vector<128x128xbf16>, vector<16x128xf32> -> vector<16x128xf32>
    %17 = arith.addf %11, %16 : vector<16x128xf32>
    %18 = vector.broadcast %0 : vector<1x128xf32> to vector<16x128xf32>
    %19 = arith.addf %17, %18 : vector<16x128xf32>
    %cst_17 = arith.constant 0.000000e+00 : f32
    %20 = vector.broadcast %cst_17 : f32 to vector<16x128xf32>
    %21 = arith.maximumf %19, %20 : vector<16x128xf32>
    %22 = vector.shape_cast %21 : vector<16x128xf32> to vector<2x8x128xf32>
    %23 = vector.extract_strided_slice %22 {offsets = [0, 0, 0], sizes = [2, 4, 128], strides = [1, 1, 1]} : vector<2x8x128xf32> to vector<2x4x128xf32>
    %24 = vector.extract_strided_slice %22 {offsets = [0, 4, 0], sizes = [2, 4, 128], strides = [1, 1, 1]} : vector<2x8x128xf32> to vector<2x4x128xf32>
    %25 = arith.maximumf %23, %24 : vector<2x4x128xf32>
    %c0_18 = arith.constant 0 : index
    %c0_19 = arith.constant 0 : index
    %c0_20 = arith.constant 0 : index
    %26 = vector.load %arg5[%c0_18, %c0_19, %c0_20] : memref<2x4x128xf32, #tpu.memory_space<vmem>>, vector<2x4x128xf32>
    tpu.vector_store %arg5[%c0_18, %c0_19, %c0_20], %25 {strides = array<i32>} : memref<2x4x128xf32, #tpu.memory_space<vmem>>, vector<2x4x128xf32>,
    %c0_21 = arith.constant 0 : index
    %c0_22 = arith.constant 0 : index
    %c0_23 = arith.constant 0 : index
    %27 = tpu.strided_load %arg5[%c0_21, %c0_22, %c0_23] {strides = array<i32: 1, 2, 1>} : memref<2x4x128xf32, #tpu.memory_space<vmem>>, vector<2x2x128xf32>
    %c0_24 = arith.constant 0 : index
    %c1_25 = arith.constant 1 : index
    %c0_26 = arith.constant 0 : index
    %28 = tpu.strided_load %arg5[%c0_24, %c1_25, %c0_26] {strides = array<i32: 1, 2, 1>} : memref<2x4x128xf32, #tpu.memory_space<vmem>>, vector<2x2x128xf32>
    %29 = arith.maximumf %27, %28 : vector<2x2x128xf32>
    %30 = arith.truncf %29 : vector<2x2x128xf32> to vector<2x2x128xbf16>
    %c0_27 = arith.constant 0 : index
    %c0_28 = arith.constant 0 : index
    %c0_29 = arith.constant 0 : index
    %c0_30 = arith.constant 0 : index
    %31 = vector.load %arg4[%c0_27, %c0_28, %c0_29, %c0_30] : memref<1x2x2x128xbf16, #tpu.memory_space<vmem>>, vector<1x2x2x128xbf16>
    %32 = vector.shape_cast %31 : vector<1x2x2x128xbf16> to vector<2x2x128xbf16>
    %33 = vector.shape_cast %30 : vector<2x2x128xbf16> to vector<1x2x2x128xbf16>
    tpu.vector_store %arg4[%c0_27, %c0_28, %c0_29, %c0_30], %33 {strides = array<i32>} : memref<1x2x2x128xbf16, #tpu.memory_space<vmem>>, vector<1x2x2x128xbf16>,
    return
  }
  func.func @transform_0(%arg0: i32) -> (i32, i32, i32) {
    %c0_i32 = arith.constant 0 : i32
    %c0_i32_0 = arith.constant 0 : i32
    %c0_i32_1 = arith.constant 0 : i32
    return %arg0, %c0_i32, %c0_i32_0 : i32, i32, i32
  }
  func.func @transform_1(%arg0: i32) -> (i32, i32, i32) {
    %c0_i32 = arith.constant 0 : i32
    %c0_i32_0 = arith.constant 0 : i32
    %c0_i32_1 = arith.constant 0 : i32
    %c0_i32_2 = arith.constant 0 : i32
    return %c0_i32, %c0_i32_0, %c0_i32_1 : i32, i32, i32
  }
  func.func @transform_2(%arg0: i32) -> (i32, i32) {
    %c0_i32 = arith.constant 0 : i32
    %c0_i32_0 = arith.constant 0 : i32
    %c0_i32_1 = arith.constant 0 : i32
    return %c0_i32, %c0_i32_0 : i32, i32
  }
  func.func @transform_3(%arg0: i32) -> (i32, i32, i32, i32) {
    %c0_i32 = arith.constant 0 : i32
    %c0_i32_0 = arith.constant 0 : i32
    %c0_i32_1 = arith.constant 0 : i32
    %c0_i32_2 = arith.constant 0 : i32
    return %arg0, %c0_i32, %c0_i32_0, %c0_i32_1 : i32, i32, i32, i32
  }
}

module attributes {stable_mosaic.version = 11 : i64} {
  func.func @_conv_kernel(%arg0: i32, %arg1: memref<1x24x128xbf16, #tpu.memory_space<vmem>>, %arg2: memref<3x128x128xbf16, #tpu.memory_space<vmem>>, %arg3: memref<1x128xf32, #tpu.memory_space<vmem>>, %arg4: memref<1x16x128xbf16, #tpu.memory_space<vmem>>, %arg5: memref<2x4x128xf32, #tpu.memory_space<vmem>>) attributes {dimension_semantics = [#tpu.dimension_semantics<parallel>], iteration_bounds = array<i64: 2>, scalar_prefetch = 0 : i64, scratch_operands = 1 : i64, tpu.core_type = #tpu.core_type<tc>, window_params = [{transform_indices = @transform_0, window_bounds = array<i64: 1, 24, 128>}, {pipeline_mode = #tpu.pipeline_mode<synchronous>, transform_indices = @transform_1, window_bounds = array<i64: 3, 128, 128>}, {pipeline_mode = #tpu.pipeline_mode<synchronous>, transform_indices = @transform_2, window_bounds = array<i64: 1, 128>}, {transform_indices = @transform_3, window_bounds = array<i64: 1, 16, 128>}]} {
    %c0 = arith.constant 0 : index
    %c0_0 = arith.constant 0 : index
    %0 = vector.load %arg3[%c0, %c0_0] : memref<1x128xf32, #tpu.memory_space<vmem>>, vector<1x128xf32>
    %c0_1 = arith.constant 0 : index
    %c0_2 = arith.constant 0 : index
    %c0_3 = arith.constant 0 : index
    %1 = vector.load %arg1[%c0_1, %c0_2, %c0_3] : memref<1x24x128xbf16, #tpu.memory_space<vmem>>, vector<1x16x128xbf16>
    %2 = vector.shape_cast %1 : vector<1x16x128xbf16> to vector<16x128xbf16>
    %c0_4 = arith.constant 0 : index
    %c0_5 = arith.constant 0 : index
    %c0_6 = arith.constant 0 : index
    %3 = vector.load %arg2[%c0_4, %c0_5, %c0_6] : memref<3x128x128xbf16, #tpu.memory_space<vmem>>, vector<1x128x128xbf16>
    %4 = vector.shape_cast %3 : vector<1x128x128xbf16> to vector<128x128xbf16>
    %cst = arith.constant dense<0.000000e+00> : vector<16x128xf32>
    %5 = tpu.matmul %2, %4, %cst {dimension_numbers = #tpu.dot_dimension_numbers<[1], [0], [0], [1], [0, 0, 1, 1], [], []>} : vector<16x128xbf16>, vector<128x128xbf16>, vector<16x128xf32> -> vector<16x128xf32>
    %c0_7 = arith.constant 0 : index
    %c4 = arith.constant 4 : index
    %c0_8 = arith.constant 0 : index
    %6 = vector.load %arg1[%c0_7, %c4, %c0_8] : memref<1x24x128xbf16, #tpu.memory_space<vmem>>, vector<1x16x128xbf16>
    %7 = vector.shape_cast %6 : vector<1x16x128xbf16> to vector<16x128xbf16>
    %c1 = arith.constant 1 : index
    %c0_9 = arith.constant 0 : index
    %c0_10 = arith.constant 0 : index
    %8 = vector.load %arg2[%c1, %c0_9, %c0_10] : memref<3x128x128xbf16, #tpu.memory_space<vmem>>, vector<1x128x128xbf16>
    %9 = vector.shape_cast %8 : vector<1x128x128xbf16> to vector<128x128xbf16>
    %cst_11 = arith.constant dense<0.000000e+00> : vector<16x128xf32>
    %10 = tpu.matmul %7, %9, %cst_11 {dimension_numbers = #tpu.dot_dimension_numbers<[1], [0], [0], [1], [0, 0, 1, 1], [], []>} : vector<16x128xbf16>, vector<128x128xbf16>, vector<16x128xf32> -> vector<16x128xf32>
    %11 = arith.addf %5, %10 : vector<16x128xf32>
    %c0_12 = arith.constant 0 : index
    %c8 = arith.constant 8 : index
    %c0_13 = arith.constant 0 : index
    %12 = vector.load %arg1[%c0_12, %c8, %c0_13] : memref<1x24x128xbf16, #tpu.memory_space<vmem>>, vector<1x16x128xbf16>
    %13 = vector.shape_cast %12 : vector<1x16x128xbf16> to vector<16x128xbf16>
    %c2 = arith.constant 2 : index
    %c0_14 = arith.constant 0 : index
    %c0_15 = arith.constant 0 : index
    %14 = vector.load %arg2[%c2, %c0_14, %c0_15] : memref<3x128x128xbf16, #tpu.memory_space<vmem>>, vector<1x128x128xbf16>
    %15 = vector.shape_cast %14 : vector<1x128x128xbf16> to vector<128x128xbf16>
    %cst_16 = arith.constant dense<0.000000e+00> : vector<16x128xf32>
    %16 = tpu.matmul %13, %15, %cst_16 {dimension_numbers = #tpu.dot_dimension_numbers<[1], [0], [0], [1], [0, 0, 1, 1], [], []>} : vector<16x128xbf16>, vector<128x128xbf16>, vector<16x128xf32> -> vector<16x128xf32>
    %17 = arith.addf %11, %16 : vector<16x128xf32>
    %18 = vector.broadcast %0 : vector<1x128xf32> to vector<16x128xf32>
    %19 = arith.addf %17, %18 : vector<16x128xf32>
    %cst_17 = arith.constant 0.000000e+00 : f32
    %20 = vector.broadcast %cst_17 : f32 to vector<16x128xf32>
    %21 = arith.maximumf %19, %20 : vector<16x128xf32>
    %22 = arith.truncf %21 : vector<16x128xf32> to vector<16x128xbf16>
    %c0_18 = arith.constant 0 : index
    %c0_19 = arith.constant 0 : index
    %c0_20 = arith.constant 0 : index
    %23 = vector.load %arg4[%c0_18, %c0_19, %c0_20] : memref<1x16x128xbf16, #tpu.memory_space<vmem>>, vector<1x16x128xbf16>
    %24 = vector.shape_cast %23 : vector<1x16x128xbf16> to vector<16x128xbf16>
    %25 = vector.shape_cast %22 : vector<16x128xbf16> to vector<1x16x128xbf16>
    tpu.vector_store %arg4[%c0_18, %c0_19, %c0_20], %25 {strides = array<i32>} : memref<1x16x128xbf16, #tpu.memory_space<vmem>>, vector<1x16x128xbf16>,
    return
  }
  func.func @transform_0(%arg0: i32) -> (i32, i32, i32) {
    %c0_i32 = arith.constant 0 : i32
    %c0_i32_0 = arith.constant 0 : i32
    %c0_i32_1 = arith.constant 0 : i32
    return %arg0, %c0_i32, %c0_i32_0 : i32, i32, i32
  }
  func.func @transform_1(%arg0: i32) -> (i32, i32, i32) {
    %c0_i32 = arith.constant 0 : i32
    %c0_i32_0 = arith.constant 0 : i32
    %c0_i32_1 = arith.constant 0 : i32
    %c0_i32_2 = arith.constant 0 : i32
    return %c0_i32, %c0_i32_0, %c0_i32_1 : i32, i32, i32
  }
  func.func @transform_2(%arg0: i32) -> (i32, i32) {
    %c0_i32 = arith.constant 0 : i32
    %c0_i32_0 = arith.constant 0 : i32
    %c0_i32_1 = arith.constant 0 : i32
    return %c0_i32, %c0_i32_0 : i32, i32
  }
  func.func @transform_3(%arg0: i32) -> (i32, i32, i32) {
    %c0_i32 = arith.constant 0 : i32
    %c0_i32_0 = arith.constant 0 : i32
    %c0_i32_1 = arith.constant 0 : i32
    return %arg0, %c0_i32, %c0_i32_0 : i32, i32, i32
  }
}

module attributes {stable_mosaic.version = 11 : i64} {
  func.func @_conv_kernel(%arg0: i32, %arg1: memref<1x8x128xbf16, #tpu.memory_space<vmem>>, %arg2: memref<3x128x128xbf16, #tpu.memory_space<vmem>>, %arg3: memref<1x128xf32, #tpu.memory_space<vmem>>, %arg4: memref<1x4x128xbf16, #tpu.memory_space<vmem>>, %arg5: memref<1x2x128xf32, #tpu.memory_space<vmem>>) attributes {dimension_semantics = [#tpu.dimension_semantics<parallel>], iteration_bounds = array<i64: 2>, scalar_prefetch = 0 : i64, scratch_operands = 1 : i64, tpu.core_type = #tpu.core_type<tc>, window_params = [{transform_indices = @transform_0, window_bounds = array<i64: 1, 8, 128>}, {pipeline_mode = #tpu.pipeline_mode<synchronous>, transform_indices = @transform_1, window_bounds = array<i64: 3, 128, 128>}, {pipeline_mode = #tpu.pipeline_mode<synchronous>, transform_indices = @transform_2, window_bounds = array<i64: 1, 128>}, {transform_indices = @transform_3, window_bounds = array<i64: 1, 4, 128>}]} {
    %c0 = arith.constant 0 : index
    %c0_0 = arith.constant 0 : index
    %0 = vector.load %arg3[%c0, %c0_0] : memref<1x128xf32, #tpu.memory_space<vmem>>, vector<1x128xf32>
    %c0_1 = arith.constant 0 : index
    %c0_2 = arith.constant 0 : index
    %c0_3 = arith.constant 0 : index
    %1 = vector.load %arg1[%c0_1, %c0_2, %c0_3] : memref<1x8x128xbf16, #tpu.memory_space<vmem>>, vector<1x4x128xbf16>
    %2 = vector.shape_cast %1 : vector<1x4x128xbf16> to vector<4x128xbf16>
    %c0_4 = arith.constant 0 : index
    %c0_5 = arith.constant 0 : index
    %c0_6 = arith.constant 0 : index
    %3 = vector.load %arg2[%c0_4, %c0_5, %c0_6] : memref<3x128x128xbf16, #tpu.memory_space<vmem>>, vector<1x128x128xbf16>
    %4 = vector.shape_cast %3 : vector<1x128x128xbf16> to vector<128x128xbf16>
    %cst = arith.constant dense<0.000000e+00> : vector<4x128xf32>
    %5 = tpu.matmul %2, %4, %cst {dimension_numbers = #tpu.dot_dimension_numbers<[1], [0], [0], [1], [0, 0, 1, 1], [], []>} : vector<4x128xbf16>, vector<128x128xbf16>, vector<4x128xf32> -> vector<4x128xf32>
    %c0_7 = arith.constant 0 : index
    %c2 = arith.constant 2 : index
    %c0_8 = arith.constant 0 : index
    %6 = vector.load %arg1[%c0_7, %c2, %c0_8] : memref<1x8x128xbf16, #tpu.memory_space<vmem>>, vector<1x4x128xbf16>
    %7 = vector.shape_cast %6 : vector<1x4x128xbf16> to vector<4x128xbf16>
    %c1 = arith.constant 1 : index
    %c0_9 = arith.constant 0 : index
    %c0_10 = arith.constant 0 : index
    %8 = vector.load %arg2[%c1, %c0_9, %c0_10] : memref<3x128x128xbf16, #tpu.memory_space<vmem>>, vector<1x128x128xbf16>
    %9 = vector.shape_cast %8 : vector<1x128x128xbf16> to vector<128x128xbf16>
    %cst_11 = arith.constant dense<0.000000e+00> : vector<4x128xf32>
    %10 = tpu.matmul %7, %9, %cst_11 {dimension_numbers = #tpu.dot_dimension_numbers<[1], [0], [0], [1], [0, 0, 1, 1], [], []>} : vector<4x128xbf16>, vector<128x128xbf16>, vector<4x128xf32> -> vector<4x128xf32>
    %11 = arith.addf %5, %10 : vector<4x128xf32>
    %c0_12 = arith.constant 0 : index
    %c4 = arith.constant 4 : index
    %c0_13 = arith.constant 0 : index
    %12 = vector.load %arg1[%c0_12, %c4, %c0_13] : memref<1x8x128xbf16, #tpu.memory_space<vmem>>, vector<1x4x128xbf16>
    %13 = vector.shape_cast %12 : vector<1x4x128xbf16> to vector<4x128xbf16>
    %c2_14 = arith.constant 2 : index
    %c0_15 = arith.constant 0 : index
    %c0_16 = arith.constant 0 : index
    %14 = vector.load %arg2[%c2_14, %c0_15, %c0_16] : memref<3x128x128xbf16, #tpu.memory_space<vmem>>, vector<1x128x128xbf16>
    %15 = vector.shape_cast %14 : vector<1x128x128xbf16> to vector<128x128xbf16>
    %cst_17 = arith.constant dense<0.000000e+00> : vector<4x128xf32>
    %16 = tpu.matmul %13, %15, %cst_17 {dimension_numbers = #tpu.dot_dimension_numbers<[1], [0], [0], [1], [0, 0, 1, 1], [], []>} : vector<4x128xbf16>, vector<128x128xbf16>, vector<4x128xf32> -> vector<4x128xf32>
    %17 = arith.addf %11, %16 : vector<4x128xf32>
    %18 = vector.broadcast %0 : vector<1x128xf32> to vector<4x128xf32>
    %19 = arith.addf %17, %18 : vector<4x128xf32>
    %cst_18 = arith.constant 0.000000e+00 : f32
    %20 = vector.broadcast %cst_18 : f32 to vector<4x128xf32>
    %21 = arith.maximumf %19, %20 : vector<4x128xf32>
    %22 = arith.truncf %21 : vector<4x128xf32> to vector<4x128xbf16>
    %c0_19 = arith.constant 0 : index
    %c0_20 = arith.constant 0 : index
    %c0_21 = arith.constant 0 : index
    %23 = vector.load %arg4[%c0_19, %c0_20, %c0_21] : memref<1x4x128xbf16, #tpu.memory_space<vmem>>, vector<1x4x128xbf16>
    %24 = vector.shape_cast %23 : vector<1x4x128xbf16> to vector<4x128xbf16>
    %25 = vector.shape_cast %22 : vector<4x128xbf16> to vector<1x4x128xbf16>
    tpu.vector_store %arg4[%c0_19, %c0_20, %c0_21], %25 {strides = array<i32>} : memref<1x4x128xbf16, #tpu.memory_space<vmem>>, vector<1x4x128xbf16>,
    return
  }
  func.func @transform_0(%arg0: i32) -> (i32, i32, i32) {
    %c0_i32 = arith.constant 0 : i32
    %c0_i32_0 = arith.constant 0 : i32
    %c0_i32_1 = arith.constant 0 : i32
    return %arg0, %c0_i32, %c0_i32_0 : i32, i32, i32
  }
  func.func @transform_1(%arg0: i32) -> (i32, i32, i32) {
    %c0_i32 = arith.constant 0 : i32
    %c0_i32_0 = arith.constant 0 : i32
    %c0_i32_1 = arith.constant 0 : i32
    %c0_i32_2 = arith.constant 0 : i32
    return %c0_i32, %c0_i32_0, %c0_i32_1 : i32, i32, i32
  }
  func.func @transform_2(%arg0: i32) -> (i32, i32) {
    %c0_i32 = arith.constant 0 : i32
    %c0_i32_0 = arith.constant 0 : i32
    %c0_i32_1 = arith.constant 0 : i32
    return %c0_i32, %c0_i32_0 : i32, i32
  }
  func.func @transform_3(%arg0: i32) -> (i32, i32, i32) {
    %c0_i32 = arith.constant 0 : i32
    %c0_i32_0 = arith.constant 0 : i32
    %c0_i32_1 = arith.constant 0 : i32
    return %arg0, %c0_i32, %c0_i32_0 : i32, i32, i32
  }
}

module attributes {stable_mosaic.version = 11 : i64} {
  func.func @_conv_kernel(%arg0: i32, %arg1: memref<1x8x256xbf16, #tpu.memory_space<vmem>>, %arg2: memref<3x256x128xbf16, #tpu.memory_space<vmem>>, %arg3: memref<1x128xf32, #tpu.memory_space<vmem>>, %arg4: memref<1x1x1x128xbf16, #tpu.memory_space<vmem>>, %arg5: memref<1x2x128xf32, #tpu.memory_space<vmem>>) attributes {dimension_semantics = [#tpu.dimension_semantics<parallel>], iteration_bounds = array<i64: 2>, scalar_prefetch = 0 : i64, scratch_operands = 1 : i64, tpu.core_type = #tpu.core_type<tc>, window_params = [{transform_indices = @transform_0, window_bounds = array<i64: 1, 8, 256>}, {pipeline_mode = #tpu.pipeline_mode<synchronous>, transform_indices = @transform_1, window_bounds = array<i64: 3, 256, 128>}, {pipeline_mode = #tpu.pipeline_mode<synchronous>, transform_indices = @transform_2, window_bounds = array<i64: 1, 128>}, {transform_indices = @transform_3, window_bounds = array<i64: 1, 1, 1, 128>}]} {
    %c0 = arith.constant 0 : index
    %c0_0 = arith.constant 0 : index
    %0 = vector.load %arg3[%c0, %c0_0] : memref<1x128xf32, #tpu.memory_space<vmem>>, vector<1x128xf32>
    %c0_1 = arith.constant 0 : index
    %c0_2 = arith.constant 0 : index
    %c0_3 = arith.constant 0 : index
    %1 = vector.load %arg1[%c0_1, %c0_2, %c0_3] : memref<1x8x256xbf16, #tpu.memory_space<vmem>>, vector<1x4x256xbf16>
    %2 = vector.shape_cast %1 : vector<1x4x256xbf16> to vector<4x256xbf16>
    %c0_4 = arith.constant 0 : index
    %c0_5 = arith.constant 0 : index
    %c0_6 = arith.constant 0 : index
    %3 = vector.load %arg2[%c0_4, %c0_5, %c0_6] : memref<3x256x128xbf16, #tpu.memory_space<vmem>>, vector<1x256x128xbf16>
    %4 = vector.shape_cast %3 : vector<1x256x128xbf16> to vector<256x128xbf16>
    %cst = arith.constant dense<0.000000e+00> : vector<4x128xf32>
    %5 = tpu.matmul %2, %4, %cst {dimension_numbers = #tpu.dot_dimension_numbers<[1], [0], [0], [1], [0, 0, 1, 1], [], []>} : vector<4x256xbf16>, vector<256x128xbf16>, vector<4x128xf32> -> vector<4x128xf32>
    %c0_7 = arith.constant 0 : index
    %c2 = arith.constant 2 : index
    %c0_8 = arith.constant 0 : index
    %6 = vector.load %arg1[%c0_7, %c2, %c0_8] : memref<1x8x256xbf16, #tpu.memory_space<vmem>>, vector<1x4x256xbf16>
    %7 = vector.shape_cast %6 : vector<1x4x256xbf16> to vector<4x256xbf16>
    %c1 = arith.constant 1 : index
    %c0_9 = arith.constant 0 : index
    %c0_10 = arith.constant 0 : index
    %8 = vector.load %arg2[%c1, %c0_9, %c0_10] : memref<3x256x128xbf16, #tpu.memory_space<vmem>>, vector<1x256x128xbf16>
    %9 = vector.shape_cast %8 : vector<1x256x128xbf16> to vector<256x128xbf16>
    %cst_11 = arith.constant dense<0.000000e+00> : vector<4x128xf32>
    %10 = tpu.matmul %7, %9, %cst_11 {dimension_numbers = #tpu.dot_dimension_numbers<[1], [0], [0], [1], [0, 0, 1, 1], [], []>} : vector<4x256xbf16>, vector<256x128xbf16>, vector<4x128xf32> -> vector<4x128xf32>
    %11 = arith.addf %5, %10 : vector<4x128xf32>
    %c0_12 = arith.constant 0 : index
    %c4 = arith.constant 4 : index
    %c0_13 = arith.constant 0 : index
    %12 = vector.load %arg1[%c0_12, %c4, %c0_13] : memref<1x8x256xbf16, #tpu.memory_space<vmem>>, vector<1x4x256xbf16>
    %13 = vector.shape_cast %12 : vector<1x4x256xbf16> to vector<4x256xbf16>
    %c2_14 = arith.constant 2 : index
    %c0_15 = arith.constant 0 : index
    %c0_16 = arith.constant 0 : index
    %14 = vector.load %arg2[%c2_14, %c0_15, %c0_16] : memref<3x256x128xbf16, #tpu.memory_space<vmem>>, vector<1x256x128xbf16>
    %15 = vector.shape_cast %14 : vector<1x256x128xbf16> to vector<256x128xbf16>
    %cst_17 = arith.constant dense<0.000000e+00> : vector<4x128xf32>
    %16 = tpu.matmul %13, %15, %cst_17 {dimension_numbers = #tpu.dot_dimension_numbers<[1], [0], [0], [1], [0, 0, 1, 1], [], []>} : vector<4x256xbf16>, vector<256x128xbf16>, vector<4x128xf32> -> vector<4x128xf32>
    %17 = arith.addf %11, %16 : vector<4x128xf32>
    %18 = vector.broadcast %0 : vector<1x128xf32> to vector<4x128xf32>
    %19 = arith.addf %17, %18 : vector<4x128xf32>
    %cst_18 = arith.constant 0.000000e+00 : f32
    %20 = vector.broadcast %cst_18 : f32 to vector<4x128xf32>
    %21 = arith.maximumf %19, %20 : vector<4x128xf32>
    %22 = vector.shape_cast %21 : vector<4x128xf32> to vector<1x4x128xf32>
    %23 = vector.extract_strided_slice %22 {offsets = [0, 0, 0], sizes = [1, 2, 128], strides = [1, 1, 1]} : vector<1x4x128xf32> to vector<1x2x128xf32>
    %24 = vector.extract_strided_slice %22 {offsets = [0, 2, 0], sizes = [1, 2, 128], strides = [1, 1, 1]} : vector<1x4x128xf32> to vector<1x2x128xf32>
    %25 = arith.maximumf %23, %24 : vector<1x2x128xf32>
    %c0_19 = arith.constant 0 : index
    %c0_20 = arith.constant 0 : index
    %c0_21 = arith.constant 0 : index
    %26 = vector.load %arg5[%c0_19, %c0_20, %c0_21] : memref<1x2x128xf32, #tpu.memory_space<vmem>>, vector<1x2x128xf32>
    tpu.vector_store %arg5[%c0_19, %c0_20, %c0_21], %25 {strides = array<i32>} : memref<1x2x128xf32, #tpu.memory_space<vmem>>, vector<1x2x128xf32>,
    %c0_22 = arith.constant 0 : index
    %c0_23 = arith.constant 0 : index
    %c0_24 = arith.constant 0 : index
    %27 = tpu.strided_load %arg5[%c0_22, %c0_23, %c0_24] {strides = array<i32: 1, 2, 1>} : memref<1x2x128xf32, #tpu.memory_space<vmem>>, vector<1x1x128xf32>
    %c0_25 = arith.constant 0 : index
    %c1_26 = arith.constant 1 : index
    %c0_27 = arith.constant 0 : index
    %28 = tpu.strided_load %arg5[%c0_25, %c1_26, %c0_27] {strides = array<i32: 1, 2, 1>} : memref<1x2x128xf32, #tpu.memory_space<vmem>>, vector<1x1x128xf32>
    %29 = arith.maximumf %27, %28 : vector<1x1x128xf32>
    %30 = arith.truncf %29 : vector<1x1x128xf32> to vector<1x1x128xbf16>
    %c0_28 = arith.constant 0 : index
    %c0_29 = arith.constant 0 : index
    %c0_30 = arith.constant 0 : index
    %c0_31 = arith.constant 0 : index
    %31 = vector.load %arg4[%c0_28, %c0_29, %c0_30, %c0_31] : memref<1x1x1x128xbf16, #tpu.memory_space<vmem>>, vector<1x1x1x128xbf16>
    %32 = vector.shape_cast %31 : vector<1x1x1x128xbf16> to vector<1x1x128xbf16>
    %33 = vector.shape_cast %30 : vector<1x1x128xbf16> to vector<1x1x1x128xbf16>
    tpu.vector_store %arg4[%c0_28, %c0_29, %c0_30, %c0_31], %33 {strides = array<i32>} : memref<1x1x1x128xbf16, #tpu.memory_space<vmem>>, vector<1x1x1x128xbf16>,
    return
  }
  func.func @transform_0(%arg0: i32) -> (i32, i32, i32) {
    %c0_i32 = arith.constant 0 : i32
    %c0_i32_0 = arith.constant 0 : i32
    %c0_i32_1 = arith.constant 0 : i32
    return %arg0, %c0_i32, %c0_i32_0 : i32, i32, i32
  }
  func.func @transform_1(%arg0: i32) -> (i32, i32, i32) {
    %c0_i32 = arith.constant 0 : i32
    %c0_i32_0 = arith.constant 0 : i32
    %c0_i32_1 = arith.constant 0 : i32
    %c0_i32_2 = arith.constant 0 : i32
    return %c0_i32, %c0_i32_0, %c0_i32_1 : i32, i32, i32
  }
  func.func @transform_2(%arg0: i32) -> (i32, i32) {
    %c0_i32 = arith.constant 0 : i32
    %c0_i32_0 = arith.constant 0 : i32
    %c0_i32_1 = arith.constant 0 : i32
    return %c0_i32, %c0_i32_0 : i32, i32
  }
  func.func @transform_3(%arg0: i32) -> (i32, i32, i32, i32) {
    %c0_i32 = arith.constant 0 : i32
    %c0_i32_0 = arith.constant 0 : i32
    %c0_i32_1 = arith.constant 0 : i32
    %c0_i32_2 = arith.constant 0 : i32
    return %arg0, %c0_i32, %c0_i32_0, %c0_i32_1 : i32, i32, i32, i32
  }
}

module attributes {stable_mosaic.version = 11 : i64} {
  func.func @_classifier_kernel(%arg0: i32, %arg1: memref<2x128xbf16, #tpu.memory_space<vmem>>, %arg2: memref<128x128xbf16, #tpu.memory_space<vmem>>, %arg3: memref<1x128xf32, #tpu.memory_space<vmem>>, %arg4: memref<128x128xbf16, #tpu.memory_space<vmem>>, %arg5: memref<1x128xf32, #tpu.memory_space<vmem>>, %arg6: memref<128x128xbf16, #tpu.memory_space<vmem>>, %arg7: memref<1x128xf32, #tpu.memory_space<vmem>>, %arg8: memref<2x128xf32, #tpu.memory_space<vmem>>) attributes {dimension_semantics = [#tpu.dimension_semantics<arbitrary>], iteration_bounds = array<i64: 1>, scalar_prefetch = 0 : i64, scratch_operands = 0 : i64, tpu.core_type = #tpu.core_type<tc>, window_params = [{pipeline_mode = #tpu.pipeline_mode<synchronous>, transform_indices = @transform_0, window_bounds = array<i64: 2, 128>}, {pipeline_mode = #tpu.pipeline_mode<synchronous>, transform_indices = @transform_1, window_bounds = array<i64: 128, 128>}, {pipeline_mode = #tpu.pipeline_mode<synchronous>, transform_indices = @transform_2, window_bounds = array<i64: 1, 128>}, {pipeline_mode = #tpu.pipeline_mode<synchronous>, transform_indices = @transform_3, window_bounds = array<i64: 128, 128>}, {pipeline_mode = #tpu.pipeline_mode<synchronous>, transform_indices = @transform_4, window_bounds = array<i64: 1, 128>}, {pipeline_mode = #tpu.pipeline_mode<synchronous>, transform_indices = @transform_5, window_bounds = array<i64: 128, 128>}, {pipeline_mode = #tpu.pipeline_mode<synchronous>, transform_indices = @transform_6, window_bounds = array<i64: 1, 128>}, {pipeline_mode = #tpu.pipeline_mode<synchronous>, transform_indices = @transform_7, window_bounds = array<i64: 2, 128>}]} {
    %c0 = arith.constant 0 : index
    %c0_0 = arith.constant 0 : index
    %0 = vector.load %arg1[%c0, %c0_0] : memref<2x128xbf16, #tpu.memory_space<vmem>>, vector<2x128xbf16>
    %c0_1 = arith.constant 0 : index
    %c0_2 = arith.constant 0 : index
    %1 = vector.load %arg2[%c0_1, %c0_2] : memref<128x128xbf16, #tpu.memory_space<vmem>>, vector<128x128xbf16>
    %cst = arith.constant dense<0.000000e+00> : vector<2x128xf32>
    %2 = tpu.matmul %0, %1, %cst {dimension_numbers = #tpu.dot_dimension_numbers<[1], [0], [0], [1], [0, 0, 1, 1], [], []>} : vector<2x128xbf16>, vector<128x128xbf16>, vector<2x128xf32> -> vector<2x128xf32>
    %c0_3 = arith.constant 0 : index
    %c0_4 = arith.constant 0 : index
    %3 = vector.load %arg3[%c0_3, %c0_4] : memref<1x128xf32, #tpu.memory_space<vmem>>, vector<1x128xf32>
    %4 = vector.broadcast %3 : vector<1x128xf32> to vector<2x128xf32>
    %5 = arith.addf %2, %4 : vector<2x128xf32>
    %cst_5 = arith.constant 0.000000e+00 : f32
    %6 = vector.broadcast %cst_5 : f32 to vector<2x128xf32>
    %7 = arith.maximumf %5, %6 : vector<2x128xf32>
    %8 = arith.truncf %7 : vector<2x128xf32> to vector<2x128xbf16>
    %c0_6 = arith.constant 0 : index
    %c0_7 = arith.constant 0 : index
    %9 = vector.load %arg4[%c0_6, %c0_7] : memref<128x128xbf16, #tpu.memory_space<vmem>>, vector<128x128xbf16>
    %cst_8 = arith.constant dense<0.000000e+00> : vector<2x128xf32>
    %10 = tpu.matmul %8, %9, %cst_8 {dimension_numbers = #tpu.dot_dimension_numbers<[1], [0], [0], [1], [0, 0, 1, 1], [], []>} : vector<2x128xbf16>, vector<128x128xbf16>, vector<2x128xf32> -> vector<2x128xf32>
    %c0_9 = arith.constant 0 : index
    %c0_10 = arith.constant 0 : index
    %11 = vector.load %arg5[%c0_9, %c0_10] : memref<1x128xf32, #tpu.memory_space<vmem>>, vector<1x128xf32>
    %12 = vector.broadcast %11 : vector<1x128xf32> to vector<2x128xf32>
    %13 = arith.addf %10, %12 : vector<2x128xf32>
    %cst_11 = arith.constant 0.000000e+00 : f32
    %14 = vector.broadcast %cst_11 : f32 to vector<2x128xf32>
    %15 = arith.maximumf %13, %14 : vector<2x128xf32>
    %16 = arith.truncf %15 : vector<2x128xf32> to vector<2x128xbf16>
    %c0_12 = arith.constant 0 : index
    %c0_13 = arith.constant 0 : index
    %17 = vector.load %arg6[%c0_12, %c0_13] : memref<128x128xbf16, #tpu.memory_space<vmem>>, vector<128x128xbf16>
    %cst_14 = arith.constant dense<0.000000e+00> : vector<2x128xf32>
    %18 = tpu.matmul %16, %17, %cst_14 {dimension_numbers = #tpu.dot_dimension_numbers<[1], [0], [0], [1], [0, 0, 1, 1], [], []>} : vector<2x128xbf16>, vector<128x128xbf16>, vector<2x128xf32> -> vector<2x128xf32>
    %c0_15 = arith.constant 0 : index
    %c0_16 = arith.constant 0 : index
    %19 = vector.load %arg7[%c0_15, %c0_16] : memref<1x128xf32, #tpu.memory_space<vmem>>, vector<1x128xf32>
    %20 = vector.broadcast %19 : vector<1x128xf32> to vector<2x128xf32>
    %21 = arith.addf %18, %20 : vector<2x128xf32>
    %c0_17 = arith.constant 0 : index
    %c0_18 = arith.constant 0 : index
    %22 = vector.load %arg8[%c0_17, %c0_18] : memref<2x128xf32, #tpu.memory_space<vmem>>, vector<2x128xf32>
    tpu.vector_store %arg8[%c0_17, %c0_18], %21 {strides = array<i32>} : memref<2x128xf32, #tpu.memory_space<vmem>>, vector<2x128xf32>,
    return
  }
  func.func @transform_0(%arg0: i32) -> (i32, i32) {
    %c0_i32 = arith.constant 0 : i32
    %c0_i32_0 = arith.constant 0 : i32
    %c0_i32_1 = arith.constant 0 : i32
    return %c0_i32, %c0_i32_0 : i32, i32
  }
  func.func @transform_1(%arg0: i32) -> (i32, i32) {
    %c0_i32 = arith.constant 0 : i32
    %c0_i32_0 = arith.constant 0 : i32
    %c0_i32_1 = arith.constant 0 : i32
    return %c0_i32, %c0_i32_0 : i32, i32
  }
  func.func @transform_2(%arg0: i32) -> (i32, i32) {
    %c0_i32 = arith.constant 0 : i32
    %c0_i32_0 = arith.constant 0 : i32
    %c0_i32_1 = arith.constant 0 : i32
    return %c0_i32, %c0_i32_0 : i32, i32
  }
  func.func @transform_3(%arg0: i32) -> (i32, i32) {
    %c0_i32 = arith.constant 0 : i32
    %c0_i32_0 = arith.constant 0 : i32
    %c0_i32_1 = arith.constant 0 : i32
    return %c0_i32, %c0_i32_0 : i32, i32
  }
  func.func @transform_4(%arg0: i32) -> (i32, i32) {
    %c0_i32 = arith.constant 0 : i32
    %c0_i32_0 = arith.constant 0 : i32
    %c0_i32_1 = arith.constant 0 : i32
    return %c0_i32, %c0_i32_0 : i32, i32
  }
  func.func @transform_5(%arg0: i32) -> (i32, i32) {
    %c0_i32 = arith.constant 0 : i32
    %c0_i32_0 = arith.constant 0 : i32
    %c0_i32_1 = arith.constant 0 : i32
    return %c0_i32, %c0_i32_0 : i32, i32
  }
  func.func @transform_6(%arg0: i32) -> (i32, i32) {
    %c0_i32 = arith.constant 0 : i32
    %c0_i32_0 = arith.constant 0 : i32
    %c0_i32_1 = arith.constant 0 : i32
    return %c0_i32, %c0_i32_0 : i32, i32
  }
  func.func @transform_7(%arg0: i32) -> (i32, i32) {
    %c0_i32 = arith.constant 0 : i32
    %c0_i32_0 = arith.constant 0 : i32
    %c0_i32_1 = arith.constant 0 : i32
    return %c0_i32, %c0_i32_0 : i32, i32
  }
}

</mosaic_0001>

<llo_original>
// kernel: vgg_forward.11
$region0: #{vgg_forward.11}
  #allocation0 [shape = 'u32[]', space=smem, size = 0x4, offset = 0x4, fixed_abs, tag = 'smem constant byte address 0x4 - core index']
  #allocation1 [shape = 'u32[144,128]{1,0:T(1,128)}', space=vmem, size = 0x12000, scoped, tag = 'internal scratch']
  #allocation2 [shape = 'f32[4,32,128]{2,1,0:T(8,128)}', space=vmem, size = 0x10000, scoped, tag = 'scratch operand']
  %s0 = inlined_call_operand.vmem [shape: bf16[2,1024,128], index: 0, kind: input, shape index: {}]
  %s1 = inlined_call_operand.vmem [shape: bf16[1,128,128], index: 1, kind: input, shape index: {}]
  %s2 = inlined_call_operand.vmem [shape: f32[1,128], index: 2, kind: input, shape index: {}]
  %s3 = inlined_call_operand.vmem [shape: bf16[2,1024,128], index: 3, kind: output, shape index: {}]
  %s4 = sld [smem:[#allocation0]]
  $region45: #{vgg_forward.11} parent=0
    _
  %s6 = ssub.s32 1, %s4
  %s7 = scalar_select 0, %s6, %s4
  loop: start=0, step=1, limit=4
  $region2: #{vgg_forward.11} parent=0 // loop_pre_header
    _
  $region3: #{vgg_forward.11} parent=0 // loop_header
    %s9 = sphi 0, %s13
    %p10 = scmp.ge.s32.totalorder %s9, 4
    %s19 = sphi 0, %s21
    %s22 = sphi 0, %s19
    %s23 = sphi 0, %s22
    %s39 = sphi 0, %s23
    %s43 = sphi 0, %s43
    %s45 = sphi 0, %s43
    %s46 = sphi 0, %s45
    %s60 = sphi 0, %s46
    %s64 = sphi 0, %s64
    %s66 = sphi 0, %s64
    %s67 = sphi 0, %s66
    %s81 = sphi 0, %s67
    %s87 = sphi 0, %s89
    %s90 = sphi 0, %s87
    %s91 = sphi 0, %s90
    %s107 = sphi 0, %s91
  $region4: #{vgg_forward.11} parent=0 // loop_header_branch
    %12 = sbr.rel (%p10) target = $region8
  $region5: #{vgg_forward.11} parent=0 // loop_body
    %s14 = ssub.s32 %s9, 1
    %s15 = ssub.s32 %s9, 2
    %s16 = sadd.s32 %s9, 1
    %s17 = ssub.s32 %s9, %s16
    %p18 = scmp.eq.s32.totalorder %s17, 0
    %s20 = sadd.s32 %s19, 1
    %s21 = scalar_select %p18, %s19, %s20
    %p24 = pneg %p18
    %p25 = scmp.eq.s32.totalorder %s9, 1
    %p26 = por %p24, %p25
    %p27 = scmp.ne.s32.totalorder %s19, %s22
    %p28 = scmp.eq.s32.totalorder %s9, 0
    %p29 = por %p27, %p28
    %p30 = scmp.ne.s32.totalorder %s19, %s22
    %p31 = scmp.eq.s32.totalorder %s14, 1
    %p32 = por %p30, %p31
    %p33 = scmp.ne.s32.totalorder %s22, %s23
    %p34 = scmp.eq.s32.totalorder %s14, 0
    %p35 = por %p33, %p34
    %p36 = scmp.ne.s32.totalorder %s22, %s23
    %p37 = scmp.eq.s32.totalorder %s15, 1
    %p38 = por %p36, %p37
    %p40 = scmp.ne.s32.totalorder %s23, %s39
    %p41 = scmp.eq.s32.totalorder %s15, 0
    %p42 = por %p40, %p41
    %s44 = sadd.s32 %s43, 1
    %p47 = scmp.eq.s32.totalorder %s9, 1
    %p48 = scmp.ne.s32.totalorder %s43, %s45
    %p49 = scmp.eq.s32.totalorder %s9, 0
    %p50 = por %p48, %p49
    %p51 = scmp.ne.s32.totalorder %s43, %s45
    %p52 = scmp.eq.s32.totalorder %s14, 1
    %p53 = por %p51, %p52
    %p54 = scmp.ne.s32.totalorder %s45, %s46
    %p55 = scmp.eq.s32.totalorder %s14, 0
    %p56 = por %p54, %p55
    %p57 = scmp.ne.s32.totalorder %s45, %s46
    %p58 = scmp.eq.s32.totalorder %s15, 1
    %p59 = por %p57, %p58
    %p61 = scmp.ne.s32.totalorder %s46, %s60
    %p62 = scmp.eq.s32.totalorder %s15, 0
    %p63 = por %p61, %p62
    %s65 = sadd.s32 %s64, 1
    %p68 = scmp.eq.s32.totalorder %s9, 1
    %p69 = scmp.ne.s32.totalorder %s64, %s66
    %p70 = scmp.eq.s32.totalorder %s9, 0
    %p71 = por %p69, %p70
    %p72 = scmp.ne.s32.totalorder %s64, %s66
    %p73 = scmp.eq.s32.totalorder %s14, 1
    %p74 = por %p72, %p73
    %p75 = scmp.ne.s32.totalorder %s66, %s67
    %p76 = scmp.eq.s32.totalorder %s14, 0
    %p77 = por %p75, %p76
    %p78 = scmp.ne.s32.totalorder %s66, %s67
    %p79 = scmp.eq.s32.totalorder %s15, 1
    %p80 = por %p78, %p79
    %p82 = scmp.ne.s32.totalorder %s67, %s81
    %p83 = scmp.eq.s32.totalorder %s15, 0
    %p84 = por %p82, %p83
    %s85 = ssub.s32 %s9, %s16
    %p86 = scmp.eq.s32.totalorder %s85, 0
    %s88 = sadd.s32 %s87, 1
    %s89 = scalar_select %p86, %s87, %s88
    %p92 = pneg %p86
    %p93 = scmp.eq.s32.totalorder %s9, 1
    %p94 = por %p92, %p93
    %p95 = scmp.ne.s32.totalorder %s87, %s90
    %p96 = scmp.eq.s32.totalorder %s9, 0
    %p97 = por %p95, %p96
    %p98 = scmp.ne.s32.totalorder %s87, %s90
    %p99 = scmp.eq.s32.totalorder %s14, 1
    %p100 = por %p98, %p99
    %p101 = scmp.ne.s32.totalorder %s90, %s91
    %p102 = scmp.eq.s32.totalorder %s14, 0
    %p103 = por %p101, %p102
    %p104 = scmp.ne.s32.totalorder %s90, %s91
    %p105 = scmp.eq.s32.totalorder %s15, 1
    %p106 = por %p104, %p105
    %p108 = scmp.ne.s32.totalorder %s91, %s107
    %p109 = scmp.eq.s32.totalorder %s15, 0
    %p110 = por %p108, %p109
    %p111 = scmp.le.s32.totalorder 1, %s9
    %p112 = scmp.lt.s32.totalorder %s9, 3
    %p113 = pnand %p111, %p112
    %p114 = pneg %p113
    // Predicated region
    $region9: #{vgg_forward.11} parent=5 // pred_check
      _
    $region10: #{vgg_forward.11} parent=5 // pred_check_branch
      %116 = sbr.rel (%p113) target = $region12
    $region11: #{vgg_forward.11} parent=5 // pred_region
      %s117 = ssub.s32 %s9, 1
      // Predicated region
      $region13: #{vgg_forward.11} parent=11 // pred_check
        %p118 = pneg %p56
      $region14: #{vgg_forward.11} parent=11 // pred_check_branch
        %120 = sbr.rel (%p118) target = $region16
      $region15: #{vgg_forward.11} parent=11 // pred_region
        _
      $region16: #{vgg_forward.11} parent=11 // pred_fallthru
        _
      // Predicated region
      $region17: #{vgg_forward.11} parent=11 // pred_check
        %p121 = pneg %p77
      $region18: #{vgg_forward.11} parent=11 // pred_check_branch
        %123 = sbr.rel (%p121) target = $region20
      $region19: #{vgg_forward.11} parent=11 // pred_region
        _
      $region20: #{vgg_forward.11} parent=11 // pred_fallthru
        _
    $region12: #{vgg_forward.11} parent=5 // pred_fallthru
      _
    %p124 = scmp.lt.s32.totalorder %s9, 2
    // Predicated region
    $region21: #{vgg_forward.11} parent=5 // pred_check
      %p125 = pneg %p124
    $region22: #{vgg_forward.11} parent=5 // pred_check_branch
      %127 = sbr.rel (%p125) target = $region24
    $region23: #{vgg_forward.11} parent=5 // pred_region
      // Predicated region
      $region25: #{vgg_forward.11} parent=23 // pred_check
        %p128 = pneg %p29
      $region26: #{vgg_forward.11} parent=23 // pred_check_branch
        %130 = sbr.rel (%p128) target = $region28
      $region27: #{vgg_forward.11} parent=23 // pred_region
        %p131 = scmp.lt.s32.totalorder %s9, 1
        %s132 = scalar_select %p131, %s9, 1
        %s133 = smul.addr %s132, 128
        %s134 = smul.addr %s133, 4
        %s135 = scalar_lea.vmem %s0, %s134
      $region28: #{vgg_forward.11} parent=23 // pred_fallthru
        _
    $region24: #{vgg_forward.11} parent=5 // pred_fallthru
      _
    %p136 = scmp.le.s32.totalorder 1, %s9
    %p137 = scmp.lt.s32.totalorder %s9, 3
    %p138 = pnand %p136, %p137
    %p139 = pneg %p138
    // Predicated region
    $region29: #{vgg_forward.11} parent=5 // pred_check
      _
    $region30: #{vgg_forward.11} parent=5 // pred_check_branch
      %141 = sbr.rel (%p138) target = $region32
    $region31: #{vgg_forward.11} parent=5 // pred_region
      %s142 = ssub.s32 %s9, 1
      %p143 = scmp.lt.s32.totalorder %s14, 1
      %s144 = scalar_select %p143, %s14, 1
      %s145 = smul.addr %s144, 128
      %s146 = smul.addr %s145, 4
      %s147 = scalar_lea.vmem %s0, %s146
      %p148 = pneg %p35
      %p149 = pneg %p32
      %p150 = pneg %p56
      %p151 = pneg %p53
      %p152 = pneg %p77
      %p153 = pneg %p74
      %p154 = pneg %p103
      %p155 = pneg %p100
      %p156 = scmp.lt.s32.totalorder %s14, 1
      %s157 = scalar_select %p156, %s14, 1
      %s158 = smul.addr %s157, 128
      %s159 = smul.addr %s158, 4
      %s160 = scalar_lea.vmem %s3, %s159
      %p161 = scmp.lt.s32.totalorder %s14, 1
      %s162 = scalar_select %p161, %s14, 1
      %s163 = smul.addr %s162, 128
      %s164 = smul.addr %s163, 4
      %s165 = scalar_lea.vmem %s0, %s164
      %p166 = scmp.lt.s32.totalorder %s14, 1
      %s167 = scalar_select %p166, %s14, 1
      %s168 = smul.addr %s167, 128
      %s169 = smul.addr %s168, 4
      %s170 = scalar_lea.vmem %s3, %s169
      %v172 = vld [vmem:[%s2] sm:$0x1]
      %v173 = vld [vmem:[%s165] sm:$0xf]
      %v174 = vld [vmem:[%s165 + $0x4] sm:$0xf]
      %v175 = vld [vmem:[%s165 + $0x8] sm:$0xf]
      %v176 = vld [vmem:[%s165 + $0xc] sm:$0xf]
      %v177 = vld [vmem:[%s165 + $0x10] sm:$0xf]
      %v178 = vld [vmem:[%s165 + $0x14] sm:$0xf]
      %v179 = vld [vmem:[%s165 + $0x18] sm:$0xf]
      %v180 = vld [vmem:[%s165 + $0x1c] sm:$0xf]
      %v181 = vld [vmem:[%s165 + $0x20] sm:$0xf]
      %v182 = vld [vmem:[%s165 + $0x24] sm:$0xf]
      %v183 = vld [vmem:[%s165 + $0x28] sm:$0xf]
      %v184 = vld [vmem:[%s165 + $0x2c] sm:$0xf]
      %v185 = vld [vmem:[%s165 + $0x30] sm:$0xf]
      %v186 = vld [vmem:[%s165 + $0x34] sm:$0xf]
      %v187 = vld [vmem:[%s165 + $0x38] sm:$0xf]
      %v188 = vld [vmem:[%s165 + $0x3c] sm:$0xf]
      %v189 = vld [vmem:[%s165 + $0x40] sm:$0xf]
      %v190 = vld [vmem:[%s165 + $0x44] sm:$0xf]
      %v191 = vld [vmem:[%s165 + $0x48] sm:$0xf]
      %v192 = vld [vmem:[%s165 + $0x4c] sm:$0xf]
      %v193 = vld [vmem:[%s165 + $0x50] sm:$0xf]
      %v194 = vld [vmem:[%s165 + $0x54] sm:$0xf]
      %v195 = vld [vmem:[%s165 + $0x58] sm:$0xf]
      %v196 = vld [vmem:[%s165 + $0x5c] sm:$0xf]
      %v197 = vld [vmem:[%s165 + $0x60] sm:$0xf]
      %v198 = vld [vmem:[%s165 + $0x64] sm:$0xf]
      %v199 = vld [vmem:[%s165 + $0x68] sm:$0xf]
      %v200 = vld [vmem:[%s165 + $0x6c] sm:$0xf]
      %v201 = vld [vmem:[%s165 + $0x70] sm:$0xf]
      %v202 = vld [vmem:[%s165 + $0x74] sm:$0xf]
      %v203 = vld [vmem:[%s165 + $0x78] sm:$0xf]
      %v204 = vld [vmem:[%s165 + $0x7c] sm:$0xf]
      %v205 = vld [vmem:[%s1] sm:$0xf]
      %v206 = vld [vmem:[%s1 + $0x4] sm:$0xf]
      %v207 = vld [vmem:[%s1 + $0x8] sm:$0xf]
      %v208 = vld [vmem:[%s1 + $0xc] sm:$0xf]
      %v209 = vld [vmem:[%s1 + $0x10] sm:$0xf]
      %v210 = vld [vmem:[%s1 + $0x14] sm:$0xf]
      %v211 = vld [vmem:[%s1 + $0x18] sm:$0xf]
      %v212 = vld [vmem:[%s1 + $0x1c] sm:$0xf]
      %v213 = vld [vmem:[%s1 + $0x20] sm:$0xf]
      %v214 = vld [vmem:[%s1 + $0x24] sm:$0xf]
      %v215 = vld [vmem:[%s1 + $0x28] sm:$0xf]
      %v216 = vld [vmem:[%s1 + $0x2c] sm:$0xf]
      %v217 = vld [vmem:[%s1 + $0x30] sm:$0xf]
      %v218 = vld [vmem:[%s1 + $0x34] sm:$0xf]
      %v219 = vld [vmem:[%s1 + $0x38] sm:$0xf]
      %v220 = vld [vmem:[%s1 + $0x3c] sm:$0xf]
      %v222 = vlaneseq
      %v223 = vshrl.u32 %v222, 7
      %v224 = vsub.s32 0, %v223
      %v225 = vrot.slane %v172, %v224
      %v259 = vunpack.c.l.b16 %v173
      %v260 = vunpack.c.l.b16 %v174
      %v261 = vunpack.c.l.b16 %v175
      %v262 = vunpack.c.l.b16 %v176
      %v263 = vunpack.c.l.b16 %v177
      %v264 = vunpack.c.l.b16 %v178
      %v265 = vunpack.c.l.b16 %v179
      %v266 = vunpack.c.l.b16 %v180
      %v267 = vunpack.c.l.b16 %v181
      %v268 = vunpack.c.l.b16 %v182
      %v269 = vunpack.c.l.b16 %v183
      %v270 = vunpack.c.l.b16 %v184
      %v271 = vunpack.c.l.b16 %v185
      %v272 = vunpack.c.l.b16 %v186
      %v273 = vunpack.c.l.b16 %v187
      %v274 = vunpack.c.l.b16 %v188
      %v275 = vunpack.c.l.b16 %v189
      %v276 = vunpack.c.l.b16 %v190
      %v277 = vunpack.c.l.b16 %v191
      %v278 = vunpack.c.l.b16 %v192
      %v279 = vunpack.c.l.b16 %v193
      %v280 = vunpack.c.l.b16 %v194
      %v281 = vunpack.c.l.b16 %v195
      %v282 = vunpack.c.l.b16 %v196
      %v283 = vunpack.c.l.b16 %v197
      %v284 = vunpack.c.l.b16 %v198
      %v285 = vunpack.c.l.b16 %v199
      %v286 = vunpack.c.l.b16 %v200
      %v287 = vunpack.c.l.b16 %v201
      %v288 = vunpack.c.l.b16 %v202
      %v289 = vunpack.c.l.b16 %v203
      %v290 = vunpack.c.l.b16 %v204
      %v291 = vpack.c.b16 %v260, %v259
      %v292 = vpack.c.b16 %v262, %v261
      %v293 = vpack.c.b16 %v264, %v263
      %v294 = vpack.c.b16 %v266, %v265
      %v295 = vpack.c.b16 %v268, %v267
      %v296 = vpack.c.b16 %v270, %v269
      %v297 = vpack.c.b16 %v272, %v271
      %v298 = vpack.c.b16 %v274, %v273
      %v299 = vpack.c.b16 %v276, %v275
      %v300 = vpack.c.b16 %v278, %v277
      %v301 = vpack.c.b16 %v280, %v279
      %v302 = vpack.c.b16 %v282, %v281
      %v303 = vpack.c.b16 %v284, %v283
      %v304 = vpack.c.b16 %v286, %v285
      %v305 = vpack.c.b16 %v288, %v287
      %v306 = vpack.c.b16 %v290, %v289
      %v339 = vunpack.c.l.b16 %v205
      %v340 = vunpack.c.l.b16 %v206
      %v341 = vunpack.c.l.b16 %v207
      %v342 = vunpack.c.l.b16 %v208
      %v343 = vunpack.c.l.b16 %v209
      %v344 = vunpack.c.l.b16 %v210
      %v345 = vunpack.c.l.b16 %v211
      %v346 = vunpack.c.l.b16 %v212
      %v347 = vunpack.c.l.b16 %v213
      %v348 = vunpack.c.l.b16 %v214
      %v349 = vunpack.c.l.b16 %v215
      %v350 = vunpack.c.l.b16 %v216
      %v351 = vunpack.c.l.b16 %v217
      %v352 = vunpack.c.l.b16 %v218
      %v353 = vunpack.c.l.b16 %v219
      %v354 = vunpack.c.l.b16 %v220
      %v355 = vpack.c.b16 %v340, %v339
      %v356 = vpack.c.b16 %v342, %v341
      %v357 = vpack.c.b16 %v344, %v343
      %v358 = vpack.c.b16 %v346, %v345
      %v359 = vpack.c.b16 %v348, %v347
      %v360 = vpack.c.b16 %v350, %v349
      %v361 = vpack.c.b16 %v352, %v351
      %v362 = vpack.c.b16 %v354, %v353
      %371 = vmatprep.subr.bf16.mxu0 0
      %372 = vmatpush1.bf16.msra.mxu0 %v355
      %373 = vmatprep.subr.bf16.mxu0 0
      %374 = vmatpush1.bf16.msra.mxu0 %v356
      %375 = vmatprep.subr.bf16.mxu0 0
      %376 = vmatpush1.bf16.msra.mxu0 %v357
      %377 = vmatprep.subr.bf16.mxu0 0
      %378 = vmatpush1.bf16.msra.mxu0 %v358
      %379 = vmatprep.subr.bf16.mxu0 0
      %380 = vmatpush1.bf16.msra.mxu0 %v359
      %381 = vmatprep.subr.bf16.mxu0 0
      %382 = vmatpush1.bf16.msra.mxu0 %v360
      %383 = vmatprep.subr.bf16.mxu0 0
      %384 = vmatpush1.bf16.msra.mxu0 %v361
      %385 = vmatprep.subr.bf16.mxu0 0
      %386 = vmatpush1.bf16.msra.mxu0 %v362
      %387 = vmatprep.subr.bf16.mxu0 0
      %388 = vmatpush1.bf16.msra.mxu0 0
      %389 = vmatprep.subr.bf16.mxu0 0
      %390 = vmatpush1.bf16.msra.mxu0 0
      %391 = vmatprep.subr.bf16.mxu0 0
      %392 = vmatpush1.bf16.msra.mxu0 0
      %393 = vmatprep.subr.bf16.mxu0 0
      %394 = vmatpush1.bf16.msra.mxu0 0
      %395 = vmatprep.subr.bf16.mxu0 0
      %396 = vmatpush1.bf16.msra.mxu0 0
      %397 = vmatprep.subr.bf16.mxu0 0
      %398 = vmatpush1.bf16.msra.mxu0 0
      %399 = vmatprep.subr.bf16.mxu0 0
      %400 = vmatpush1.bf16.msra.mxu0 0
      %401 = vmatprep.subr.bf16.mxu0 0
      %402 = vmatpush1.bf16.msra.mxu0 0
      %403 = vmatprep.mubr.bf16.mxu0 0
      %404 = vmatmul.mubr.bf16.gmra.mrb[0].mxu0 %v291
      %v405 = vpop.f32.mrb[0].mxu0
      %v406 = vadd.f32 %v225, %v405
      %v407 = vpop.f32.mrb[0].mxu0
      %v408 = vpop.f32.mrb[0].mxu0
      %v409 = vadd.f32 %v225, %v408
      %v410 = vpop.f32.mrb[0].mxu0
      %411 = vmatprep.mubr.bf16.mxu0 0
      %412 = vmatmul.mubr.bf16.gmra.mrb[0].mxu0 %v292
      %v413 = vpop.f32.mrb[0].mxu0
      %v414 = vadd.f32 %v225, %v413
      %v415 = vpop.f32.mrb[0].mxu0
      %v416 = vpop.f32.mrb[0].mxu0
      %v417 = vadd.f32 %v225, %v416
      %v418 = vpop.f32.mrb[0].mxu0
      %419 = vmatprep.mubr.bf16.mxu0 0
      %420 = vmatmul.mubr.bf16.gmra.mrb[0].mxu0 %v293
      %v421 = vpop.f32.mrb[0].mxu0
      %v422 = vadd.f32 %v225, %v421
      %v423 = vpop.f32.mrb[0].mxu0
      %v424 = vpop.f32.mrb[0].mxu0
      %v425 = vadd.f32 %v225, %v424
      %v426 = vpop.f32.mrb[0].mxu0
      %427 = vmatprep.mubr.bf16.mxu0 0
      %428 = vmatmul.mubr.bf16.gmra.mrb[0].mxu0 %v294
      %v429 = vpop.f32.mrb[0].mxu0
      %v430 = vadd.f32 %v225, %v429
      %v431 = vpop.f32.mrb[0].mxu0
      %v432 = vpop.f32.mrb[0].mxu0
      %v433 = vadd.f32 %v225, %v432
      %v434 = vpop.f32.mrb[0].mxu0
      %435 = vmatprep.mubr.bf16.mxu0 0
      %436 = vmatmul.mubr.bf16.gmra.mrb[0].mxu0 %v295
      %v437 = vpop.f32.mrb[0].mxu0
      %v438 = vadd.f32 %v225, %v437
      %v439 = vpop.f32.mrb[0].mxu0
      %v440 = vpop.f32.mrb[0].mxu0
      %v441 = vadd.f32 %v225, %v440
      %v442 = vpop.f32.mrb[0].mxu0
      %443 = vmatprep.mubr.bf16.mxu0 0
      %444 = vmatmul.mubr.bf16.gmra.mrb[0].mxu0 %v296
      %v445 = vpop.f32.mrb[0].mxu0
      %v446 = vadd.f32 %v225, %v445
      %v447 = vpop.f32.mrb[0].mxu0
      %v448 = vpop.f32.mrb[0].mxu0
      %v449 = vadd.f32 %v225, %v448
      %v450 = vpop.f32.mrb[0].mxu0
      %451 = vmatprep.mubr.bf16.mxu0 0
      %452 = vmatmul.mubr.bf16.gmra.mrb[0].mxu0 %v297
      %v453 = vpop.f32.mrb[0].mxu0
      %v454 = vadd.f32 %v225, %v453
      %v455 = vpop.f32.mrb[0].mxu0
      %v456 = vpop.f32.mrb[0].mxu0
      %v457 = vadd.f32 %v225, %v456
      %v458 = vpop.f32.mrb[0].mxu0
      %459 = vmatprep.mubr.bf16.mxu0 0
      %460 = vmatmul.mubr.bf16.gmra.mrb[0].mxu0 %v298
      %v461 = vpop.f32.mrb[0].mxu0
      %v462 = vadd.f32 %v225, %v461
      %v463 = vpop.f32.mrb[0].mxu0
      %v464 = vpop.f32.mrb[0].mxu0
      %v465 = vadd.f32 %v225, %v464
      %v466 = vpop.f32.mrb[0].mxu0
      %467 = vmatprep.mubr.bf16.mxu0 0
      %468 = vmatmul.mubr.bf16.gmra.mrb[0].mxu0 %v299
      %v469 = vpop.f32.mrb[0].mxu0
      %v470 = vadd.f32 %v225, %v469
      %v471 = vpop.f32.mrb[0].mxu0
      %v472 = vpop.f32.mrb[0].mxu0
      %v473 = vadd.f32 %v225, %v472
      %v474 = vpop.f32.mrb[0].mxu0
      %475 = vmatprep.mubr.bf16.mxu0 0
      %476 = vmatmul.mubr.bf16.gmra.mrb[0].mxu0 %v300
      %v477 = vpop.f32.mrb[0].mxu0
      %v478 = vadd.f32 %v225, %v477
      %v479 = vpop.f32.mrb[0].mxu0
      %v480 = vpop.f32.mrb[0].mxu0
      %v481 = vadd.f32 %v225, %v480
      %v482 = vpop.f32.mrb[0].mxu0
      %483 = vmatprep.mubr.bf16.mxu0 0
      %484 = vmatmul.mubr.bf16.gmra.mrb[0].mxu0 %v301
      %v485 = vpop.f32.mrb[0].mxu0
      %v486 = vadd.f32 %v225, %v485
      %v487 = vpop.f32.mrb[0].mxu0
      %v488 = vpop.f32.mrb[0].mxu0
      %v489 = vadd.f32 %v225, %v488
      %v490 = vpop.f32.mrb[0].mxu0
      %491 = vmatprep.mubr.bf16.mxu0 0
      %492 = vmatmul.mubr.bf16.gmra.mrb[0].mxu0 %v302
      %v493 = vpop.f32.mrb[0].mxu0
      %v494 = vadd.f32 %v225, %v493
      %v495 = vpop.f32.mrb[0].mxu0
      %v496 = vpop.f32.mrb[0].mxu0
      %v497 = vadd.f32 %v225, %v496
      %v498 = vpop.f32.mrb[0].mxu0
      %499 = vmatprep.mubr.bf16.mxu0 0
      %500 = vmatmul.mubr.bf16.gmra.mrb[0].mxu0 %v303
      %v501 = vpop.f32.mrb[0].mxu0
      %v502 = vadd.f32 %v225, %v501
      %v503 = vpop.f32.mrb[0].mxu0
      %v504 = vpop.f32.mrb[0].mxu0
      %v505 = vadd.f32 %v225, %v504
      %v506 = vpop.f32.mrb[0].mxu0
      %507 = vmatprep.mubr.bf16.mxu0 0
      %508 = vmatmul.mubr.bf16.gmra.mrb[0].mxu0 %v304
      %v509 = vpop.f32.mrb[0].mxu0
      %v510 = vadd.f32 %v225, %v509
      %v511 = vpop.f32.mrb[0].mxu0
      %v512 = vpop.f32.mrb[0].mxu0
      %v513 = vadd.f32 %v225, %v512
      %v514 = vpop.f32.mrb[0].mxu0
      %515 = vmatprep.mubr.bf16.mxu0 0
      %516 = vmatmul.mubr.bf16.gmra.mrb[0].mxu0 %v305
      %v517 = vpop.f32.mrb[0].mxu0
      %v518 = vadd.f32 %v225, %v517
      %v519 = vpop.f32.mrb[0].mxu0
      %v520 = vpop.f32.mrb[0].mxu0
      %v521 = vadd.f32 %v225, %v520
      %v522 = vpop.f32.mrb[0].mxu0
      %523 = vmatprep.mubr.bf16.mxu0 0
      %524 = vmatmul.mubr.bf16.gmra.mrb[0].mxu0 %v306
      %v525 = vpop.f32.mrb[0].mxu0
      %v526 = vadd.f32 %v225, %v525
      %v527 = vpop.f32.mrb[0].mxu0
      %v528 = vpop.f32.mrb[0].mxu0
      %v529 = vadd.f32 %v225, %v528
      %v530 = vpop.f32.mrb[0].mxu0
      %531 = vdwg.mxu0
      %v532 = vmax.f32 %v406, 0.0
      %v533 = vmax.f32 %v409, 0.0
      %v534 = vmax.f32 %v414, 0.0
      %v535 = vmax.f32 %v417, 0.0
      %v536 = vmax.f32 %v422, 0.0
      %v537 = vmax.f32 %v425, 0.0
      %v538 = vmax.f32 %v430, 0.0
      %v539 = vmax.f32 %v433, 0.0
      %v540 = vmax.f32 %v438, 0.0
      %v541 = vmax.f32 %v441, 0.0
      %v542 = vmax.f32 %v446, 0.0
      %v543 = vmax.f32 %v449, 0.0
      %v544 = vmax.f32 %v454, 0.0
      %v545 = vmax.f32 %v457, 0.0
      %v546 = vmax.f32 %v462, 0.0
      %v547 = vmax.f32 %v465, 0.0
      %v548 = vmax.f32 %v470, 0.0
      %v549 = vmax.f32 %v473, 0.0
      %v550 = vmax.f32 %v478, 0.0
      %v551 = vmax.f32 %v481, 0.0
      %v552 = vmax.f32 %v486, 0.0
      %v553 = vmax.f32 %v489, 0.0
      %v554 = vmax.f32 %v494, 0.0
      %v555 = vmax.f32 %v497, 0.0
      %v556 = vmax.f32 %v502, 0.0
      %v557 = vmax.f32 %v505, 0.0
      %v558 = vmax.f32 %v510, 0.0
      %v559 = vmax.f32 %v513, 0.0
      %v560 = vmax.f32 %v518, 0.0
      %v561 = vmax.f32 %v521, 0.0
      %v562 = vmax.f32 %v526, 0.0
      %v563 = vmax.f32 %v529, 0.0
      %v564 = vpack.c.bf16 %v533, %v532
      %v565 = vpack.c.bf16 %v535, %v534
      %v566 = vpack.c.bf16 %v537, %v536
      %v567 = vpack.c.bf16 %v539, %v538
      %v568 = vpack.c.bf16 %v541, %v540
      %v569 = vpack.c.bf16 %v543, %v542
      %v570 = vpack.c.bf16 %v545, %v544
      %v571 = vpack.c.bf16 %v547, %v546
      %v572 = vpack.c.bf16 %v549, %v548
      %v573 = vpack.c.bf16 %v551, %v550
      %v574 = vpack.c.bf16 %v553, %v552
      %v575 = vpack.c.bf16 %v555, %v554
      %v576 = vpack.c.bf16 %v557, %v556
      %v577 = vpack.c.bf16 %v559, %v558
      %v578 = vpack.c.bf16 %v561, %v560
      %v579 = vpack.c.bf16 %v563, %v562
      %v596 = vunpack.c.l.b16 %v564
      %v597 = vunpack.c.h.b16 %v564
      %v598 = vunpack.c.l.b16 %v565
      %v599 = vunpack.c.h.b16 %v565
      %v600 = vunpack.c.l.b16 %v566
      %v601 = vunpack.c.h.b16 %v566
      %v602 = vunpack.c.l.b16 %v567
      %v603 = vunpack.c.h.b16 %v567
      %v604 = vunpack.c.l.b16 %v568
      %v605 = vunpack.c.h.b16 %v568
      %v606 = vunpack.c.l.b16 %v569
      %v607 = vunpack.c.h.b16 %v569
      %v608 = vunpack.c.l.b16 %v570
      %v609 = vunpack.c.h.b16 %v570
      %v610 = vunpack.c.l.b16 %v571
      %v611 = vunpack.c.h.b16 %v571
      %v612 = vunpack.c.l.b16 %v572
      %v613 = vunpack.c.h.b16 %v572
      %v614 = vunpack.c.l.b16 %v573
      %v615 = vunpack.c.h.b16 %v573
      %v616 = vunpack.c.l.b16 %v574
      %v617 = vunpack.c.h.b16 %v574
      %v618 = vunpack.c.l.b16 %v575
      %v619 = vunpack.c.h.b16 %v575
      %v620 = vunpack.c.l.b16 %v576
      %v621 = vunpack.c.h.b16 %v576
      %v622 = vunpack.c.l.b16 %v577
      %v623 = vunpack.c.h.b16 %v577
      %v624 = vunpack.c.l.b16 %v578
      %v625 = vunpack.c.h.b16 %v578
      %v626 = vunpack.c.l.b16 %v579
      %v627 = vunpack.c.h.b16 %v579
      %v628 = vpack.c.b16 %v596, %v596
      %v629 = vpack.c.b16 %v597, %v597
      %v630 = vpack.c.b16 %v598, %v598
      %v631 = vpack.c.b16 %v599, %v599
      %v632 = vpack.c.b16 %v600, %v600
      %v633 = vpack.c.b16 %v601, %v601
      %v634 = vpack.c.b16 %v602, %v602
      %v635 = vpack.c.b16 %v603, %v603
      %v636 = vpack.c.b16 %v604, %v604
      %v637 = vpack.c.b16 %v605, %v605
      %v638 = vpack.c.b16 %v606, %v606
      %v639 = vpack.c.b16 %v607, %v607
      %v640 = vpack.c.b16 %v608, %v608
      %v641 = vpack.c.b16 %v609, %v609
      %v642 = vpack.c.b16 %v610, %v610
      %v643 = vpack.c.b16 %v611, %v611
      %v644 = vpack.c.b16 %v612, %v612
      %v645 = vpack.c.b16 %v613, %v613
      %v646 = vpack.c.b16 %v614, %v614
      %v647 = vpack.c.b16 %v615, %v615
      %v648 = vpack.c.b16 %v616, %v616
      %v649 = vpack.c.b16 %v617, %v617
      %v650 = vpack.c.b16 %v618, %v618
      %v651 = vpack.c.b16 %v619, %v619
      %v652 = vpack.c.b16 %v620, %v620
      %v653 = vpack.c.b16 %v621, %v621
      %v654 = vpack.c.b16 %v622, %v622
      %v655 = vpack.c.b16 %v623, %v623
      %v656 = vpack.c.b16 %v624, %v624
      %v657 = vpack.c.b16 %v625, %v625
      %v658 = vpack.c.b16 %v626, %v626
      %v659 = vpack.c.b16 %v627, %v627
      %692 = vst [vmem:[%s170] sm:$0xf] %v628
      %693 = vst [vmem:[%s170 + $0x4] sm:$0xf] %v629
      %694 = vst [vmem:[%s170 + $0x8] sm:$0xf] %v630
      %695 = vst [vmem:[%s170 + $0xc] sm:$0xf] %v631
      %696 = vst [vmem:[%s170 + $0x10] sm:$0xf] %v632
      %697 = vst [vmem:[%s170 + $0x14] sm:$0xf] %v633
      %698 = vst [vmem:[%s170 + $0x18] sm:$0xf] %v634
      %699 = vst [vmem:[%s170 + $0x1c] sm:$0xf] %v635
      %700 = vst [vmem:[%s170 + $0x20] sm:$0xf] %v636
      %701 = vst [vmem:[%s170 + $0x24] sm:$0xf] %v637
      %702 = vst [vmem:[%s170 + $0x28] sm:$0xf] %v638
      %703 = vst [vmem:[%s170 + $0x2c] sm:$0xf] %v639
      %704 = vst [vmem:[%s170 + $0x30] sm:$0xf] %v640
      %705 = vst [vmem:[%s170 + $0x34] sm:$0xf] %v641
      %706 = vst [vmem:[%s170 + $0x38] sm:$0xf] %v642
      %707 = vst [vmem:[%s170 + $0x3c] sm:$0xf] %v643
      %708 = vst [vmem:[%s170 + $0x40] sm:$0xf] %v644
      %709 = vst [vmem:[%s170 + $0x44] sm:$0xf] %v645
      %710 = vst [vmem:[%s170 + $0x48] sm:$0xf] %v646
      %711 = vst [vmem:[%s170 + $0x4c] sm:$0xf] %v647
      %712 = vst [vmem:[%s170 + $0x50] sm:$0xf] %v648
      %713 = vst [vmem:[%s170 + $0x54] sm:$0xf] %v649
      %714 = vst [vmem:[%s170 + $0x58] sm:$0xf] %v650
      %715 = vst [vmem:[%s170 + $0x5c] sm:$0xf] %v651
      %716 = vst [vmem:[%s170 + $0x60] sm:$0xf] %v652
      %717 = vst [vmem:[%s170 + $0x64] sm:$0xf] %v653
      %718 = vst [vmem:[%s170 + $0x68] sm:$0xf] %v654
      %719 = vst [vmem:[%s170 + $0x6c] sm:$0xf] %v655
      %720 = vst [vmem:[%s170 + $0x70] sm:$0xf] %v656
      %721 = vst [vmem:[%s170 + $0x74] sm:$0xf] %v657
      %722 = vst [vmem:[%s170 + $0x78] sm:$0xf] %v658
      %723 = vst [vmem:[%s170 + $0x7c] sm:$0xf] %v659
      %v724 = vld [vmem:[%s165 + $0x80] sm:$0xf]
      %v725 = vld [vmem:[%s165 + $0x84] sm:$0xf]
      %v726 = vld [vmem:[%s165 + $0x88] sm:$0xf]
      %v727 = vld [vmem:[%s165 + $0x8c] sm:$0xf]
      %v728 = vld [vmem:[%s165 + $0x90] sm:$0xf]
      %v729 = vld [vmem:[%s165 + $0x94] sm:$0xf]
      %v730 = vld [vmem:[%s165 + $0x98] sm:$0xf]
      %v731 = vld [vmem:[%s165 + $0x9c] sm:$0xf]
      %v732 = vld [vmem:[%s165 + $0xa0] sm:$0xf]
      %v733 = vld [vmem:[%s165 + $0xa4] sm:$0xf]
      %v734 = vld [vmem:[%s165 + $0xa8] sm:$0xf]
      %v735 = vld [vmem:[%s165 + $0xac] sm:$0xf]
      %v736 = vld [vmem:[%s165 + $0xb0] sm:$0xf]
      %v737 = vld [vmem:[%s165 + $0xb4] sm:$0xf]
      %v738 = vld [vmem:[%s165 + $0xb8] sm:$0xf]
      %v739 = vld [vmem:[%s165 + $0xbc] sm:$0xf]
      %v740 = vld [vmem:[%s165 + $0xc0] sm:$0xf]
      %v741 = vld [vmem:[%s165 + $0xc4] sm:$0xf]
      %v742 = vld [vmem:[%s165 + $0xc8] sm:$0xf]
      %v743 = vld [vmem:[%s165 + $0xcc] sm:$0xf]
      %v744 = vld [vmem:[%s165 + $0xd0] sm:$0xf]
      %v745 = vld [vmem:[%s165 + $0xd4] sm:$0xf]
      %v746 = vld [vmem:[%s165 + $0xd8] sm:$0xf]
      %v747 = vld [vmem:[%s165 + $0xdc] sm:$0xf]
      %v748 = vld [vmem:[%s165 + $0xe0] sm:$0xf]
      %v749 = vld [vmem:[%s165 + $0xe4] sm:$0xf]
      %v750 = vld [vmem:[%s165 + $0xe8] sm:$0xf]
      %v751 = vld [vmem:[%s165 + $0xec] sm:$0xf]
      %v752 = vld [vmem:[%s165 + $0xf0] sm:$0xf]
      %v753 = vld [vmem:[%s165 + $0xf4] sm:$0xf]
      %v754 = vld [vmem:[%s165 + $0xf8] sm:$0xf]
      %v755 = vld [vmem:[%s165 + $0xfc] sm:$0xf]
      %v756 = vld [vmem:[%s1] sm:$0xf]
      %v757 = vld [vmem:[%s1 + $0x4] sm:$0xf]
      %v758 = vld [vmem:[%s1 + $0x8] sm:$0xf]
      %v759 = vld [vmem:[%s1 + $0xc] sm:$0xf]
      %v760 = vld [vmem:[%s1 + $0x10] sm:$0xf]
      %v761 = vld [vmem:[%s1 + $0x14] sm:$0xf]
      %v762 = vld [vmem:[%s1 + $0x18] sm:$0xf]
      %v763 = vld [vmem:[%s1 + $0x1c] sm:$0xf]
      %v764 = vld [vmem:[%s1 + $0x20] sm:$0xf]
      %v765 = vld [vmem:[%s1 + $0x24] sm:$0xf]
      %v766 = vld [vmem:[%s1 + $0x28] sm:$0xf]
      %v767 = vld [vmem:[%s1 + $0x2c] sm:$0xf]
      %v768 = vld [vmem:[%s1 + $0x30] sm:$0xf]
      %v769 = vld [vmem:[%s1 + $0x34] sm:$0xf]
      %v770 = vld [vmem:[%s1 + $0x38] sm:$0xf]
      %v771 = vld [vmem:[%s1 + $0x3c] sm:$0xf]
      %v804 = vunpack.c.l.b16 %v724
      %v805 = vunpack.c.l.b16 %v725
      %v806 = vunpack.c.l.b16 %v726
      %v807 = vunpack.c.l.b16 %v727
      %v808 = vunpack.c.l.b16 %v728
      %v809 = vunpack.c.l.b16 %v729
      %v810 = vunpack.c.l.b16 %v730
      %v811 = vunpack.c.l.b16 %v731
      %v812 = vunpack.c.l.b16 %v732
      %v813 = vunpack.c.l.b16 %v733
      %v814 = vunpack.c.l.b16 %v734
      %v815 = vunpack.c.l.b16 %v735
      %v816 = vunpack.c.l.b16 %v736
      %v817 = vunpack.c.l.b16 %v737
      %v818 = vunpack.c.l.b16 %v738
      %v819 = vunpack.c.l.b16 %v739
      %v820 = vunpack.c.l.b16 %v740
      %v821 = vunpack.c.l.b16 %v741
      %v822 = vunpack.c.l.b16 %v742
      %v823 = vunpack.c.l.b16 %v743
      %v824 = vunpack.c.l.b16 %v744
      %v825 = vunpack.c.l.b16 %v745
      %v826 = vunpack.c.l.b16 %v746
      %v827 = vunpack.c.l.b16 %v747
      %v828 = vunpack.c.l.b16 %v748
      %v829 = vunpack.c.l.b16 %v749
      %v830 = vunpack.c.l.b16 %v750
      %v831 = vunpack.c.l.b16 %v751
      %v832 = vunpack.c.l.b16 %v752
      %v833 = vunpack.c.l.b16 %v753
      %v834 = vunpack.c.l.b16 %v754
      %v835 = vunpack.c.l.b16 %v755
      %v836 = vpack.c.b16 %v805, %v804
      %v837 = vpack.c.b16 %v807, %v806
      %v838 = vpack.c.b16 %v809, %v808
      %v839 = vpack.c.b16 %v811, %v810
      %v840 = vpack.c.b16 %v813, %v812
      %v841 = vpack.c.b16 %v815, %v814
      %v842 = vpack.c.b16 %v817, %v816
      %v843 = vpack.c.b16 %v819, %v818
      %v844 = vpack.c.b16 %v821, %v820
      %v845 = vpack.c.b16 %v823, %v822
      %v846 = vpack.c.b16 %v825, %v824
      %v847 = vpack.c.b16 %v827, %v826
      %v848 = vpack.c.b16 %v829, %v828
      %v849 = vpack.c.b16 %v831, %v830
      %v850 = vpack.c.b16 %v833, %v832
      %v851 = vpack.c.b16 %v835, %v834
      %v884 = vunpack.c.l.b16 %v756
      %v885 = vunpack.c.l.b16 %v757
      %v886 = vunpack.c.l.b16 %v758
      %v887 = vunpack.c.l.b16 %v759
      %v888 = vunpack.c.l.b16 %v760
      %v889 = vunpack.c.l.b16 %v761
      %v890 = vunpack.c.l.b16 %v762
      %v891 = vunpack.c.l.b16 %v763
      %v892 = vunpack.c.l.b16 %v764
      %v893 = vunpack.c.l.b16 %v765
      %v894 = vunpack.c.l.b16 %v766
      %v895 = vunpack.c.l.b16 %v767
      %v896 = vunpack.c.l.b16 %v768
      %v897 = vunpack.c.l.b16 %v769
      %v898 = vunpack.c.l.b16 %v770
      %v899 = vunpack.c.l.b16 %v771
      %v900 = vpack.c.b16 %v885, %v884
      %v901 = vpack.c.b16 %v887, %v886
      %v902 = vpack.c.b16 %v889, %v888
      %v903 = vpack.c.b16 %v891, %v890
      %v904 = vpack.c.b16 %v893, %v892
      %v905 = vpack.c.b16 %v895, %v894
      %v906 = vpack.c.b16 %v897, %v896
      %v907 = vpack.c.b16 %v899, %v898
      %916 = vmatprep.subr.bf16.mxu0 0
      %917 = vmatpush1.bf16.msra.mxu0 %v900
      %918 = vmatprep.subr.bf16.mxu0 0
      %919 = vmatpush1.bf16.msra.mxu0 %v901
      %920 = vmatprep.subr.bf16.mxu0 0
      %921 = vmatpush1.bf16.msra.mxu0 %v902
      %922 = vmatprep.subr.bf16.mxu0 0
      %923 = vmatpush1.bf16.msra.mxu0 %v903
      %924 = vmatprep.subr.bf16.mxu0 0
      %925 = vmatpush1.bf16.msra.mxu0 %v904
      %926 = vmatprep.subr.bf16.mxu0 0
      %927 = vmatpush1.bf16.msra.mxu0 %v905
      %928 = vmatprep.subr.bf16.mxu0 0
      %929 = vmatpush1.bf16.msra.mxu0 %v906
      %930 = vmatprep.subr.bf16.mxu0 0
      %931 = vmatpush1.bf16.msra.mxu0 %v907
      %932 = vmatprep.subr.bf16.mxu0 0
      %933 = vmatpush1.bf16.msra.mxu0 0
      %934 = vmatprep.subr.bf16.mxu0 0
      %935 = vmatpush1.bf16.msra.mxu0 0
      %936 = vmatprep.subr.bf16.mxu0 0
      %937 = vmatpush1.bf16.msra.mxu0 0
      %938 = vmatprep.subr.bf16.mxu0 0
      %939 = vmatpush1.bf16.msra.mxu0 0
      %940 = vmatprep.subr.bf16.mxu0 0
      %941 = vmatpush1.bf16.msra.mxu0 0
      %942 = vmatprep.subr.bf16.mxu0 0
      %943 = vmatpush1.bf16.msra.mxu0 0
      %944 = vmatprep.subr.bf16.mxu0 0
      %945 = vmatpush1.bf16.msra.mxu0 0
      %946 = vmatprep.subr.bf16.mxu0 0
      %947 = vmatpush1.bf16.msra.mxu0 0
      %948 = vmatprep.mubr.bf16.mxu0 0
      %949 = vmatmul.mubr.bf16.gmra.mrb[0].mxu0 %v836
      %v950 = vpop.f32.mrb[0].mxu0
      %v951 = vadd.f32 %v225, %v950
      %v952 = vpop.f32.mrb[0].mxu0
      %v953 = vpop.f32.mrb[0].mxu0
      %v954 = vadd.f32 %v225, %v953
      %v955 = vpop.f32.mrb[0].mxu0
      %956 = vmatprep.mubr.bf16.mxu0 0
      %957 = vmatmul.mubr.bf16.gmra.mrb[0].mxu0 %v837
      %v958 = vpop.f32.mrb[0].mxu0
      %v959 = vadd.f32 %v225, %v958
      %v960 = vpop.f32.mrb[0].mxu0
      %v961 = vpop.f32.mrb[0].mxu0
      %v962 = vadd.f32 %v225, %v961
      %v963 = vpop.f32.mrb[0].mxu0
      %964 = vmatprep.mubr.bf16.mxu0 0
      %965 = vmatmul.mubr.bf16.gmra.mrb[0].mxu0 %v838
      %v966 = vpop.f32.mrb[0].mxu0
      %v967 = vadd.f32 %v225, %v966
      %v968 = vpop.f32.mrb[0].mxu0
      %v969 = vpop.f32.mrb[0].mxu0
      %v970 = vadd.f32 %v225, %v969
      %v971 = vpop.f32.mrb[0].mxu0
      %972 = vmatprep.mubr.bf16.mxu0 0
      %973 = vmatmul.mubr.bf16.gmra.mrb[0].mxu0 %v839
      %v974 = vpop.f32.mrb[0].mxu0
      %v975 = vadd.f32 %v225, %v974
      %v976 = vpop.f32.mrb[0].mxu0
      %v977 = vpop.f32.mrb[0].mxu0
      %v978 = vadd.f32 %v225, %v977
      %v979 = vpop.f32.mrb[0].mxu0
      %980 = vmatprep.mubr.bf16.mxu0 0
      %981 = vmatmul.mubr.bf16.gmra.mrb[0].mxu0 %v840
      %v982 = vpop.f32.mrb[0].mxu0
      %v983 = vadd.f32 %v225, %v982
      %v984 = vpop.f32.mrb[0].mxu0
      %v985 = vpop.f32.mrb[0].mxu0
      %v986 = vadd.f32 %v225, %v985
      %v987 = vpop.f32.mrb[0].mxu0
      %988 = vmatprep.mubr.bf16.mxu0 0
      %989 = vmatmul.mubr.bf16.gmra.mrb[0].mxu0 %v841
      %v990 = vpop.f32.mrb[0].mxu0
      %v991 = vadd.f32 %v225, %v990
      %v992 = vpop.f32.mrb[0].mxu0
      %v993 = vpop.f32.mrb[0].mxu0
      %v994 = vadd.f32 %v225, %v993
      %v995 = vpop.f32.mrb[0].mxu0
      %996 = vmatprep.mubr.bf16.mxu0 0
      %997 = vmatmul.mubr.bf16.gmra.mrb[0].mxu0 %v842
      %v998 = vpop.f32.mrb[0].mxu0
      %v999 = vadd.f32 %v225, %v998
      %v1000 = vpop.f32.mrb[0].mxu0
      %v1001 = vpop.f32.mrb[0].mxu0
      %v1002 = vadd.f32 %v225, %v1001
      %v1003 = vpop.f32.mrb[0].mxu0
      %1004 = vmatprep.mubr.bf16.mxu0 0
      %1005 = vmatmul.mubr.bf16.gmra.mrb[0].mxu0 %v843
      %v1006 = vpop.f32.mrb[0].mxu0
      %v1007 = vadd.f32 %v225, %v1006
      %v1008 = vpop.f32.mrb[0].mxu0
      %v1009 = vpop.f32.mrb[0].mxu0
      %v1010 = vadd.f32 %v225, %v1009
      %v1011 = vpop.f32.mrb[0].mxu0
      %1012 = vmatprep.mubr.bf16.mxu0 0
      %1013 = vmatmul.mubr.bf16.gmra.mrb[0].mxu0 %v844
      %v1014 = vpop.f32.mrb[0].mxu0
      %v1015 = vadd.f32 %v225, %v1014
      %v1016 = vpop.f32.mrb[0].mxu0
      %v1017 = vpop.f32.mrb[0].mxu0
      %v1018 = vadd.f32 %v225, %v1017
      %v1019 = vpop.f32.mrb[0].mxu0
      %1020 = vmatprep.mubr.bf16.mxu0 0
      %1021 = vmatmul.mubr.bf16.gmra.mrb[0].mxu0 %v845
      %v1022 = vpop.f32.mrb[0].mxu0
      %v1023 = vadd.f32 %v225, %v1022
      %v1024 = vpop.f32.mrb[0].mxu0
      %v1025 = vpop.f32.mrb[0].mxu0
      %v1026 = vadd.f32 %v225, %v1025
      %v1027 = vpop.f32.mrb[0].mxu0
      %1028 = vmatprep.mubr.bf16.mxu0 0
      %1029 = vmatmul.mubr.bf16.gmra.mrb[0].mxu0 %v846
      %v1030 = vpop.f32.mrb[0].mxu0
      %v1031 = vadd.f32 %v225, %v1030
      %v1032 = vpop.f32.mrb[0].mxu0
      %v1033 = vpop.f32.mrb[0].mxu0
      %v1034 = vadd.f32 %v225, %v1033
      %v1035 = vpop.f32.mrb[0].mxu0
      %1036 = vmatprep.mubr.bf16.mxu0 0
      %1037 = vmatmul.mubr.bf16.gmra.mrb[0].mxu0 %v847
      %v1038 = vpop.f32.mrb[0].mxu0
      %v1039 = vadd.f32 %v225, %v1038
      %v1040 = vpop.f32.mrb[0].mxu0
      %v1041 = vpop.f32.mrb[0].mxu0
      %v1042 = vadd.f32 %v225, %v1041
      %v1043 = vpop.f32.mrb[0].mxu0
      %1044 = vmatprep.mubr.bf16.mxu0 0
      %1045 = vmatmul.mubr.bf16.gmra.mrb[0].mxu0 %v848
      %v1046 = vpop.f32.mrb[0].mxu0
      %v1047 = vadd.f32 %v225, %v1046
      %v1048 = vpop.f32.mrb[0].mxu0
      %v1049 = vpop.f32.mrb[0].mxu0
      %v1050 = vadd.f32 %v225, %v1049
      %v1051 = vpop.f32.mrb[0].mxu0
      %1052 = vmatprep.mubr.bf16.mxu0 0
      %1053 = vmatmul.mubr.bf16.gmra.mrb[0].mxu0 %v849
      %v1054 = vpop.f32.mrb[0].mxu0
      %v1055 = vadd.f32 %v225, %v1054
      %v1056 = vpop.f32.mrb[0].mxu0
      %v1057 = vpop.f32.mrb[0].mxu0
      %v1058 = vadd.f32 %v225, %v1057
      %v1059 = vpop.f32.mrb[0].mxu0
      %1060 = vmatprep.mubr.bf16.mxu0 0
      %1061 = vmatmul.mubr.bf16.gmra.mrb[0].mxu0 %v850
      %v1062 = vpop.f32.mrb[0].mxu0
      %v1063 = vadd.f32 %v225, %v1062
      %v1064 = vpop.f32.mrb[0].mxu0
      %v1065 = vpop.f32.mrb[0].mxu0
      %v1066 = vadd.f32 %v225, %v1065
      %v1067 = vpop.f32.mrb[0].mxu0
      %1068 = vmatprep.mubr.bf16.mxu0 0
      %1069 = vmatmul.mubr.bf16.gmra.mrb[0].mxu0 %v851
      %v1070 = vpop.f32.mrb[0].mxu0
      %v1071 = vadd.f32 %v225, %v1070
      %v1072 = vpop.f32.mrb[0].mxu0
      %v1073 = vpop.f32.mrb[0].mxu0
      %v1074 = vadd.f32 %v225, %v1073
      %v1075 = vpop.f32.mrb[0].mxu0
      %1076 = vdwg.mxu0
      %v1077 = vmax.f32 %v951, 0.0
      %v1078 = vmax.f32 %v954, 0.0
      %v1079 = vmax.f32 %v959, 0.0
      %v1080 = vmax.f32 %v962, 0.0
      %v1081 = vmax.f32 %v967, 0.0
      %v1082 = vmax.f32 %v970, 0.0
      %v1083 = vmax.f32 %v975, 0.0
      %v1084 = vmax.f32 %v978, 0.0
      %v1085 = vmax.f32 %v983, 0.0
      %v1086 = vmax.f32 %v986, 0.0
      %v1087 = vmax.f32 %v991, 0.0
      %v1088 = vmax.f32 %v994, 0.0
      %v1089 = vmax.f32 %v999, 0.0
      %v1090 = vmax.f32 %v1002, 0.0
      %v1091 = vmax.f32 %v1007, 0.0
      %v1092 = vmax.f32 %v1010, 0.0
      %v1093 = vmax.f32 %v1015, 0.0
      %v1094 = vmax.f32 %v1018, 0.0
      %v1095 = vmax.f32 %v1023, 0.0
      %v1096 = vmax.f32 %v1026, 0.0
      %v1097 = vmax.f32 %v1031, 0.0
      %v1098 = vmax.f32 %v1034, 0.0
      %v1099 = vmax.f32 %v1039, 0.0
      %v1100 = vmax.f32 %v1042, 0.0
      %v1101 = vmax.f32 %v1047, 0.0
      %v1102 = vmax.f32 %v1050, 0.0
      %v1103 = vmax.f32 %v1055, 0.0
      %v1104 = vmax.f32 %v1058, 0.0
      %v1105 = vmax.f32 %v1063, 0.0
      %v1106 = vmax.f32 %v1066, 0.0
      %v1107 = vmax.f32 %v1071, 0.0
      %v1108 = vmax.f32 %v1074, 0.0
      %v1109 = vpack.c.bf16 %v1078, %v1077
      %v1110 = vpack.c.bf16 %v1080, %v1079
      %v1111 = vpack.c.bf16 %v1082, %v1081
      %v1112 = vpack.c.bf16 %v1084, %v1083
      %v1113 = vpack.c.bf16 %v1086, %v1085
      %v1114 = vpack.c.bf16 %v1088, %v1087
      %v1115 = vpack.c.bf16 %v1090, %v1089
      %v1116 = vpack.c.bf16 %v1092, %v1091
      %v1117 = vpack.c.bf16 %v1094, %v1093
      %v1118 = vpack.c.bf16 %v1096, %v1095
      %v1119 = vpack.c.bf16 %v1098, %v1097
      %v1120 = vpack.c.bf16 %v1100, %v1099
      %v1121 = vpack.c.bf16 %v1102, %v1101
      %v1122 = vpack.c.bf16 %v1104, %v1103
      %v1123 = vpack.c.bf16 %v1106, %v1105
      %v1124 = vpack.c.bf16 %v1108, %v1107
      %v1141 = vunpack.c.l.b16 %v1109
      %v1142 = vunpack.c.h.b16 %v1109
      %v1143 = vunpack.c.l.b16 %v1110
      %v1144 = vunpack.c.h.b16 %v1110
      %v1145 = vunpack.c.l.b16 %v1111
      %v1146 = vunpack.c.h.b16 %v1111
      %v1147 = vunpack.c.l.b16 %v1112
      %v1148 = vunpack.c.h.b16 %v1112
      %v1149 = vunpack.c.l.b16 %v1113
      %v1150 = vunpack.c.h.b16 %v1113
      %v1151 = vunpack.c.l.b16 %v1114
      %v1152 = vunpack.c.h.b16 %v1114
      %v1153 = vunpack.c.l.b16 %v1115
      %v1154 = vunpack.c.h.b16 %v1115
      %v1155 = vunpack.c.l.b16 %v1116
      %v1156 = vunpack.c.h.b16 %v1116
      %v1157 = vunpack.c.l.b16 %v1117
      %v1158 = vunpack.c.h.b16 %v1117
      %v1159 = vunpack.c.l.b16 %v1118
      %v1160 = vunpack.c.h.b16 %v1118
      %v1161 = vunpack.c.l.b16 %v1119
      %v1162 = vunpack.c.h.b16 %v1119
      %v1163 = vunpack.c.l.b16 %v1120
      %v1164 = vunpack.c.h.b16 %v1120
      %v1165 = vunpack.c.l.b16 %v1121
      %v1166 = vunpack.c.h.b16 %v1121
      %v1167 = vunpack.c.l.b16 %v1122
      %v1168 = vunpack.c.h.b16 %v1122
      %v1169 = vunpack.c.l.b16 %v1123
      %v1170 = vunpack.c.h.b16 %v1123
      %v1171 = vunpack.c.l.b16 %v1124
      %v1172 = vunpack.c.h.b16 %v1124
      %v1173 = vpack.c.b16 %v1141, %v1141
      %v1174 = vpack.c.b16 %v1142, %v1142
      %v1175 = vpack.c.b16 %v1143, %v1143
      %v1176 = vpack.c.b16 %v1144, %v1144
      %v1177 = vpack.c.b16 %v1145, %v1145
      %v1178 = vpack.c.b16 %v1146, %v1146
      %v1179 = vpack.c.b16 %v1147, %v1147
      %v1180 = vpack.c.b16 %v1148, %v1148
      %v1181 = vpack.c.b16 %v1149, %v1149
      %v1182 = vpack.c.b16 %v1150, %v1150
      %v1183 = vpack.c.b16 %v1151, %v1151
      %v1184 = vpack.c.b16 %v1152, %v1152
      %v1185 = vpack.c.b16 %v1153, %v1153
      %v1186 = vpack.c.b16 %v1154, %v1154
      %v1187 = vpack.c.b16 %v1155, %v1155
      %v1188 = vpack.c.b16 %v1156, %v1156
      %v1189 = vpack.c.b16 %v1157, %v1157
      %v1190 = vpack.c.b16 %v1158, %v1158
      %v1191 = vpack.c.b16 %v1159, %v1159
      %v1192 = vpack.c.b16 %v1160, %v1160
      %v1193 = vpack.c.b16 %v1161, %v1161
      %v1194 = vpack.c.b16 %v1162, %v1162
      %v1195 = vpack.c.b16 %v1163, %v1163
      %v1196 = vpack.c.b16 %v1164, %v1164
      %v1197 = vpack.c.b16 %v1165, %v1165
      %v1198 = vpack.c.b16 %v1166, %v1166
      %v1199 = vpack.c.b16 %v1167, %v1167
      %v1200 = vpack.c.b16 %v1168, %v1168
      %v1201 = vpack.c.b16 %v1169, %v1169
      %v1202 = vpack.c.b16 %v1170, %v1170
      %v1203 = vpack.c.b16 %v1171, %v1171
      %v1204 = vpack.c.b16 %v1172, %v1172
      %1237 = vst [vmem:[%s170 + $0x80] sm:$0xf] %v1173
      %1238 = vst [vmem:[%s170 + $0x84] sm:$0xf] %v1174
      %1239 = vst [vmem:[%s170 + $0x88] sm:$0xf] %v1175
      %1240 = vst [vmem:[%s170 + $0x8c] sm:$0xf] %v1176
      %1241 = vst [vmem:[%s170 + $0x90] sm:$0xf] %v1177
      %1242 = vst [vmem:[%s170 + $0x94] sm:$0xf] %v1178
      %1243 = vst [vmem:[%s170 + $0x98] sm:$0xf] %v1179
      %1244 = vst [vmem:[%s170 + $0x9c] sm:$0xf] %v1180
      %1245 = vst [vmem:[%s170 + $0xa0] sm:$0xf] %v1181
      %1246 = vst [vmem:[%s170 + $0xa4] sm:$0xf] %v1182
      %1247 = vst [vmem:[%s170 + $0xa8] sm:$0xf] %v1183
      %1248 = vst [vmem:[%s170 + $0xac] sm:$0xf] %v1184
      %1249 = vst [vmem:[%s170 + $0xb0] sm:$0xf] %v1185
      %1250 = vst [vmem:[%s170 + $0xb4] sm:$0xf] %v1186
      %1251 = vst [vmem:[%s170 + $0xb8] sm:$0xf] %v1187
      %1252 = vst [vmem:[%s170 + $0xbc] sm:$0xf] %v1188
      %1253 = vst [vmem:[%s170 + $0xc0] sm:$0xf] %v1189
      %1254 = vst [vmem:[%s170 + $0xc4] sm:$0xf] %v1190
      %1255 = vst [vmem:[%s170 + $0xc8] sm:$0xf] %v1191
      %1256 = vst [vmem:[%s170 + $0xcc] sm:$0xf] %v1192
      %1257 = vst [vmem:[%s170 + $0xd0] sm:$0xf] %v1193
      %1258 = vst [vmem:[%s170 + $0xd4] sm:$0xf] %v1194
      %1259 = vst [vmem:[%s170 + $0xd8] sm:$0xf] %v1195
      %1260 = vst [vmem:[%s170 + $0xdc] sm:$0xf] %v1196
      %1261 = vst [vmem:[%s170 + $0xe0] sm:$0xf] %v1197
      %1262 = vst [vmem:[%s170 + $0xe4] sm:$0xf] %v1198
      %1263 = vst [vmem:[%s170 + $0xe8] sm:$0xf] %v1199
      %1264 = vst [vmem:[%s170 + $0xec] sm:$0xf] %v1200
      %1265 = vst [vmem:[%s170 + $0xf0] sm:$0xf] %v1201
      %1266 = vst [vmem:[%s170 + $0xf4] sm:$0xf] %v1202
      %1267 = vst [vmem:[%s170 + $0xf8] sm:$0xf] %v1203
      %1268 = vst [vmem:[%s170 + $0xfc] sm:$0xf] %v1204
      %v1269 = vld [vmem:[%s165 + $0x100] sm:$0xf]
      %v1270 = vld [vmem:[%s165 + $0x104] sm:$0xf]
      %v1271 = vld [vmem:[%s165 + $0x108] sm:$0xf]
      %v1272 = vld [vmem:[%s165 + $0x10c] sm:$0xf]
      %v1273 = vld [vmem:[%s165 + $0x110] sm:$0xf]
      %v1274 = vld [vmem:[%s165 + $0x114] sm:$0xf]
      %v1275 = vld [vmem:[%s165 + $0x118] sm:$0xf]
      %v1276 = vld [vmem:[%s165 + $0x11c] sm:$0xf]
      %v1277 = vld [vmem:[%s165 + $0x120] sm:$0xf]
      %v1278 = vld [vmem:[%s165 + $0x124] sm:$0xf]
      %v1279 = vld [vmem:[%s165 + $0x128] sm:$0xf]
      %v1280 = vld [vmem:[%s165 + $0x12c] sm:$0xf]
      %v1281 = vld [vmem:[%s165 + $0x130] sm:$0xf]
      %v1282 = vld [vmem:[%s165 + $0x134] sm:$0xf]
      %v1283 = vld [vmem:[%s165 + $0x138] sm:$0xf]
      %v1284 = vld [vmem:[%s165 + $0x13c] sm:$0xf]
      %v1285 = vld [vmem:[%s165 + $0x140] sm:$0xf]
      %v1286 = vld [vmem:[%s165 + $0x144] sm:$0xf]
      %v1287 = vld [vmem:[%s165 + $0x148] sm:$0xf]
      %v1288 = vld [vmem:[%s165 + $0x14c] sm:$0xf]
      %v1289 = vld [vmem:[%s165 + $0x150] sm:$0xf]
      %v1290 = vld [vmem:[%s165 + $0x154] sm:$0xf]
      %v1291 = vld [vmem:[%s165 + $0x158] sm:$0xf]
      %v1292 = vld [vmem:[%s165 + $0x15c] sm:$0xf]
      %v1293 = vld [vmem:[%s165 + $0x160] sm:$0xf]
      %v1294 = vld [vmem:[%s165 + $0x164] sm:$0xf]
      %v1295 = vld [vmem:[%s165 + $0x168] sm:$0xf]
      %v1296 = vld [vmem:[%s165 + $0x16c] sm:$0xf]
      %v1297 = vld [vmem:[%s165 + $0x170] sm:$0xf]
      %v1298 = vld [vmem:[%s165 + $0x174] sm:$0xf]
      %v1299 = vld [vmem:[%s165 + $0x178] sm:$0xf]
      %v1300 = vld [vmem:[%s165 + $0x17c] sm:$0xf]
      %v1301 = vld [vmem:[%s1] sm:$0xf]
      %v1302 = vld [vmem:[%s1 + $0x4] sm:$0xf]
      %v1303 = vld [vmem:[%s1 + $0x8] sm:$0xf]
      %v1304 = vld [vmem:[%s1 + $0xc] sm:$0xf]
      %v1305 = vld [vmem:[%s1 + $0x10] sm:$0xf]
      %v1306 = vld [vmem:[%s1 + $0x14] sm:$0xf]
      %v1307 = vld [vmem:[%s1 + $0x18] sm:$0xf]
      %v1308 = vld [vmem:[%s1 + $0x1c] sm:$0xf]
      %v1309 = vld [vmem:[%s1 + $0x20] sm:$0xf]
      %v1310 = vld [vmem:[%s1 + $0x24] sm:$0xf]
      %v1311 = vld [vmem:[%s1 + $0x28] sm:$0xf]
      %v1312 = vld [vmem:[%s1 + $0x2c] sm:$0xf]
      %v1313 = vld [vmem:[%s1 + $0x30] sm:$0xf]
      %v1314 = vld [vmem:[%s1 + $0x34] sm:$0xf]
      %v1315 = vld [vmem:[%s1 + $0x38] sm:$0xf]
      %v1316 = vld [vmem:[%s1 + $0x3c] sm:$0xf]
      %v1349 = vunpack.c.l.b16 %v1269
      %v1350 = vunpack.c.l.b16 %v1270
      %v1351 = vunpack.c.l.b16 %v1271
      %v1352 = vunpack.c.l.b16 %v1272
      %v1353 = vunpack.c.l.b16 %v1273
      %v1354 = vunpack.c.l.b16 %v1274
      %v1355 = vunpack.c.l.b16 %v1275
      %v1356 = vunpack.c.l.b16 %v1276
      %v1357 = vunpack.c.l.b16 %v1277
      %v1358 = vunpack.c.l.b16 %v1278
      %v1359 = vunpack.c.l.b16 %v1279
      %v1360 = vunpack.c.l.b16 %v1280
      %v1361 = vunpack.c.l.b16 %v1281
      %v1362 = vunpack.c.l.b16 %v1282
      %v1363 = vunpack.c.l.b16 %v1283
      %v1364 = vunpack.c.l.b16 %v1284
      %v1365 = vunpack.c.l.b16 %v1285
      %v1366 = vunpack.c.l.b16 %v1286
      %v1367 = vunpack.c.l.b16 %v1287
      %v1368 = vunpack.c.l.b16 %v1288
      %v1369 = vunpack.c.l.b16 %v1289
      %v1370 = vunpack.c.l.b16 %v1290
      %v1371 = vunpack.c.l.b16 %v1291
      %v1372 = vunpack.c.l.b16 %v1292
      %v1373 = vunpack.c.l.b16 %v1293
      %v1374 = vunpack.c.l.b16 %v1294
      %v1375 = vunpack.c.l.b16 %v1295
      %v1376 = vunpack.c.l.b16 %v1296
      %v1377 = vunpack.c.l.b16 %v1297
      %v1378 = vunpack.c.l.b16 %v1298
      %v1379 = vunpack.c.l.b16 %v1299
      %v1380 = vunpack.c.l.b16 %v1300
      %v1381 = vpack.c.b16 %v1350, %v1349
      %v1382 = vpack.c.b16 %v1352, %v1351
      %v1383 = vpack.c.b16 %v1354, %v1353
      %v1384 = vpack.c.b16 %v1356, %v1355
      %v1385 = vpack.c.b16 %v1358, %v1357
      %v1386 = vpack.c.b16 %v1360, %v1359
      %v1387 = vpack.c.b16 %v1362, %v1361
      %v1388 = vpack.c.b16 %v1364, %v1363
      %v1389 = vpack.c.b16 %v1366, %v1365
      %v1390 = vpack.c.b16 %v1368, %v1367
      %v1391 = vpack.c.b16 %v1370, %v1369
      %v1392 = vpack.c.b16 %v1372, %v1371
      %v1393 = vpack.c.b16 %v1374, %v1373
      %v1394 = vpack.c.b16 %v1376, %v1375
      %v1395 = vpack.c.b16 %v1378, %v1377
      %v1396 = vpack.c.b16 %v1380, %v1379
      %v1429 = vunpack.c.l.b16 %v1301
      %v1430 = vunpack.c.l.b16 %v1302
      %v1431 = vunpack.c.l.b16 %v1303
      %v1432 = vunpack.c.l.b16 %v1304
      %v1433 = vunpack.c.l.b16 %v1305
      %v1434 = vunpack.c.l.b16 %v1306
      %v1435 = vunpack.c.l.b16 %v1307
      %v1436 = vunpack.c.l.b16 %v1308
      %v1437 = vunpack.c.l.b16 %v1309
      %v1438 = vunpack.c.l.b16 %v1310
      %v1439 = vunpack.c.l.b16 %v1311
      %v1440 = vunpack.c.l.b16 %v1312
      %v1441 = vunpack.c.l.b16 %v1313
      %v1442 = vunpack.c.l.b16 %v1314
      %v1443 = vunpack.c.l.b16 %v1315
      %v1444 = vunpack.c.l.b16 %v1316
      %v1445 = vpack.c.b16 %v1430, %v1429
      %v1446 = vpack.c.b16 %v1432, %v1431
      %v1447 = vpack.c.b16 %v1434, %v1433
      %v1448 = vpack.c.b16 %v1436, %v1435
      %v1449 = vpack.c.b16 %v1438, %v1437
      %v1450 = vpack.c.b16 %v1440, %v1439
      %v1451 = vpack.c.b16 %v1442, %v1441
      %v1452 = vpack.c.b16 %v1444, %v1443
      %1461 = vmatprep.subr.bf16.mxu0 0
      %1462 = vmatpush1.bf16.msra.mxu0 %v1445
      %1463 = vmatprep.subr.bf16.mxu0 0
      %1464 = vmatpush1.bf16.msra.mxu0 %v1446
      %1465 = vmatprep.subr.bf16.mxu0 0
      %1466 = vmatpush1.bf16.msra.mxu0 %v1447
      %1467 = vmatprep.subr.bf16.mxu0 0
      %1468 = vmatpush1.bf16.msra.mxu0 %v1448
      %1469 = vmatprep.subr.bf16.mxu0 0
      %1470 = vmatpush1.bf16.msra.mxu0 %v1449
      %1471 = vmatprep.subr.bf16.mxu0 0
      %1472 = vmatpush1.bf16.msra.mxu0 %v1450
      %1473 = vmatprep.subr.bf16.mxu0 0
      %1474 = vmatpush1.bf16.msra.mxu0 %v1451
      %1475 = vmatprep.subr.bf16.mxu0 0
      %1476 = vmatpush1.bf16.msra.mxu0 %v1452
      %1477 = vmatprep.subr.bf16.mxu0 0
      %1478 = vmatpush1.bf16.msra.mxu0 0
      %1479 = vmatprep.subr.bf16.mxu0 0
      %1480 = vmatpush1.bf16.msra.mxu0 0
      %1481 = vmatprep.subr.bf16.mxu0 0
      %1482 = vmatpush1.bf16.msra.mxu0 0
      %1483 = vmatprep.subr.bf16.mxu0 0
      %1484 = vmatpush1.bf16.msra.mxu0 0
      %1485 = vmatprep.subr.bf16.mxu0 0
      %1486 = vmatpush1.bf16.msra.mxu0 0
      %1487 = vmatprep.subr.bf16.mxu0 0
      %1488 = vmatpush1.bf16.msra.mxu0 0
      %1489 = vmatprep.subr.bf16.mxu0 0
      %1490 = vmatpush1.bf16.msra.mxu0 0
      %1491 = vmatprep.subr.bf16.mxu0 0
      %1492 = vmatpush1.bf16.msra.mxu0 0
      %1493 = vmatprep.mubr.bf16.mxu0 0
      %1494 = vmatmul.mubr.bf16.gmra.mrb[0].mxu0 %v1381
      %v1495 = vpop.f32.mrb[0].mxu0
      %v1496 = vadd.f32 %v225, %v1495
      %v1497 = vpop.f32.mrb[0].mxu0
      %v1498 = vpop.f32.mrb[0].mxu0
      %v1499 = vadd.f32 %v225, %v1498
      %v1500 = vpop.f32.mrb[0].mxu0
      %1501 = vmatprep.mubr.bf16.mxu0 0
      %1502 = vmatmul.mubr.bf16.gmra.mrb[0].mxu0 %v1382
      %v1503 = vpop.f32.mrb[0].mxu0
      %v1504 = vadd.f32 %v225, %v1503
      %v1505 = vpop.f32.mrb[0].mxu0
      %v1506 = vpop.f32.mrb[0].mxu0
      %v1507 = vadd.f32 %v225, %v1506
      %v1508 = vpop.f32.mrb[0].mxu0
      %1509 = vmatprep.mubr.bf16.mxu0 0
      %1510 = vmatmul.mubr.bf16.gmra.mrb[0].mxu0 %v1383
      %v1511 = vpop.f32.mrb[0].mxu0
      %v1512 = vadd.f32 %v225, %v1511
      %v1513 = vpop.f32.mrb[0].mxu0
      %v1514 = vpop.f32.mrb[0].mxu0
      %v1515 = vadd.f32 %v225, %v1514
      %v1516 = vpop.f32.mrb[0].mxu0
      %1517 = vmatprep.mubr.bf16.mxu0 0
      %1518 = vmatmul.mubr.bf16.gmra.mrb[0].mxu0 %v1384
      %v1519 = vpop.f32.mrb[0].mxu0
      %v1520 = vadd.f32 %v225, %v1519
      %v1521 = vpop.f32.mrb[0].mxu0
      %v1522 = vpop.f32.mrb[0].mxu0
      %v1523 = vadd.f32 %v225, %v1522
      %v1524 = vpop.f32.mrb[0].mxu0
      %1525 = vmatprep.mubr.bf16.mxu0 0
      %1526 = vmatmul.mubr.bf16.gmra.mrb[0].mxu0 %v1385
      %v1527 = vpop.f32.mrb[0].mxu0
      %v1528 = vadd.f32 %v225, %v1527
      %v1529 = vpop.f32.mrb[0].mxu0
      %v1530 = vpop.f32.mrb[0].mxu0
      %v1531 = vadd.f32 %v225, %v1530
      %v1532 = vpop.f32.mrb[0].mxu0
      %1533 = vmatprep.mubr.bf16.mxu0 0
      %1534 = vmatmul.mubr.bf16.gmra.mrb[0].mxu0 %v1386
      %v1535 = vpop.f32.mrb[0].mxu0
      %v1536 = vadd.f32 %v225, %v1535
      %v1537 = vpop.f32.mrb[0].mxu0
      %v1538 = vpop.f32.mrb[0].mxu0
      %v1539 = vadd.f32 %v225, %v1538
      %v1540 = vpop.f32.mrb[0].mxu0
      %1541 = vmatprep.mubr.bf16.mxu0 0
      %1542 = vmatmul.mubr.bf16.gmra.mrb[0].mxu0 %v1387
      %v1543 = vpop.f32.mrb[0].mxu0
      %v1544 = vadd.f32 %v225, %v1543
      %v1545 = vpop.f32.mrb[0].mxu0
      %v1546 = vpop.f32.mrb[0].mxu0
      %v1547 = vadd.f32 %v225, %v1546
      %v1548 = vpop.f32.mrb[0].mxu0
      %1549 = vmatprep.mubr.bf16.mxu0 0
      %1550 = vmatmul.mubr.bf16.gmra.mrb[0].mxu0 %v1388
      %v1551 = vpop.f32.mrb[0].mxu0
      %v1552 = vadd.f32 %v225, %v1551
      %v1553 = vpop.f32.mrb[0].mxu0
      %v1554 = vpop.f32.mrb[0].mxu0
      %v1555 = vadd.f32 %v225, %v1554
      %v1556 = vpop.f32.mrb[0].mxu0
      %1557 = vmatprep.mubr.bf16.mxu0 0
      %1558 = vmatmul.mubr.bf16.gmra.mrb[0].mxu0 %v1389
      %v1559 = vpop.f32.mrb[0].mxu0
      %v1560 = vadd.f32 %v225, %v1559
      %v1561 = vpop.f32.mrb[0].mxu0
      %v1562 = vpop.f32.mrb[0].mxu0
      %v1563 = vadd.f32 %v225, %v1562
      %v1564 = vpop.f32.mrb[0].mxu0
      %1565 = vmatprep.mubr.bf16.mxu0 0
      %1566 = vmatmul.mubr.bf16.gmra.mrb[0].mxu0 %v1390
      %v1567 = vpop.f32.mrb[0].mxu0
      %v1568 = vadd.f32 %v225, %v1567
      %v1569 = vpop.f32.mrb[0].mxu0
      %v1570 = vpop.f32.mrb[0].mxu0
      %v1571 = vadd.f32 %v225, %v1570
      %v1572 = vpop.f32.mrb[0].mxu0
      %1573 = vmatprep.mubr.bf16.mxu0 0
      %1574 = vmatmul.mubr.bf16.gmra.mrb[0].mxu0 %v1391
      %v1575 = vpop.f32.mrb[0].mxu0
      %v1576 = vadd.f32 %v225, %v1575
      %v1577 = vpop.f32.mrb[0].mxu0
      %v1578 = vpop.f32.mrb[0].mxu0
      %v1579 = vadd.f32 %v225, %v1578
      %v1580 = vpop.f32.mrb[0].mxu0
      %1581 = vmatprep.mubr.bf16.mxu0 0
      %1582 = vmatmul.mubr.bf16.gmra.mrb[0].mxu0 %v1392
      %v1583 = vpop.f32.mrb[0].mxu0
      %v1584 = vadd.f32 %v225, %v1583
      %v1585 = vpop.f32.mrb[0].mxu0
      %v1586 = vpop.f32.mrb[0].mxu0
      %v1587 = vadd.f32 %v225, %v1586
      %v1588 = vpop.f32.mrb[0].mxu0
      %1589 = vmatprep.mubr.bf16.mxu0 0
      %1590 = vmatmul.mubr.bf16.gmra.mrb[0].mxu0 %v1393
      %v1591 = vpop.f32.mrb[0].mxu0
      %v1592 = vadd.f32 %v225, %v1591
      %v1593 = vpop.f32.mrb[0].mxu0
      %v1594 = vpop.f32.mrb[0].mxu0
      %v1595 = vadd.f32 %v225, %v1594
      %v1596 = vpop.f32.mrb[0].mxu0
      %1597 = vmatprep.mubr.bf16.mxu0 0
      %1598 = vmatmul.mubr.bf16.gmra.mrb[0].mxu0 %v1394
      %v1599 = vpop.f32.mrb[0].mxu0
      %v1600 = vadd.f32 %v225, %v1599
      %v1601 = vpop.f32.mrb[0].mxu0
      %v1602 = vpop.f32.mrb[0].mxu0
      %v1603 = vadd.f32 %v225, %v1602
      %v1604 = vpop.f32.mrb[0].mxu0
      %1605 = vmatprep.mubr.bf16.mxu0 0
      %1606 = vmatmul.mubr.bf16.gmra.mrb[0].mxu0 %v1395
      %v1607 = vpop.f32.mrb[0].mxu0
      %v1608 = vadd.f32 %v225, %v1607
      %v1609 = vpop.f32.mrb[0].mxu0
      %v1610 = vpop.f32.mrb[0].mxu0
      %v1611 = vadd.f32 %v225, %v1610
      %v1612 = vpop.f32.mrb[0].mxu0
      %1613 = vmatprep.mubr.bf16.mxu0 0
      %1614 = vmatmul.mubr.bf16.gmra.mrb[0].mxu0 %v1396
      %v1615 = vpop.f32.mrb[0].mxu0
      %v1616 = vadd.f32 %v225, %v1615
      %v1617 = vpop.f32.mrb[0].mxu0
      %v1618 = vpop.f32.mrb[0].mxu0
      %v1619 = vadd.f32 %v225, %v1618
      %v1620 = vpop.f32.mrb[0].mxu0
      %1621 = vdwg.mxu0
      %v1622 = vmax.f32 %v1496, 0.0
      %v1623 = vmax.f32 %v1499, 0.0
      %v1624 = vmax.f32 %v1504, 0.0
      %v1625 = vmax.f32 %v1507, 0.0
      %v1626 = vmax.f32 %v1512, 0.0
      %v1627 = vmax.f32 %v1515, 0.0
      %v1628 = vmax.f32 %v1520, 0.0
      %v1629 = vmax.f32 %v1523, 0.0
      %v1630 = vmax.f32 %v1528, 0.0
      %v1631 = vmax.f32 %v1531, 0.0
      %v1632 = vmax.f32 %v1536, 0.0
      %v1633 = vmax.f32 %v1539, 0.0
      %v1634 = vmax.f32 %v1544, 0.0
      %v1635 = vmax.f32 %v1547, 0.0
      %v1636 = vmax.f32 %v1552, 0.0
      %v1637 = vmax.f32 %v1555, 0.0
      %v1638 = vmax.f32 %v1560, 0.0
      %v1639 = vmax.f32 %v1563, 0.0
      %v1640 = vmax.f32 %v1568, 0.0
      %v1641 = vmax.f32 %v1571, 0.0
      %v1642 = vmax.f32 %v1576, 0.0
      %v1643 = vmax.f32 %v1579, 0.0
      %v1644 = vmax.f32 %v1584, 0.0
      %v1645 = vmax.f32 %v1587, 0.0
      %v1646 = vmax.f32 %v1592, 0.0
      %v1647 = vmax.f32 %v1595, 0.0
      %v1648 = vmax.f32 %v1600, 0.0
      %v1649 = vmax.f32 %v1603, 0.0
      %v1650 = vmax.f32 %v1608, 0.0
      %v1651 = vmax.f32 %v1611, 0.0
      %v1652 = vmax.f32 %v1616, 0.0
      %v1653 = vmax.f32 %v1619, 0.0
      %v1654 = vpack.c.bf16 %v1623, %v1622
      %v1655 = vpack.c.bf16 %v1625, %v1624
      %v1656 = vpack.c.bf16 %v1627, %v1626
      %v1657 = vpack.c.bf16 %v1629, %v1628
      %v1658 = vpack.c.bf16 %v1631, %v1630
      %v1659 = vpack.c.bf16 %v1633, %v1632
      %v1660 = vpack.c.bf16 %v1635, %v1634
      %v1661 = vpack.c.bf16 %v1637, %v1636
      %v1662 = vpack.c.bf16 %v1639, %v1638
      %v1663 = vpack.c.bf16 %v1641, %v1640
      %v1664 = vpack.c.bf16 %v1643, %v1642
      %v1665 = vpack.c.bf16 %v1645, %v1644
      %v1666 = vpack.c.bf16 %v1647, %v1646
      %v1667 = vpack.c.bf16 %v1649, %v1648
      %v1668 = vpack.c.bf16 %v1651, %v1650
      %v1669 = vpack.c.bf16 %v1653, %v1652
      %v1686 = vunpack.c.l.b16 %v1654
      %v1687 = vunpack.c.h.b16 %v1654
      %v1688 = vunpack.c.l.b16 %v1655
      %v1689 = vunpack.c.h.b16 %v1655
      %v1690 = vunpack.c.l.b16 %v1656
      %v1691 = vunpack.c.h.b16 %v1656
      %v1692 = vunpack.c.l.b16 %v1657
      %v1693 = vunpack.c.h.b16 %v1657
      %v1694 = vunpack.c.l.b16 %v1658
      %v1695 = vunpack.c.h.b16 %v1658
      %v1696 = vunpack.c.l.b16 %v1659
      %v1697 = vunpack.c.h.b16 %v1659
      %v1698 = vunpack.c.l.b16 %v1660
      %v1699 = vunpack.c.h.b16 %v1660
      %v1700 = vunpack.c.l.b16 %v1661
      %v1701 = vunpack.c.h.b16 %v1661
      %v1702 = vunpack.c.l.b16 %v1662
      %v1703 = vunpack.c.h.b16 %v1662
      %v1704 = vunpack.c.l.b16 %v1663
      %v1705 = vunpack.c.h.b16 %v1663
      %v1706 = vunpack.c.l.b16 %v1664
      %v1707 = vunpack.c.h.b16 %v1664
      %v1708 = vunpack.c.l.b16 %v1665
      %v1709 = vunpack.c.h.b16 %v1665
      %v1710 = vunpack.c.l.b16 %v1666
      %v1711 = vunpack.c.h.b16 %v1666
      %v1712 = vunpack.c.l.b16 %v1667
      %v1713 = vunpack.c.h.b16 %v1667
      %v1714 = vunpack.c.l.b16 %v1668
      %v1715 = vunpack.c.h.b16 %v1668
      %v1716 = vunpack.c.l.b16 %v1669
      %v1717 = vunpack.c.h.b16 %v1669
      %v1718 = vpack.c.b16 %v1686, %v1686
      %v1719 = vpack.c.b16 %v1687, %v1687
      %v1720 = vpack.c.b16 %v1688, %v1688
      %v1721 = vpack.c.b16 %v1689, %v1689
      %v1722 = vpack.c.b16 %v1690, %v1690
      %v1723 = vpack.c.b16 %v1691, %v1691
      %v1724 = vpack.c.b16 %v1692, %v1692
      %v1725 = vpack.c.b16 %v1693, %v1693
      %v1726 = vpack.c.b16 %v1694, %v1694
      %v1727 = vpack.c.b16 %v1695, %v1695
      %v1728 = vpack.c.b16 %v1696, %v1696
      %v1729 = vpack.c.b16 %v1697, %v1697
      %v1730 = vpack.c.b16 %v1698, %v1698
      %v1731 = vpack.c.b16 %v1699, %v1699
      %v1732 = vpack.c.b16 %v1700, %v1700
      %v1733 = vpack.c.b16 %v1701, %v1701
      %v1734 = vpack.c.b16 %v1702, %v1702
      %v1735 = vpack.c.b16 %v1703, %v1703
      %v1736 = vpack.c.b16 %v1704, %v1704
      %v1737 = vpack.c.b16 %v1705, %v1705
      %v1738 = vpack.c.b16 %v1706, %v1706
      %v1739 = vpack.c.b16 %v1707, %v1707
      %v1740 = vpack.c.b16 %v1708, %v1708
      %v1741 = vpack.c.b16 %v1709, %v1709
      %v1742 = vpack.c.b16 %v1710, %v1710
      %v1743 = vpack.c.b16 %v1711, %v1711
      %v1744 = vpack.c.b16 %v1712, %v1712
      %v1745 = vpack.c.b16 %v1713, %v1713
      %v1746 = vpack.c.b16 %v1714, %v1714
      %v1747 = vpack.c.b16 %v1715, %v1715
      %v1748 = vpack.c.b16 %v1716, %v1716
      %v1749 = vpack.c.b16 %v1717, %v1717
      %1782 = vst [vmem:[%s170 + $0x100] sm:$0xf] %v1718
      %1783 = vst [vmem:[%s170 + $0x104] sm:$0xf] %v1719
      %1784 = vst [vmem:[%s170 + $0x108] sm:$0xf] %v1720
      %1785 = vst [vmem:[%s170 + $0x10c] sm:$0xf] %v1721
      %1786 = vst [vmem:[%s170 + $0x110] sm:$0xf] %v1722
      %1787 = vst [vmem:[%s170 + $0x114] sm:$0xf] %v1723
      %1788 = vst [vmem:[%s170 + $0x118] sm:$0xf] %v1724
      %1789 = vst [vmem:[%s170 + $0x11c] sm:$0xf] %v1725
      %1790 = vst [vmem:[%s170 + $0x120] sm:$0xf] %v1726
      %1791 = vst [vmem:[%s170 + $0x124] sm:$0xf] %v1727
      %1792 = vst [vmem:[%s170 + $0x128] sm:$0xf] %v1728
      %1793 = vst [vmem:[%s170 + $0x12c] sm:$0xf] %v1729
      %1794 = vst [vmem:[%s170 + $0x130] sm:$0xf] %v1730
      %1795 = vst [vmem:[%s170 + $0x134] sm:$0xf] %v1731
      %1796 = vst [vmem:[%s170 + $0x138] sm:$0xf] %v1732
      %1797 = vst [vmem:[%s170 + $0x13c] sm:$0xf] %v1733
      %1798 = vst [vmem:[%s170 + $0x140] sm:$0xf] %v1734
      %1799 = vst [vmem:[%s170 + $0x144] sm:$0xf] %v1735
      %1800 = vst [vmem:[%s170 + $0x148] sm:$0xf] %v1736
      %1801 = vst [vmem:[%s170 + $0x14c] sm:$0xf] %v1737
      %1802 = vst [vmem:[%s170 + $0x150] sm:$0xf] %v1738
      %1803 = vst [vmem:[%s170 + $0x154] sm:$0xf] %v1739
      %1804 = vst [vmem:[%s170 + $0x158] sm:$0xf] %v1740
      %1805 = vst [vmem:[%s170 + $0x15c] sm:$0xf] %v1741
      %1806 = vst [vmem:[%s170 + $0x160] sm:$0xf] %v1742
      %1807 = vst [vmem:[%s170 + $0x164] sm:$0xf] %v1743
      %1808 = vst [vmem:[%s170 + $0x168] sm:$0xf] %v1744
      %1809 = vst [vmem:[%s170 + $0x16c] sm:$0xf] %v1745
      %1810 = vst [vmem:[%s170 + $0x170] sm:$0xf] %v1746
      %1811 = vst [vmem:[%s170 + $0x174] sm:$0xf] %v1747
      %1812 = vst [vmem:[%s170 + $0x178] sm:$0xf] %v1748
      %1813 = vst [vmem:[%s170 + $0x17c] sm:$0xf] %v1749
      %v1814 = vld [vmem:[%s165 + $0x180] sm:$0xf]
      %v1815 = vld [vmem:[%s165 + $0x184] sm:$0xf]
      %v1816 = vld [vmem:[%s165 + $0x188] sm:$0xf]
      %v1817 = vld [vmem:[%s165 + $0x18c] sm:$0xf]
      %v1818 = vld [vmem:[%s165 + $0x190] sm:$0xf]
      %v1819 = vld [vmem:[%s165 + $0x194] sm:$0xf]
      %v1820 = vld [vmem:[%s165 + $0x198] sm:$0xf]
      %v1821 = vld [vmem:[%s165 + $0x19c] sm:$0xf]
      %v1822 = vld [vmem:[%s165 + $0x1a0] sm:$0xf]
      %v1823 = vld [vmem:[%s165 + $0x1a4] sm:$0xf]
      %v1824 = vld [vmem:[%s165 + $0x1a8] sm:$0xf]
      %v1825 = vld [vmem:[%s165 + $0x1ac] sm:$0xf]
      %v1826 = vld [vmem:[%s165 + $0x1b0] sm:$0xf]
      %v1827 = vld [vmem:[%s165 + $0x1b4] sm:$0xf]
      %v1828 = vld [vmem:[%s165 + $0x1b8] sm:$0xf]
      %v1829 = vld [vmem:[%s165 + $0x1bc] sm:$0xf]
      %v1830 = vld [vmem:[%s165 + $0x1c0] sm:$0xf]
      %v1831 = vld [vmem:[%s165 + $0x1c4] sm:$0xf]
      %v1832 = vld [vmem:[%s165 + $0x1c8] sm:$0xf]
      %v1833 = vld [vmem:[%s165 + $0x1cc] sm:$0xf]
      %v1834 = vld [vmem:[%s165 + $0x1d0] sm:$0xf]
      %v1835 = vld [vmem:[%s165 + $0x1d4] sm:$0xf]
      %v1836 = vld [vmem:[%s165 + $0x1d8] sm:$0xf]
      %v1837 = vld [vmem:[%s165 + $0x1dc] sm:$0xf]
      %v1838 = vld [vmem:[%s165 + $0x1e0] sm:$0xf]
      %v1839 = vld [vmem:[%s165 + $0x1e4] sm:$0xf]
      %v1840 = vld [vmem:[%s165 + $0x1e8] sm:$0xf]
      %v1841 = vld [vmem:[%s165 + $0x1ec] sm:$0xf]
      %v1842 = vld [vmem:[%s165 + $0x1f0] sm:$0xf]
      %v1843 = vld [vmem:[%s165 + $0x1f4] sm:$0xf]
      %v1844 = vld [vmem:[%s165 + $0x1f8] sm:$0xf]
      %v1845 = vld [vmem:[%s165 + $0x1fc] sm:$0xf]
      %v1846 = vld [vmem:[%s1] sm:$0xf]
      %v1847 = vld [vmem:[%s1 + $0x4] sm:$0xf]
      %v1848 = vld [vmem:[%s1 + $0x8] sm:$0xf]
      %v1849 = vld [vmem:[%s1 + $0xc] sm:$0xf]
      %v1850 = vld [vmem:[%s1 + $0x10] sm:$0xf]
      %v1851 = vld [vmem:[%s1 + $0x14] sm:$0xf]
      %v1852 = vld [vmem:[%s1 + $0x18] sm:$0xf]
      %v1853 = vld [vmem:[%s1 + $0x1c] sm:$0xf]
      %v1854 = vld [vmem:[%s1 + $0x20] sm:$0xf]
      %v1855 = vld [vmem:[%s1 + $0x24] sm:$0xf]
      %v1856 = vld [vmem:[%s1 + $0x28] sm:$0xf]
      %v1857 = vld [vmem:[%s1 + $0x2c] sm:$0xf]
      %v1858 = vld [vmem:[%s1 + $0x30] sm:$0xf]
      %v1859 = vld [vmem:[%s1 + $0x34] sm:$0xf]
      %v1860 = vld [vmem:[%s1 + $0x38] sm:$0xf]
      %v1861 = vld [vmem:[%s1 + $0x3c] sm:$0xf]
      %v1894 = vunpack.c.l.b16 %v1814
      %v1895 = vunpack.c.l.b16 %v1815
      %v1896 = vunpack.c.l.b16 %v1816
      %v1897 = vunpack.c.l.b16 %v1817
      %v1898 = vunpack.c.l.b16 %v1818
      %v1899 = vunpack.c.l.b16 %v1819
      %v1900 = vunpack.c.l.b16 %v1820
      %v1901 = vunpack.c.l.b16 %v1821
      %v1902 = vunpack.c.l.b16 %v1822
      %v1903 = vunpack.c.l.b16 %v1823
      %v1904 = vunpack.c.l.b16 %v1824
      %v1905 = vunpack.c.l.b16 %v1825
      %v1906 = vunpack.c.l.b16 %v1826
      %v1907 = vunpack.c.l.b16 %v1827
      %v1908 = vunpack.c.l.b16 %v1828
      %v1909 = vunpack.c.l.b16 %v1829
      %v1910 = vunpack.c.l.b16 %v1830
      %v1911 = vunpack.c.l.b16 %v1831
      %v1912 = vunpack.c.l.b16 %v1832
      %v1913 = vunpack.c.l.b16 %v1833
      %v1914 = vunpack.c.l.b16 %v1834
      %v1915 = vunpack.c.l.b16 %v1835
      %v1916 = vunpack.c.l.b16 %v1836
      %v1917 = vunpack.c.l.b16 %v1837
      %v1918 = vunpack.c.l.b16 %v1838
      %v1919 = vunpack.c.l.b16 %v1839
      %v1920 = vunpack.c.l.b16 %v1840
      %v1921 = vunpack.c.l.b16 %v1841
      %v1922 = vunpack.c.l.b16 %v1842
      %v1923 = vunpack.c.l.b16 %v1843
      %v1924 = vunpack.c.l.b16 %v1844
      %v1925 = vunpack.c.l.b16 %v1845
      %v1926 = vpack.c.b16 %v1895, %v1894
      %v1927 = vpack.c.b16 %v1897, %v1896
      %v1928 = vpack.c.b16 %v1899, %v1898
      %v1929 = vpack.c.b16 %v1901, %v1900
      %v1930 = vpack.c.b16 %v1903, %v1902
      %v1931 = vpack.c.b16 %v1905, %v1904
      %v1932 = vpack.c.b16 %v1907, %v1906
      %v1933 = vpack.c.b16 %v1909, %v1908
      %v1934 = vpack.c.b16 %v1911, %v1910
      %v1935 = vpack.c.b16 %v1913, %v1912
      %v1936 = vpack.c.b16 %v1915, %v1914
      %v1937 = vpack.c.b16 %v1917, %v1916
      %v1938 = vpack.c.b16 %v1919, %v1918
      %v1939 = vpack.c.b16 %v1921, %v1920
      %v1940 = vpack.c.b16 %v1923, %v1922
      %v1941 = vpack.c.b16 %v1925, %v1924
      %v1974 = vunpack.c.l.b16 %v1846
      %v1975 = vunpack.c.l.b16 %v1847
      %v1976 = vunpack.c.l.b16 %v1848
      %v1977 = vunpack.c.l.b16 %v1849
      %v1978 = vunpack.c.l.b16 %v1850
      %v1979 = vunpack.c.l.b16 %v1851
      %v1980 = vunpack.c.l.b16 %v1852
      %v1981 = vunpack.c.l.b16 %v1853
      %v1982 = vunpack.c.l.b16 %v1854
      %v1983 = vunpack.c.l.b16 %v1855
      %v1984 = vunpack.c.l.b16 %v1856
      %v1985 = vunpack.c.l.b16 %v1857
      %v1986 = vunpack.c.l.b16 %v1858
      %v1987 = vunpack.c.l.b16 %v1859
      %v1988 = vunpack.c.l.b16 %v1860
      %v1989 = vunpack.c.l.b16 %v1861
      %v1990 = vpack.c.b16 %v1975, %v1974
      %v1991 = vpack.c.b16 %v1977, %v1976
      %v1992 = vpack.c.b16 %v1979, %v1978
      %v1993 = vpack.c.b16 %v1981, %v1980
      %v1994 = vpack.c.b16 %v1983, %v1982
      %v1995 = vpack.c.b16 %v1985, %v1984
      %v1996 = vpack.c.b16 %v1987, %v1986
      %v1997 = vpack.c.b16 %v1989, %v1988
      %2006 = vmatprep.subr.bf16.mxu0 0
      %2007 = vmatpush1.bf16.msra.mxu0 %v1990
      %2008 = vmatprep.subr.bf16.mxu0 0
      %2009 = vmatpush1.bf16.msra.mxu0 %v1991
      %2010 = vmatprep.subr.bf16.mxu0 0
      %2011 = vmatpush1.bf16.msra.mxu0 %v1992
      %2012 = vmatprep.subr.bf16.mxu0 0
      %2013 = vmatpush1.bf16.msra.mxu0 %v1993
      %2014 = vmatprep.subr.bf16.mxu0 0
      %2015 = vmatpush1.bf16.msra.mxu0 %v1994
      %2016 = vmatprep.subr.bf16.mxu0 0
      %2017 = vmatpush1.bf16.msra.mxu0 %v1995
      %2018 = vmatprep.subr.bf16.mxu0 0
      %2019 = vmatpush1.bf16.msra.mxu0 %v1996
      %2020 = vmatprep.subr.bf16.mxu0 0
      %2021 = vmatpush1.bf16.msra.mxu0 %v1997
      %2022 = vmatprep.subr.bf16.mxu0 0
      %2023 = vmatpush1.bf16.msra.mxu0 0
      %2024 = vmatprep.subr.bf16.mxu0 0
      %2025 = vmatpush1.bf16.msra.mxu0 0
      %2026 = vmatprep.subr.bf16.mxu0 0
      %2027 = vmatpush1.bf16.msra.mxu0 0
      %2028 = vmatprep.subr.bf16.mxu0 0
      %2029 = vmatpush1.bf16.msra.mxu0 0
      %2030 = vmatprep.subr.bf16.mxu0 0
      %2031 = vmatpush1.bf16.msra.mxu0 0
      %2032 = vmatprep.subr.bf16.mxu0 0
      %2033 = vmatpush1.bf16.msra.mxu0 0
      %2034 = vmatprep.subr.bf16.mxu0 0
      %2035 = vmatpush1.bf16.msra.mxu0 0
      %2036 = vmatprep.subr.bf16.mxu0 0
      %2037 = vmatpush1.bf16.msra.mxu0 0
      %2038 = vmatprep.mubr.bf16.mxu0 0
      %2039 = vmatmul.mubr.bf16.gmra.mrb[0].mxu0 %v1926
      %v2040 = vpop.f32.mrb[0].mxu0
      %v2041 = vadd.f32 %v225, %v2040
      %v2042 = vpop.f32.mrb[0].mxu0
      %v2043 = vpop.f32.mrb[0].mxu0
      %v2044 = vadd.f32 %v225, %v2043
      %v2045 = vpop.f32.mrb[0].mxu0
      %2046 = vmatprep.mubr.bf16.mxu0 0
      %2047 = vmatmul.mubr.bf16.gmra.mrb[0].mxu0 %v1927
      %v2048 = vpop.f32.mrb[0].mxu0
      %v2049 = vadd.f32 %v225, %v2048
      %v2050 = vpop.f32.mrb[0].mxu0
      %v2051 = vpop.f32.mrb[0].mxu0
      %v2052 = vadd.f32 %v225, %v2051
      %v2053 = vpop.f32.mrb[0].mxu0
      %2054 = vmatprep.mubr.bf16.mxu0 0
      %2055 = vmatmul.mubr.bf16.gmra.mrb[0].mxu0 %v1928
      %v2056 = vpop.f32.mrb[0].mxu0
      %v2057 = vadd.f32 %v225, %v2056
      %v2058 = vpop.f32.mrb[0].mxu0
      %v2059 = vpop.f32.mrb[0].mxu0
      %v2060 = vadd.f32 %v225, %v2059
      %v2061 = vpop.f32.mrb[0].mxu0
      %2062 = vmatprep.mubr.bf16.mxu0 0
      %2063 = vmatmul.mubr.bf16.gmra.mrb[0].mxu0 %v1929
      %v2064 = vpop.f32.mrb[0].mxu0
      %v2065 = vadd.f32 %v225, %v2064
      %v2066 = vpop.f32.mrb[0].mxu0
      %v2067 = vpop.f32.mrb[0].mxu0
      %v2068 = vadd.f32 %v225, %v2067
      %v2069 = vpop.f32.mrb[0].mxu0
      %2070 = vmatprep.mubr.bf16.mxu0 0
      %2071 = vmatmul.mubr.bf16.gmra.mrb[0].mxu0 %v1930
      %v2072 = vpop.f32.mrb[0].mxu0
      %v2073 = vadd.f32 %v225, %v2072
      %v2074 = vpop.f32.mrb[0].mxu0
      %v2075 = vpop.f32.mrb[0].mxu0
      %v2076 = vadd.f32 %v225, %v2075
      %v2077 = vpop.f32.mrb[0].mxu0
      %2078 = vmatprep.mubr.bf16.mxu0 0
      %2079 = vmatmul.mubr.bf16.gmra.mrb[0].mxu0 %v1931
      %v2080 = vpop.f32.mrb[0].mxu0
      %v2081 = vadd.f32 %v225, %v2080
      %v2082 = vpop.f32.mrb[0].mxu0
      %v2083 = vpop.f32.mrb[0].mxu0
      %v2084 = vadd.f32 %v225, %v2083
      %v2085 = vpop.f32.mrb[0].mxu0
      %2086 = vmatprep.mubr.bf16.mxu0 0
      %2087 = vmatmul.mubr.bf16.gmra.mrb[0].mxu0 %v1932
      %v2088 = vpop.f32.mrb[0].mxu0
      %v2089 = vadd.f32 %v225, %v2088
      %v2090 = vpop.f32.mrb[0].mxu0
      %v2091 = vpop.f32.mrb[0].mxu0
      %v2092 = vadd.f32 %v225, %v2091
      %v2093 = vpop.f32.mrb[0].mxu0
      %2094 = vmatprep.mubr.bf16.mxu0 0
      %2095 = vmatmul.mubr.bf16.gmra.mrb[0].mxu0 %v1933
      %v2096 = vpop.f32.mrb[0].mxu0
      %v2097 = vadd.f32 %v225, %v2096
      %v2098 = vpop.f32.mrb[0].mxu0
      %v2099 = vpop.f32.mrb[0].mxu0
      %v2100 = vadd.f32 %v225, %v2099
      %v2101 = vpop.f32.mrb[0].mxu0
      %2102 = vmatprep.mubr.bf16.mxu0 0
      %2103 = vmatmul.mubr.bf16.gmra.mrb[0].mxu0 %v1934
      %v2104 = vpop.f32.mrb[0].mxu0
      %v2105 = vadd.f32 %v225, %v2104
      %v2106 = vpop.f32.mrb[0].mxu0
      %v2107 = vpop.f32.mrb[0].mxu0
      %v2108 = vadd.f32 %v225, %v2107
      %v2109 = vpop.f32.mrb[0].mxu0
      %2110 = vmatprep.mubr.bf16.mxu0 0
      %2111 = vmatmul.mubr.bf16.gmra.mrb[0].mxu0 %v1935
      %v2112 = vpop.f32.mrb[0].mxu0
      %v2113 = vadd.f32 %v225, %v2112
      %v2114 = vpop.f32.mrb[0].mxu0
      %v2115 = vpop.f32.mrb[0].mxu0
      %v2116 = vadd.f32 %v225, %v2115
      %v2117 = vpop.f32.mrb[0].mxu0
      %2118 = vmatprep.mubr.bf16.mxu0 0
      %2119 = vmatmul.mubr.bf16.gmra.mrb[0].mxu0 %v1936
      %v2120 = vpop.f32.mrb[0].mxu0
      %v2121 = vadd.f32 %v225, %v2120
      %v2122 = vpop.f32.mrb[0].mxu0
      %v2123 = vpop.f32.mrb[0].mxu0
      %v2124 = vadd.f32 %v225, %v2123
      %v2125 = vpop.f32.mrb[0].mxu0
      %2126 = vmatprep.mubr.bf16.mxu0 0
      %2127 = vmatmul.mubr.bf16.gmra.mrb[0].mxu0 %v1937
      %v2128 = vpop.f32.mrb[0].mxu0
      %v2129 = vadd.f32 %v225, %v2128
      %v2130 = vpop.f32.mrb[0].mxu0
      %v2131 = vpop.f32.mrb[0].mxu0
      %v2132 = vadd.f32 %v225, %v2131
      %v2133 = vpop.f32.mrb[0].mxu0
      %2134 = vmatprep.mubr.bf16.mxu0 0
      %2135 = vmatmul.mubr.bf16.gmra.mrb[0].mxu0 %v1938
      %v2136 = vpop.f32.mrb[0].mxu0
      %v2137 = vadd.f32 %v225, %v2136
      %v2138 = vpop.f32.mrb[0].mxu0
      %v2139 = vpop.f32.mrb[0].mxu0
      %v2140 = vadd.f32 %v225, %v2139
      %v2141 = vpop.f32.mrb[0].mxu0
      %2142 = vmatprep.mubr.bf16.mxu0 0
      %2143 = vmatmul.mubr.bf16.gmra.mrb[0].mxu0 %v1939
      %v2144 = vpop.f32.mrb[0].mxu0
      %v2145 = vadd.f32 %v225, %v2144
      %v2146 = vpop.f32.mrb[0].mxu0
      %v2147 = vpop.f32.mrb[0].mxu0
      %v2148 = vadd.f32 %v225, %v2147
      %v2149 = vpop.f32.mrb[0].mxu0
      %2150 = vmatprep.mubr.bf16.mxu0 0
      %2151 = vmatmul.mubr.bf16.gmra.mrb[0].mxu0 %v1940
      %v2152 = vpop.f32.mrb[0].mxu0
      %v2153 = vadd.f32 %v225, %v2152
      %v2154 = vpop.f32.mrb[0].mxu0
      %v2155 = vpop.f32.mrb[0].mxu0
      %v2156 = vadd.f32 %v225, %v2155
      %v2157 = vpop.f32.mrb[0].mxu0
      %2158 = vmatprep.mubr.bf16.mxu0 0
      %2159 = vmatmul.mubr.bf16.gmra.mrb[0].mxu0 %v1941
      %v2160 = vpop.f32.mrb[0].mxu0
      %v2161 = vadd.f32 %v225, %v2160
      %v2162 = vpop.f32.mrb[0].mxu0
      %v2163 = vpop.f32.mrb[0].mxu0
      %v2164 = vadd.f32 %v225, %v2163
      %v2165 = vpop.f32.mrb[0].mxu0
      %2166 = vdwg.mxu0
      %v2167 = vmax.f32 %v2041, 0.0
      %v2168 = vmax.f32 %v2044, 0.0
      %v2169 = vmax.f32 %v2049, 0.0
      %v2170 = vmax.f32 %v2052, 0.0
      %v2171 = vmax.f32 %v2057, 0.0
      %v2172 = vmax.f32 %v2060, 0.0
      %v2173 = vmax.f32 %v2065, 0.0
      %v2174 = vmax.f32 %v2068, 0.0
      %v2175 = vmax.f32 %v2073, 0.0
      %v2176 = vmax.f32 %v2076, 0.0
      %v2177 = vmax.f32 %v2081, 0.0
      %v2178 = vmax.f32 %v2084, 0.0
      %v2179 = vmax.f32 %v2089, 0.0
      %v2180 = vmax.f32 %v2092, 0.0
      %v2181 = vmax.f32 %v2097, 0.0
      %v2182 = vmax.f32 %v2100, 0.0
      %v2183 = vmax.f32 %v2105, 0.0
      %v2184 = vmax.f32 %v2108, 0.0
      %v2185 = vmax.f32 %v2113, 0.0
      %v2186 = vmax.f32 %v2116, 0.0
      %v2187 = vmax.f32 %v2121, 0.0
      %v2188 = vmax.f32 %v2124, 0.0
      %v2189 = vmax.f32 %v2129, 0.0
      %v2190 = vmax.f32 %v2132, 0.0
      %v2191 = vmax.f32 %v2137, 0.0
      %v2192 = vmax.f32 %v2140, 0.0
      %v2193 = vmax.f32 %v2145, 0.0
      %v2194 = vmax.f32 %v2148, 0.0
      %v2195 = vmax.f32 %v2153, 0.0
      %v2196 = vmax.f32 %v2156, 0.0
      %v2197 = vmax.f32 %v2161, 0.0
      %v2198 = vmax.f32 %v2164, 0.0
      %v2199 = vpack.c.bf16 %v2168, %v2167
      %v2200 = vpack.c.bf16 %v2170, %v2169
      %v2201 = vpack.c.bf16 %v2172, %v2171
      %v2202 = vpack.c.bf16 %v2174, %v2173
      %v2203 = vpack.c.bf16 %v2176, %v2175
      %v2204 = vpack.c.bf16 %v2178, %v2177
      %v2205 = vpack.c.bf16 %v2180, %v2179
      %v2206 = vpack.c.bf16 %v2182, %v2181
      %v2207 = vpack.c.bf16 %v2184, %v2183
      %v2208 = vpack.c.bf16 %v2186, %v2185
      %v2209 = vpack.c.bf16 %v2188, %v2187
      %v2210 = vpack.c.bf16 %v2190, %v2189
      %v2211 = vpack.c.bf16 %v2192, %v2191
      %v2212 = vpack.c.bf16 %v2194, %v2193
      %v2213 = vpack.c.bf16 %v2196, %v2195
      %v2214 = vpack.c.bf16 %v2198, %v2197
      %v2231 = vunpack.c.l.b16 %v2199
      %v2232 = vunpack.c.h.b16 %v2199
      %v2233 = vunpack.c.l.b16 %v2200
      %v2234 = vunpack.c.h.b16 %v2200
      %v2235 = vunpack.c.l.b16 %v2201
      %v2236 = vunpack.c.h.b16 %v2201
      %v2237 = vunpack.c.l.b16 %v2202
      %v2238 = vunpack.c.h.b16 %v2202
      %v2239 = vunpack.c.l.b16 %v2203
      %v2240 = vunpack.c.h.b16 %v2203
      %v2241 = vunpack.c.l.b16 %v2204
      %v2242 = vunpack.c.h.b16 %v2204
      %v2243 = vunpack.c.l.b16 %v2205
      %v2244 = vunpack.c.h.b16 %v2205
      %v2245 = vunpack.c.l.b16 %v2206
      %v2246 = vunpack.c.h.b16 %v2206
      %v2247 = vunpack.c.l.b16 %v2207
      %v2248 = vunpack.c.h.b16 %v2207
      %v2249 = vunpack.c.l.b16 %v2208
      %v2250 = vunpack.c.h.b16 %v2208
      %v2251 = vunpack.c.l.b16 %v2209
      %v2252 = vunpack.c.h.b16 %v2209
      %v2253 = vunpack.c.l.b16 %v2210
      %v2254 = vunpack.c.h.b16 %v2210
      %v2255 = vunpack.c.l.b16 %v2211
      %v2256 = vunpack.c.h.b16 %v2211
      %v2257 = vunpack.c.l.b16 %v2212
      %v2258 = vunpack.c.h.b16 %v2212
      %v2259 = vunpack.c.l.b16 %v2213
      %v2260 = vunpack.c.h.b16 %v2213
      %v2261 = vunpack.c.l.b16 %v2214
      %v2262 = vunpack.c.h.b16 %v2214
      %v2263 = vpack.c.b16 %v2231, %v2231
      %v2264 = vpack.c.b16 %v2232, %v2232
      %v2265 = vpack.c.b16 %v2233, %v2233
      %v2266 = vpack.c.b16 %v2234, %v2234
      %v2267 = vpack.c.b16 %v2235, %v2235
      %v2268 = vpack.c.b16 %v2236, %v2236
      %v2269 = vpack.c.b16 %v2237, %v2237
      %v2270 = vpack.c.b16 %v2238, %v2238
      %v2271 = vpack.c.b16 %v2239, %v2239
      %v2272 = vpack.c.b16 %v2240, %v2240
      %v2273 = vpack.c.b16 %v2241, %v2241
      %v2274 = vpack.c.b16 %v2242, %v2242
      %v2275 = vpack.c.b16 %v2243, %v2243
      %v2276 = vpack.c.b16 %v2244, %v2244
      %v2277 = vpack.c.b16 %v2245, %v2245
      %v2278 = vpack.c.b16 %v2246, %v2246
      %v2279 = vpack.c.b16 %v2247, %v2247
      %v2280 = vpack.c.b16 %v2248, %v2248
      %v2281 = vpack.c.b16 %v2249, %v2249
      %v2282 = vpack.c.b16 %v2250, %v2250
      %v2283 = vpack.c.b16 %v2251, %v2251
      %v2284 = vpack.c.b16 %v2252, %v2252
      %v2285 = vpack.c.b16 %v2253, %v2253
      %v2286 = vpack.c.b16 %v2254, %v2254
      %v2287 = vpack.c.b16 %v2255, %v2255
      %v2288 = vpack.c.b16 %v2256, %v2256
      %v2289 = vpack.c.b16 %v2257, %v2257
      %v2290 = vpack.c.b16 %v2258, %v2258
      %v2291 = vpack.c.b16 %v2259, %v2259
      %v2292 = vpack.c.b16 %v2260, %v2260
      %v2293 = vpack.c.b16 %v2261, %v2261
      %v2294 = vpack.c.b16 %v2262, %v2262
      %2327 = vst [vmem:[%s170 + $0x180] sm:$0xf] %v2263
      %2328 = vst [vmem:[%s170 + $0x184] sm:$0xf] %v2264
      %2329 = vst [vmem:[%s170 + $0x188] sm:$0xf] %v2265
      %2330 = vst [vmem:[%s170 + $0x18c] sm:$0xf] %v2266
      %2331 = vst [vmem:[%s170 + $0x190] sm:$0xf] %v2267
      %2332 = vst [vmem:[%s170 + $0x194] sm:$0xf] %v2268
      %2333 = vst [vmem:[%s170 + $0x198] sm:$0xf] %v2269
      %2334 = vst [vmem:[%s170 + $0x19c] sm:$0xf] %v2270
      %2335 = vst [vmem:[%s170 + $0x1a0] sm:$0xf] %v2271
      %2336 = vst [vmem:[%s170 + $0x1a4] sm:$0xf] %v2272
      %2337 = vst [vmem:[%s170 + $0x1a8] sm:$0xf] %v2273
      %2338 = vst [vmem:[%s170 + $0x1ac] sm:$0xf] %v2274
      %2339 = vst [vmem:[%s170 + $0x1b0] sm:$0xf] %v2275
      %2340 = vst [vmem:[%s170 + $0x1b4] sm:$0xf] %v2276
      %2341 = vst [vmem:[%s170 + $0x1b8] sm:$0xf] %v2277
      %2342 = vst [vmem:[%s170 + $0x1bc] sm:$0xf] %v2278
      %2343 = vst [vmem:[%s170 + $0x1c0] sm:$0xf] %v2279
      %2344 = vst [vmem:[%s170 + $0x1c4] sm:$0xf] %v2280
      %2345 = vst [vmem:[%s170 + $0x1c8] sm:$0xf] %v2281
      %2346 = vst [vmem:[%s170 + $0x1cc] sm:$0xf] %v2282
      %2347 = vst [vmem:[%s170 + $0x1d0] sm:$0xf] %v2283
      %2348 = vst [vmem:[%s170 + $0x1d4] sm:$0xf] %v2284
      %2349 = vst [vmem:[%s170 + $0x1d8] sm:$0xf] %v2285
      %2350 = vst [vmem:[%s170 + $0x1dc] sm:$0xf] %v2286
      %2351 = vst [vmem:[%s170 + $0x1e0] sm:$0xf] %v2287
      %2352 = vst [vmem:[%s170 + $0x1e4] sm:$0xf] %v2288
      %2353 = vst [vmem:[%s170 + $0x1e8] sm:$0xf] %v2289
      %2354 = vst [vmem:[%s170 + $0x1ec] sm:$0xf] %v2290
      %2355 = vst [vmem:[%s170 + $0x1f0] sm:$0xf] %v2291
      %2356 = vst [vmem:[%s170 + $0x1f4] sm:$0xf] %v2292
      %2357 = vst [vmem:[%s170 + $0x1f8] sm:$0xf] %v2293
      %2358 = vst [vmem:[%s170 + $0x1fc] sm:$0xf] %v2294
      %p2359 = scmp.lt.s32.totalorder %s14, 1
      %s2360 = scalar_select %p2359, %s14, 1
      %s2361 = smul.addr %s2360, 128
      %s2362 = smul.addr %s2361, 4
      %s2363 = scalar_lea.vmem %s3, %s2362
      // Predicated region
      $region33: #{vgg_forward.11} parent=31 // pred_check
        %p2364 = pneg %p100
      $region34: #{vgg_forward.11} parent=31 // pred_check_branch
        %2366 = sbr.rel (%p2364) target = $region36
      $region35: #{vgg_forward.11} parent=31 // pred_region
        _
      $region36: #{vgg_forward.11} parent=31 // pred_fallthru
        _
    $region32: #{vgg_forward.11} parent=5 // pred_fallthru
      _
    %p2367 = scmp.le.s32.totalorder 2, %s9
    // Predicated region
    $region37: #{vgg_forward.11} parent=5 // pred_check
      %p2368 = pneg %p2367
    $region38: #{vgg_forward.11} parent=5 // pred_check_branch
      %2370 = sbr.rel (%p2368) target = $region40
    $region39: #{vgg_forward.11} parent=5 // pred_region
      %s2371 = ssub.s32 %s9, 2
      // Predicated region
      $region41: #{vgg_forward.11} parent=39 // pred_check
        %p2372 = pneg %p106
      $region42: #{vgg_forward.11} parent=39 // pred_check_branch
        %2374 = sbr.rel (%p2372) target = $region44
      $region43: #{vgg_forward.11} parent=39 // pred_region
        %p2375 = scmp.lt.s32.totalorder %s15, 1
        %s2376 = scalar_select %p2375, %s15, 1
        %s2377 = smul.addr %s2376, 128
        %s2378 = smul.addr %s2377, 4
        %s2379 = scalar_lea.vmem %s3, %s2378
      $region44: #{vgg_forward.11} parent=39 // pred_fallthru
        _
    $region40: #{vgg_forward.11} parent=5 // pred_fallthru
      _
  $region6: #{vgg_forward.11} parent=0 // loop_footer
    %s13 = sadd.s32 1, %s9
  $region7: #{vgg_forward.11} parent=0 // loop_footer_branch
    %8 = sbr.rel target = $region3
  $region8: #{vgg_forward.11} parent=0 // loop_exit
    _

// kernel: vgg_forward.12
$region0: #{vgg_forward.12}
  #allocation0 [shape = 'u32[]', space=smem, size = 0x4, offset = 0x4, fixed_abs, tag = 'smem constant byte address 0x4 - core index']
  #allocation1 [shape = 'u32[144,128]{1,0:T(1,128)}', space=vmem, size = 0x12000, scoped, tag = 'internal scratch']
  #allocation2 [shape = 'f32[4,32,128]{2,1,0:T(8,128)}', space=vmem, size = 0x10000, scoped, tag = 'scratch operand']
  %s0 = inlined_call_operand.vmem [shape: bf16[2,1024,128], index: 0, kind: input, shape index: {}]
  %s1 = inlined_call_operand.vmem [shape: bf16[1,128,128], index: 1, kind: input, shape index: {}]
  %s2 = inlined_call_operand.vmem [shape: f32[1,128], index: 2, kind: input, shape index: {}]
  %s3 = inlined_call_operand.vmem [shape: bf16[2,16,16,128], index: 3, kind: output, shape index: {}]
  %s4 = sld [smem:[#allocation0]]
  $region45: #{vgg_forward.12} parent=0
    _
  %s6 = ssub.s32 1, %s4
  %s7 = scalar_select 0, %s6, %s4
  loop: start=0, step=1, limit=4
  $region2: #{vgg_forward.12} parent=0 // loop_pre_header
    _
  $region3: #{vgg_forward.12} parent=0 // loop_header
    %s9 = sphi 0, %s13
    %p10 = scmp.ge.s32.totalorder %s9, 4
    %s19 = sphi 0, %s21
    %s22 = sphi 0, %s19
    %s23 = sphi 0, %s22
    %s39 = sphi 0, %s23
    %s43 = sphi 0, %s43
    %s45 = sphi 0, %s43
    %s46 = sphi 0, %s45
    %s60 = sphi 0, %s46
    %s64 = sphi 0, %s64
    %s66 = sphi 0, %s64
    %s67 = sphi 0, %s66
    %s81 = sphi 0, %s67
    %s87 = sphi 0, %s89
    %s90 = sphi 0, %s87
    %s91 = sphi 0, %s90
    %s107 = sphi 0, %s91
  $region4: #{vgg_forward.12} parent=0 // loop_header_branch
    %12 = sbr.rel (%p10) target = $region8
  $region5: #{vgg_forward.12} parent=0 // loop_body
    %s14 = ssub.s32 %s9, 1
    %s15 = ssub.s32 %s9, 2
    %s16 = sadd.s32 %s9, 1
    %s17 = ssub.s32 %s9, %s16
    %p18 = scmp.eq.s32.totalorder %s17, 0
    %s20 = sadd.s32 %s19, 1
    %s21 = scalar_select %p18, %s19, %s20
    %p24 = pneg %p18
    %p25 = scmp.eq.s32.totalorder %s9, 1
    %p26 = por %p24, %p25
    %p27 = scmp.ne.s32.totalorder %s19, %s22
    %p28 = scmp.eq.s32.totalorder %s9, 0
    %p29 = por %p27, %p28
    %p30 = scmp.ne.s32.totalorder %s19, %s22
    %p31 = scmp.eq.s32.totalorder %s14, 1
    %p32 = por %p30, %p31
    %p33 = scmp.ne.s32.totalorder %s22, %s23
    %p34 = scmp.eq.s32.totalorder %s14, 0
    %p35 = por %p33, %p34
    %p36 = scmp.ne.s32.totalorder %s22, %s23
    %p37 = scmp.eq.s32.totalorder %s15, 1
    %p38 = por %p36, %p37
    %p40 = scmp.ne.s32.totalorder %s23, %s39
    %p41 = scmp.eq.s32.totalorder %s15, 0
    %p42 = por %p40, %p41
    %s44 = sadd.s32 %s43, 1
    %p47 = scmp.eq.s32.totalorder %s9, 1
    %p48 = scmp.ne.s32.totalorder %s43, %s45
    %p49 = scmp.eq.s32.totalorder %s9, 0
    %p50 = por %p48, %p49
    %p51 = scmp.ne.s32.totalorder %s43, %s45
    %p52 = scmp.eq.s32.totalorder %s14, 1
    %p53 = por %p51, %p52
    %p54 = scmp.ne.s32.totalorder %s45, %s46
    %p55 = scmp.eq.s32.totalorder %s14, 0
    %p56 = por %p54, %p55
    %p57 = scmp.ne.s32.totalorder %s45, %s46
    %p58 = scmp.eq.s32.totalorder %s15, 1
    %p59 = por %p57, %p58
    %p61 = scmp.ne.s32.totalorder %s46, %s60
    %p62 = scmp.eq.s32.totalorder %s15, 0
    %p63 = por %p61, %p62
    %s65 = sadd.s32 %s64, 1
    %p68 = scmp.eq.s32.totalorder %s9, 1
    %p69 = scmp.ne.s32.totalorder %s64, %s66
    %p70 = scmp.eq.s32.totalorder %s9, 0
    %p71 = por %p69, %p70
    %p72 = scmp.ne.s32.totalorder %s64, %s66
    %p73 = scmp.eq.s32.totalorder %s14, 1
    %p74 = por %p72, %p73
    %p75 = scmp.ne.s32.totalorder %s66, %s67
    %p76 = scmp.eq.s32.totalorder %s14, 0
    %p77 = por %p75, %p76
    %p78 = scmp.ne.s32.totalorder %s66, %s67
    %p79 = scmp.eq.s32.totalorder %s15, 1
    %p80 = por %p78, %p79
    %p82 = scmp.ne.s32.totalorder %s67, %s81
    %p83 = scmp.eq.s32.totalorder %s15, 0
    %p84 = por %p82, %p83
    %s85 = ssub.s32 %s9, %s16
    %p86 = scmp.eq.s32.totalorder %s85, 0
    %s88 = sadd.s32 %s87, 1
    %s89 = scalar_select %p86, %s87, %s88
    %p92 = pneg %p86
    %p93 = scmp.eq.s32.totalorder %s9, 1
    %p94 = por %p92, %p93
    %p95 = scmp.ne.s32.totalorder %s87, %s90
    %p96 = scmp.eq.s32.totalorder %s9, 0
    %p97 = por %p95, %p96
    %p98 = scmp.ne.s32.totalorder %s87, %s90
    %p99 = scmp.eq.s32.totalorder %s14, 1
    %p100 = por %p98, %p99
    %p101 = scmp.ne.s32.totalorder %s90, %s91
    %p102 = scmp.eq.s32.totalorder %s14, 0
    %p103 = por %p101, %p102
    %p104 = scmp.ne.s32.totalorder %s90, %s91
    %p105 = scmp.eq.s32.totalorder %s15, 1
    %p106 = por %p104, %p105
    %p108 = scmp.ne.s32.totalorder %s91, %s107
    %p109 = scmp.eq.s32.totalorder %s15, 0
    %p110 = por %p108, %p109
    %p111 = scmp.le.s32.totalorder 1, %s9
    %p112 = scmp.lt.s32.totalorder %s9, 3
    %p113 = pnand %p111, %p112
    %p114 = pneg %p113
    // Predicated region
    $region9: #{vgg_forward.12} parent=5 // pred_check
      _
    $region10: #{vgg_forward.12} parent=5 // pred_check_branch
      %116 = sbr.rel (%p113) target = $region12
    $region11: #{vgg_forward.12} parent=5 // pred_region
      %s117 = ssub.s32 %s9, 1
      // Predicated region
      $region13: #{vgg_forward.12} parent=11 // pred_check
        %p118 = pneg %p56
      $region14: #{vgg_forward.12} parent=11 // pred_check_branch
        %120 = sbr.rel (%p118) target = $region16
      $region15: #{vgg_forward.12} parent=11 // pred_region
        _
      $region16: #{vgg_forward.12} parent=11 // pred_fallthru
        _
      // Predicated region
      $region17: #{vgg_forward.12} parent=11 // pred_check
        %p121 = pneg %p77
      $region18: #{vgg_forward.12} parent=11 // pred_check_branch
        %123 = sbr.rel (%p121) target = $region20
      $region19: #{vgg_forward.12} parent=11 // pred_region
        _
      $region20: #{vgg_forward.12} parent=11 // pred_fallthru
        _
    $region12: #{vgg_forward.12} parent=5 // pred_fallthru
      _
    %p124 = scmp.lt.s32.totalorder %s9, 2
    // Predicated region
    $region21: #{vgg_forward.12} parent=5 // pred_check
      %p125 = pneg %p124
    $region22: #{vgg_forward.12} parent=5 // pred_check_branch
      %127 = sbr.rel (%p125) target = $region24
    $region23: #{vgg_forward.12} parent=5 // pred_region
      // Predicated region
      $region25: #{vgg_forward.12} parent=23 // pred_check
        %p128 = pneg %p29
      $region26: #{vgg_forward.12} parent=23 // pred_check_branch
        %130 = sbr.rel (%p128) target = $region28
      $region27: #{vgg_forward.12} parent=23 // pred_region
        %p131 = scmp.lt.s32.totalorder %s9, 1
        %s132 = scalar_select %p131, %s9, 1
        %s133 = smul.addr %s132, 128
        %s134 = smul.addr %s133, 4
        %s135 = scalar_lea.vmem %s0, %s134
      $region28: #{vgg_forward.12} parent=23 // pred_fallthru
        _
    $region24: #{vgg_forward.12} parent=5 // pred_fallthru
      _
    %p136 = scmp.le.s32.totalorder 1, %s9
    %p137 = scmp.lt.s32.totalorder %s9, 3
    %p138 = pnand %p136, %p137
    %p139 = pneg %p138
    // Predicated region
    $region29: #{vgg_forward.12} parent=5 // pred_check
      _
    $region30: #{vgg_forward.12} parent=5 // pred_check_branch
      %141 = sbr.rel (%p138) target = $region32
    $region31: #{vgg_forward.12} parent=5 // pred_region
      %s142 = ssub.s32 %s9, 1
      %p143 = scmp.lt.s32.totalorder %s14, 1
      %s144 = scalar_select %p143, %s14, 1
      %s145 = smul.addr %s144, 128
      %s146 = smul.addr %s145, 4
      %s147 = scalar_lea.vmem %s0, %s146
      %p148 = pneg %p35
      %p149 = pneg %p32
      %p150 = pneg %p56
      %p151 = pneg %p53
      %p152 = pneg %p77
      %p153 = pneg %p74
      %p154 = pneg %p103
      %p155 = pneg %p100
      %p156 = scmp.lt.s32.totalorder %s14, 1
      %s157 = scalar_select %p156, %s14, 1
      %s158 = smul.addr %s157, 32
      %s159 = smul.addr %s158, 4
      %s160 = scalar_lea.vmem %s3, %s159
      %p161 = scmp.lt.s32.totalorder %s14, 1
      %s162 = scalar_select %p161, %s14, 1
      %s163 = smul.addr %s162, 128
      %s164 = smul.addr %s163, 4
      %s165 = scalar_lea.vmem %s0, %s164
      %p166 = scmp.lt.s32.totalorder %s14, 1
      %s167 = scalar_select %p166, %s14, 1
      %s168 = smul.addr %s167, 32
      %s169 = smul.addr %s168, 4
      %s170 = scalar_lea.vmem %s3, %s169
      %v172 = vld [vmem:[%s2] sm:$0x1]
      %v173 = vld [vmem:[%s165] sm:$0xf]
      %v174 = vld [vmem:[%s165 + $0x4] sm:$0xf]
      %v175 = vld [vmem:[%s165 + $0x8] sm:$0xf]
      %v176 = vld [vmem:[%s165 + $0xc] sm:$0xf]
      %v177 = vld [vmem:[%s165 + $0x10] sm:$0xf]
      %v178 = vld [vmem:[%s165 + $0x14] sm:$0xf]
      %v179 = vld [vmem:[%s165 + $0x18] sm:$0xf]
      %v180 = vld [vmem:[%s165 + $0x1c] sm:$0xf]
      %v181 = vld [vmem:[%s165 + $0x20] sm:$0xf]
      %v182 = vld [vmem:[%s165 + $0x24] sm:$0xf]
      %v183 = vld [vmem:[%s165 + $0x28] sm:$0xf]
      %v184 = vld [vmem:[%s165 + $0x2c] sm:$0xf]
      %v185 = vld [vmem:[%s165 + $0x30] sm:$0xf]
      %v186 = vld [vmem:[%s165 + $0x34] sm:$0xf]
      %v187 = vld [vmem:[%s165 + $0x38] sm:$0xf]
      %v188 = vld [vmem:[%s165 + $0x3c] sm:$0xf]
      %v189 = vld [vmem:[%s165 + $0x40] sm:$0xf]
      %v190 = vld [vmem:[%s165 + $0x44] sm:$0xf]
      %v191 = vld [vmem:[%s165 + $0x48] sm:$0xf]
      %v192 = vld [vmem:[%s165 + $0x4c] sm:$0xf]
      %v193 = vld [vmem:[%s165 + $0x50] sm:$0xf]
      %v194 = vld [vmem:[%s165 + $0x54] sm:$0xf]
      %v195 = vld [vmem:[%s165 + $0x58] sm:$0xf]
      %v196 = vld [vmem:[%s165 + $0x5c] sm:$0xf]
      %v197 = vld [vmem:[%s165 + $0x60] sm:$0xf]
      %v198 = vld [vmem:[%s165 + $0x64] sm:$0xf]
      %v199 = vld [vmem:[%s165 + $0x68] sm:$0xf]
      %v200 = vld [vmem:[%s165 + $0x6c] sm:$0xf]
      %v201 = vld [vmem:[%s165 + $0x70] sm:$0xf]
      %v202 = vld [vmem:[%s165 + $0x74] sm:$0xf]
      %v203 = vld [vmem:[%s165 + $0x78] sm:$0xf]
      %v204 = vld [vmem:[%s165 + $0x7c] sm:$0xf]
      %v205 = vld [vmem:[%s1] sm:$0xf]
      %v206 = vld [vmem:[%s1 + $0x4] sm:$0xf]
      %v207 = vld [vmem:[%s1 + $0x8] sm:$0xf]
      %v208 = vld [vmem:[%s1 + $0xc] sm:$0xf]
      %v209 = vld [vmem:[%s1 + $0x10] sm:$0xf]
      %v210 = vld [vmem:[%s1 + $0x14] sm:$0xf]
      %v211 = vld [vmem:[%s1 + $0x18] sm:$0xf]
      %v212 = vld [vmem:[%s1 + $0x1c] sm:$0xf]
      %v213 = vld [vmem:[%s1 + $0x20] sm:$0xf]
      %v214 = vld [vmem:[%s1 + $0x24] sm:$0xf]
      %v215 = vld [vmem:[%s1 + $0x28] sm:$0xf]
      %v216 = vld [vmem:[%s1 + $0x2c] sm:$0xf]
      %v217 = vld [vmem:[%s1 + $0x30] sm:$0xf]
      %v218 = vld [vmem:[%s1 + $0x34] sm:$0xf]
      %v219 = vld [vmem:[%s1 + $0x38] sm:$0xf]
      %v220 = vld [vmem:[%s1 + $0x3c] sm:$0xf]
      %v222 = vlaneseq
      %v223 = vshrl.u32 %v222, 7
      %v224 = vsub.s32 0, %v223
      %v225 = vrot.slane %v172, %v224
      %v259 = vunpack.c.l.b16 %v173
      %v260 = vunpack.c.l.b16 %v174
      %v261 = vunpack.c.l.b16 %v175
      %v262 = vunpack.c.l.b16 %v176
      %v263 = vunpack.c.l.b16 %v177
      %v264 = vunpack.c.l.b16 %v178
      %v265 = vunpack.c.l.b16 %v179
      %v266 = vunpack.c.l.b16 %v180
      %v267 = vunpack.c.l.b16 %v181
      %v268 = vunpack.c.l.b16 %v182
      %v269 = vunpack.c.l.b16 %v183
      %v270 = vunpack.c.l.b16 %v184
      %v271 = vunpack.c.l.b16 %v185
      %v272 = vunpack.c.l.b16 %v186
      %v273 = vunpack.c.l.b16 %v187
      %v274 = vunpack.c.l.b16 %v188
      %v275 = vunpack.c.l.b16 %v189
      %v276 = vunpack.c.l.b16 %v190
      %v277 = vunpack.c.l.b16 %v191
      %v278 = vunpack.c.l.b16 %v192
      %v279 = vunpack.c.l.b16 %v193
      %v280 = vunpack.c.l.b16 %v194
      %v281 = vunpack.c.l.b16 %v195
      %v282 = vunpack.c.l.b16 %v196
      %v283 = vunpack.c.l.b16 %v197
      %v284 = vunpack.c.l.b16 %v198
      %v285 = vunpack.c.l.b16 %v199
      %v286 = vunpack.c.l.b16 %v200
      %v287 = vunpack.c.l.b16 %v201
      %v288 = vunpack.c.l.b16 %v202
      %v289 = vunpack.c.l.b16 %v203
      %v290 = vunpack.c.l.b16 %v204
      %v291 = vpack.c.b16 %v260, %v259
      %v292 = vpack.c.b16 %v262, %v261
      %v293 = vpack.c.b16 %v264, %v263
      %v294 = vpack.c.b16 %v266, %v265
      %v295 = vpack.c.b16 %v268, %v267
      %v296 = vpack.c.b16 %v270, %v269
      %v297 = vpack.c.b16 %v272, %v271
      %v298 = vpack.c.b16 %v274, %v273
      %v299 = vpack.c.b16 %v276, %v275
      %v300 = vpack.c.b16 %v278, %v277
      %v301 = vpack.c.b16 %v280, %v279
      %v302 = vpack.c.b16 %v282, %v281
      %v303 = vpack.c.b16 %v284, %v283
      %v304 = vpack.c.b16 %v286, %v285
      %v305 = vpack.c.b16 %v288, %v287
      %v306 = vpack.c.b16 %v290, %v289
      %v339 = vunpack.c.l.b16 %v205
      %v340 = vunpack.c.l.b16 %v206
      %v341 = vunpack.c.l.b16 %v207
      %v342 = vunpack.c.l.b16 %v208
      %v343 = vunpack.c.l.b16 %v209
      %v344 = vunpack.c.l.b16 %v210
      %v345 = vunpack.c.l.b16 %v211
      %v346 = vunpack.c.l.b16 %v212
      %v347 = vunpack.c.l.b16 %v213
      %v348 = vunpack.c.l.b16 %v214
      %v349 = vunpack.c.l.b16 %v215
      %v350 = vunpack.c.l.b16 %v216
      %v351 = vunpack.c.l.b16 %v217
      %v352 = vunpack.c.l.b16 %v218
      %v353 = vunpack.c.l.b16 %v219
      %v354 = vunpack.c.l.b16 %v220
      %v355 = vpack.c.b16 %v340, %v339
      %v356 = vpack.c.b16 %v342, %v341
      %v357 = vpack.c.b16 %v344, %v343
      %v358 = vpack.c.b16 %v346, %v345
      %v359 = vpack.c.b16 %v348, %v347
      %v360 = vpack.c.b16 %v350, %v349
      %v361 = vpack.c.b16 %v352, %v351
      %v362 = vpack.c.b16 %v354, %v353
      %371 = vmatprep.subr.bf16.mxu0 0
      %372 = vmatpush1.bf16.msra.mxu0 %v355
      %373 = vmatprep.subr.bf16.mxu0 0
      %374 = vmatpush1.bf16.msra.mxu0 %v356
      %375 = vmatprep.subr.bf16.mxu0 0
      %376 = vmatpush1.bf16.msra.mxu0 %v357
      %377 = vmatprep.subr.bf16.mxu0 0
      %378 = vmatpush1.bf16.msra.mxu0 %v358
      %379 = vmatprep.subr.bf16.mxu0 0
      %380 = vmatpush1.bf16.msra.mxu0 %v359
      %381 = vmatprep.subr.bf16.mxu0 0
      %382 = vmatpush1.bf16.msra.mxu0 %v360
      %383 = vmatprep.subr.bf16.mxu0 0
      %384 = vmatpush1.bf16.msra.mxu0 %v361
      %385 = vmatprep.subr.bf16.mxu0 0
      %386 = vmatpush1.bf16.msra.mxu0 %v362
      %387 = vmatprep.subr.bf16.mxu0 0
      %388 = vmatpush1.bf16.msra.mxu0 0
      %389 = vmatprep.subr.bf16.mxu0 0
      %390 = vmatpush1.bf16.msra.mxu0 0
      %391 = vmatprep.subr.bf16.mxu0 0
      %392 = vmatpush1.bf16.msra.mxu0 0
      %393 = vmatprep.subr.bf16.mxu0 0
      %394 = vmatpush1.bf16.msra.mxu0 0
      %395 = vmatprep.subr.bf16.mxu0 0
      %396 = vmatpush1.bf16.msra.mxu0 0
      %397 = vmatprep.subr.bf16.mxu0 0
      %398 = vmatpush1.bf16.msra.mxu0 0
      %399 = vmatprep.subr.bf16.mxu0 0
      %400 = vmatpush1.bf16.msra.mxu0 0
      %401 = vmatprep.subr.bf16.mxu0 0
      %402 = vmatpush1.bf16.msra.mxu0 0
      %403 = vmatprep.mubr.bf16.mxu0 0
      %404 = vmatmul.mubr.bf16.gmra.mrb[0].mxu0 %v291
      %v405 = vpop.f32.mrb[0].mxu0
      %v406 = vadd.f32 %v225, %v405
      %v407 = vpop.f32.mrb[0].mxu0
      %v408 = vpop.f32.mrb[0].mxu0
      %v409 = vadd.f32 %v225, %v408
      %v410 = vpop.f32.mrb[0].mxu0
      %411 = vmatprep.mubr.bf16.mxu0 0
      %412 = vmatmul.mubr.bf16.gmra.mrb[0].mxu0 %v292
      %v413 = vpop.f32.mrb[0].mxu0
      %v414 = vadd.f32 %v225, %v413
      %v415 = vpop.f32.mrb[0].mxu0
      %v416 = vpop.f32.mrb[0].mxu0
      %v417 = vadd.f32 %v225, %v416
      %v418 = vpop.f32.mrb[0].mxu0
      %419 = vmatprep.mubr.bf16.mxu0 0
      %420 = vmatmul.mubr.bf16.gmra.mrb[0].mxu0 %v293
      %v421 = vpop.f32.mrb[0].mxu0
      %v422 = vadd.f32 %v225, %v421
      %v423 = vpop.f32.mrb[0].mxu0
      %v424 = vpop.f32.mrb[0].mxu0
      %v425 = vadd.f32 %v225, %v424
      %v426 = vpop.f32.mrb[0].mxu0
      %427 = vmatprep.mubr.bf16.mxu0 0
      %428 = vmatmul.mubr.bf16.gmra.mrb[0].mxu0 %v294
      %v429 = vpop.f32.mrb[0].mxu0
      %v430 = vadd.f32 %v225, %v429
      %v431 = vpop.f32.mrb[0].mxu0
      %v432 = vpop.f32.mrb[0].mxu0
      %v433 = vadd.f32 %v225, %v432
      %v434 = vpop.f32.mrb[0].mxu0
      %435 = vmatprep.mubr.bf16.mxu0 0
      %436 = vmatmul.mubr.bf16.gmra.mrb[0].mxu0 %v295
      %v437 = vpop.f32.mrb[0].mxu0
      %v438 = vadd.f32 %v225, %v437
      %v439 = vpop.f32.mrb[0].mxu0
      %v440 = vpop.f32.mrb[0].mxu0
      %v441 = vadd.f32 %v225, %v440
      %v442 = vpop.f32.mrb[0].mxu0
      %443 = vmatprep.mubr.bf16.mxu0 0
      %444 = vmatmul.mubr.bf16.gmra.mrb[0].mxu0 %v296
      %v445 = vpop.f32.mrb[0].mxu0
      %v446 = vadd.f32 %v225, %v445
      %v447 = vpop.f32.mrb[0].mxu0
      %v448 = vpop.f32.mrb[0].mxu0
      %v449 = vadd.f32 %v225, %v448
      %v450 = vpop.f32.mrb[0].mxu0
      %451 = vmatprep.mubr.bf16.mxu0 0
      %452 = vmatmul.mubr.bf16.gmra.mrb[0].mxu0 %v297
      %v453 = vpop.f32.mrb[0].mxu0
      %v454 = vadd.f32 %v225, %v453
      %v455 = vpop.f32.mrb[0].mxu0
      %v456 = vpop.f32.mrb[0].mxu0
      %v457 = vadd.f32 %v225, %v456
      %v458 = vpop.f32.mrb[0].mxu0
      %459 = vmatprep.mubr.bf16.mxu0 0
      %460 = vmatmul.mubr.bf16.gmra.mrb[0].mxu0 %v298
      %v461 = vpop.f32.mrb[0].mxu0
      %v462 = vadd.f32 %v225, %v461
      %v463 = vpop.f32.mrb[0].mxu0
      %v464 = vpop.f32.mrb[0].mxu0
      %v465 = vadd.f32 %v225, %v464
      %v466 = vpop.f32.mrb[0].mxu0
      %467 = vmatprep.mubr.bf16.mxu0 0
      %468 = vmatmul.mubr.bf16.gmra.mrb[0].mxu0 %v299
      %v469 = vpop.f32.mrb[0].mxu0
      %v470 = vadd.f32 %v225, %v469
      %v471 = vpop.f32.mrb[0].mxu0
      %v472 = vpop.f32.mrb[0].mxu0
      %v473 = vadd.f32 %v225, %v472
      %v474 = vpop.f32.mrb[0].mxu0
      %475 = vmatprep.mubr.bf16.mxu0 0
      %476 = vmatmul.mubr.bf16.gmra.mrb[0].mxu0 %v300
      %v477 = vpop.f32.mrb[0].mxu0
      %v478 = vadd.f32 %v225, %v477
      %v479 = vpop.f32.mrb[0].mxu0
      %v480 = vpop.f32.mrb[0].mxu0
      %v481 = vadd.f32 %v225, %v480
      %v482 = vpop.f32.mrb[0].mxu0
      %483 = vmatprep.mubr.bf16.mxu0 0
      %484 = vmatmul.mubr.bf16.gmra.mrb[0].mxu0 %v301
      %v485 = vpop.f32.mrb[0].mxu0
      %v486 = vadd.f32 %v225, %v485
      %v487 = vpop.f32.mrb[0].mxu0
      %v488 = vpop.f32.mrb[0].mxu0
      %v489 = vadd.f32 %v225, %v488
      %v490 = vpop.f32.mrb[0].mxu0
      %491 = vmatprep.mubr.bf16.mxu0 0
      %492 = vmatmul.mubr.bf16.gmra.mrb[0].mxu0 %v302
      %v493 = vpop.f32.mrb[0].mxu0
      %v494 = vadd.f32 %v225, %v493
      %v495 = vpop.f32.mrb[0].mxu0
      %v496 = vpop.f32.mrb[0].mxu0
      %v497 = vadd.f32 %v225, %v496
      %v498 = vpop.f32.mrb[0].mxu0
      %499 = vmatprep.mubr.bf16.mxu0 0
      %500 = vmatmul.mubr.bf16.gmra.mrb[0].mxu0 %v303
      %v501 = vpop.f32.mrb[0].mxu0
      %v502 = vadd.f32 %v225, %v501
      %v503 = vpop.f32.mrb[0].mxu0
      %v504 = vpop.f32.mrb[0].mxu0
      %v505 = vadd.f32 %v225, %v504
      %v506 = vpop.f32.mrb[0].mxu0
      %507 = vmatprep.mubr.bf16.mxu0 0
      %508 = vmatmul.mubr.bf16.gmra.mrb[0].mxu0 %v304
      %v509 = vpop.f32.mrb[0].mxu0
      %v510 = vadd.f32 %v225, %v509
      %v511 = vpop.f32.mrb[0].mxu0
      %v512 = vpop.f32.mrb[0].mxu0
      %v513 = vadd.f32 %v225, %v512
      %v514 = vpop.f32.mrb[0].mxu0
      %515 = vmatprep.mubr.bf16.mxu0 0
      %516 = vmatmul.mubr.bf16.gmra.mrb[0].mxu0 %v305
      %v517 = vpop.f32.mrb[0].mxu0
      %v518 = vadd.f32 %v225, %v517
      %v519 = vpop.f32.mrb[0].mxu0
      %v520 = vpop.f32.mrb[0].mxu0
      %v521 = vadd.f32 %v225, %v520
      %v522 = vpop.f32.mrb[0].mxu0
      %523 = vmatprep.mubr.bf16.mxu0 0
      %524 = vmatmul.mubr.bf16.gmra.mrb[0].mxu0 %v306
      %v525 = vpop.f32.mrb[0].mxu0
      %v526 = vadd.f32 %v225, %v525
      %v527 = vpop.f32.mrb[0].mxu0
      %v528 = vpop.f32.mrb[0].mxu0
      %v529 = vadd.f32 %v225, %v528
      %v530 = vpop.f32.mrb[0].mxu0
      %531 = vdwg.mxu0
      %v532 = vmax.f32 %v406, 0.0
      %v533 = vmax.f32 %v409, 0.0
      %v534 = vmax.f32 %v414, 0.0
      %v535 = vmax.f32 %v417, 0.0
      %v536 = vmax.f32 %v422, 0.0
      %v537 = vmax.f32 %v425, 0.0
      %v538 = vmax.f32 %v430, 0.0
      %v539 = vmax.f32 %v433, 0.0
      %v540 = vmax.f32 %v438, 0.0
      %v541 = vmax.f32 %v441, 0.0
      %v542 = vmax.f32 %v446, 0.0
      %v543 = vmax.f32 %v449, 0.0
      %v544 = vmax.f32 %v454, 0.0
      %v545 = vmax.f32 %v457, 0.0
      %v546 = vmax.f32 %v462, 0.0
      %v547 = vmax.f32 %v465, 0.0
      %v548 = vmax.f32 %v470, 0.0
      %v549 = vmax.f32 %v473, 0.0
      %v550 = vmax.f32 %v478, 0.0
      %v551 = vmax.f32 %v481, 0.0
      %v552 = vmax.f32 %v486, 0.0
      %v553 = vmax.f32 %v489, 0.0
      %v554 = vmax.f32 %v494, 0.0
      %v555 = vmax.f32 %v497, 0.0
      %v556 = vmax.f32 %v502, 0.0
      %v557 = vmax.f32 %v505, 0.0
      %v558 = vmax.f32 %v510, 0.0
      %v559 = vmax.f32 %v513, 0.0
      %v560 = vmax.f32 %v518, 0.0
      %v561 = vmax.f32 %v521, 0.0
      %v562 = vmax.f32 %v526, 0.0
      %v563 = vmax.f32 %v529, 0.0
      %v564 = vmax.f32 %v532, %v536
      %v565 = vmax.f32 %v533, %v537
      %v566 = vmax.f32 %v534, %v538
      %v567 = vmax.f32 %v535, %v539
      %v568 = vmax.f32 %v540, %v544
      %v569 = vmax.f32 %v541, %v545
      %v570 = vmax.f32 %v542, %v546
      %v571 = vmax.f32 %v543, %v547
      %v572 = vmax.f32 %v548, %v552
      %v573 = vmax.f32 %v549, %v553
      %v574 = vmax.f32 %v550, %v554
      %v575 = vmax.f32 %v551, %v555
      %v576 = vmax.f32 %v556, %v560
      %v577 = vmax.f32 %v557, %v561
      %v578 = vmax.f32 %v558, %v562
      %v579 = vmax.f32 %v559, %v563
      %580 = vst [vmem:[#allocation2] sm:$0xff] %v564
      %581 = vst [vmem:[#allocation2 + $0x8] sm:$0xff] %v565
      %582 = vst [vmem:[#allocation2 + $0x10] sm:$0xff] %v566
      %583 = vst [vmem:[#allocation2 + $0x18] sm:$0xff] %v567
      %584 = vst [vmem:[#allocation2 + $0x20] sm:$0xff] %v568
      %585 = vst [vmem:[#allocation2 + $0x28] sm:$0xff] %v569
      %586 = vst [vmem:[#allocation2 + $0x30] sm:$0xff] %v570
      %587 = vst [vmem:[#allocation2 + $0x38] sm:$0xff] %v571
      %588 = vst [vmem:[#allocation2 + $0x40] sm:$0xff] %v572
      %589 = vst [vmem:[#allocation2 + $0x48] sm:$0xff] %v573
      %590 = vst [vmem:[#allocation2 + $0x50] sm:$0xff] %v574
      %591 = vst [vmem:[#allocation2 + $0x58] sm:$0xff] %v575
      %592 = vst [vmem:[#allocation2 + $0x60] sm:$0xff] %v576
      %593 = vst [vmem:[#allocation2 + $0x68] sm:$0xff] %v577
      %594 = vst [vmem:[#allocation2 + $0x70] sm:$0xff] %v578
      %595 = vst [vmem:[#allocation2 + $0x78] sm:$0xff] %v579
      %v596 = vld [vmem:[#allocation2] ss:$2 sm:$0xff]
      %s597 = scalar_lea.vmem [#allocation2], 16
      %v598 = vld [vmem:[%s597] ss:$2 sm:$0xff]
      %s599 = scalar_lea.vmem [#allocation2], 32
      %v600 = vld [vmem:[%s599] ss:$2 sm:$0xff]
      %s601 = scalar_lea.vmem [#allocation2], 48
      %v602 = vld [vmem:[%s601] ss:$2 sm:$0xff]
      %s603 = scalar_lea.vmem [#allocation2], 64
      %v604 = vld [vmem:[%s603] ss:$2 sm:$0xff]
      %s605 = scalar_lea.vmem [#allocation2], 80
      %v606 = vld [vmem:[%s605] ss:$2 sm:$0xff]
      %s607 = scalar_lea.vmem [#allocation2], 96
      %v608 = vld [vmem:[%s607] ss:$2 sm:$0xff]
      %s609 = scalar_lea.vmem [#allocation2], 112
      %v610 = vld [vmem:[%s609] ss:$2 sm:$0xff]
      %s611 = scalar_lea.vmem [#allocation2], 1
      %v612 = vld [vmem:[%s611] ss:$2 sm:$0xff]
      %s613 = scalar_lea.vmem [#allocation2], 17
      %v614 = vld [vmem:[%s613] ss:$2 sm:$0xff]
      %s615 = scalar_lea.vmem [#allocation2], 33
      %v616 = vld [vmem:[%s615] ss:$2 sm:$0xff]
      %s617 = scalar_lea.vmem [#allocation2], 49
      %v618 = vld [vmem:[%s617] ss:$2 sm:$0xff]
      %s619 = scalar_lea.vmem [#allocation2], 65
      %v620 = vld [vmem:[%s619] ss:$2 sm:$0xff]
      %s621 = scalar_lea.vmem [#allocation2], 81
      %v622 = vld [vmem:[%s621] ss:$2 sm:$0xff]
      %s623 = scalar_lea.vmem [#allocation2], 97
      %v624 = vld [vmem:[%s623] ss:$2 sm:$0xff]
      %s625 = scalar_lea.vmem [#allocation2], 113
      %v626 = vld [vmem:[%s625] ss:$2 sm:$0xff]
      %v627 = vmax.f32 %v596, %v612
      %v628 = vmax.f32 %v598, %v614
      %v629 = vmax.f32 %v600, %v616
      %v630 = vmax.f32 %v602, %v618
      %v631 = vmax.f32 %v604, %v620
      %v632 = vmax.f32 %v606, %v622
      %v633 = vmax.f32 %v608, %v624
      %v634 = vmax.f32 %v610, %v626
      %v635 = vpack.c.bf16 %v628, %v627
      %v636 = vpack.c.bf16 %v630, %v629
      %v637 = vpack.c.bf16 %v632, %v631
      %v638 = vpack.c.bf16 %v634, %v633
      %v643 = vunpack.c.l.b16 %v635
      %v644 = vunpack.c.h.b16 %v635
      %v645 = vunpack.c.l.b16 %v636
      %v646 = vunpack.c.h.b16 %v636
      %v647 = vunpack.c.l.b16 %v637
      %v648 = vunpack.c.h.b16 %v637
      %v649 = vunpack.c.l.b16 %v638
      %v650 = vunpack.c.h.b16 %v638
      %v651 = vpack.c.b16 %v643, %v643
      %v652 = vpack.c.b16 %v644, %v644
      %v653 = vpack.c.b16 %v645, %v645
      %v654 = vpack.c.b16 %v646, %v646
      %v655 = vpack.c.b16 %v647, %v647
      %v656 = vpack.c.b16 %v648, %v648
      %v657 = vpack.c.b16 %v649, %v649
      %v658 = vpack.c.b16 %v650, %v650
      %667 = vst [vmem:[%s170] sm:$0xf] %v651
      %668 = vst [vmem:[%s170 + $0x4] sm:$0xf] %v652
      %669 = vst [vmem:[%s170 + $0x8] sm:$0xf] %v653
      %670 = vst [vmem:[%s170 + $0xc] sm:$0xf] %v654
      %671 = vst [vmem:[%s170 + $0x10] sm:$0xf] %v655
      %672 = vst [vmem:[%s170 + $0x14] sm:$0xf] %v656
      %673 = vst [vmem:[%s170 + $0x18] sm:$0xf] %v657
      %674 = vst [vmem:[%s170 + $0x1c] sm:$0xf] %v658
      %v675 = vld [vmem:[%s165 + $0x80] sm:$0xf]
      %v676 = vld [vmem:[%s165 + $0x84] sm:$0xf]
      %v677 = vld [vmem:[%s165 + $0x88] sm:$0xf]
      %v678 = vld [vmem:[%s165 + $0x8c] sm:$0xf]
      %v679 = vld [vmem:[%s165 + $0x90] sm:$0xf]
      %v680 = vld [vmem:[%s165 + $0x94] sm:$0xf]
      %v681 = vld [vmem:[%s165 + $0x98] sm:$0xf]
      %v682 = vld [vmem:[%s165 + $0x9c] sm:$0xf]
      %v683 = vld [vmem:[%s165 + $0xa0] sm:$0xf]
      %v684 = vld [vmem:[%s165 + $0xa4] sm:$0xf]
      %v685 = vld [vmem:[%s165 + $0xa8] sm:$0xf]
      %v686 = vld [vmem:[%s165 + $0xac] sm:$0xf]
      %v687 = vld [vmem:[%s165 + $0xb0] sm:$0xf]
      %v688 = vld [vmem:[%s165 + $0xb4] sm:$0xf]
      %v689 = vld [vmem:[%s165 + $0xb8] sm:$0xf]
      %v690 = vld [vmem:[%s165 + $0xbc] sm:$0xf]
      %v691 = vld [vmem:[%s165 + $0xc0] sm:$0xf]
      %v692 = vld [vmem:[%s165 + $0xc4] sm:$0xf]
      %v693 = vld [vmem:[%s165 + $0xc8] sm:$0xf]
      %v694 = vld [vmem:[%s165 + $0xcc] sm:$0xf]
      %v695 = vld [vmem:[%s165 + $0xd0] sm:$0xf]
      %v696 = vld [vmem:[%s165 + $0xd4] sm:$0xf]
      %v697 = vld [vmem:[%s165 + $0xd8] sm:$0xf]
      %v698 = vld [vmem:[%s165 + $0xdc] sm:$0xf]
      %v699 = vld [vmem:[%s165 + $0xe0] sm:$0xf]
      %v700 = vld [vmem:[%s165 + $0xe4] sm:$0xf]
      %v701 = vld [vmem:[%s165 + $0xe8] sm:$0xf]
      %v702 = vld [vmem:[%s165 + $0xec] sm:$0xf]
      %v703 = vld [vmem:[%s165 + $0xf0] sm:$0xf]
      %v704 = vld [vmem:[%s165 + $0xf4] sm:$0xf]
      %v705 = vld [vmem:[%s165 + $0xf8] sm:$0xf]
      %v706 = vld [vmem:[%s165 + $0xfc] sm:$0xf]
      %v707 = vld [vmem:[%s1] sm:$0xf]
      %v708 = vld [vmem:[%s1 + $0x4] sm:$0xf]
      %v709 = vld [vmem:[%s1 + $0x8] sm:$0xf]
      %v710 = vld [vmem:[%s1 + $0xc] sm:$0xf]
      %v711 = vld [vmem:[%s1 + $0x10] sm:$0xf]
      %v712 = vld [vmem:[%s1 + $0x14] sm:$0xf]
      %v713 = vld [vmem:[%s1 + $0x18] sm:$0xf]
      %v714 = vld [vmem:[%s1 + $0x1c] sm:$0xf]
      %v715 = vld [vmem:[%s1 + $0x20] sm:$0xf]
      %v716 = vld [vmem:[%s1 + $0x24] sm:$0xf]
      %v717 = vld [vmem:[%s1 + $0x28] sm:$0xf]
      %v718 = vld [vmem:[%s1 + $0x2c] sm:$0xf]
      %v719 = vld [vmem:[%s1 + $0x30] sm:$0xf]
      %v720 = vld [vmem:[%s1 + $0x34] sm:$0xf]
      %v721 = vld [vmem:[%s1 + $0x38] sm:$0xf]
      %v722 = vld [vmem:[%s1 + $0x3c] sm:$0xf]
      %v755 = vunpack.c.l.b16 %v675
      %v756 = vunpack.c.l.b16 %v676
      %v757 = vunpack.c.l.b16 %v677
      %v758 = vunpack.c.l.b16 %v678
      %v759 = vunpack.c.l.b16 %v679
      %v760 = vunpack.c.l.b16 %v680
      %v761 = vunpack.c.l.b16 %v681
      %v762 = vunpack.c.l.b16 %v682
      %v763 = vunpack.c.l.b16 %v683
      %v764 = vunpack.c.l.b16 %v684
      %v765 = vunpack.c.l.b16 %v685
      %v766 = vunpack.c.l.b16 %v686
      %v767 = vunpack.c.l.b16 %v687
      %v768 = vunpack.c.l.b16 %v688
      %v769 = vunpack.c.l.b16 %v689
      %v770 = vunpack.c.l.b16 %v690
      %v771 = vunpack.c.l.b16 %v691
      %v772 = vunpack.c.l.b16 %v692
      %v773 = vunpack.c.l.b16 %v693
      %v774 = vunpack.c.l.b16 %v694
      %v775 = vunpack.c.l.b16 %v695
      %v776 = vunpack.c.l.b16 %v696
      %v777 = vunpack.c.l.b16 %v697
      %v778 = vunpack.c.l.b16 %v698
      %v779 = vunpack.c.l.b16 %v699
      %v780 = vunpack.c.l.b16 %v700
      %v781 = vunpack.c.l.b16 %v701
      %v782 = vunpack.c.l.b16 %v702
      %v783 = vunpack.c.l.b16 %v703
      %v784 = vunpack.c.l.b16 %v704
      %v785 = vunpack.c.l.b16 %v705
      %v786 = vunpack.c.l.b16 %v706
      %v787 = vpack.c.b16 %v756, %v755
      %v788 = vpack.c.b16 %v758, %v757
      %v789 = vpack.c.b16 %v760, %v759
      %v790 = vpack.c.b16 %v762, %v761
      %v791 = vpack.c.b16 %v764, %v763
      %v792 = vpack.c.b16 %v766, %v765
      %v793 = vpack.c.b16 %v768, %v767
      %v794 = vpack.c.b16 %v770, %v769
      %v795 = vpack.c.b16 %v772, %v771
      %v796 = vpack.c.b16 %v774, %v773
      %v797 = vpack.c.b16 %v776, %v775
      %v798 = vpack.c.b16 %v778, %v777
      %v799 = vpack.c.b16 %v780, %v779
      %v800 = vpack.c.b16 %v782, %v781
      %v801 = vpack.c.b16 %v784, %v783
      %v802 = vpack.c.b16 %v786, %v785
      %v835 = vunpack.c.l.b16 %v707
      %v836 = vunpack.c.l.b16 %v708
      %v837 = vunpack.c.l.b16 %v709
      %v838 = vunpack.c.l.b16 %v710
      %v839 = vunpack.c.l.b16 %v711
      %v840 = vunpack.c.l.b16 %v712
      %v841 = vunpack.c.l.b16 %v713
      %v842 = vunpack.c.l.b16 %v714
      %v843 = vunpack.c.l.b16 %v715
      %v844 = vunpack.c.l.b16 %v716
      %v845 = vunpack.c.l.b16 %v717
      %v846 = vunpack.c.l.b16 %v718
      %v847 = vunpack.c.l.b16 %v719
      %v848 = vunpack.c.l.b16 %v720
      %v849 = vunpack.c.l.b16 %v721
      %v850 = vunpack.c.l.b16 %v722
      %v851 = vpack.c.b16 %v836, %v835
      %v852 = vpack.c.b16 %v838, %v837
      %v853 = vpack.c.b16 %v840, %v839
      %v854 = vpack.c.b16 %v842, %v841
      %v855 = vpack.c.b16 %v844, %v843
      %v856 = vpack.c.b16 %v846, %v845
      %v857 = vpack.c.b16 %v848, %v847
      %v858 = vpack.c.b16 %v850, %v849
      %867 = vmatprep.subr.bf16.mxu0 0
      %868 = vmatpush1.bf16.msra.mxu0 %v851
      %869 = vmatprep.subr.bf16.mxu0 0
      %870 = vmatpush1.bf16.msra.mxu0 %v852
      %871 = vmatprep.subr.bf16.mxu0 0
      %872 = vmatpush1.bf16.msra.mxu0 %v853
      %873 = vmatprep.subr.bf16.mxu0 0
      %874 = vmatpush1.bf16.msra.mxu0 %v854
      %875 = vmatprep.subr.bf16.mxu0 0
      %876 = vmatpush1.bf16.msra.mxu0 %v855
      %877 = vmatprep.subr.bf16.mxu0 0
      %878 = vmatpush1.bf16.msra.mxu0 %v856
      %879 = vmatprep.subr.bf16.mxu0 0
      %880 = vmatpush1.bf16.msra.mxu0 %v857
      %881 = vmatprep.subr.bf16.mxu0 0
      %882 = vmatpush1.bf16.msra.mxu0 %v858
      %883 = vmatprep.subr.bf16.mxu0 0
      %884 = vmatpush1.bf16.msra.mxu0 0
      %885 = vmatprep.subr.bf16.mxu0 0
      %886 = vmatpush1.bf16.msra.mxu0 0
      %887 = vmatprep.subr.bf16.mxu0 0
      %888 = vmatpush1.bf16.msra.mxu0 0
      %889 = vmatprep.subr.bf16.mxu0 0
      %890 = vmatpush1.bf16.msra.mxu0 0
      %891 = vmatprep.subr.bf16.mxu0 0
      %892 = vmatpush1.bf16.msra.mxu0 0
      %893 = vmatprep.subr.bf16.mxu0 0
      %894 = vmatpush1.bf16.msra.mxu0 0
      %895 = vmatprep.subr.bf16.mxu0 0
      %896 = vmatpush1.bf16.msra.mxu0 0
      %897 = vmatprep.subr.bf16.mxu0 0
      %898 = vmatpush1.bf16.msra.mxu0 0
      %899 = vmatprep.mubr.bf16.mxu0 0
      %900 = vmatmul.mubr.bf16.gmra.mrb[0].mxu0 %v787
      %v901 = vpop.f32.mrb[0].mxu0
      %v902 = vadd.f32 %v225, %v901
      %v903 = vpop.f32.mrb[0].mxu0
      %v904 = vpop.f32.mrb[0].mxu0
      %v905 = vadd.f32 %v225, %v904
      %v906 = vpop.f32.mrb[0].mxu0
      %907 = vmatprep.mubr.bf16.mxu0 0
      %908 = vmatmul.mubr.bf16.gmra.mrb[0].mxu0 %v788
      %v909 = vpop.f32.mrb[0].mxu0
      %v910 = vadd.f32 %v225, %v909
      %v911 = vpop.f32.mrb[0].mxu0
      %v912 = vpop.f32.mrb[0].mxu0
      %v913 = vadd.f32 %v225, %v912
      %v914 = vpop.f32.mrb[0].mxu0
      %915 = vmatprep.mubr.bf16.mxu0 0
      %916 = vmatmul.mubr.bf16.gmra.mrb[0].mxu0 %v789
      %v917 = vpop.f32.mrb[0].mxu0
      %v918 = vadd.f32 %v225, %v917
      %v919 = vpop.f32.mrb[0].mxu0
      %v920 = vpop.f32.mrb[0].mxu0
      %v921 = vadd.f32 %v225, %v920
      %v922 = vpop.f32.mrb[0].mxu0
      %923 = vmatprep.mubr.bf16.mxu0 0
      %924 = vmatmul.mubr.bf16.gmra.mrb[0].mxu0 %v790
      %v925 = vpop.f32.mrb[0].mxu0
      %v926 = vadd.f32 %v225, %v925
      %v927 = vpop.f32.mrb[0].mxu0
      %v928 = vpop.f32.mrb[0].mxu0
      %v929 = vadd.f32 %v225, %v928
      %v930 = vpop.f32.mrb[0].mxu0
      %931 = vmatprep.mubr.bf16.mxu0 0
      %932 = vmatmul.mubr.bf16.gmra.mrb[0].mxu0 %v791
      %v933 = vpop.f32.mrb[0].mxu0
      %v934 = vadd.f32 %v225, %v933
      %v935 = vpop.f32.mrb[0].mxu0
      %v936 = vpop.f32.mrb[0].mxu0
      %v937 = vadd.f32 %v225, %v936
      %v938 = vpop.f32.mrb[0].mxu0
      %939 = vmatprep.mubr.bf16.mxu0 0
      %940 = vmatmul.mubr.bf16.gmra.mrb[0].mxu0 %v792
      %v941 = vpop.f32.mrb[0].mxu0
      %v942 = vadd.f32 %v225, %v941
      %v943 = vpop.f32.mrb[0].mxu0
      %v944 = vpop.f32.mrb[0].mxu0
      %v945 = vadd.f32 %v225, %v944
      %v946 = vpop.f32.mrb[0].mxu0
      %947 = vmatprep.mubr.bf16.mxu0 0
      %948 = vmatmul.mubr.bf16.gmra.mrb[0].mxu0 %v793
      %v949 = vpop.f32.mrb[0].mxu0
      %v950 = vadd.f32 %v225, %v949
      %v951 = vpop.f32.mrb[0].mxu0
      %v952 = vpop.f32.mrb[0].mxu0
      %v953 = vadd.f32 %v225, %v952
      %v954 = vpop.f32.mrb[0].mxu0
      %955 = vmatprep.mubr.bf16.mxu0 0
      %956 = vmatmul.mubr.bf16.gmra.mrb[0].mxu0 %v794
      %v957 = vpop.f32.mrb[0].mxu0
      %v958 = vadd.f32 %v225, %v957
      %v959 = vpop.f32.mrb[0].mxu0
      %v960 = vpop.f32.mrb[0].mxu0
      %v961 = vadd.f32 %v225, %v960
      %v962 = vpop.f32.mrb[0].mxu0
      %963 = vmatprep.mubr.bf16.mxu0 0
      %964 = vmatmul.mubr.bf16.gmra.mrb[0].mxu0 %v795
      %v965 = vpop.f32.mrb[0].mxu0
      %v966 = vadd.f32 %v225, %v965
      %v967 = vpop.f32.mrb[0].mxu0
      %v968 = vpop.f32.mrb[0].mxu0
      %v969 = vadd.f32 %v225, %v968
      %v970 = vpop.f32.mrb[0].mxu0
      %971 = vmatprep.mubr.bf16.mxu0 0
      %972 = vmatmul.mubr.bf16.gmra.mrb[0].mxu0 %v796
      %v973 = vpop.f32.mrb[0].mxu0
      %v974 = vadd.f32 %v225, %v973
      %v975 = vpop.f32.mrb[0].mxu0
      %v976 = vpop.f32.mrb[0].mxu0
      %v977 = vadd.f32 %v225, %v976
      %v978 = vpop.f32.mrb[0].mxu0
      %979 = vmatprep.mubr.bf16.mxu0 0
      %980 = vmatmul.mubr.bf16.gmra.mrb[0].mxu0 %v797
      %v981 = vpop.f32.mrb[0].mxu0
      %v982 = vadd.f32 %v225, %v981
      %v983 = vpop.f32.mrb[0].mxu0
      %v984 = vpop.f32.mrb[0].mxu0
      %v985 = vadd.f32 %v225, %v984
      %v986 = vpop.f32.mrb[0].mxu0
      %987 = vmatprep.mubr.bf16.mxu0 0
      %988 = vmatmul.mubr.bf16.gmra.mrb[0].mxu0 %v798
      %v989 = vpop.f32.mrb[0].mxu0
      %v990 = vadd.f32 %v225, %v989
      %v991 = vpop.f32.mrb[0].mxu0
      %v992 = vpop.f32.mrb[0].mxu0
      %v993 = vadd.f32 %v225, %v992
      %v994 = vpop.f32.mrb[0].mxu0
      %995 = vmatprep.mubr.bf16.mxu0 0
      %996 = vmatmul.mubr.bf16.gmra.mrb[0].mxu0 %v799
      %v997 = vpop.f32.mrb[0].mxu0
      %v998 = vadd.f32 %v225, %v997
      %v999 = vpop.f32.mrb[0].mxu0
      %v1000 = vpop.f32.mrb[0].mxu0
      %v1001 = vadd.f32 %v225, %v1000
      %v1002 = vpop.f32.mrb[0].mxu0
      %1003 = vmatprep.mubr.bf16.mxu0 0
      %1004 = vmatmul.mubr.bf16.gmra.mrb[0].mxu0 %v800
      %v1005 = vpop.f32.mrb[0].mxu0
      %v1006 = vadd.f32 %v225, %v1005
      %v1007 = vpop.f32.mrb[0].mxu0
      %v1008 = vpop.f32.mrb[0].mxu0
      %v1009 = vadd.f32 %v225, %v1008
      %v1010 = vpop.f32.mrb[0].mxu0
      %1011 = vmatprep.mubr.bf16.mxu0 0
      %1012 = vmatmul.mubr.bf16.gmra.mrb[0].mxu0 %v801
      %v1013 = vpop.f32.mrb[0].mxu0
      %v1014 = vadd.f32 %v225, %v1013
      %v1015 = vpop.f32.mrb[0].mxu0
      %v1016 = vpop.f32.mrb[0].mxu0
      %v1017 = vadd.f32 %v225, %v1016
      %v1018 = vpop.f32.mrb[0].mxu0
      %1019 = vmatprep.mubr.bf16.mxu0 0
      %1020 = vmatmul.mubr.bf16.gmra.mrb[0].mxu0 %v802
      %v1021 = vpop.f32.mrb[0].mxu0
      %v1022 = vadd.f32 %v225, %v1021
      %v1023 = vpop.f32.mrb[0].mxu0
      %v1024 = vpop.f32.mrb[0].mxu0
      %v1025 = vadd.f32 %v225, %v1024
      %v1026 = vpop.f32.mrb[0].mxu0
      %1027 = vdwg.mxu0
      %v1028 = vmax.f32 %v902, 0.0
      %v1029 = vmax.f32 %v905, 0.0
      %v1030 = vmax.f32 %v910, 0.0
      %v1031 = vmax.f32 %v913, 0.0
      %v1032 = vmax.f32 %v918, 0.0
      %v1033 = vmax.f32 %v921, 0.0
      %v1034 = vmax.f32 %v926, 0.0
      %v1035 = vmax.f32 %v929, 0.0
      %v1036 = vmax.f32 %v934, 0.0
      %v1037 = vmax.f32 %v937, 0.0
      %v1038 = vmax.f32 %v942, 0.0
      %v1039 = vmax.f32 %v945, 0.0
      %v1040 = vmax.f32 %v950, 0.0
      %v1041 = vmax.f32 %v953, 0.0
      %v1042 = vmax.f32 %v958, 0.0
      %v1043 = vmax.f32 %v961, 0.0
      %v1044 = vmax.f32 %v966, 0.0
      %v1045 = vmax.f32 %v969, 0.0
      %v1046 = vmax.f32 %v974, 0.0
      %v1047 = vmax.f32 %v977, 0.0
      %v1048 = vmax.f32 %v982, 0.0
      %v1049 = vmax.f32 %v985, 0.0
      %v1050 = vmax.f32 %v990, 0.0
      %v1051 = vmax.f32 %v993, 0.0
      %v1052 = vmax.f32 %v998, 0.0
      %v1053 = vmax.f32 %v1001, 0.0
      %v1054 = vmax.f32 %v1006, 0.0
      %v1055 = vmax.f32 %v1009, 0.0
      %v1056 = vmax.f32 %v1014, 0.0
      %v1057 = vmax.f32 %v1017, 0.0
      %v1058 = vmax.f32 %v1022, 0.0
      %v1059 = vmax.f32 %v1025, 0.0
      %v1060 = vmax.f32 %v1028, %v1032
      %v1061 = vmax.f32 %v1029, %v1033
      %v1062 = vmax.f32 %v1030, %v1034
      %v1063 = vmax.f32 %v1031, %v1035
      %v1064 = vmax.f32 %v1036, %v1040
      %v1065 = vmax.f32 %v1037, %v1041
      %v1066 = vmax.f32 %v1038, %v1042
      %v1067 = vmax.f32 %v1039, %v1043
      %v1068 = vmax.f32 %v1044, %v1048
      %v1069 = vmax.f32 %v1045, %v1049
      %v1070 = vmax.f32 %v1046, %v1050
      %v1071 = vmax.f32 %v1047, %v1051
      %v1072 = vmax.f32 %v1052, %v1056
      %v1073 = vmax.f32 %v1053, %v1057
      %v1074 = vmax.f32 %v1054, %v1058
      %v1075 = vmax.f32 %v1055, %v1059
      %1076 = vst [vmem:[#allocation2] sm:$0xff] %v1060
      %1077 = vst [vmem:[#allocation2 + $0x8] sm:$0xff] %v1061
      %1078 = vst [vmem:[#allocation2 + $0x10] sm:$0xff] %v1062
      %1079 = vst [vmem:[#allocation2 + $0x18] sm:$0xff] %v1063
      %1080 = vst [vmem:[#allocation2 + $0x20] sm:$0xff] %v1064
      %1081 = vst [vmem:[#allocation2 + $0x28] sm:$0xff] %v1065
      %1082 = vst [vmem:[#allocation2 + $0x30] sm:$0xff] %v1066
      %1083 = vst [vmem:[#allocation2 + $0x38] sm:$0xff] %v1067
      %1084 = vst [vmem:[#allocation2 + $0x40] sm:$0xff] %v1068
      %1085 = vst [vmem:[#allocation2 + $0x48] sm:$0xff] %v1069
      %1086 = vst [vmem:[#allocation2 + $0x50] sm:$0xff] %v1070
      %1087 = vst [vmem:[#allocation2 + $0x58] sm:$0xff] %v1071
      %1088 = vst [vmem:[#allocation2 + $0x60] sm:$0xff] %v1072
      %1089 = vst [vmem:[#allocation2 + $0x68] sm:$0xff] %v1073
      %1090 = vst [vmem:[#allocation2 + $0x70] sm:$0xff] %v1074
      %1091 = vst [vmem:[#allocation2 + $0x78] sm:$0xff] %v1075
      %v1092 = vld [vmem:[#allocation2] ss:$2 sm:$0xff]
      %v1093 = vld [vmem:[%s597] ss:$2 sm:$0xff]
      %v1094 = vld [vmem:[%s599] ss:$2 sm:$0xff]
      %v1095 = vld [vmem:[%s601] ss:$2 sm:$0xff]
      %v1096 = vld [vmem:[%s603] ss:$2 sm:$0xff]
      %v1097 = vld [vmem:[%s605] ss:$2 sm:$0xff]
      %v1098 = vld [vmem:[%s607] ss:$2 sm:$0xff]
      %v1099 = vld [vmem:[%s609] ss:$2 sm:$0xff]
      %v1100 = vld [vmem:[%s611] ss:$2 sm:$0xff]
      %v1101 = vld [vmem:[%s613] ss:$2 sm:$0xff]
      %v1102 = vld [vmem:[%s615] ss:$2 sm:$0xff]
      %v1103 = vld [vmem:[%s617] ss:$2 sm:$0xff]
      %v1104 = vld [vmem:[%s619] ss:$2 sm:$0xff]
      %v1105 = vld [vmem:[%s621] ss:$2 sm:$0xff]
      %v1106 = vld [vmem:[%s623] ss:$2 sm:$0xff]
      %v1107 = vld [vmem:[%s625] ss:$2 sm:$0xff]
      %v1108 = vmax.f32 %v1092, %v1100
      %v1109 = vmax.f32 %v1093, %v1101
      %v1110 = vmax.f32 %v1094, %v1102
      %v1111 = vmax.f32 %v1095, %v1103
      %v1112 = vmax.f32 %v1096, %v1104
      %v1113 = vmax.f32 %v1097, %v1105
      %v1114 = vmax.f32 %v1098, %v1106
      %v1115 = vmax.f32 %v1099, %v1107
      %v1116 = vpack.c.bf16 %v1109, %v1108
      %v1117 = vpack.c.bf16 %v1111, %v1110
      %v1118 = vpack.c.bf16 %v1113, %v1112
      %v1119 = vpack.c.bf16 %v1115, %v1114
      %v1124 = vunpack.c.l.b16 %v1116
      %v1125 = vunpack.c.h.b16 %v1116
      %v1126 = vunpack.c.l.b16 %v1117
      %v1127 = vunpack.c.h.b16 %v1117
      %v1128 = vunpack.c.l.b16 %v1118
      %v1129 = vunpack.c.h.b16 %v1118
      %v1130 = vunpack.c.l.b16 %v1119
      %v1131 = vunpack.c.h.b16 %v1119
      %v1132 = vpack.c.b16 %v1124, %v1124
      %v1133 = vpack.c.b16 %v1125, %v1125
      %v1134 = vpack.c.b16 %v1126, %v1126
      %v1135 = vpack.c.b16 %v1127, %v1127
      %v1136 = vpack.c.b16 %v1128, %v1128
      %v1137 = vpack.c.b16 %v1129, %v1129
      %v1138 = vpack.c.b16 %v1130, %v1130
      %v1139 = vpack.c.b16 %v1131, %v1131
      %s1148 = scalar_lea.vmem %s170, 32
      %1149 = vst [vmem:[%s1148] sm:$0xf] %v1132
      %1150 = vst [vmem:[%s1148 + $0x4] sm:$0xf] %v1133
      %1151 = vst [vmem:[%s1148 + $0x8] sm:$0xf] %v1134
      %1152 = vst [vmem:[%s1148 + $0xc] sm:$0xf] %v1135
      %1153 = vst [vmem:[%s1148 + $0x10] sm:$0xf] %v1136
      %1154 = vst [vmem:[%s1148 + $0x14] sm:$0xf] %v1137
      %1155 = vst [vmem:[%s1148 + $0x18] sm:$0xf] %v1138
      %1156 = vst [vmem:[%s1148 + $0x1c] sm:$0xf] %v1139
      %v1157 = vld [vmem:[%s165 + $0x100] sm:$0xf]
      %v1158 = vld [vmem:[%s165 + $0x104] sm:$0xf]
      %v1159 = vld [vmem:[%s165 + $0x108] sm:$0xf]
      %v1160 = vld [vmem:[%s165 + $0x10c] sm:$0xf]
      %v1161 = vld [vmem:[%s165 + $0x110] sm:$0xf]
      %v1162 = vld [vmem:[%s165 + $0x114] sm:$0xf]
      %v1163 = vld [vmem:[%s165 + $0x118] sm:$0xf]
      %v1164 = vld [vmem:[%s165 + $0x11c] sm:$0xf]
      %v1165 = vld [vmem:[%s165 + $0x120] sm:$0xf]
      %v1166 = vld [vmem:[%s165 + $0x124] sm:$0xf]
      %v1167 = vld [vmem:[%s165 + $0x128] sm:$0xf]
      %v1168 = vld [vmem:[%s165 + $0x12c] sm:$0xf]
      %v1169 = vld [vmem:[%s165 + $0x130] sm:$0xf]
      %v1170 = vld [vmem:[%s165 + $0x134] sm:$0xf]
      %v1171 = vld [vmem:[%s165 + $0x138] sm:$0xf]
      %v1172 = vld [vmem:[%s165 + $0x13c] sm:$0xf]
      %v1173 = vld [vmem:[%s165 + $0x140] sm:$0xf]
      %v1174 = vld [vmem:[%s165 + $0x144] sm:$0xf]
      %v1175 = vld [vmem:[%s165 + $0x148] sm:$0xf]
      %v1176 = vld [vmem:[%s165 + $0x14c] sm:$0xf]
      %v1177 = vld [vmem:[%s165 + $0x150] sm:$0xf]
      %v1178 = vld [vmem:[%s165 + $0x154] sm:$0xf]
      %v1179 = vld [vmem:[%s165 + $0x158] sm:$0xf]
      %v1180 = vld [vmem:[%s165 + $0x15c] sm:$0xf]
      %v1181 = vld [vmem:[%s165 + $0x160] sm:$0xf]
      %v1182 = vld [vmem:[%s165 + $0x164] sm:$0xf]
      %v1183 = vld [vmem:[%s165 + $0x168] sm:$0xf]
      %v1184 = vld [vmem:[%s165 + $0x16c] sm:$0xf]
      %v1185 = vld [vmem:[%s165 + $0x170] sm:$0xf]
      %v1186 = vld [vmem:[%s165 + $0x174] sm:$0xf]
      %v1187 = vld [vmem:[%s165 + $0x178] sm:$0xf]
      %v1188 = vld [vmem:[%s165 + $0x17c] sm:$0xf]
      %v1189 = vld [vmem:[%s1] sm:$0xf]
      %v1190 = vld [vmem:[%s1 + $0x4] sm:$0xf]
      %v1191 = vld [vmem:[%s1 + $0x8] sm:$0xf]
      %v1192 = vld [vmem:[%s1 + $0xc] sm:$0xf]
      %v1193 = vld [vmem:[%s1 + $0x10] sm:$0xf]
      %v1194 = vld [vmem:[%s1 + $0x14] sm:$0xf]
      %v1195 = vld [vmem:[%s1 + $0x18] sm:$0xf]
      %v1196 = vld [vmem:[%s1 + $0x1c] sm:$0xf]
      %v1197 = vld [vmem:[%s1 + $0x20] sm:$0xf]
      %v1198 = vld [vmem:[%s1 + $0x24] sm:$0xf]
      %v1199 = vld [vmem:[%s1 + $0x28] sm:$0xf]
      %v1200 = vld [vmem:[%s1 + $0x2c] sm:$0xf]
      %v1201 = vld [vmem:[%s1 + $0x30] sm:$0xf]
      %v1202 = vld [vmem:[%s1 + $0x34] sm:$0xf]
      %v1203 = vld [vmem:[%s1 + $0x38] sm:$0xf]
      %v1204 = vld [vmem:[%s1 + $0x3c] sm:$0xf]
      %v1237 = vunpack.c.l.b16 %v1157
      %v1238 = vunpack.c.l.b16 %v1158
      %v1239 = vunpack.c.l.b16 %v1159
      %v1240 = vunpack.c.l.b16 %v1160
      %v1241 = vunpack.c.l.b16 %v1161
      %v1242 = vunpack.c.l.b16 %v1162
      %v1243 = vunpack.c.l.b16 %v1163
      %v1244 = vunpack.c.l.b16 %v1164
      %v1245 = vunpack.c.l.b16 %v1165
      %v1246 = vunpack.c.l.b16 %v1166
      %v1247 = vunpack.c.l.b16 %v1167
      %v1248 = vunpack.c.l.b16 %v1168
      %v1249 = vunpack.c.l.b16 %v1169
      %v1250 = vunpack.c.l.b16 %v1170
      %v1251 = vunpack.c.l.b16 %v1171
      %v1252 = vunpack.c.l.b16 %v1172
      %v1253 = vunpack.c.l.b16 %v1173
      %v1254 = vunpack.c.l.b16 %v1174
      %v1255 = vunpack.c.l.b16 %v1175
      %v1256 = vunpack.c.l.b16 %v1176
      %v1257 = vunpack.c.l.b16 %v1177
      %v1258 = vunpack.c.l.b16 %v1178
      %v1259 = vunpack.c.l.b16 %v1179
      %v1260 = vunpack.c.l.b16 %v1180
      %v1261 = vunpack.c.l.b16 %v1181
      %v1262 = vunpack.c.l.b16 %v1182
      %v1263 = vunpack.c.l.b16 %v1183
      %v1264 = vunpack.c.l.b16 %v1184
      %v1265 = vunpack.c.l.b16 %v1185
      %v1266 = vunpack.c.l.b16 %v1186
      %v1267 = vunpack.c.l.b16 %v1187
      %v1268 = vunpack.c.l.b16 %v1188
      %v1269 = vpack.c.b16 %v1238, %v1237
      %v1270 = vpack.c.b16 %v1240, %v1239
      %v1271 = vpack.c.b16 %v1242, %v1241
      %v1272 = vpack.c.b16 %v1244, %v1243
      %v1273 = vpack.c.b16 %v1246, %v1245
      %v1274 = vpack.c.b16 %v1248, %v1247
      %v1275 = vpack.c.b16 %v1250, %v1249
      %v1276 = vpack.c.b16 %v1252, %v1251
      %v1277 = vpack.c.b16 %v1254, %v1253
      %v1278 = vpack.c.b16 %v1256, %v1255
      %v1279 = vpack.c.b16 %v1258, %v1257
      %v1280 = vpack.c.b16 %v1260, %v1259
      %v1281 = vpack.c.b16 %v1262, %v1261
      %v1282 = vpack.c.b16 %v1264, %v1263
      %v1283 = vpack.c.b16 %v1266, %v1265
      %v1284 = vpack.c.b16 %v1268, %v1267
      %v1317 = vunpack.c.l.b16 %v1189
      %v1318 = vunpack.c.l.b16 %v1190
      %v1319 = vunpack.c.l.b16 %v1191
      %v1320 = vunpack.c.l.b16 %v1192
      %v1321 = vunpack.c.l.b16 %v1193
      %v1322 = vunpack.c.l.b16 %v1194
      %v1323 = vunpack.c.l.b16 %v1195
      %v1324 = vunpack.c.l.b16 %v1196
      %v1325 = vunpack.c.l.b16 %v1197
      %v1326 = vunpack.c.l.b16 %v1198
      %v1327 = vunpack.c.l.b16 %v1199
      %v1328 = vunpack.c.l.b16 %v1200
      %v1329 = vunpack.c.l.b16 %v1201
      %v1330 = vunpack.c.l.b16 %v1202
      %v1331 = vunpack.c.l.b16 %v1203
      %v1332 = vunpack.c.l.b16 %v1204
      %v1333 = vpack.c.b16 %v1318, %v1317
      %v1334 = vpack.c.b16 %v1320, %v1319
      %v1335 = vpack.c.b16 %v1322, %v1321
      %v1336 = vpack.c.b16 %v1324, %v1323
      %v1337 = vpack.c.b16 %v1326, %v1325
      %v1338 = vpack.c.b16 %v1328, %v1327
      %v1339 = vpack.c.b16 %v1330, %v1329
      %v1340 = vpack.c.b16 %v1332, %v1331
      %1349 = vmatprep.subr.bf16.mxu0 0
      %1350 = vmatpush1.bf16.msra.mxu0 %v1333
      %1351 = vmatprep.subr.bf16.mxu0 0
      %1352 = vmatpush1.bf16.msra.mxu0 %v1334
      %1353 = vmatprep.subr.bf16.mxu0 0
      %1354 = vmatpush1.bf16.msra.mxu0 %v1335
      %1355 = vmatprep.subr.bf16.mxu0 0
      %1356 = vmatpush1.bf16.msra.mxu0 %v1336
      %1357 = vmatprep.subr.bf16.mxu0 0
      %1358 = vmatpush1.bf16.msra.mxu0 %v1337
      %1359 = vmatprep.subr.bf16.mxu0 0
      %1360 = vmatpush1.bf16.msra.mxu0 %v1338
      %1361 = vmatprep.subr.bf16.mxu0 0
      %1362 = vmatpush1.bf16.msra.mxu0 %v1339
      %1363 = vmatprep.subr.bf16.mxu0 0
      %1364 = vmatpush1.bf16.msra.mxu0 %v1340
      %1365 = vmatprep.subr.bf16.mxu0 0
      %1366 = vmatpush1.bf16.msra.mxu0 0
      %1367 = vmatprep.subr.bf16.mxu0 0
      %1368 = vmatpush1.bf16.msra.mxu0 0
      %1369 = vmatprep.subr.bf16.mxu0 0
      %1370 = vmatpush1.bf16.msra.mxu0 0
      %1371 = vmatprep.subr.bf16.mxu0 0
      %1372 = vmatpush1.bf16.msra.mxu0 0
      %1373 = vmatprep.subr.bf16.mxu0 0
      %1374 = vmatpush1.bf16.msra.mxu0 0
      %1375 = vmatprep.subr.bf16.mxu0 0
      %1376 = vmatpush1.bf16.msra.mxu0 0
      %1377 = vmatprep.subr.bf16.mxu0 0
      %1378 = vmatpush1.bf16.msra.mxu0 0
      %1379 = vmatprep.subr.bf16.mxu0 0
      %1380 = vmatpush1.bf16.msra.mxu0 0
      %1381 = vmatprep.mubr.bf16.mxu0 0
      %1382 = vmatmul.mubr.bf16.gmra.mrb[0].mxu0 %v1269
      %v1383 = vpop.f32.mrb[0].mxu0
      %v1384 = vadd.f32 %v225, %v1383
      %v1385 = vpop.f32.mrb[0].mxu0
      %v1386 = vpop.f32.mrb[0].mxu0
      %v1387 = vadd.f32 %v225, %v1386
      %v1388 = vpop.f32.mrb[0].mxu0
      %1389 = vmatprep.mubr.bf16.mxu0 0
      %1390 = vmatmul.mubr.bf16.gmra.mrb[0].mxu0 %v1270
      %v1391 = vpop.f32.mrb[0].mxu0
      %v1392 = vadd.f32 %v225, %v1391
      %v1393 = vpop.f32.mrb[0].mxu0
      %v1394 = vpop.f32.mrb[0].mxu0
      %v1395 = vadd.f32 %v225, %v1394
      %v1396 = vpop.f32.mrb[0].mxu0
      %1397 = vmatprep.mubr.bf16.mxu0 0
      %1398 = vmatmul.mubr.bf16.gmra.mrb[0].mxu0 %v1271
      %v1399 = vpop.f32.mrb[0].mxu0
      %v1400 = vadd.f32 %v225, %v1399
      %v1401 = vpop.f32.mrb[0].mxu0
      %v1402 = vpop.f32.mrb[0].mxu0
      %v1403 = vadd.f32 %v225, %v1402
      %v1404 = vpop.f32.mrb[0].mxu0
      %1405 = vmatprep.mubr.bf16.mxu0 0
      %1406 = vmatmul.mubr.bf16.gmra.mrb[0].mxu0 %v1272
      %v1407 = vpop.f32.mrb[0].mxu0
      %v1408 = vadd.f32 %v225, %v1407
      %v1409 = vpop.f32.mrb[0].mxu0
      %v1410 = vpop.f32.mrb[0].mxu0
      %v1411 = vadd.f32 %v225, %v1410
      %v1412 = vpop.f32.mrb[0].mxu0
      %1413 = vmatprep.mubr.bf16.mxu0 0
      %1414 = vmatmul.mubr.bf16.gmra.mrb[0].mxu0 %v1273
      %v1415 = vpop.f32.mrb[0].mxu0
      %v1416 = vadd.f32 %v225, %v1415
      %v1417 = vpop.f32.mrb[0].mxu0
      %v1418 = vpop.f32.mrb[0].mxu0
      %v1419 = vadd.f32 %v225, %v1418
      %v1420 = vpop.f32.mrb[0].mxu0
      %1421 = vmatprep.mubr.bf16.mxu0 0
      %1422 = vmatmul.mubr.bf16.gmra.mrb[0].mxu0 %v1274
      %v1423 = vpop.f32.mrb[0].mxu0
      %v1424 = vadd.f32 %v225, %v1423
      %v1425 = vpop.f32.mrb[0].mxu0
      %v1426 = vpop.f32.mrb[0].mxu0
      %v1427 = vadd.f32 %v225, %v1426
      %v1428 = vpop.f32.mrb[0].mxu0
      %1429 = vmatprep.mubr.bf16.mxu0 0
      %1430 = vmatmul.mubr.bf16.gmra.mrb[0].mxu0 %v1275
      %v1431 = vpop.f32.mrb[0].mxu0
      %v1432 = vadd.f32 %v225, %v1431
      %v1433 = vpop.f32.mrb[0].mxu0
      %v1434 = vpop.f32.mrb[0].mxu0
      %v1435 = vadd.f32 %v225, %v1434
      %v1436 = vpop.f32.mrb[0].mxu0
      %1437 = vmatprep.mubr.bf16.mxu0 0
      %1438 = vmatmul.mubr.bf16.gmra.mrb[0].mxu0 %v1276
      %v1439 = vpop.f32.mrb[0].mxu0
      %v1440 = vadd.f32 %v225, %v1439
      %v1441 = vpop.f32.mrb[0].mxu0
      %v1442 = vpop.f32.mrb[0].mxu0
      %v1443 = vadd.f32 %v225, %v1442
      %v1444 = vpop.f32.mrb[0].mxu0
      %1445 = vmatprep.mubr.bf16.mxu0 0
      %1446 = vmatmul.mubr.bf16.gmra.mrb[0].mxu0 %v1277
      %v1447 = vpop.f32.mrb[0].mxu0
      %v1448 = vadd.f32 %v225, %v1447
      %v1449 = vpop.f32.mrb[0].mxu0
      %v1450 = vpop.f32.mrb[0].mxu0
      %v1451 = vadd.f32 %v225, %v1450
      %v1452 = vpop.f32.mrb[0].mxu0
      %1453 = vmatprep.mubr.bf16.mxu0 0
      %1454 = vmatmul.mubr.bf16.gmra.mrb[0].mxu0 %v1278
      %v1455 = vpop.f32.mrb[0].mxu0
      %v1456 = vadd.f32 %v225, %v1455
      %v1457 = vpop.f32.mrb[0].mxu0
      %v1458 = vpop.f32.mrb[0].mxu0
      %v1459 = vadd.f32 %v225, %v1458
      %v1460 = vpop.f32.mrb[0].mxu0
      %1461 = vmatprep.mubr.bf16.mxu0 0
      %1462 = vmatmul.mubr.bf16.gmra.mrb[0].mxu0 %v1279
      %v1463 = vpop.f32.mrb[0].mxu0
      %v1464 = vadd.f32 %v225, %v1463
      %v1465 = vpop.f32.mrb[0].mxu0
      %v1466 = vpop.f32.mrb[0].mxu0
      %v1467 = vadd.f32 %v225, %v1466
      %v1468 = vpop.f32.mrb[0].mxu0
      %1469 = vmatprep.mubr.bf16.mxu0 0
      %1470 = vmatmul.mubr.bf16.gmra.mrb[0].mxu0 %v1280
      %v1471 = vpop.f32.mrb[0].mxu0
      %v1472 = vadd.f32 %v225, %v1471
      %v1473 = vpop.f32.mrb[0].mxu0
      %v1474 = vpop.f32.mrb[0].mxu0
      %v1475 = vadd.f32 %v225, %v1474
      %v1476 = vpop.f32.mrb[0].mxu0
      %1477 = vmatprep.mubr.bf16.mxu0 0
      %1478 = vmatmul.mubr.bf16.gmra.mrb[0].mxu0 %v1281
      %v1479 = vpop.f32.mrb[0].mxu0
      %v1480 = vadd.f32 %v225, %v1479
      %v1481 = vpop.f32.mrb[0].mxu0
      %v1482 = vpop.f32.mrb[0].mxu0
      %v1483 = vadd.f32 %v225, %v1482
      %v1484 = vpop.f32.mrb[0].mxu0
      %1485 = vmatprep.mubr.bf16.mxu0 0
      %1486 = vmatmul.mubr.bf16.gmra.mrb[0].mxu0 %v1282
      %v1487 = vpop.f32.mrb[0].mxu0
      %v1488 = vadd.f32 %v225, %v1487
      %v1489 = vpop.f32.mrb[0].mxu0
      %v1490 = vpop.f32.mrb[0].mxu0
      %v1491 = vadd.f32 %v225, %v1490
      %v1492 = vpop.f32.mrb[0].mxu0
      %1493 = vmatprep.mubr.bf16.mxu0 0
      %1494 = vmatmul.mubr.bf16.gmra.mrb[0].mxu0 %v1283
      %v1495 = vpop.f32.mrb[0].mxu0
      %v1496 = vadd.f32 %v225, %v1495
      %v1497 = vpop.f32.mrb[0].mxu0
      %v1498 = vpop.f32.mrb[0].mxu0
      %v1499 = vadd.f32 %v225, %v1498
      %v1500 = vpop.f32.mrb[0].mxu0
      %1501 = vmatprep.mubr.bf16.mxu0 0
      %1502 = vmatmul.mubr.bf16.gmra.mrb[0].mxu0 %v1284
      %v1503 = vpop.f32.mrb[0].mxu0
      %v1504 = vadd.f32 %v225, %v1503
      %v1505 = vpop.f32.mrb[0].mxu0
      %v1506 = vpop.f32.mrb[0].mxu0
      %v1507 = vadd.f32 %v225, %v1506
      %v1508 = vpop.f32.mrb[0].mxu0
      %1509 = vdwg.mxu0
      %v1510 = vmax.f32 %v1384, 0.0
      %v1511 = vmax.f32 %v1387, 0.0
      %v1512 = vmax.f32 %v1392, 0.0
      %v1513 = vmax.f32 %v1395, 0.0
      %v1514 = vmax.f32 %v1400, 0.0
      %v1515 = vmax.f32 %v1403, 0.0
      %v1516 = vmax.f32 %v1408, 0.0
      %v1517 = vmax.f32 %v1411, 0.0
      %v1518 = vmax.f32 %v1416, 0.0
      %v1519 = vmax.f32 %v1419, 0.0
      %v1520 = vmax.f32 %v1424, 0.0
      %v1521 = vmax.f32 %v1427, 0.0
      %v1522 = vmax.f32 %v1432, 0.0
      %v1523 = vmax.f32 %v1435, 0.0
      %v1524 = vmax.f32 %v1440, 0.0
      %v1525 = vmax.f32 %v1443, 0.0
      %v1526 = vmax.f32 %v1448, 0.0
      %v1527 = vmax.f32 %v1451, 0.0
      %v1528 = vmax.f32 %v1456, 0.0
      %v1529 = vmax.f32 %v1459, 0.0
      %v1530 = vmax.f32 %v1464, 0.0
      %v1531 = vmax.f32 %v1467, 0.0
      %v1532 = vmax.f32 %v1472, 0.0
      %v1533 = vmax.f32 %v1475, 0.0
      %v1534 = vmax.f32 %v1480, 0.0
      %v1535 = vmax.f32 %v1483, 0.0
      %v1536 = vmax.f32 %v1488, 0.0
      %v1537 = vmax.f32 %v1491, 0.0
      %v1538 = vmax.f32 %v1496, 0.0
      %v1539 = vmax.f32 %v1499, 0.0
      %v1540 = vmax.f32 %v1504, 0.0
      %v1541 = vmax.f32 %v1507, 0.0
      %v1542 = vmax.f32 %v1510, %v1514
      %v1543 = vmax.f32 %v1511, %v1515
      %v1544 = vmax.f32 %v1512, %v1516
      %v1545 = vmax.f32 %v1513, %v1517
      %v1546 = vmax.f32 %v1518, %v1522
      %v1547 = vmax.f32 %v1519, %v1523
      %v1548 = vmax.f32 %v1520, %v1524
      %v1549 = vmax.f32 %v1521, %v1525
      %v1550 = vmax.f32 %v1526, %v1530
      %v1551 = vmax.f32 %v1527, %v1531
      %v1552 = vmax.f32 %v1528, %v1532
      %v1553 = vmax.f32 %v1529, %v1533
      %v1554 = vmax.f32 %v1534, %v1538
      %v1555 = vmax.f32 %v1535, %v1539
      %v1556 = vmax.f32 %v1536, %v1540
      %v1557 = vmax.f32 %v1537, %v1541
      %1558 = vst [vmem:[#allocation2] sm:$0xff] %v1542
      %1559 = vst [vmem:[#allocation2 + $0x8] sm:$0xff] %v1543
      %1560 = vst [vmem:[#allocation2 + $0x10] sm:$0xff] %v1544
      %1561 = vst [vmem:[#allocation2 + $0x18] sm:$0xff] %v1545
      %1562 = vst [vmem:[#allocation2 + $0x20] sm:$0xff] %v1546
      %1563 = vst [vmem:[#allocation2 + $0x28] sm:$0xff] %v1547
      %1564 = vst [vmem:[#allocation2 + $0x30] sm:$0xff] %v1548
      %1565 = vst [vmem:[#allocation2 + $0x38] sm:$0xff] %v1549
      %1566 = vst [vmem:[#allocation2 + $0x40] sm:$0xff] %v1550
      %1567 = vst [vmem:[#allocation2 + $0x48] sm:$0xff] %v1551
      %1568 = vst [vmem:[#allocation2 + $0x50] sm:$0xff] %v1552
      %1569 = vst [vmem:[#allocation2 + $0x58] sm:$0xff] %v1553
      %1570 = vst [vmem:[#allocation2 + $0x60] sm:$0xff] %v1554
      %1571 = vst [vmem:[#allocation2 + $0x68] sm:$0xff] %v1555
      %1572 = vst [vmem:[#allocation2 + $0x70] sm:$0xff] %v1556
      %1573 = vst [vmem:[#allocation2 + $0x78] sm:$0xff] %v1557
      %v1574 = vld [vmem:[#allocation2] ss:$2 sm:$0xff]
      %v1575 = vld [vmem:[%s597] ss:$2 sm:$0xff]
      %v1576 = vld [vmem:[%s599] ss:$2 sm:$0xff]
      %v1577 = vld [vmem:[%s601] ss:$2 sm:$0xff]
      %v1578 = vld [vmem:[%s603] ss:$2 sm:$0xff]
      %v1579 = vld [vmem:[%s605] ss:$2 sm:$0xff]
      %v1580 = vld [vmem:[%s607] ss:$2 sm:$0xff]
      %v1581 = vld [vmem:[%s609] ss:$2 sm:$0xff]
      %v1582 = vld [vmem:[%s611] ss:$2 sm:$0xff]
      %v1583 = vld [vmem:[%s613] ss:$2 sm:$0xff]
      %v1584 = vld [vmem:[%s615] ss:$2 sm:$0xff]
      %v1585 = vld [vmem:[%s617] ss:$2 sm:$0xff]
      %v1586 = vld [vmem:[%s619] ss:$2 sm:$0xff]
      %v1587 = vld [vmem:[%s621] ss:$2 sm:$0xff]
      %v1588 = vld [vmem:[%s623] ss:$2 sm:$0xff]
      %v1589 = vld [vmem:[%s625] ss:$2 sm:$0xff]
      %v1590 = vmax.f32 %v1574, %v1582
      %v1591 = vmax.f32 %v1575, %v1583
      %v1592 = vmax.f32 %v1576, %v1584
      %v1593 = vmax.f32 %v1577, %v1585
      %v1594 = vmax.f32 %v1578, %v1586
      %v1595 = vmax.f32 %v1579, %v1587
      %v1596 = vmax.f32 %v1580, %v1588
      %v1597 = vmax.f32 %v1581, %v1589
      %v1598 = vpack.c.bf16 %v1591, %v1590
      %v1599 = vpack.c.bf16 %v1593, %v1592
      %v1600 = vpack.c.bf16 %v1595, %v1594
      %v1601 = vpack.c.bf16 %v1597, %v1596
      %v1606 = vunpack.c.l.b16 %v1598
      %v1607 = vunpack.c.h.b16 %v1598
      %v1608 = vunpack.c.l.b16 %v1599
      %v1609 = vunpack.c.h.b16 %v1599
      %v1610 = vunpack.c.l.b16 %v1600
      %v1611 = vunpack.c.h.b16 %v1600
      %v1612 = vunpack.c.l.b16 %v1601
      %v1613 = vunpack.c.h.b16 %v1601
      %v1614 = vpack.c.b16 %v1606, %v1606
      %v1615 = vpack.c.b16 %v1607, %v1607
      %v1616 = vpack.c.b16 %v1608, %v1608
      %v1617 = vpack.c.b16 %v1609, %v1609
      %v1618 = vpack.c.b16 %v1610, %v1610
      %v1619 = vpack.c.b16 %v1611, %v1611
      %v1620 = vpack.c.b16 %v1612, %v1612
      %v1621 = vpack.c.b16 %v1613, %v1613
      %s1630 = scalar_lea.vmem %s170, 64
      %1631 = vst [vmem:[%s1630] sm:$0xf] %v1614
      %1632 = vst [vmem:[%s1630 + $0x4] sm:$0xf] %v1615
      %1633 = vst [vmem:[%s1630 + $0x8] sm:$0xf] %v1616
      %1634 = vst [vmem:[%s1630 + $0xc] sm:$0xf] %v1617
      %1635 = vst [vmem:[%s1630 + $0x10] sm:$0xf] %v1618
      %1636 = vst [vmem:[%s1630 + $0x14] sm:$0xf] %v1619
      %1637 = vst [vmem:[%s1630 + $0x18] sm:$0xf] %v1620
      %1638 = vst [vmem:[%s1630 + $0x1c] sm:$0xf] %v1621
      %v1639 = vld [vmem:[%s165 + $0x180] sm:$0xf]
      %v1640 = vld [vmem:[%s165 + $0x184] sm:$0xf]
      %v1641 = vld [vmem:[%s165 + $0x188] sm:$0xf]
      %v1642 = vld [vmem:[%s165 + $0x18c] sm:$0xf]
      %v1643 = vld [vmem:[%s165 + $0x190] sm:$0xf]
      %v1644 = vld [vmem:[%s165 + $0x194] sm:$0xf]
      %v1645 = vld [vmem:[%s165 + $0x198] sm:$0xf]
      %v1646 = vld [vmem:[%s165 + $0x19c] sm:$0xf]
      %v1647 = vld [vmem:[%s165 + $0x1a0] sm:$0xf]
      %v1648 = vld [vmem:[%s165 + $0x1a4] sm:$0xf]
      %v1649 = vld [vmem:[%s165 + $0x1a8] sm:$0xf]
      %v1650 = vld [vmem:[%s165 + $0x1ac] sm:$0xf]
      %v1651 = vld [vmem:[%s165 + $0x1b0] sm:$0xf]
      %v1652 = vld [vmem:[%s165 + $0x1b4] sm:$0xf]
      %v1653 = vld [vmem:[%s165 + $0x1b8] sm:$0xf]
      %v1654 = vld [vmem:[%s165 + $0x1bc] sm:$0xf]
      %v1655 = vld [vmem:[%s165 + $0x1c0] sm:$0xf]
      %v1656 = vld [vmem:[%s165 + $0x1c4] sm:$0xf]
      %v1657 = vld [vmem:[%s165 + $0x1c8] sm:$0xf]
      %v1658 = vld [vmem:[%s165 + $0x1cc] sm:$0xf]
      %v1659 = vld [vmem:[%s165 + $0x1d0] sm:$0xf]
      %v1660 = vld [vmem:[%s165 + $0x1d4] sm:$0xf]
      %v1661 = vld [vmem:[%s165 + $0x1d8] sm:$0xf]
      %v1662 = vld [vmem:[%s165 + $0x1dc] sm:$0xf]
      %v1663 = vld [vmem:[%s165 + $0x1e0] sm:$0xf]
      %v1664 = vld [vmem:[%s165 + $0x1e4] sm:$0xf]
      %v1665 = vld [vmem:[%s165 + $0x1e8] sm:$0xf]
      %v1666 = vld [vmem:[%s165 + $0x1ec] sm:$0xf]
      %v1667 = vld [vmem:[%s165 + $0x1f0] sm:$0xf]
      %v1668 = vld [vmem:[%s165 + $0x1f4] sm:$0xf]
      %v1669 = vld [vmem:[%s165 + $0x1f8] sm:$0xf]
      %v1670 = vld [vmem:[%s165 + $0x1fc] sm:$0xf]
      %v1671 = vld [vmem:[%s1] sm:$0xf]
      %v1672 = vld [vmem:[%s1 + $0x4] sm:$0xf]
      %v1673 = vld [vmem:[%s1 + $0x8] sm:$0xf]
      %v1674 = vld [vmem:[%s1 + $0xc] sm:$0xf]
      %v1675 = vld [vmem:[%s1 + $0x10] sm:$0xf]
      %v1676 = vld [vmem:[%s1 + $0x14] sm:$0xf]
      %v1677 = vld [vmem:[%s1 + $0x18] sm:$0xf]
      %v1678 = vld [vmem:[%s1 + $0x1c] sm:$0xf]
      %v1679 = vld [vmem:[%s1 + $0x20] sm:$0xf]
      %v1680 = vld [vmem:[%s1 + $0x24] sm:$0xf]
      %v1681 = vld [vmem:[%s1 + $0x28] sm:$0xf]
      %v1682 = vld [vmem:[%s1 + $0x2c] sm:$0xf]
      %v1683 = vld [vmem:[%s1 + $0x30] sm:$0xf]
      %v1684 = vld [vmem:[%s1 + $0x34] sm:$0xf]
      %v1685 = vld [vmem:[%s1 + $0x38] sm:$0xf]
      %v1686 = vld [vmem:[%s1 + $0x3c] sm:$0xf]
      %v1719 = vunpack.c.l.b16 %v1639
      %v1720 = vunpack.c.l.b16 %v1640
      %v1721 = vunpack.c.l.b16 %v1641
      %v1722 = vunpack.c.l.b16 %v1642
      %v1723 = vunpack.c.l.b16 %v1643
      %v1724 = vunpack.c.l.b16 %v1644
      %v1725 = vunpack.c.l.b16 %v1645
      %v1726 = vunpack.c.l.b16 %v1646
      %v1727 = vunpack.c.l.b16 %v1647
      %v1728 = vunpack.c.l.b16 %v1648
      %v1729 = vunpack.c.l.b16 %v1649
      %v1730 = vunpack.c.l.b16 %v1650
      %v1731 = vunpack.c.l.b16 %v1651
      %v1732 = vunpack.c.l.b16 %v1652
      %v1733 = vunpack.c.l.b16 %v1653
      %v1734 = vunpack.c.l.b16 %v1654
      %v1735 = vunpack.c.l.b16 %v1655
      %v1736 = vunpack.c.l.b16 %v1656
      %v1737 = vunpack.c.l.b16 %v1657
      %v1738 = vunpack.c.l.b16 %v1658
      %v1739 = vunpack.c.l.b16 %v1659
      %v1740 = vunpack.c.l.b16 %v1660
      %v1741 = vunpack.c.l.b16 %v1661
      %v1742 = vunpack.c.l.b16 %v1662
      %v1743 = vunpack.c.l.b16 %v1663
      %v1744 = vunpack.c.l.b16 %v1664
      %v1745 = vunpack.c.l.b16 %v1665
      %v1746 = vunpack.c.l.b16 %v1666
      %v1747 = vunpack.c.l.b16 %v1667
      %v1748 = vunpack.c.l.b16 %v1668
      %v1749 = vunpack.c.l.b16 %v1669
      %v1750 = vunpack.c.l.b16 %v1670
      %v1751 = vpack.c.b16 %v1720, %v1719
      %v1752 = vpack.c.b16 %v1722, %v1721
      %v1753 = vpack.c.b16 %v1724, %v1723
      %v1754 = vpack.c.b16 %v1726, %v1725
      %v1755 = vpack.c.b16 %v1728, %v1727
      %v1756 = vpack.c.b16 %v1730, %v1729
      %v1757 = vpack.c.b16 %v1732, %v1731
      %v1758 = vpack.c.b16 %v1734, %v1733
      %v1759 = vpack.c.b16 %v1736, %v1735
      %v1760 = vpack.c.b16 %v1738, %v1737
      %v1761 = vpack.c.b16 %v1740, %v1739
      %v1762 = vpack.c.b16 %v1742, %v1741
      %v1763 = vpack.c.b16 %v1744, %v1743
      %v1764 = vpack.c.b16 %v1746, %v1745
      %v1765 = vpack.c.b16 %v1748, %v1747
      %v1766 = vpack.c.b16 %v1750, %v1749
      %v1799 = vunpack.c.l.b16 %v1671
      %v1800 = vunpack.c.l.b16 %v1672
      %v1801 = vunpack.c.l.b16 %v1673
      %v1802 = vunpack.c.l.b16 %v1674
      %v1803 = vunpack.c.l.b16 %v1675
      %v1804 = vunpack.c.l.b16 %v1676
      %v1805 = vunpack.c.l.b16 %v1677
      %v1806 = vunpack.c.l.b16 %v1678
      %v1807 = vunpack.c.l.b16 %v1679
      %v1808 = vunpack.c.l.b16 %v1680
      %v1809 = vunpack.c.l.b16 %v1681
      %v1810 = vunpack.c.l.b16 %v1682
      %v1811 = vunpack.c.l.b16 %v1683
      %v1812 = vunpack.c.l.b16 %v1684
      %v1813 = vunpack.c.l.b16 %v1685
      %v1814 = vunpack.c.l.b16 %v1686
      %v1815 = vpack.c.b16 %v1800, %v1799
      %v1816 = vpack.c.b16 %v1802, %v1801
      %v1817 = vpack.c.b16 %v1804, %v1803
      %v1818 = vpack.c.b16 %v1806, %v1805
      %v1819 = vpack.c.b16 %v1808, %v1807
      %v1820 = vpack.c.b16 %v1810, %v1809
      %v1821 = vpack.c.b16 %v1812, %v1811
      %v1822 = vpack.c.b16 %v1814, %v1813
      %1831 = vmatprep.subr.bf16.mxu0 0
      %1832 = vmatpush1.bf16.msra.mxu0 %v1815
      %1833 = vmatprep.subr.bf16.mxu0 0
      %1834 = vmatpush1.bf16.msra.mxu0 %v1816
      %1835 = vmatprep.subr.bf16.mxu0 0
      %1836 = vmatpush1.bf16.msra.mxu0 %v1817
      %1837 = vmatprep.subr.bf16.mxu0 0
      %1838 = vmatpush1.bf16.msra.mxu0 %v1818
      %1839 = vmatprep.subr.bf16.mxu0 0
      %1840 = vmatpush1.bf16.msra.mxu0 %v1819
      %1841 = vmatprep.subr.bf16.mxu0 0
      %1842 = vmatpush1.bf16.msra.mxu0 %v1820
      %1843 = vmatprep.subr.bf16.mxu0 0
      %1844 = vmatpush1.bf16.msra.mxu0 %v1821
      %1845 = vmatprep.subr.bf16.mxu0 0
      %1846 = vmatpush1.bf16.msra.mxu0 %v1822
      %1847 = vmatprep.subr.bf16.mxu0 0
      %1848 = vmatpush1.bf16.msra.mxu0 0
      %1849 = vmatprep.subr.bf16.mxu0 0
      %1850 = vmatpush1.bf16.msra.mxu0 0
      %1851 = vmatprep.subr.bf16.mxu0 0
      %1852 = vmatpush1.bf16.msra.mxu0 0
      %1853 = vmatprep.subr.bf16.mxu0 0
      %1854 = vmatpush1.bf16.msra.mxu0 0
      %1855 = vmatprep.subr.bf16.mxu0 0
      %1856 = vmatpush1.bf16.msra.mxu0 0
      %1857 = vmatprep.subr.bf16.mxu0 0
      %1858 = vmatpush1.bf16.msra.mxu0 0
      %1859 = vmatprep.subr.bf16.mxu0 0
      %1860 = vmatpush1.bf16.msra.mxu0 0
      %1861 = vmatprep.subr.bf16.mxu0 0
      %1862 = vmatpush1.bf16.msra.mxu0 0
      %1863 = vmatprep.mubr.bf16.mxu0 0
      %1864 = vmatmul.mubr.bf16.gmra.mrb[0].mxu0 %v1751
      %v1865 = vpop.f32.mrb[0].mxu0
      %v1866 = vadd.f32 %v225, %v1865
      %v1867 = vpop.f32.mrb[0].mxu0
      %v1868 = vpop.f32.mrb[0].mxu0
      %v1869 = vadd.f32 %v225, %v1868
      %v1870 = vpop.f32.mrb[0].mxu0
      %1871 = vmatprep.mubr.bf16.mxu0 0
      %1872 = vmatmul.mubr.bf16.gmra.mrb[0].mxu0 %v1752
      %v1873 = vpop.f32.mrb[0].mxu0
      %v1874 = vadd.f32 %v225, %v1873
      %v1875 = vpop.f32.mrb[0].mxu0
      %v1876 = vpop.f32.mrb[0].mxu0
      %v1877 = vadd.f32 %v225, %v1876
      %v1878 = vpop.f32.mrb[0].mxu0
      %1879 = vmatprep.mubr.bf16.mxu0 0
      %1880 = vmatmul.mubr.bf16.gmra.mrb[0].mxu0 %v1753
      %v1881 = vpop.f32.mrb[0].mxu0
      %v1882 = vadd.f32 %v225, %v1881
      %v1883 = vpop.f32.mrb[0].mxu0
      %v1884 = vpop.f32.mrb[0].mxu0
      %v1885 = vadd.f32 %v225, %v1884
      %v1886 = vpop.f32.mrb[0].mxu0
      %1887 = vmatprep.mubr.bf16.mxu0 0
      %1888 = vmatmul.mubr.bf16.gmra.mrb[0].mxu0 %v1754
      %v1889 = vpop.f32.mrb[0].mxu0
      %v1890 = vadd.f32 %v225, %v1889
      %v1891 = vpop.f32.mrb[0].mxu0
      %v1892 = vpop.f32.mrb[0].mxu0
      %v1893 = vadd.f32 %v225, %v1892
      %v1894 = vpop.f32.mrb[0].mxu0
      %1895 = vmatprep.mubr.bf16.mxu0 0
      %1896 = vmatmul.mubr.bf16.gmra.mrb[0].mxu0 %v1755
      %v1897 = vpop.f32.mrb[0].mxu0
      %v1898 = vadd.f32 %v225, %v1897
      %v1899 = vpop.f32.mrb[0].mxu0
      %v1900 = vpop.f32.mrb[0].mxu0
      %v1901 = vadd.f32 %v225, %v1900
      %v1902 = vpop.f32.mrb[0].mxu0
      %1903 = vmatprep.mubr.bf16.mxu0 0
      %1904 = vmatmul.mubr.bf16.gmra.mrb[0].mxu0 %v1756
      %v1905 = vpop.f32.mrb[0].mxu0
      %v1906 = vadd.f32 %v225, %v1905
      %v1907 = vpop.f32.mrb[0].mxu0
      %v1908 = vpop.f32.mrb[0].mxu0
      %v1909 = vadd.f32 %v225, %v1908
      %v1910 = vpop.f32.mrb[0].mxu0
      %1911 = vmatprep.mubr.bf16.mxu0 0
      %1912 = vmatmul.mubr.bf16.gmra.mrb[0].mxu0 %v1757
      %v1913 = vpop.f32.mrb[0].mxu0
      %v1914 = vadd.f32 %v225, %v1913
      %v1915 = vpop.f32.mrb[0].mxu0
      %v1916 = vpop.f32.mrb[0].mxu0
      %v1917 = vadd.f32 %v225, %v1916
      %v1918 = vpop.f32.mrb[0].mxu0
      %1919 = vmatprep.mubr.bf16.mxu0 0
      %1920 = vmatmul.mubr.bf16.gmra.mrb[0].mxu0 %v1758
      %v1921 = vpop.f32.mrb[0].mxu0
      %v1922 = vadd.f32 %v225, %v1921
      %v1923 = vpop.f32.mrb[0].mxu0
      %v1924 = vpop.f32.mrb[0].mxu0
      %v1925 = vadd.f32 %v225, %v1924
      %v1926 = vpop.f32.mrb[0].mxu0
      %1927 = vmatprep.mubr.bf16.mxu0 0
      %1928 = vmatmul.mubr.bf16.gmra.mrb[0].mxu0 %v1759
      %v1929 = vpop.f32.mrb[0].mxu0
      %v1930 = vadd.f32 %v225, %v1929
      %v1931 = vpop.f32.mrb[0].mxu0
      %v1932 = vpop.f32.mrb[0].mxu0
      %v1933 = vadd.f32 %v225, %v1932
      %v1934 = vpop.f32.mrb[0].mxu0
      %1935 = vmatprep.mubr.bf16.mxu0 0
      %1936 = vmatmul.mubr.bf16.gmra.mrb[0].mxu0 %v1760
      %v1937 = vpop.f32.mrb[0].mxu0
      %v1938 = vadd.f32 %v225, %v1937
      %v1939 = vpop.f32.mrb[0].mxu0
      %v1940 = vpop.f32.mrb[0].mxu0
      %v1941 = vadd.f32 %v225, %v1940
      %v1942 = vpop.f32.mrb[0].mxu0
      %1943 = vmatprep.mubr.bf16.mxu0 0
      %1944 = vmatmul.mubr.bf16.gmra.mrb[0].mxu0 %v1761
      %v1945 = vpop.f32.mrb[0].mxu0
      %v1946 = vadd.f32 %v225, %v1945
      %v1947 = vpop.f32.mrb[0].mxu0
      %v1948 = vpop.f32.mrb[0].mxu0
      %v1949 = vadd.f32 %v225, %v1948
      %v1950 = vpop.f32.mrb[0].mxu0
      %1951 = vmatprep.mubr.bf16.mxu0 0
      %1952 = vmatmul.mubr.bf16.gmra.mrb[0].mxu0 %v1762
      %v1953 = vpop.f32.mrb[0].mxu0
      %v1954 = vadd.f32 %v225, %v1953
      %v1955 = vpop.f32.mrb[0].mxu0
      %v1956 = vpop.f32.mrb[0].mxu0
      %v1957 = vadd.f32 %v225, %v1956
      %v1958 = vpop.f32.mrb[0].mxu0
      %1959 = vmatprep.mubr.bf16.mxu0 0
      %1960 = vmatmul.mubr.bf16.gmra.mrb[0].mxu0 %v1763
      %v1961 = vpop.f32.mrb[0].mxu0
      %v1962 = vadd.f32 %v225, %v1961
      %v1963 = vpop.f32.mrb[0].mxu0
      %v1964 = vpop.f32.mrb[0].mxu0
      %v1965 = vadd.f32 %v225, %v1964
      %v1966 = vpop.f32.mrb[0].mxu0
      %1967 = vmatprep.mubr.bf16.mxu0 0
      %1968 = vmatmul.mubr.bf16.gmra.mrb[0].mxu0 %v1764
      %v1969 = vpop.f32.mrb[0].mxu0
      %v1970 = vadd.f32 %v225, %v1969
      %v1971 = vpop.f32.mrb[0].mxu0
      %v1972 = vpop.f32.mrb[0].mxu0
      %v1973 = vadd.f32 %v225, %v1972
      %v1974 = vpop.f32.mrb[0].mxu0
      %1975 = vmatprep.mubr.bf16.mxu0 0
      %1976 = vmatmul.mubr.bf16.gmra.mrb[0].mxu0 %v1765
      %v1977 = vpop.f32.mrb[0].mxu0
      %v1978 = vadd.f32 %v225, %v1977
      %v1979 = vpop.f32.mrb[0].mxu0
      %v1980 = vpop.f32.mrb[0].mxu0
      %v1981 = vadd.f32 %v225, %v1980
      %v1982 = vpop.f32.mrb[0].mxu0
      %1983 = vmatprep.mubr.bf16.mxu0 0
      %1984 = vmatmul.mubr.bf16.gmra.mrb[0].mxu0 %v1766
      %v1985 = vpop.f32.mrb[0].mxu0
      %v1986 = vadd.f32 %v225, %v1985
      %v1987 = vpop.f32.mrb[0].mxu0
      %v1988 = vpop.f32.mrb[0].mxu0
      %v1989 = vadd.f32 %v225, %v1988
      %v1990 = vpop.f32.mrb[0].mxu0
      %1991 = vdwg.mxu0
      %v1992 = vmax.f32 %v1866, 0.0
      %v1993 = vmax.f32 %v1869, 0.0
      %v1994 = vmax.f32 %v1874, 0.0
      %v1995 = vmax.f32 %v1877, 0.0
      %v1996 = vmax.f32 %v1882, 0.0
      %v1997 = vmax.f32 %v1885, 0.0
      %v1998 = vmax.f32 %v1890, 0.0
      %v1999 = vmax.f32 %v1893, 0.0
      %v2000 = vmax.f32 %v1898, 0.0
      %v2001 = vmax.f32 %v1901, 0.0
      %v2002 = vmax.f32 %v1906, 0.0
      %v2003 = vmax.f32 %v1909, 0.0
      %v2004 = vmax.f32 %v1914, 0.0
      %v2005 = vmax.f32 %v1917, 0.0
      %v2006 = vmax.f32 %v1922, 0.0
      %v2007 = vmax.f32 %v1925, 0.0
      %v2008 = vmax.f32 %v1930, 0.0
      %v2009 = vmax.f32 %v1933, 0.0
      %v2010 = vmax.f32 %v1938, 0.0
      %v2011 = vmax.f32 %v1941, 0.0
      %v2012 = vmax.f32 %v1946, 0.0
      %v2013 = vmax.f32 %v1949, 0.0
      %v2014 = vmax.f32 %v1954, 0.0
      %v2015 = vmax.f32 %v1957, 0.0
      %v2016 = vmax.f32 %v1962, 0.0
      %v2017 = vmax.f32 %v1965, 0.0
      %v2018 = vmax.f32 %v1970, 0.0
      %v2019 = vmax.f32 %v1973, 0.0
      %v2020 = vmax.f32 %v1978, 0.0
      %v2021 = vmax.f32 %v1981, 0.0
      %v2022 = vmax.f32 %v1986, 0.0
      %v2023 = vmax.f32 %v1989, 0.0
      %v2024 = vmax.f32 %v1992, %v1996
      %v2025 = vmax.f32 %v1993, %v1997
      %v2026 = vmax.f32 %v1994, %v1998
      %v2027 = vmax.f32 %v1995, %v1999
      %v2028 = vmax.f32 %v2000, %v2004
      %v2029 = vmax.f32 %v2001, %v2005
      %v2030 = vmax.f32 %v2002, %v2006
      %v2031 = vmax.f32 %v2003, %v2007
      %v2032 = vmax.f32 %v2008, %v2012
      %v2033 = vmax.f32 %v2009, %v2013
      %v2034 = vmax.f32 %v2010, %v2014
      %v2035 = vmax.f32 %v2011, %v2015
      %v2036 = vmax.f32 %v2016, %v2020
      %v2037 = vmax.f32 %v2017, %v2021
      %v2038 = vmax.f32 %v2018, %v2022
      %v2039 = vmax.f32 %v2019, %v2023
      %2040 = vst [vmem:[#allocation2] sm:$0xff] %v2024
      %2041 = vst [vmem:[#allocation2 + $0x8] sm:$0xff] %v2025
      %2042 = vst [vmem:[#allocation2 + $0x10] sm:$0xff] %v2026
      %2043 = vst [vmem:[#allocation2 + $0x18] sm:$0xff] %v2027
      %2044 = vst [vmem:[#allocation2 + $0x20] sm:$0xff] %v2028
      %2045 = vst [vmem:[#allocation2 + $0x28] sm:$0xff] %v2029
      %2046 = vst [vmem:[#allocation2 + $0x30] sm:$0xff] %v2030
      %2047 = vst [vmem:[#allocation2 + $0x38] sm:$0xff] %v2031
      %2048 = vst [vmem:[#allocation2 + $0x40] sm:$0xff] %v2032
      %2049 = vst [vmem:[#allocation2 + $0x48] sm:$0xff] %v2033
      %2050 = vst [vmem:[#allocation2 + $0x50] sm:$0xff] %v2034
      %2051 = vst [vmem:[#allocation2 + $0x58] sm:$0xff] %v2035
      %2052 = vst [vmem:[#allocation2 + $0x60] sm:$0xff] %v2036
      %2053 = vst [vmem:[#allocation2 + $0x68] sm:$0xff] %v2037
      %2054 = vst [vmem:[#allocation2 + $0x70] sm:$0xff] %v2038
      %2055 = vst [vmem:[#allocation2 + $0x78] sm:$0xff] %v2039
      %v2056 = vld [vmem:[#allocation2] ss:$2 sm:$0xff]
      %v2057 = vld [vmem:[%s597] ss:$2 sm:$0xff]
      %v2058 = vld [vmem:[%s599] ss:$2 sm:$0xff]
      %v2059 = vld [vmem:[%s601] ss:$2 sm:$0xff]
      %v2060 = vld [vmem:[%s603] ss:$2 sm:$0xff]
      %v2061 = vld [vmem:[%s605] ss:$2 sm:$0xff]
      %v2062 = vld [vmem:[%s607] ss:$2 sm:$0xff]
      %v2063 = vld [vmem:[%s609] ss:$2 sm:$0xff]
      %v2064 = vld [vmem:[%s611] ss:$2 sm:$0xff]
      %v2065 = vld [vmem:[%s613] ss:$2 sm:$0xff]
      %v2066 = vld [vmem:[%s615] ss:$2 sm:$0xff]
      %v2067 = vld [vmem:[%s617] ss:$2 sm:$0xff]
      %v2068 = vld [vmem:[%s619] ss:$2 sm:$0xff]
      %v2069 = vld [vmem:[%s621] ss:$2 sm:$0xff]
      %v2070 = vld [vmem:[%s623] ss:$2 sm:$0xff]
      %v2071 = vld [vmem:[%s625] ss:$2 sm:$0xff]
      %v2072 = vmax.f32 %v2056, %v2064
      %v2073 = vmax.f32 %v2057, %v2065
      %v2074 = vmax.f32 %v2058, %v2066
      %v2075 = vmax.f32 %v2059, %v2067
      %v2076 = vmax.f32 %v2060, %v2068
      %v2077 = vmax.f32 %v2061, %v2069
      %v2078 = vmax.f32 %v2062, %v2070
      %v2079 = vmax.f32 %v2063, %v2071
      %v2080 = vpack.c.bf16 %v2073, %v2072
      %v2081 = vpack.c.bf16 %v2075, %v2074
      %v2082 = vpack.c.bf16 %v2077, %v2076
      %v2083 = vpack.c.bf16 %v2079, %v2078
      %v2088 = vunpack.c.l.b16 %v2080
      %v2089 = vunpack.c.h.b16 %v2080
      %v2090 = vunpack.c.l.b16 %v2081
      %v2091 = vunpack.c.h.b16 %v2081
      %v2092 = vunpack.c.l.b16 %v2082
      %v2093 = vunpack.c.h.b16 %v2082
      %v2094 = vunpack.c.l.b16 %v2083
      %v2095 = vunpack.c.h.b16 %v2083
      %v2096 = vpack.c.b16 %v2088, %v2088
      %v2097 = vpack.c.b16 %v2089, %v2089
      %v2098 = vpack.c.b16 %v2090, %v2090
      %v2099 = vpack.c.b16 %v2091, %v2091
      %v2100 = vpack.c.b16 %v2092, %v2092
      %v2101 = vpack.c.b16 %v2093, %v2093
      %v2102 = vpack.c.b16 %v2094, %v2094
      %v2103 = vpack.c.b16 %v2095, %v2095
      %s2112 = scalar_lea.vmem %s170, 96
      %2113 = vst [vmem:[%s2112] sm:$0xf] %v2096
      %2114 = vst [vmem:[%s2112 + $0x4] sm:$0xf] %v2097
      %2115 = vst [vmem:[%s2112 + $0x8] sm:$0xf] %v2098
      %2116 = vst [vmem:[%s2112 + $0xc] sm:$0xf] %v2099
      %2117 = vst [vmem:[%s2112 + $0x10] sm:$0xf] %v2100
      %2118 = vst [vmem:[%s2112 + $0x14] sm:$0xf] %v2101
      %2119 = vst [vmem:[%s2112 + $0x18] sm:$0xf] %v2102
      %2120 = vst [vmem:[%s2112 + $0x1c] sm:$0xf] %v2103
      %p2121 = scmp.lt.s32.totalorder %s14, 1
      %s2122 = scalar_select %p2121, %s14, 1
      %s2123 = smul.addr %s2122, 32
      %s2124 = smul.addr %s2123, 4
      %s2125 = scalar_lea.vmem %s3, %s2124
      // Predicated region
      $region33: #{vgg_forward.12} parent=31 // pred_check
        %p2126 = pneg %p100
      $region34: #{vgg_forward.12} parent=31 // pred_check_branch
        %2128 = sbr.rel (%p2126) target = $region36
      $region35: #{vgg_forward.12} parent=31 // pred_region
        _
      $region36: #{vgg_forward.12} parent=31 // pred_fallthru
        _
    $region32: #{vgg_forward.12} parent=5 // pred_fallthru
      _
    %p2129 = scmp.le.s32.totalorder 2, %s9
    // Predicated region
    $region37: #{vgg_forward.12} parent=5 // pred_check
      %p2130 = pneg %p2129
    $region38: #{vgg_forward.12} parent=5 // pred_check_branch
      %2132 = sbr.rel (%p2130) target = $region40
    $region39: #{vgg_forward.12} parent=5 // pred_region
      %s2133 = ssub.s32 %s9, 2
      // Predicated region
      $region41: #{vgg_forward.12} parent=39 // pred_check
        %p2134 = pneg %p106
      $region42: #{vgg_forward.12} parent=39 // pred_check_branch
        %2136 = sbr.rel (%p2134) target = $region44
      $region43: #{vgg_forward.12} parent=39 // pred_region
        %p2137 = scmp.lt.s32.totalorder %s15, 1
        %s2138 = scalar_select %p2137, %s15, 1
        %s2139 = smul.addr %s2138, 32
        %s2140 = smul.addr %s2139, 4
        %s2141 = scalar_lea.vmem %s3, %s2140
      $region44: #{vgg_forward.12} parent=39 // pred_fallthru
        _
    $region40: #{vgg_forward.12} parent=5 // pred_fallthru
      _
  $region6: #{vgg_forward.12} parent=0 // loop_footer
    %s13 = sadd.s32 1, %s9
  $region7: #{vgg_forward.12} parent=0 // loop_footer_branch
    %8 = sbr.rel target = $region3
  $region8: #{vgg_forward.12} parent=0 // loop_exit
    _

// kernel: vgg_forward.13
$region0: #{vgg_forward.13}
  #allocation0 [shape = 'u32[]', space=smem, size = 0x4, offset = 0x4, fixed_abs, tag = 'smem constant byte address 0x4 - core index']
  #allocation1 [shape = 'u32[144,128]{1,0:T(1,128)}', space=vmem, size = 0x12000, scoped, tag = 'internal scratch']
  #allocation2 [shape = 'f32[8,16,128]{2,1,0:T(8,128)}', space=vmem, size = 0x10000, scoped, tag = 'scratch operand']
  %s0 = inlined_call_operand.vmem [shape: bf16[2,256,128], index: 0, kind: input, shape index: {}]
  %s1 = inlined_call_operand.vmem [shape: bf16[1,128,128], index: 1, kind: input, shape index: {}]
  %s2 = inlined_call_operand.vmem [shape: f32[1,128], index: 2, kind: input, shape index: {}]
  %s3 = inlined_call_operand.vmem [shape: bf16[2,256,128], index: 3, kind: output, shape index: {}]
  %s4 = sld [smem:[#allocation0]]
  $region45: #{vgg_forward.13} parent=0
    _
  %s6 = ssub.s32 1, %s4
  %s7 = scalar_select 0, %s6, %s4
  loop: start=0, step=1, limit=4
  $region2: #{vgg_forward.13} parent=0 // loop_pre_header
    _
  $region3: #{vgg_forward.13} parent=0 // loop_header
    %s9 = sphi 0, %s13
    %p10 = scmp.ge.s32.totalorder %s9, 4
    %s19 = sphi 0, %s21
    %s22 = sphi 0, %s19
    %s23 = sphi 0, %s22
    %s39 = sphi 0, %s23
    %s43 = sphi 0, %s43
    %s45 = sphi 0, %s43
    %s46 = sphi 0, %s45
    %s60 = sphi 0, %s46
    %s64 = sphi 0, %s64
    %s66 = sphi 0, %s64
    %s67 = sphi 0, %s66
    %s81 = sphi 0, %s67
    %s87 = sphi 0, %s89
    %s90 = sphi 0, %s87
    %s91 = sphi 0, %s90
    %s107 = sphi 0, %s91
  $region4: #{vgg_forward.13} parent=0 // loop_header_branch
    %12 = sbr.rel (%p10) target = $region8
  $region5: #{vgg_forward.13} parent=0 // loop_body
    %s14 = ssub.s32 %s9, 1
    %s15 = ssub.s32 %s9, 2
    %s16 = sadd.s32 %s9, 1
    %s17 = ssub.s32 %s9, %s16
    %p18 = scmp.eq.s32.totalorder %s17, 0
    %s20 = sadd.s32 %s19, 1
    %s21 = scalar_select %p18, %s19, %s20
    %p24 = pneg %p18
    %p25 = scmp.eq.s32.totalorder %s9, 1
    %p26 = por %p24, %p25
    %p27 = scmp.ne.s32.totalorder %s19, %s22
    %p28 = scmp.eq.s32.totalorder %s9, 0
    %p29 = por %p27, %p28
    %p30 = scmp.ne.s32.totalorder %s19, %s22
    %p31 = scmp.eq.s32.totalorder %s14, 1
    %p32 = por %p30, %p31
    %p33 = scmp.ne.s32.totalorder %s22, %s23
    %p34 = scmp.eq.s32.totalorder %s14, 0
    %p35 = por %p33, %p34
    %p36 = scmp.ne.s32.totalorder %s22, %s23
    %p37 = scmp.eq.s32.totalorder %s15, 1
    %p38 = por %p36, %p37
    %p40 = scmp.ne.s32.totalorder %s23, %s39
    %p41 = scmp.eq.s32.totalorder %s15, 0
    %p42 = por %p40, %p41
    %s44 = sadd.s32 %s43, 1
    %p47 = scmp.eq.s32.totalorder %s9, 1
    %p48 = scmp.ne.s32.totalorder %s43, %s45
    %p49 = scmp.eq.s32.totalorder %s9, 0
    %p50 = por %p48, %p49
    %p51 = scmp.ne.s32.totalorder %s43, %s45
    %p52 = scmp.eq.s32.totalorder %s14, 1
    %p53 = por %p51, %p52
    %p54 = scmp.ne.s32.totalorder %s45, %s46
    %p55 = scmp.eq.s32.totalorder %s14, 0
    %p56 = por %p54, %p55
    %p57 = scmp.ne.s32.totalorder %s45, %s46
    %p58 = scmp.eq.s32.totalorder %s15, 1
    %p59 = por %p57, %p58
    %p61 = scmp.ne.s32.totalorder %s46, %s60
    %p62 = scmp.eq.s32.totalorder %s15, 0
    %p63 = por %p61, %p62
    %s65 = sadd.s32 %s64, 1
    %p68 = scmp.eq.s32.totalorder %s9, 1
    %p69 = scmp.ne.s32.totalorder %s64, %s66
    %p70 = scmp.eq.s32.totalorder %s9, 0
    %p71 = por %p69, %p70
    %p72 = scmp.ne.s32.totalorder %s64, %s66
    %p73 = scmp.eq.s32.totalorder %s14, 1
    %p74 = por %p72, %p73
    %p75 = scmp.ne.s32.totalorder %s66, %s67
    %p76 = scmp.eq.s32.totalorder %s14, 0
    %p77 = por %p75, %p76
    %p78 = scmp.ne.s32.totalorder %s66, %s67
    %p79 = scmp.eq.s32.totalorder %s15, 1
    %p80 = por %p78, %p79
    %p82 = scmp.ne.s32.totalorder %s67, %s81
    %p83 = scmp.eq.s32.totalorder %s15, 0
    %p84 = por %p82, %p83
    %s85 = ssub.s32 %s9, %s16
    %p86 = scmp.eq.s32.totalorder %s85, 0
    %s88 = sadd.s32 %s87, 1
    %s89 = scalar_select %p86, %s87, %s88
    %p92 = pneg %p86
    %p93 = scmp.eq.s32.totalorder %s9, 1
    %p94 = por %p92, %p93
    %p95 = scmp.ne.s32.totalorder %s87, %s90
    %p96 = scmp.eq.s32.totalorder %s9, 0
    %p97 = por %p95, %p96
    %p98 = scmp.ne.s32.totalorder %s87, %s90
    %p99 = scmp.eq.s32.totalorder %s14, 1
    %p100 = por %p98, %p99
    %p101 = scmp.ne.s32.totalorder %s90, %s91
    %p102 = scmp.eq.s32.totalorder %s14, 0
    %p103 = por %p101, %p102
    %p104 = scmp.ne.s32.totalorder %s90, %s91
    %p105 = scmp.eq.s32.totalorder %s15, 1
    %p106 = por %p104, %p105
    %p108 = scmp.ne.s32.totalorder %s91, %s107
    %p109 = scmp.eq.s32.totalorder %s15, 0
    %p110 = por %p108, %p109
    %p111 = scmp.le.s32.totalorder 1, %s9
    %p112 = scmp.lt.s32.totalorder %s9, 3
    %p113 = pnand %p111, %p112
    %p114 = pneg %p113
    // Predicated region
    $region9: #{vgg_forward.13} parent=5 // pred_check
      _
    $region10: #{vgg_forward.13} parent=5 // pred_check_branch
      %116 = sbr.rel (%p113) target = $region12
    $region11: #{vgg_forward.13} parent=5 // pred_region
      %s117 = ssub.s32 %s9, 1
      // Predicated region
      $region13: #{vgg_forward.13} parent=11 // pred_check
        %p118 = pneg %p56
      $region14: #{vgg_forward.13} parent=11 // pred_check_branch
        %120 = sbr.rel (%p118) target = $region16
      $region15: #{vgg_forward.13} parent=11 // pred_region
        _
      $region16: #{vgg_forward.13} parent=11 // pred_fallthru
        _
      // Predicated region
      $region17: #{vgg_forward.13} parent=11 // pred_check
        %p121 = pneg %p77
      $region18: #{vgg_forward.13} parent=11 // pred_check_branch
        %123 = sbr.rel (%p121) target = $region20
      $region19: #{vgg_forward.13} parent=11 // pred_region
        _
      $region20: #{vgg_forward.13} parent=11 // pred_fallthru
        _
    $region12: #{vgg_forward.13} parent=5 // pred_fallthru
      _
    %p124 = scmp.lt.s32.totalorder %s9, 2
    // Predicated region
    $region21: #{vgg_forward.13} parent=5 // pred_check
      %p125 = pneg %p124
    $region22: #{vgg_forward.13} parent=5 // pred_check_branch
      %127 = sbr.rel (%p125) target = $region24
    $region23: #{vgg_forward.13} parent=5 // pred_region
      // Predicated region
      $region25: #{vgg_forward.13} parent=23 // pred_check
        %p128 = pneg %p29
      $region26: #{vgg_forward.13} parent=23 // pred_check_branch
        %130 = sbr.rel (%p128) target = $region28
      $region27: #{vgg_forward.13} parent=23 // pred_region
        %p131 = scmp.lt.s32.totalorder %s9, 1
        %s132 = scalar_select %p131, %s9, 1
        %s133 = smul.addr %s132, 32
        %s134 = smul.addr %s133, 4
        %s135 = scalar_lea.vmem %s0, %s134
      $region28: #{vgg_forward.13} parent=23 // pred_fallthru
        _
    $region24: #{vgg_forward.13} parent=5 // pred_fallthru
      _
    %p136 = scmp.le.s32.totalorder 1, %s9
    %p137 = scmp.lt.s32.totalorder %s9, 3
    %p138 = pnand %p136, %p137
    %p139 = pneg %p138
    // Predicated region
    $region29: #{vgg_forward.13} parent=5 // pred_check
      _
    $region30: #{vgg_forward.13} parent=5 // pred_check_branch
      %141 = sbr.rel (%p138) target = $region32
    $region31: #{vgg_forward.13} parent=5 // pred_region
      %s142 = ssub.s32 %s9, 1
      %p143 = scmp.lt.s32.totalorder %s14, 1
      %s144 = scalar_select %p143, %s14, 1
      %s145 = smul.addr %s144, 32
      %s146 = smul.addr %s145, 4
      %s147 = scalar_lea.vmem %s0, %s146
      %p148 = pneg %p35
      %p149 = pneg %p32
      %p150 = pneg %p56
      %p151 = pneg %p53
      %p152 = pneg %p77
      %p153 = pneg %p74
      %p154 = pneg %p103
      %p155 = pneg %p100
      %p156 = scmp.lt.s32.totalorder %s14, 1
      %s157 = scalar_select %p156, %s14, 1
      %s158 = smul.addr %s157, 32
      %s159 = smul.addr %s158, 4
      %s160 = scalar_lea.vmem %s3, %s159
      %p161 = scmp.lt.s32.totalorder %s14, 1
      %s162 = scalar_select %p161, %s14, 1
      %s163 = smul.addr %s162, 32
      %s164 = smul.addr %s163, 4
      %s165 = scalar_lea.vmem %s0, %s164
      %p166 = scmp.lt.s32.totalorder %s14, 1
      %s167 = scalar_select %p166, %s14, 1
      %s168 = smul.addr %s167, 32
      %s169 = smul.addr %s168, 4
      %s170 = scalar_lea.vmem %s3, %s169
      %v172 = vld [vmem:[%s2] sm:$0x1]
      %v173 = vld [vmem:[%s165] sm:$0xf]
      %v174 = vld [vmem:[%s165 + $0x4] sm:$0xf]
      %v175 = vld [vmem:[%s165 + $0x8] sm:$0xf]
      %v176 = vld [vmem:[%s165 + $0xc] sm:$0xf]
      %v177 = vld [vmem:[%s165 + $0x10] sm:$0xf]
      %v178 = vld [vmem:[%s165 + $0x14] sm:$0xf]
      %v179 = vld [vmem:[%s165 + $0x18] sm:$0xf]
      %v180 = vld [vmem:[%s165 + $0x1c] sm:$0xf]
      %v181 = vld [vmem:[%s165 + $0x20] sm:$0xf]
      %v182 = vld [vmem:[%s165 + $0x24] sm:$0xf]
      %v183 = vld [vmem:[%s165 + $0x28] sm:$0xf]
      %v184 = vld [vmem:[%s165 + $0x2c] sm:$0xf]
      %v185 = vld [vmem:[%s165 + $0x30] sm:$0xf]
      %v186 = vld [vmem:[%s165 + $0x34] sm:$0xf]
      %v187 = vld [vmem:[%s165 + $0x38] sm:$0xf]
      %v188 = vld [vmem:[%s165 + $0x3c] sm:$0xf]
      %v189 = vld [vmem:[%s165 + $0x40] sm:$0xf]
      %v190 = vld [vmem:[%s165 + $0x44] sm:$0xf]
      %v191 = vld [vmem:[%s165 + $0x48] sm:$0xf]
      %v192 = vld [vmem:[%s165 + $0x4c] sm:$0xf]
      %v193 = vld [vmem:[%s165 + $0x50] sm:$0xf]
      %v194 = vld [vmem:[%s165 + $0x54] sm:$0xf]
      %v195 = vld [vmem:[%s165 + $0x58] sm:$0xf]
      %v196 = vld [vmem:[%s165 + $0x5c] sm:$0xf]
      %v197 = vld [vmem:[%s165 + $0x60] sm:$0xf]
      %v198 = vld [vmem:[%s165 + $0x64] sm:$0xf]
      %v199 = vld [vmem:[%s165 + $0x68] sm:$0xf]
      %v200 = vld [vmem:[%s165 + $0x6c] sm:$0xf]
      %v201 = vld [vmem:[%s165 + $0x70] sm:$0xf]
      %v202 = vld [vmem:[%s165 + $0x74] sm:$0xf]
      %v203 = vld [vmem:[%s165 + $0x78] sm:$0xf]
      %v204 = vld [vmem:[%s165 + $0x7c] sm:$0xf]
      %v205 = vld [vmem:[%s1] sm:$0xf]
      %v206 = vld [vmem:[%s1 + $0x4] sm:$0xf]
      %v207 = vld [vmem:[%s1 + $0x8] sm:$0xf]
      %v208 = vld [vmem:[%s1 + $0xc] sm:$0xf]
      %v209 = vld [vmem:[%s1 + $0x10] sm:$0xf]
      %v210 = vld [vmem:[%s1 + $0x14] sm:$0xf]
      %v211 = vld [vmem:[%s1 + $0x18] sm:$0xf]
      %v212 = vld [vmem:[%s1 + $0x1c] sm:$0xf]
      %v213 = vld [vmem:[%s1 + $0x20] sm:$0xf]
      %v214 = vld [vmem:[%s1 + $0x24] sm:$0xf]
      %v215 = vld [vmem:[%s1 + $0x28] sm:$0xf]
      %v216 = vld [vmem:[%s1 + $0x2c] sm:$0xf]
      %v217 = vld [vmem:[%s1 + $0x30] sm:$0xf]
      %v218 = vld [vmem:[%s1 + $0x34] sm:$0xf]
      %v219 = vld [vmem:[%s1 + $0x38] sm:$0xf]
      %v220 = vld [vmem:[%s1 + $0x3c] sm:$0xf]
      %v222 = vlaneseq
      %v223 = vshrl.u32 %v222, 7
      %v224 = vsub.s32 0, %v223
      %v225 = vrot.slane %v172, %v224
      %v259 = vunpack.c.l.b16 %v173
      %v260 = vunpack.c.l.b16 %v174
      %v261 = vunpack.c.l.b16 %v175
      %v262 = vunpack.c.l.b16 %v176
      %v263 = vunpack.c.l.b16 %v177
      %v264 = vunpack.c.l.b16 %v178
      %v265 = vunpack.c.l.b16 %v179
      %v266 = vunpack.c.l.b16 %v180
      %v267 = vunpack.c.l.b16 %v181
      %v268 = vunpack.c.l.b16 %v182
      %v269 = vunpack.c.l.b16 %v183
      %v270 = vunpack.c.l.b16 %v184
      %v271 = vunpack.c.l.b16 %v185
      %v272 = vunpack.c.l.b16 %v186
      %v273 = vunpack.c.l.b16 %v187
      %v274 = vunpack.c.l.b16 %v188
      %v275 = vunpack.c.l.b16 %v189
      %v276 = vunpack.c.l.b16 %v190
      %v277 = vunpack.c.l.b16 %v191
      %v278 = vunpack.c.l.b16 %v192
      %v279 = vunpack.c.l.b16 %v193
      %v280 = vunpack.c.l.b16 %v194
      %v281 = vunpack.c.l.b16 %v195
      %v282 = vunpack.c.l.b16 %v196
      %v283 = vunpack.c.l.b16 %v197
      %v284 = vunpack.c.l.b16 %v198
      %v285 = vunpack.c.l.b16 %v199
      %v286 = vunpack.c.l.b16 %v200
      %v287 = vunpack.c.l.b16 %v201
      %v288 = vunpack.c.l.b16 %v202
      %v289 = vunpack.c.l.b16 %v203
      %v290 = vunpack.c.l.b16 %v204
      %v291 = vpack.c.b16 %v260, %v259
      %v292 = vpack.c.b16 %v262, %v261
      %v293 = vpack.c.b16 %v264, %v263
      %v294 = vpack.c.b16 %v266, %v265
      %v295 = vpack.c.b16 %v268, %v267
      %v296 = vpack.c.b16 %v270, %v269
      %v297 = vpack.c.b16 %v272, %v271
      %v298 = vpack.c.b16 %v274, %v273
      %v299 = vpack.c.b16 %v276, %v275
      %v300 = vpack.c.b16 %v278, %v277
      %v301 = vpack.c.b16 %v280, %v279
      %v302 = vpack.c.b16 %v282, %v281
      %v303 = vpack.c.b16 %v284, %v283
      %v304 = vpack.c.b16 %v286, %v285
      %v305 = vpack.c.b16 %v288, %v287
      %v306 = vpack.c.b16 %v290, %v289
      %v339 = vunpack.c.l.b16 %v205
      %v340 = vunpack.c.l.b16 %v206
      %v341 = vunpack.c.l.b16 %v207
      %v342 = vunpack.c.l.b16 %v208
      %v343 = vunpack.c.l.b16 %v209
      %v344 = vunpack.c.l.b16 %v210
      %v345 = vunpack.c.l.b16 %v211
      %v346 = vunpack.c.l.b16 %v212
      %v347 = vunpack.c.l.b16 %v213
      %v348 = vunpack.c.l.b16 %v214
      %v349 = vunpack.c.l.b16 %v215
      %v350 = vunpack.c.l.b16 %v216
      %v351 = vunpack.c.l.b16 %v217
      %v352 = vunpack.c.l.b16 %v218
      %v353 = vunpack.c.l.b16 %v219
      %v354 = vunpack.c.l.b16 %v220
      %v355 = vpack.c.b16 %v340, %v339
      %v356 = vpack.c.b16 %v342, %v341
      %v357 = vpack.c.b16 %v344, %v343
      %v358 = vpack.c.b16 %v346, %v345
      %v359 = vpack.c.b16 %v348, %v347
      %v360 = vpack.c.b16 %v350, %v349
      %v361 = vpack.c.b16 %v352, %v351
      %v362 = vpack.c.b16 %v354, %v353
      %371 = vmatprep.subr.bf16.mxu0 0
      %372 = vmatpush1.bf16.msra.mxu0 %v355
      %373 = vmatprep.subr.bf16.mxu0 0
      %374 = vmatpush1.bf16.msra.mxu0 %v356
      %375 = vmatprep.subr.bf16.mxu0 0
      %376 = vmatpush1.bf16.msra.mxu0 %v357
      %377 = vmatprep.subr.bf16.mxu0 0
      %378 = vmatpush1.bf16.msra.mxu0 %v358
      %379 = vmatprep.subr.bf16.mxu0 0
      %380 = vmatpush1.bf16.msra.mxu0 %v359
      %381 = vmatprep.subr.bf16.mxu0 0
      %382 = vmatpush1.bf16.msra.mxu0 %v360
      %383 = vmatprep.subr.bf16.mxu0 0
      %384 = vmatpush1.bf16.msra.mxu0 %v361
      %385 = vmatprep.subr.bf16.mxu0 0
      %386 = vmatpush1.bf16.msra.mxu0 %v362
      %387 = vmatprep.subr.bf16.mxu0 0
      %388 = vmatpush1.bf16.msra.mxu0 0
      %389 = vmatprep.subr.bf16.mxu0 0
      %390 = vmatpush1.bf16.msra.mxu0 0
      %391 = vmatprep.subr.bf16.mxu0 0
      %392 = vmatpush1.bf16.msra.mxu0 0
      %393 = vmatprep.subr.bf16.mxu0 0
      %394 = vmatpush1.bf16.msra.mxu0 0
      %395 = vmatprep.subr.bf16.mxu0 0
      %396 = vmatpush1.bf16.msra.mxu0 0
      %397 = vmatprep.subr.bf16.mxu0 0
      %398 = vmatpush1.bf16.msra.mxu0 0
      %399 = vmatprep.subr.bf16.mxu0 0
      %400 = vmatpush1.bf16.msra.mxu0 0
      %401 = vmatprep.subr.bf16.mxu0 0
      %402 = vmatpush1.bf16.msra.mxu0 0
      %403 = vmatprep.mubr.bf16.mxu0 0
      %404 = vmatmul.mubr.bf16.gmra.mrb[0].mxu0 %v291
      %v405 = vpop.f32.mrb[0].mxu0
      %v406 = vadd.f32 %v225, %v405
      %v407 = vpop.f32.mrb[0].mxu0
      %v408 = vpop.f32.mrb[0].mxu0
      %v409 = vadd.f32 %v225, %v408
      %v410 = vpop.f32.mrb[0].mxu0
      %411 = vmatprep.mubr.bf16.mxu0 0
      %412 = vmatmul.mubr.bf16.gmra.mrb[0].mxu0 %v292
      %v413 = vpop.f32.mrb[0].mxu0
      %v414 = vadd.f32 %v225, %v413
      %v415 = vpop.f32.mrb[0].mxu0
      %v416 = vpop.f32.mrb[0].mxu0
      %v417 = vadd.f32 %v225, %v416
      %v418 = vpop.f32.mrb[0].mxu0
      %419 = vmatprep.mubr.bf16.mxu0 0
      %420 = vmatmul.mubr.bf16.gmra.mrb[0].mxu0 %v293
      %v421 = vpop.f32.mrb[0].mxu0
      %v422 = vadd.f32 %v225, %v421
      %v423 = vpop.f32.mrb[0].mxu0
      %v424 = vpop.f32.mrb[0].mxu0
      %v425 = vadd.f32 %v225, %v424
      %v426 = vpop.f32.mrb[0].mxu0
      %427 = vmatprep.mubr.bf16.mxu0 0
      %428 = vmatmul.mubr.bf16.gmra.mrb[0].mxu0 %v294
      %v429 = vpop.f32.mrb[0].mxu0
      %v430 = vadd.f32 %v225, %v429
      %v431 = vpop.f32.mrb[0].mxu0
      %v432 = vpop.f32.mrb[0].mxu0
      %v433 = vadd.f32 %v225, %v432
      %v434 = vpop.f32.mrb[0].mxu0
      %435 = vmatprep.mubr.bf16.mxu0 0
      %436 = vmatmul.mubr.bf16.gmra.mrb[0].mxu0 %v295
      %v437 = vpop.f32.mrb[0].mxu0
      %v438 = vadd.f32 %v225, %v437
      %v439 = vpop.f32.mrb[0].mxu0
      %v440 = vpop.f32.mrb[0].mxu0
      %v441 = vadd.f32 %v225, %v440
      %v442 = vpop.f32.mrb[0].mxu0
      %443 = vmatprep.mubr.bf16.mxu0 0
      %444 = vmatmul.mubr.bf16.gmra.mrb[0].mxu0 %v296
      %v445 = vpop.f32.mrb[0].mxu0
      %v446 = vadd.f32 %v225, %v445
      %v447 = vpop.f32.mrb[0].mxu0
      %v448 = vpop.f32.mrb[0].mxu0
      %v449 = vadd.f32 %v225, %v448
      %v450 = vpop.f32.mrb[0].mxu0
      %451 = vmatprep.mubr.bf16.mxu0 0
      %452 = vmatmul.mubr.bf16.gmra.mrb[0].mxu0 %v297
      %v453 = vpop.f32.mrb[0].mxu0
      %v454 = vadd.f32 %v225, %v453
      %v455 = vpop.f32.mrb[0].mxu0
      %v456 = vpop.f32.mrb[0].mxu0
      %v457 = vadd.f32 %v225, %v456
      %v458 = vpop.f32.mrb[0].mxu0
      %459 = vmatprep.mubr.bf16.mxu0 0
      %460 = vmatmul.mubr.bf16.gmra.mrb[0].mxu0 %v298
      %v461 = vpop.f32.mrb[0].mxu0
      %v462 = vadd.f32 %v225, %v461
      %v463 = vpop.f32.mrb[0].mxu0
      %v464 = vpop.f32.mrb[0].mxu0
      %v465 = vadd.f32 %v225, %v464
      %v466 = vpop.f32.mrb[0].mxu0
      %467 = vmatprep.mubr.bf16.mxu0 0
      %468 = vmatmul.mubr.bf16.gmra.mrb[0].mxu0 %v299
      %v469 = vpop.f32.mrb[0].mxu0
      %v470 = vadd.f32 %v225, %v469
      %v471 = vpop.f32.mrb[0].mxu0
      %v472 = vpop.f32.mrb[0].mxu0
      %v473 = vadd.f32 %v225, %v472
      %v474 = vpop.f32.mrb[0].mxu0
      %475 = vmatprep.mubr.bf16.mxu0 0
      %476 = vmatmul.mubr.bf16.gmra.mrb[0].mxu0 %v300
      %v477 = vpop.f32.mrb[0].mxu0
      %v478 = vadd.f32 %v225, %v477
      %v479 = vpop.f32.mrb[0].mxu0
      %v480 = vpop.f32.mrb[0].mxu0
      %v481 = vadd.f32 %v225, %v480
      %v482 = vpop.f32.mrb[0].mxu0
      %483 = vmatprep.mubr.bf16.mxu0 0
      %484 = vmatmul.mubr.bf16.gmra.mrb[0].mxu0 %v301
      %v485 = vpop.f32.mrb[0].mxu0
      %v486 = vadd.f32 %v225, %v485
      %v487 = vpop.f32.mrb[0].mxu0
      %v488 = vpop.f32.mrb[0].mxu0
      %v489 = vadd.f32 %v225, %v488
      %v490 = vpop.f32.mrb[0].mxu0
      %491 = vmatprep.mubr.bf16.mxu0 0
      %492 = vmatmul.mubr.bf16.gmra.mrb[0].mxu0 %v302
      %v493 = vpop.f32.mrb[0].mxu0
      %v494 = vadd.f32 %v225, %v493
      %v495 = vpop.f32.mrb[0].mxu0
      %v496 = vpop.f32.mrb[0].mxu0
      %v497 = vadd.f32 %v225, %v496
      %v498 = vpop.f32.mrb[0].mxu0
      %499 = vmatprep.mubr.bf16.mxu0 0
      %500 = vmatmul.mubr.bf16.gmra.mrb[0].mxu0 %v303
      %v501 = vpop.f32.mrb[0].mxu0
      %v502 = vadd.f32 %v225, %v501
      %v503 = vpop.f32.mrb[0].mxu0
      %v504 = vpop.f32.mrb[0].mxu0
      %v505 = vadd.f32 %v225, %v504
      %v506 = vpop.f32.mrb[0].mxu0
      %507 = vmatprep.mubr.bf16.mxu0 0
      %508 = vmatmul.mubr.bf16.gmra.mrb[0].mxu0 %v304
      %v509 = vpop.f32.mrb[0].mxu0
      %v510 = vadd.f32 %v225, %v509
      %v511 = vpop.f32.mrb[0].mxu0
      %v512 = vpop.f32.mrb[0].mxu0
      %v513 = vadd.f32 %v225, %v512
      %v514 = vpop.f32.mrb[0].mxu0
      %515 = vmatprep.mubr.bf16.mxu0 0
      %516 = vmatmul.mubr.bf16.gmra.mrb[0].mxu0 %v305
      %v517 = vpop.f32.mrb[0].mxu0
      %v518 = vadd.f32 %v225, %v517
      %v519 = vpop.f32.mrb[0].mxu0
      %v520 = vpop.f32.mrb[0].mxu0
      %v521 = vadd.f32 %v225, %v520
      %v522 = vpop.f32.mrb[0].mxu0
      %523 = vmatprep.mubr.bf16.mxu0 0
      %524 = vmatmul.mubr.bf16.gmra.mrb[0].mxu0 %v306
      %v525 = vpop.f32.mrb[0].mxu0
      %v526 = vadd.f32 %v225, %v525
      %v527 = vpop.f32.mrb[0].mxu0
      %v528 = vpop.f32.mrb[0].mxu0
      %v529 = vadd.f32 %v225, %v528
      %v530 = vpop.f32.mrb[0].mxu0
      %531 = vdwg.mxu0
      %v532 = vmax.f32 %v406, 0.0
      %v533 = vmax.f32 %v409, 0.0
      %v534 = vmax.f32 %v414, 0.0
      %v535 = vmax.f32 %v417, 0.0
      %v536 = vmax.f32 %v422, 0.0
      %v537 = vmax.f32 %v425, 0.0
      %v538 = vmax.f32 %v430, 0.0
      %v539 = vmax.f32 %v433, 0.0
      %v540 = vmax.f32 %v438, 0.0
      %v541 = vmax.f32 %v441, 0.0
      %v542 = vmax.f32 %v446, 0.0
      %v543 = vmax.f32 %v449, 0.0
      %v544 = vmax.f32 %v454, 0.0
      %v545 = vmax.f32 %v457, 0.0
      %v546 = vmax.f32 %v462, 0.0
      %v547 = vmax.f32 %v465, 0.0
      %v548 = vmax.f32 %v470, 0.0
      %v549 = vmax.f32 %v473, 0.0
      %v550 = vmax.f32 %v478, 0.0
      %v551 = vmax.f32 %v481, 0.0
      %v552 = vmax.f32 %v486, 0.0
      %v553 = vmax.f32 %v489, 0.0
      %v554 = vmax.f32 %v494, 0.0
      %v555 = vmax.f32 %v497, 0.0
      %v556 = vmax.f32 %v502, 0.0
      %v557 = vmax.f32 %v505, 0.0
      %v558 = vmax.f32 %v510, 0.0
      %v559 = vmax.f32 %v513, 0.0
      %v560 = vmax.f32 %v518, 0.0
      %v561 = vmax.f32 %v521, 0.0
      %v562 = vmax.f32 %v526, 0.0
      %v563 = vmax.f32 %v529, 0.0
      %v564 = vpack.c.bf16 %v533, %v532
      %v565 = vpack.c.bf16 %v535, %v534
      %v566 = vpack.c.bf16 %v537, %v536
      %v567 = vpack.c.bf16 %v539, %v538
      %v568 = vpack.c.bf16 %v541, %v540
      %v569 = vpack.c.bf16 %v543, %v542
      %v570 = vpack.c.bf16 %v545, %v544
      %v571 = vpack.c.bf16 %v547, %v546
      %v572 = vpack.c.bf16 %v549, %v548
      %v573 = vpack.c.bf16 %v551, %v550
      %v574 = vpack.c.bf16 %v553, %v552
      %v575 = vpack.c.bf16 %v555, %v554
      %v576 = vpack.c.bf16 %v557, %v556
      %v577 = vpack.c.bf16 %v559, %v558
      %v578 = vpack.c.bf16 %v561, %v560
      %v579 = vpack.c.bf16 %v563, %v562
      %v596 = vunpack.c.l.b16 %v564
      %v597 = vunpack.c.h.b16 %v564
      %v598 = vunpack.c.l.b16 %v565
      %v599 = vunpack.c.h.b16 %v565
      %v600 = vunpack.c.l.b16 %v566
      %v601 = vunpack.c.h.b16 %v566
      %v602 = vunpack.c.l.b16 %v567
      %v603 = vunpack.c.h.b16 %v567
      %v604 = vunpack.c.l.b16 %v568
      %v605 = vunpack.c.h.b16 %v568
      %v606 = vunpack.c.l.b16 %v569
      %v607 = vunpack.c.h.b16 %v569
      %v608 = vunpack.c.l.b16 %v570
      %v609 = vunpack.c.h.b16 %v570
      %v610 = vunpack.c.l.b16 %v571
      %v611 = vunpack.c.h.b16 %v571
      %v612 = vunpack.c.l.b16 %v572
      %v613 = vunpack.c.h.b16 %v572
      %v614 = vunpack.c.l.b16 %v573
      %v615 = vunpack.c.h.b16 %v573
      %v616 = vunpack.c.l.b16 %v574
      %v617 = vunpack.c.h.b16 %v574
      %v618 = vunpack.c.l.b16 %v575
      %v619 = vunpack.c.h.b16 %v575
      %v620 = vunpack.c.l.b16 %v576
      %v621 = vunpack.c.h.b16 %v576
      %v622 = vunpack.c.l.b16 %v577
      %v623 = vunpack.c.h.b16 %v577
      %v624 = vunpack.c.l.b16 %v578
      %v625 = vunpack.c.h.b16 %v578
      %v626 = vunpack.c.l.b16 %v579
      %v627 = vunpack.c.h.b16 %v579
      %v628 = vpack.c.b16 %v596, %v596
      %v629 = vpack.c.b16 %v597, %v597
      %v630 = vpack.c.b16 %v598, %v598
      %v631 = vpack.c.b16 %v599, %v599
      %v632 = vpack.c.b16 %v600, %v600
      %v633 = vpack.c.b16 %v601, %v601
      %v634 = vpack.c.b16 %v602, %v602
      %v635 = vpack.c.b16 %v603, %v603
      %v636 = vpack.c.b16 %v604, %v604
      %v637 = vpack.c.b16 %v605, %v605
      %v638 = vpack.c.b16 %v606, %v606
      %v639 = vpack.c.b16 %v607, %v607
      %v640 = vpack.c.b16 %v608, %v608
      %v641 = vpack.c.b16 %v609, %v609
      %v642 = vpack.c.b16 %v610, %v610
      %v643 = vpack.c.b16 %v611, %v611
      %v644 = vpack.c.b16 %v612, %v612
      %v645 = vpack.c.b16 %v613, %v613
      %v646 = vpack.c.b16 %v614, %v614
      %v647 = vpack.c.b16 %v615, %v615
      %v648 = vpack.c.b16 %v616, %v616
      %v649 = vpack.c.b16 %v617, %v617
      %v650 = vpack.c.b16 %v618, %v618
      %v651 = vpack.c.b16 %v619, %v619
      %v652 = vpack.c.b16 %v620, %v620
      %v653 = vpack.c.b16 %v621, %v621
      %v654 = vpack.c.b16 %v622, %v622
      %v655 = vpack.c.b16 %v623, %v623
      %v656 = vpack.c.b16 %v624, %v624
      %v657 = vpack.c.b16 %v625, %v625
      %v658 = vpack.c.b16 %v626, %v626
      %v659 = vpack.c.b16 %v627, %v627
      %692 = vst [vmem:[%s170] sm:$0xf] %v628
      %693 = vst [vmem:[%s170 + $0x4] sm:$0xf] %v629
      %694 = vst [vmem:[%s170 + $0x8] sm:$0xf] %v630
      %695 = vst [vmem:[%s170 + $0xc] sm:$0xf] %v631
      %696 = vst [vmem:[%s170 + $0x10] sm:$0xf] %v632
      %697 = vst [vmem:[%s170 + $0x14] sm:$0xf] %v633
      %698 = vst [vmem:[%s170 + $0x18] sm:$0xf] %v634
      %699 = vst [vmem:[%s170 + $0x1c] sm:$0xf] %v635
      %700 = vst [vmem:[%s170 + $0x20] sm:$0xf] %v636
      %701 = vst [vmem:[%s170 + $0x24] sm:$0xf] %v637
      %702 = vst [vmem:[%s170 + $0x28] sm:$0xf] %v638
      %703 = vst [vmem:[%s170 + $0x2c] sm:$0xf] %v639
      %704 = vst [vmem:[%s170 + $0x30] sm:$0xf] %v640
      %705 = vst [vmem:[%s170 + $0x34] sm:$0xf] %v641
      %706 = vst [vmem:[%s170 + $0x38] sm:$0xf] %v642
      %707 = vst [vmem:[%s170 + $0x3c] sm:$0xf] %v643
      %708 = vst [vmem:[%s170 + $0x40] sm:$0xf] %v644
      %709 = vst [vmem:[%s170 + $0x44] sm:$0xf] %v645
      %710 = vst [vmem:[%s170 + $0x48] sm:$0xf] %v646
      %711 = vst [vmem:[%s170 + $0x4c] sm:$0xf] %v647
      %712 = vst [vmem:[%s170 + $0x50] sm:$0xf] %v648
      %713 = vst [vmem:[%s170 + $0x54] sm:$0xf] %v649
      %714 = vst [vmem:[%s170 + $0x58] sm:$0xf] %v650
      %715 = vst [vmem:[%s170 + $0x5c] sm:$0xf] %v651
      %716 = vst [vmem:[%s170 + $0x60] sm:$0xf] %v652
      %717 = vst [vmem:[%s170 + $0x64] sm:$0xf] %v653
      %718 = vst [vmem:[%s170 + $0x68] sm:$0xf] %v654
      %719 = vst [vmem:[%s170 + $0x6c] sm:$0xf] %v655
      %720 = vst [vmem:[%s170 + $0x70] sm:$0xf] %v656
      %721 = vst [vmem:[%s170 + $0x74] sm:$0xf] %v657
      %722 = vst [vmem:[%s170 + $0x78] sm:$0xf] %v658
      %723 = vst [vmem:[%s170 + $0x7c] sm:$0xf] %v659
      %p724 = scmp.lt.s32.totalorder %s14, 1
      %s725 = scalar_select %p724, %s14, 1
      %s726 = smul.addr %s725, 32
      %s727 = smul.addr %s726, 4
      %s728 = scalar_lea.vmem %s3, %s727
      // Predicated region
      $region33: #{vgg_forward.13} parent=31 // pred_check
        %p729 = pneg %p100
      $region34: #{vgg_forward.13} parent=31 // pred_check_branch
        %731 = sbr.rel (%p729) target = $region36
      $region35: #{vgg_forward.13} parent=31 // pred_region
        _
      $region36: #{vgg_forward.13} parent=31 // pred_fallthru
        _
    $region32: #{vgg_forward.13} parent=5 // pred_fallthru
      _
    %p732 = scmp.le.s32.totalorder 2, %s9
    // Predicated region
    $region37: #{vgg_forward.13} parent=5 // pred_check
      %p733 = pneg %p732
    $region38: #{vgg_forward.13} parent=5 // pred_check_branch
      %735 = sbr.rel (%p733) target = $region40
    $region39: #{vgg_forward.13} parent=5 // pred_region
      %s736 = ssub.s32 %s9, 2
      // Predicated region
      $region41: #{vgg_forward.13} parent=39 // pred_check
        %p737 = pneg %p106
      $region42: #{vgg_forward.13} parent=39 // pred_check_branch
        %739 = sbr.rel (%p737) target = $region44
      $region43: #{vgg_forward.13} parent=39 // pred_region
        %p740 = scmp.lt.s32.totalorder %s15, 1
        %s741 = scalar_select %p740, %s15, 1
        %s742 = smul.addr %s741, 32
        %s743 = smul.addr %s742, 4
        %s744 = scalar_lea.vmem %s3, %s743
      $region44: #{vgg_forward.13} parent=39 // pred_fallthru
        _
    $region40: #{vgg_forward.13} parent=5 // pred_fallthru
      _
  $region6: #{vgg_forward.13} parent=0 // loop_footer
    %s13 = sadd.s32 1, %s9
  $region7: #{vgg_forward.13} parent=0 // loop_footer_branch
    %8 = sbr.rel target = $region3
  $region8: #{vgg_forward.13} parent=0 // loop_exit
    _

// kernel: vgg_forward.14
$region0: #{vgg_forward.14}
  #allocation0 [shape = 'u32[]', space=smem, size = 0x4, offset = 0x4, fixed_abs, tag = 'smem constant byte address 0x4 - core index']
  #allocation1 [shape = 'u32[144,128]{1,0:T(1,128)}', space=vmem, size = 0x12000, scoped, tag = 'internal scratch']
  #allocation2 [shape = 'f32[8,16,128]{2,1,0:T(8,128)}', space=vmem, size = 0x10000, scoped, tag = 'scratch operand']
  %s0 = inlined_call_operand.vmem [shape: bf16[2,288,128], index: 0, kind: input, shape index: {}]
  %s1 = inlined_call_operand.vmem [shape: bf16[3,128,128], index: 1, kind: input, shape index: {}]
  %s2 = inlined_call_operand.vmem [shape: f32[1,128], index: 2, kind: input, shape index: {}]
  %s3 = inlined_call_operand.vmem [shape: bf16[2,8,8,128], index: 3, kind: output, shape index: {}]
  %s4 = sld [smem:[#allocation0]]
  $region45: #{vgg_forward.14} parent=0
    _
  %s6 = ssub.s32 1, %s4
  %s7 = scalar_select 0, %s6, %s4
  loop: start=0, step=1, limit=4
  $region2: #{vgg_forward.14} parent=0 // loop_pre_header
    _
  $region3: #{vgg_forward.14} parent=0 // loop_header
    %s9 = sphi 0, %s13
    %p10 = scmp.ge.s32.totalorder %s9, 4
    %s19 = sphi 0, %s21
    %s22 = sphi 0, %s19
    %s23 = sphi 0, %s22
    %s39 = sphi 0, %s23
    %s43 = sphi 0, %s43
    %s45 = sphi 0, %s43
    %s46 = sphi 0, %s45
    %s60 = sphi 0, %s46
    %s64 = sphi 0, %s64
    %s66 = sphi 0, %s64
    %s67 = sphi 0, %s66
    %s81 = sphi 0, %s67
    %s87 = sphi 0, %s89
    %s90 = sphi 0, %s87
    %s91 = sphi 0, %s90
    %s107 = sphi 0, %s91
  $region4: #{vgg_forward.14} parent=0 // loop_header_branch
    %12 = sbr.rel (%p10) target = $region8
  $region5: #{vgg_forward.14} parent=0 // loop_body
    %s14 = ssub.s32 %s9, 1
    %s15 = ssub.s32 %s9, 2
    %s16 = sadd.s32 %s9, 1
    %s17 = ssub.s32 %s9, %s16
    %p18 = scmp.eq.s32.totalorder %s17, 0
    %s20 = sadd.s32 %s19, 1
    %s21 = scalar_select %p18, %s19, %s20
    %p24 = pneg %p18
    %p25 = scmp.eq.s32.totalorder %s9, 1
    %p26 = por %p24, %p25
    %p27 = scmp.ne.s32.totalorder %s19, %s22
    %p28 = scmp.eq.s32.totalorder %s9, 0
    %p29 = por %p27, %p28
    %p30 = scmp.ne.s32.totalorder %s19, %s22
    %p31 = scmp.eq.s32.totalorder %s14, 1
    %p32 = por %p30, %p31
    %p33 = scmp.ne.s32.totalorder %s22, %s23
    %p34 = scmp.eq.s32.totalorder %s14, 0
    %p35 = por %p33, %p34
    %p36 = scmp.ne.s32.totalorder %s22, %s23
    %p37 = scmp.eq.s32.totalorder %s15, 1
    %p38 = por %p36, %p37
    %p40 = scmp.ne.s32.totalorder %s23, %s39
    %p41 = scmp.eq.s32.totalorder %s15, 0
    %p42 = por %p40, %p41
    %s44 = sadd.s32 %s43, 1
    %p47 = scmp.eq.s32.totalorder %s9, 1
    %p48 = scmp.ne.s32.totalorder %s43, %s45
    %p49 = scmp.eq.s32.totalorder %s9, 0
    %p50 = por %p48, %p49
    %p51 = scmp.ne.s32.totalorder %s43, %s45
    %p52 = scmp.eq.s32.totalorder %s14, 1
    %p53 = por %p51, %p52
    %p54 = scmp.ne.s32.totalorder %s45, %s46
    %p55 = scmp.eq.s32.totalorder %s14, 0
    %p56 = por %p54, %p55
    %p57 = scmp.ne.s32.totalorder %s45, %s46
    %p58 = scmp.eq.s32.totalorder %s15, 1
    %p59 = por %p57, %p58
    %p61 = scmp.ne.s32.totalorder %s46, %s60
    %p62 = scmp.eq.s32.totalorder %s15, 0
    %p63 = por %p61, %p62
    %s65 = sadd.s32 %s64, 1
    %p68 = scmp.eq.s32.totalorder %s9, 1
    %p69 = scmp.ne.s32.totalorder %s64, %s66
    %p70 = scmp.eq.s32.totalorder %s9, 0
    %p71 = por %p69, %p70
    %p72 = scmp.ne.s32.totalorder %s64, %s66
    %p73 = scmp.eq.s32.totalorder %s14, 1
    %p74 = por %p72, %p73
    %p75 = scmp.ne.s32.totalorder %s66, %s67
    %p76 = scmp.eq.s32.totalorder %s14, 0
    %p77 = por %p75, %p76
    %p78 = scmp.ne.s32.totalorder %s66, %s67
    %p79 = scmp.eq.s32.totalorder %s15, 1
    %p80 = por %p78, %p79
    %p82 = scmp.ne.s32.totalorder %s67, %s81
    %p83 = scmp.eq.s32.totalorder %s15, 0
    %p84 = por %p82, %p83
    %s85 = ssub.s32 %s9, %s16
    %p86 = scmp.eq.s32.totalorder %s85, 0
    %s88 = sadd.s32 %s87, 1
    %s89 = scalar_select %p86, %s87, %s88
    %p92 = pneg %p86
    %p93 = scmp.eq.s32.totalorder %s9, 1
    %p94 = por %p92, %p93
    %p95 = scmp.ne.s32.totalorder %s87, %s90
    %p96 = scmp.eq.s32.totalorder %s9, 0
    %p97 = por %p95, %p96
    %p98 = scmp.ne.s32.totalorder %s87, %s90
    %p99 = scmp.eq.s32.totalorder %s14, 1
    %p100 = por %p98, %p99
    %p101 = scmp.ne.s32.totalorder %s90, %s91
    %p102 = scmp.eq.s32.totalorder %s14, 0
    %p103 = por %p101, %p102
    %p104 = scmp.ne.s32.totalorder %s90, %s91
    %p105 = scmp.eq.s32.totalorder %s15, 1
    %p106 = por %p104, %p105
    %p108 = scmp.ne.s32.totalorder %s91, %s107
    %p109 = scmp.eq.s32.totalorder %s15, 0
    %p110 = por %p108, %p109
    %p111 = scmp.le.s32.totalorder 1, %s9
    %p112 = scmp.lt.s32.totalorder %s9, 3
    %p113 = pnand %p111, %p112
    %p114 = pneg %p113
    // Predicated region
    $region9: #{vgg_forward.14} parent=5 // pred_check
      _
    $region10: #{vgg_forward.14} parent=5 // pred_check_branch
      %116 = sbr.rel (%p113) target = $region12
    $region11: #{vgg_forward.14} parent=5 // pred_region
      %s117 = ssub.s32 %s9, 1
      // Predicated region
      $region13: #{vgg_forward.14} parent=11 // pred_check
        %p118 = pneg %p56
      $region14: #{vgg_forward.14} parent=11 // pred_check_branch
        %120 = sbr.rel (%p118) target = $region16
      $region15: #{vgg_forward.14} parent=11 // pred_region
        _
      $region16: #{vgg_forward.14} parent=11 // pred_fallthru
        _
      // Predicated region
      $region17: #{vgg_forward.14} parent=11 // pred_check
        %p121 = pneg %p77
      $region18: #{vgg_forward.14} parent=11 // pred_check_branch
        %123 = sbr.rel (%p121) target = $region20
      $region19: #{vgg_forward.14} parent=11 // pred_region
        _
      $region20: #{vgg_forward.14} parent=11 // pred_fallthru
        _
    $region12: #{vgg_forward.14} parent=5 // pred_fallthru
      _
    %p124 = scmp.lt.s32.totalorder %s9, 2
    // Predicated region
    $region21: #{vgg_forward.14} parent=5 // pred_check
      %p125 = pneg %p124
    $region22: #{vgg_forward.14} parent=5 // pred_check_branch
      %127 = sbr.rel (%p125) target = $region24
    $region23: #{vgg_forward.14} parent=5 // pred_region
      // Predicated region
      $region25: #{vgg_forward.14} parent=23 // pred_check
        %p128 = pneg %p29
      $region26: #{vgg_forward.14} parent=23 // pred_check_branch
        %130 = sbr.rel (%p128) target = $region28
      $region27: #{vgg_forward.14} parent=23 // pred_region
        %p131 = scmp.lt.s32.totalorder %s9, 1
        %s132 = scalar_select %p131, %s9, 1
        %s133 = smul.addr %s132, 36
        %s134 = smul.addr %s133, 4
        %s135 = scalar_lea.vmem %s0, %s134
      $region28: #{vgg_forward.14} parent=23 // pred_fallthru
        _
    $region24: #{vgg_forward.14} parent=5 // pred_fallthru
      _
    %p136 = scmp.le.s32.totalorder 1, %s9
    %p137 = scmp.lt.s32.totalorder %s9, 3
    %p138 = pnand %p136, %p137
    %p139 = pneg %p138
    // Predicated region
    $region29: #{vgg_forward.14} parent=5 // pred_check
      _
    $region30: #{vgg_forward.14} parent=5 // pred_check_branch
      %141 = sbr.rel (%p138) target = $region32
    $region31: #{vgg_forward.14} parent=5 // pred_region
      %s142 = ssub.s32 %s9, 1
      %p143 = scmp.lt.s32.totalorder %s14, 1
      %s144 = scalar_select %p143, %s14, 1
      %s145 = smul.addr %s144, 36
      %s146 = smul.addr %s145, 4
      %s147 = scalar_lea.vmem %s0, %s146
      %p148 = pneg %p35
      %p149 = pneg %p32
      %p150 = pneg %p56
      %p151 = pneg %p53
      %p152 = pneg %p77
      %p153 = pneg %p74
      %p154 = pneg %p103
      %p155 = pneg %p100
      %p156 = scmp.lt.s32.totalorder %s14, 1
      %s157 = scalar_select %p156, %s14, 1
      %s158 = smul.addr %s157, 8
      %s159 = smul.addr %s158, 4
      %s160 = scalar_lea.vmem %s3, %s159
      %p161 = scmp.lt.s32.totalorder %s14, 1
      %s162 = scalar_select %p161, %s14, 1
      %s163 = smul.addr %s162, 36
      %s164 = smul.addr %s163, 4
      %s165 = scalar_lea.vmem %s0, %s164
      %p166 = scmp.lt.s32.totalorder %s14, 1
      %s167 = scalar_select %p166, %s14, 1
      %s168 = smul.addr %s167, 8
      %s169 = smul.addr %s168, 4
      %s170 = scalar_lea.vmem %s3, %s169
      %v172 = vld [vmem:[%s2] sm:$0x1]
      %v173 = vld [vmem:[%s165] sm:$0xf]
      %v174 = vld [vmem:[%s165 + $0x4] sm:$0xf]
      %v175 = vld [vmem:[%s165 + $0x8] sm:$0xf]
      %v176 = vld [vmem:[%s165 + $0xc] sm:$0xf]
      %v177 = vld [vmem:[%s165 + $0x10] sm:$0xf]
      %v178 = vld [vmem:[%s165 + $0x14] sm:$0xf]
      %v179 = vld [vmem:[%s165 + $0x18] sm:$0xf]
      %v180 = vld [vmem:[%s165 + $0x1c] sm:$0xf]
      %v181 = vld [vmem:[%s165 + $0x20] sm:$0xf]
      %v182 = vld [vmem:[%s165 + $0x24] sm:$0xf]
      %v183 = vld [vmem:[%s165 + $0x28] sm:$0xf]
      %v184 = vld [vmem:[%s165 + $0x2c] sm:$0xf]
      %v185 = vld [vmem:[%s165 + $0x30] sm:$0xf]
      %v186 = vld [vmem:[%s165 + $0x34] sm:$0xf]
      %v187 = vld [vmem:[%s165 + $0x38] sm:$0xf]
      %v188 = vld [vmem:[%s165 + $0x3c] sm:$0xf]
      %v189 = vld [vmem:[%s165 + $0x40] sm:$0xf]
      %v190 = vld [vmem:[%s165 + $0x44] sm:$0xf]
      %v191 = vld [vmem:[%s165 + $0x48] sm:$0xf]
      %v192 = vld [vmem:[%s165 + $0x4c] sm:$0xf]
      %v193 = vld [vmem:[%s165 + $0x50] sm:$0xf]
      %v194 = vld [vmem:[%s165 + $0x54] sm:$0xf]
      %v195 = vld [vmem:[%s165 + $0x58] sm:$0xf]
      %v196 = vld [vmem:[%s165 + $0x5c] sm:$0xf]
      %v197 = vld [vmem:[%s165 + $0x60] sm:$0xf]
      %v198 = vld [vmem:[%s165 + $0x64] sm:$0xf]
      %v199 = vld [vmem:[%s165 + $0x68] sm:$0xf]
      %v200 = vld [vmem:[%s165 + $0x6c] sm:$0xf]
      %v201 = vld [vmem:[%s165 + $0x70] sm:$0xf]
      %v202 = vld [vmem:[%s165 + $0x74] sm:$0xf]
      %v203 = vld [vmem:[%s165 + $0x78] sm:$0xf]
      %v204 = vld [vmem:[%s165 + $0x7c] sm:$0xf]
      %v205 = vld [vmem:[%s1] sm:$0xf]
      %v206 = vld [vmem:[%s1 + $0x4] sm:$0xf]
      %v207 = vld [vmem:[%s1 + $0x8] sm:$0xf]
      %v208 = vld [vmem:[%s1 + $0xc] sm:$0xf]
      %v209 = vld [vmem:[%s1 + $0x10] sm:$0xf]
      %v210 = vld [vmem:[%s1 + $0x14] sm:$0xf]
      %v211 = vld [vmem:[%s1 + $0x18] sm:$0xf]
      %v212 = vld [vmem:[%s1 + $0x1c] sm:$0xf]
      %v213 = vld [vmem:[%s1 + $0x20] sm:$0xf]
      %v214 = vld [vmem:[%s1 + $0x24] sm:$0xf]
      %v215 = vld [vmem:[%s1 + $0x28] sm:$0xf]
      %v216 = vld [vmem:[%s1 + $0x2c] sm:$0xf]
      %v217 = vld [vmem:[%s1 + $0x30] sm:$0xf]
      %v218 = vld [vmem:[%s1 + $0x34] sm:$0xf]
      %v219 = vld [vmem:[%s1 + $0x38] sm:$0xf]
      %v220 = vld [vmem:[%s1 + $0x3c] sm:$0xf]
      %v221 = vld [vmem:[%s165 + $0x80] sm:$0xf]
      %v222 = vld [vmem:[%s165 + $0x84] sm:$0xf]
      %s223 = scalar_lea.vmem %s1, 64
      %v224 = vld [vmem:[%s223] sm:$0xf]
      %v225 = vld [vmem:[%s223 + $0x4] sm:$0xf]
      %v226 = vld [vmem:[%s223 + $0x8] sm:$0xf]
      %v227 = vld [vmem:[%s223 + $0xc] sm:$0xf]
      %v228 = vld [vmem:[%s223 + $0x10] sm:$0xf]
      %v229 = vld [vmem:[%s223 + $0x14] sm:$0xf]
      %v230 = vld [vmem:[%s223 + $0x18] sm:$0xf]
      %v231 = vld [vmem:[%s223 + $0x1c] sm:$0xf]
      %v232 = vld [vmem:[%s223 + $0x20] sm:$0xf]
      %v233 = vld [vmem:[%s223 + $0x24] sm:$0xf]
      %v234 = vld [vmem:[%s223 + $0x28] sm:$0xf]
      %v235 = vld [vmem:[%s223 + $0x2c] sm:$0xf]
      %v236 = vld [vmem:[%s223 + $0x30] sm:$0xf]
      %v237 = vld [vmem:[%s223 + $0x34] sm:$0xf]
      %v238 = vld [vmem:[%s223 + $0x38] sm:$0xf]
      %v239 = vld [vmem:[%s223 + $0x3c] sm:$0xf]
      %v272 = vunpack.c.l.b16 %v175
      %v273 = vunpack.c.l.b16 %v176
      %v274 = vunpack.c.l.b16 %v177
      %v275 = vunpack.c.l.b16 %v178
      %v276 = vunpack.c.l.b16 %v179
      %v277 = vunpack.c.l.b16 %v180
      %v278 = vunpack.c.l.b16 %v181
      %v279 = vunpack.c.l.b16 %v182
      %v280 = vunpack.c.l.b16 %v183
      %v281 = vunpack.c.l.b16 %v184
      %v282 = vunpack.c.l.b16 %v185
      %v283 = vunpack.c.l.b16 %v186
      %v284 = vunpack.c.l.b16 %v187
      %v285 = vunpack.c.l.b16 %v188
      %v286 = vunpack.c.l.b16 %v189
      %v287 = vunpack.c.l.b16 %v190
      %v288 = vunpack.c.l.b16 %v191
      %v289 = vunpack.c.l.b16 %v192
      %v290 = vunpack.c.l.b16 %v193
      %v291 = vunpack.c.l.b16 %v194
      %v292 = vunpack.c.l.b16 %v195
      %v293 = vunpack.c.l.b16 %v196
      %v294 = vunpack.c.l.b16 %v197
      %v295 = vunpack.c.l.b16 %v198
      %v296 = vunpack.c.l.b16 %v199
      %v297 = vunpack.c.l.b16 %v200
      %v298 = vunpack.c.l.b16 %v201
      %v299 = vunpack.c.l.b16 %v202
      %v300 = vunpack.c.l.b16 %v203
      %v301 = vunpack.c.l.b16 %v204
      %v302 = vunpack.c.l.b16 %v221
      %v303 = vunpack.c.l.b16 %v222
      %v304 = vpack.c.b16 %v273, %v272
      %v305 = vpack.c.b16 %v275, %v274
      %v306 = vpack.c.b16 %v277, %v276
      %v307 = vpack.c.b16 %v279, %v278
      %v308 = vpack.c.b16 %v281, %v280
      %v309 = vpack.c.b16 %v283, %v282
      %v310 = vpack.c.b16 %v285, %v284
      %v311 = vpack.c.b16 %v287, %v286
      %v312 = vpack.c.b16 %v289, %v288
      %v313 = vpack.c.b16 %v291, %v290
      %v314 = vpack.c.b16 %v293, %v292
      %v315 = vpack.c.b16 %v295, %v294
      %v316 = vpack.c.b16 %v297, %v296
      %v317 = vpack.c.b16 %v299, %v298
      %v318 = vpack.c.b16 %v301, %v300
      %v319 = vpack.c.b16 %v303, %v302
      %v352 = vunpack.c.l.b16 %v224
      %v353 = vunpack.c.l.b16 %v225
      %v354 = vunpack.c.l.b16 %v226
      %v355 = vunpack.c.l.b16 %v227
      %v356 = vunpack.c.l.b16 %v228
      %v357 = vunpack.c.l.b16 %v229
      %v358 = vunpack.c.l.b16 %v230
      %v359 = vunpack.c.l.b16 %v231
      %v360 = vunpack.c.l.b16 %v232
      %v361 = vunpack.c.l.b16 %v233
      %v362 = vunpack.c.l.b16 %v234
      %v363 = vunpack.c.l.b16 %v235
      %v364 = vunpack.c.l.b16 %v236
      %v365 = vunpack.c.l.b16 %v237
      %v366 = vunpack.c.l.b16 %v238
      %v367 = vunpack.c.l.b16 %v239
      %v368 = vpack.c.b16 %v353, %v352
      %v369 = vpack.c.b16 %v355, %v354
      %v370 = vpack.c.b16 %v357, %v356
      %v371 = vpack.c.b16 %v359, %v358
      %v372 = vpack.c.b16 %v361, %v360
      %v373 = vpack.c.b16 %v363, %v362
      %v374 = vpack.c.b16 %v365, %v364
      %v375 = vpack.c.b16 %v367, %v366
      %384 = vmatprep.subr.bf16.mxu0 0
      %385 = vmatpush1.bf16.msra.mxu0 %v368
      %386 = vmatprep.subr.bf16.mxu0 0
      %387 = vmatpush1.bf16.msra.mxu0 %v369
      %388 = vmatprep.subr.bf16.mxu0 0
      %389 = vmatpush1.bf16.msra.mxu0 %v370
      %390 = vmatprep.subr.bf16.mxu0 0
      %391 = vmatpush1.bf16.msra.mxu0 %v371
      %392 = vmatprep.subr.bf16.mxu0 0
      %393 = vmatpush1.bf16.msra.mxu0 %v372
      %394 = vmatprep.subr.bf16.mxu0 0
      %395 = vmatpush1.bf16.msra.mxu0 %v373
      %396 = vmatprep.subr.bf16.mxu0 0
      %397 = vmatpush1.bf16.msra.mxu0 %v374
      %398 = vmatprep.subr.bf16.mxu0 0
      %399 = vmatpush1.bf16.msra.mxu0 %v375
      %400 = vmatprep.subr.bf16.mxu0 0
      %401 = vmatpush1.bf16.msra.mxu0 0
      %402 = vmatprep.subr.bf16.mxu0 0
      %403 = vmatpush1.bf16.msra.mxu0 0
      %404 = vmatprep.subr.bf16.mxu0 0
      %405 = vmatpush1.bf16.msra.mxu0 0
      %406 = vmatprep.subr.bf16.mxu0 0
      %407 = vmatpush1.bf16.msra.mxu0 0
      %408 = vmatprep.subr.bf16.mxu0 0
      %409 = vmatpush1.bf16.msra.mxu0 0
      %410 = vmatprep.subr.bf16.mxu0 0
      %411 = vmatpush1.bf16.msra.mxu0 0
      %412 = vmatprep.subr.bf16.mxu0 0
      %413 = vmatpush1.bf16.msra.mxu0 0
      %414 = vmatprep.subr.bf16.mxu0 0
      %415 = vmatpush1.bf16.msra.mxu0 0
      %416 = vmatprep.mubr.bf16.mxu0 0
      %417 = vmatmul.mubr.bf16.gmra.mrb[0].mxu0 %v304
      %v418 = vpop.f32.mrb[0].mxu0
      %v419 = vadd.f32 0.0, %v418
      %v420 = vpop.f32.mrb[0].mxu0
      %v421 = vpop.f32.mrb[0].mxu0
      %v422 = vadd.f32 0.0, %v421
      %v423 = vpop.f32.mrb[0].mxu0
      %424 = vmatprep.mubr.bf16.mxu0 0
      %425 = vmatmul.mubr.bf16.gmra.mrb[0].mxu0 %v305
      %v426 = vpop.f32.mrb[0].mxu0
      %v427 = vadd.f32 0.0, %v426
      %v428 = vpop.f32.mrb[0].mxu0
      %v429 = vpop.f32.mrb[0].mxu0
      %v430 = vadd.f32 0.0, %v429
      %v431 = vpop.f32.mrb[0].mxu0
      %432 = vmatprep.mubr.bf16.mxu0 0
      %433 = vmatmul.mubr.bf16.gmra.mrb[0].mxu0 %v306
      %v434 = vpop.f32.mrb[0].mxu0
      %v435 = vadd.f32 0.0, %v434
      %v436 = vpop.f32.mrb[0].mxu0
      %v437 = vpop.f32.mrb[0].mxu0
      %v438 = vadd.f32 0.0, %v437
      %v439 = vpop.f32.mrb[0].mxu0
      %440 = vmatprep.mubr.bf16.mxu0 0
      %441 = vmatmul.mubr.bf16.gmra.mrb[0].mxu0 %v307
      %v442 = vpop.f32.mrb[0].mxu0
      %v443 = vadd.f32 0.0, %v442
      %v444 = vpop.f32.mrb[0].mxu0
      %v445 = vpop.f32.mrb[0].mxu0
      %v446 = vadd.f32 0.0, %v445
      %v447 = vpop.f32.mrb[0].mxu0
      %448 = vmatprep.mubr.bf16.mxu0 0
      %449 = vmatmul.mubr.bf16.gmra.mrb[0].mxu0 %v308
      %v450 = vpop.f32.mrb[0].mxu0
      %v451 = vadd.f32 0.0, %v450
      %v452 = vpop.f32.mrb[0].mxu0
      %v453 = vpop.f32.mrb[0].mxu0
      %v454 = vadd.f32 0.0, %v453
      %v455 = vpop.f32.mrb[0].mxu0
      %456 = vmatprep.mubr.bf16.mxu0 0
      %457 = vmatmul.mubr.bf16.gmra.mrb[0].mxu0 %v309
      %v458 = vpop.f32.mrb[0].mxu0
      %v459 = vadd.f32 0.0, %v458
      %v460 = vpop.f32.mrb[0].mxu0
      %v461 = vpop.f32.mrb[0].mxu0
      %v462 = vadd.f32 0.0, %v461
      %v463 = vpop.f32.mrb[0].mxu0
      %464 = vmatprep.mubr.bf16.mxu0 0
      %465 = vmatmul.mubr.bf16.gmra.mrb[0].mxu0 %v310
      %v466 = vpop.f32.mrb[0].mxu0
      %v467 = vadd.f32 0.0, %v466
      %v468 = vpop.f32.mrb[0].mxu0
      %v469 = vpop.f32.mrb[0].mxu0
      %v470 = vadd.f32 0.0, %v469
      %v471 = vpop.f32.mrb[0].mxu0
      %472 = vmatprep.mubr.bf16.mxu0 0
      %473 = vmatmul.mubr.bf16.gmra.mrb[0].mxu0 %v311
      %v474 = vpop.f32.mrb[0].mxu0
      %v475 = vadd.f32 0.0, %v474
      %v476 = vpop.f32.mrb[0].mxu0
      %v477 = vpop.f32.mrb[0].mxu0
      %v478 = vadd.f32 0.0, %v477
      %v479 = vpop.f32.mrb[0].mxu0
      %480 = vmatprep.mubr.bf16.mxu0 0
      %481 = vmatmul.mubr.bf16.gmra.mrb[0].mxu0 %v312
      %v482 = vpop.f32.mrb[0].mxu0
      %v483 = vadd.f32 0.0, %v482
      %v484 = vpop.f32.mrb[0].mxu0
      %v485 = vpop.f32.mrb[0].mxu0
      %v486 = vadd.f32 0.0, %v485
      %v487 = vpop.f32.mrb[0].mxu0
      %488 = vmatprep.mubr.bf16.mxu0 0
      %489 = vmatmul.mubr.bf16.gmra.mrb[0].mxu0 %v313
      %v490 = vpop.f32.mrb[0].mxu0
      %v491 = vadd.f32 0.0, %v490
      %v492 = vpop.f32.mrb[0].mxu0
      %v493 = vpop.f32.mrb[0].mxu0
      %v494 = vadd.f32 0.0, %v493
      %v495 = vpop.f32.mrb[0].mxu0
      %496 = vmatprep.mubr.bf16.mxu0 0
      %497 = vmatmul.mubr.bf16.gmra.mrb[0].mxu0 %v314
      %v498 = vpop.f32.mrb[0].mxu0
      %v499 = vadd.f32 0.0, %v498
      %v500 = vpop.f32.mrb[0].mxu0
      %v501 = vpop.f32.mrb[0].mxu0
      %v502 = vadd.f32 0.0, %v501
      %v503 = vpop.f32.mrb[0].mxu0
      %504 = vmatprep.mubr.bf16.mxu0 0
      %505 = vmatmul.mubr.bf16.gmra.mrb[0].mxu0 %v315
      %v506 = vpop.f32.mrb[0].mxu0
      %v507 = vadd.f32 0.0, %v506
      %v508 = vpop.f32.mrb[0].mxu0
      %v509 = vpop.f32.mrb[0].mxu0
      %v510 = vadd.f32 0.0, %v509
      %v511 = vpop.f32.mrb[0].mxu0
      %512 = vmatprep.mubr.bf16.mxu0 0
      %513 = vmatmul.mubr.bf16.gmra.mrb[0].mxu0 %v316
      %v514 = vpop.f32.mrb[0].mxu0
      %v515 = vadd.f32 0.0, %v514
      %v516 = vpop.f32.mrb[0].mxu0
      %v517 = vpop.f32.mrb[0].mxu0
      %v518 = vadd.f32 0.0, %v517
      %v519 = vpop.f32.mrb[0].mxu0
      %520 = vmatprep.mubr.bf16.mxu0 0
      %521 = vmatmul.mubr.bf16.gmra.mrb[0].mxu0 %v317
      %v522 = vpop.f32.mrb[0].mxu0
      %v523 = vadd.f32 0.0, %v522
      %v524 = vpop.f32.mrb[0].mxu0
      %v525 = vpop.f32.mrb[0].mxu0
      %v526 = vadd.f32 0.0, %v525
      %v527 = vpop.f32.mrb[0].mxu0
      %528 = vmatprep.mubr.bf16.mxu0 0
      %529 = vmatmul.mubr.bf16.gmra.mrb[0].mxu0 %v318
      %v530 = vpop.f32.mrb[0].mxu0
      %v531 = vadd.f32 0.0, %v530
      %v532 = vpop.f32.mrb[0].mxu0
      %v533 = vpop.f32.mrb[0].mxu0
      %v534 = vadd.f32 0.0, %v533
      %v535 = vpop.f32.mrb[0].mxu0
      %536 = vmatprep.mubr.bf16.mxu0 0
      %537 = vmatmul.mubr.bf16.gmra.mrb[0].mxu0 %v319
      %v538 = vpop.f32.mrb[0].mxu0
      %v539 = vadd.f32 0.0, %v538
      %v540 = vpop.f32.mrb[0].mxu0
      %v541 = vpop.f32.mrb[0].mxu0
      %v542 = vadd.f32 0.0, %v541
      %v543 = vpop.f32.mrb[0].mxu0
      %544 = vdwg.mxu0
      %v547 = vunpack.c.l.b16 %v173
      %v548 = vunpack.c.l.b16 %v174
      %v549 = vpack.c.b16 %v548, %v547
      %v567 = vunpack.c.l.b16 %v205
      %v568 = vunpack.c.l.b16 %v206
      %v569 = vunpack.c.l.b16 %v207
      %v570 = vunpack.c.l.b16 %v208
      %v571 = vunpack.c.l.b16 %v209
      %v572 = vunpack.c.l.b16 %v210
      %v573 = vunpack.c.l.b16 %v211
      %v574 = vunpack.c.l.b16 %v212
      %v575 = vunpack.c.l.b16 %v213
      %v576 = vunpack.c.l.b16 %v214
      %v577 = vunpack.c.l.b16 %v215
      %v578 = vunpack.c.l.b16 %v216
      %v579 = vunpack.c.l.b16 %v217
      %v580 = vunpack.c.l.b16 %v218
      %v581 = vunpack.c.l.b16 %v219
      %v582 = vunpack.c.l.b16 %v220
      %v583 = vpack.c.b16 %v568, %v567
      %v584 = vpack.c.b16 %v570, %v569
      %v585 = vpack.c.b16 %v572, %v571
      %v586 = vpack.c.b16 %v574, %v573
      %v587 = vpack.c.b16 %v576, %v575
      %v588 = vpack.c.b16 %v578, %v577
      %v589 = vpack.c.b16 %v580, %v579
      %v590 = vpack.c.b16 %v582, %v581
      %599 = vmatprep.subr.bf16.mxu0 0
      %600 = vmatpush1.bf16.msra.mxu0 %v583
      %601 = vmatprep.subr.bf16.mxu0 0
      %602 = vmatpush1.bf16.msra.mxu0 %v584
      %603 = vmatprep.subr.bf16.mxu0 0
      %604 = vmatpush1.bf16.msra.mxu0 %v585
      %605 = vmatprep.subr.bf16.mxu0 0
      %606 = vmatpush1.bf16.msra.mxu0 %v586
      %607 = vmatprep.subr.bf16.mxu0 0
      %608 = vmatpush1.bf16.msra.mxu0 %v587
      %609 = vmatprep.subr.bf16.mxu0 0
      %610 = vmatpush1.bf16.msra.mxu0 %v588
      %611 = vmatprep.subr.bf16.mxu0 0
      %612 = vmatpush1.bf16.msra.mxu0 %v589
      %613 = vmatprep.subr.bf16.mxu0 0
      %614 = vmatpush1.bf16.msra.mxu0 %v590
      %615 = vmatprep.subr.bf16.mxu0 0
      %616 = vmatpush1.bf16.msra.mxu0 0
      %617 = vmatprep.subr.bf16.mxu0 0
      %618 = vmatpush1.bf16.msra.mxu0 0
      %619 = vmatprep.subr.bf16.mxu0 0
      %620 = vmatpush1.bf16.msra.mxu0 0
      %621 = vmatprep.subr.bf16.mxu0 0
      %622 = vmatpush1.bf16.msra.mxu0 0
      %623 = vmatprep.subr.bf16.mxu0 0
      %624 = vmatpush1.bf16.msra.mxu0 0
      %625 = vmatprep.subr.bf16.mxu0 0
      %626 = vmatpush1.bf16.msra.mxu0 0
      %627 = vmatprep.subr.bf16.mxu0 0
      %628 = vmatpush1.bf16.msra.mxu0 0
      %629 = vmatprep.subr.bf16.mxu0 0
      %630 = vmatpush1.bf16.msra.mxu0 0
      %631 = vmatprep.mubr.bf16.mxu0 0
      %632 = vmatmul.mubr.bf16.gmra.mrb[0].mxu0 %v549
      %v633 = vpop.f32.mrb[0].mxu0
      %v634 = vadd.f32 %v419, %v633
      %v635 = vpop.f32.mrb[0].mxu0
      %v636 = vpop.f32.mrb[0].mxu0
      %v637 = vadd.f32 %v422, %v636
      %v638 = vpop.f32.mrb[0].mxu0
      %639 = vmatprep.mubr.bf16.mxu0 0
      %640 = vmatmul.mubr.bf16.gmra.mrb[0].mxu0 %v304
      %v641 = vpop.f32.mrb[0].mxu0
      %v642 = vadd.f32 %v427, %v641
      %v643 = vpop.f32.mrb[0].mxu0
      %v644 = vpop.f32.mrb[0].mxu0
      %v645 = vadd.f32 %v430, %v644
      %v646 = vpop.f32.mrb[0].mxu0
      %647 = vmatprep.mubr.bf16.mxu0 0
      %648 = vmatmul.mubr.bf16.gmra.mrb[0].mxu0 %v305
      %v649 = vpop.f32.mrb[0].mxu0
      %v650 = vadd.f32 %v435, %v649
      %v651 = vpop.f32.mrb[0].mxu0
      %v652 = vpop.f32.mrb[0].mxu0
      %v653 = vadd.f32 %v438, %v652
      %v654 = vpop.f32.mrb[0].mxu0
      %655 = vmatprep.mubr.bf16.mxu0 0
      %656 = vmatmul.mubr.bf16.gmra.mrb[0].mxu0 %v306
      %v657 = vpop.f32.mrb[0].mxu0
      %v658 = vadd.f32 %v443, %v657
      %v659 = vpop.f32.mrb[0].mxu0
      %v660 = vpop.f32.mrb[0].mxu0
      %v661 = vadd.f32 %v446, %v660
      %v662 = vpop.f32.mrb[0].mxu0
      %663 = vmatprep.mubr.bf16.mxu0 0
      %664 = vmatmul.mubr.bf16.gmra.mrb[0].mxu0 %v307
      %v665 = vpop.f32.mrb[0].mxu0
      %v666 = vadd.f32 %v451, %v665
      %v667 = vpop.f32.mrb[0].mxu0
      %v668 = vpop.f32.mrb[0].mxu0
      %v669 = vadd.f32 %v454, %v668
      %v670 = vpop.f32.mrb[0].mxu0
      %671 = vmatprep.mubr.bf16.mxu0 0
      %672 = vmatmul.mubr.bf16.gmra.mrb[0].mxu0 %v308
      %v673 = vpop.f32.mrb[0].mxu0
      %v674 = vadd.f32 %v459, %v673
      %v675 = vpop.f32.mrb[0].mxu0
      %v676 = vpop.f32.mrb[0].mxu0
      %v677 = vadd.f32 %v462, %v676
      %v678 = vpop.f32.mrb[0].mxu0
      %679 = vmatprep.mubr.bf16.mxu0 0
      %680 = vmatmul.mubr.bf16.gmra.mrb[0].mxu0 %v309
      %v681 = vpop.f32.mrb[0].mxu0
      %v682 = vadd.f32 %v467, %v681
      %v683 = vpop.f32.mrb[0].mxu0
      %v684 = vpop.f32.mrb[0].mxu0
      %v685 = vadd.f32 %v470, %v684
      %v686 = vpop.f32.mrb[0].mxu0
      %687 = vmatprep.mubr.bf16.mxu0 0
      %688 = vmatmul.mubr.bf16.gmra.mrb[0].mxu0 %v310
      %v689 = vpop.f32.mrb[0].mxu0
      %v690 = vadd.f32 %v475, %v689
      %v691 = vpop.f32.mrb[0].mxu0
      %v692 = vpop.f32.mrb[0].mxu0
      %v693 = vadd.f32 %v478, %v692
      %v694 = vpop.f32.mrb[0].mxu0
      %695 = vmatprep.mubr.bf16.mxu0 0
      %696 = vmatmul.mubr.bf16.gmra.mrb[0].mxu0 %v311
      %v697 = vpop.f32.mrb[0].mxu0
      %v698 = vadd.f32 %v483, %v697
      %v699 = vpop.f32.mrb[0].mxu0
      %v700 = vpop.f32.mrb[0].mxu0
      %v701 = vadd.f32 %v486, %v700
      %v702 = vpop.f32.mrb[0].mxu0
      %703 = vmatprep.mubr.bf16.mxu0 0
      %704 = vmatmul.mubr.bf16.gmra.mrb[0].mxu0 %v312
      %v705 = vpop.f32.mrb[0].mxu0
      %v706 = vadd.f32 %v491, %v705
      %v707 = vpop.f32.mrb[0].mxu0
      %v708 = vpop.f32.mrb[0].mxu0
      %v709 = vadd.f32 %v494, %v708
      %v710 = vpop.f32.mrb[0].mxu0
      %711 = vmatprep.mubr.bf16.mxu0 0
      %712 = vmatmul.mubr.bf16.gmra.mrb[0].mxu0 %v313
      %v713 = vpop.f32.mrb[0].mxu0
      %v714 = vadd.f32 %v499, %v713
      %v715 = vpop.f32.mrb[0].mxu0
      %v716 = vpop.f32.mrb[0].mxu0
      %v717 = vadd.f32 %v502, %v716
      %v718 = vpop.f32.mrb[0].mxu0
      %719 = vmatprep.mubr.bf16.mxu0 0
      %720 = vmatmul.mubr.bf16.gmra.mrb[0].mxu0 %v314
      %v721 = vpop.f32.mrb[0].mxu0
      %v722 = vadd.f32 %v507, %v721
      %v723 = vpop.f32.mrb[0].mxu0
      %v724 = vpop.f32.mrb[0].mxu0
      %v725 = vadd.f32 %v510, %v724
      %v726 = vpop.f32.mrb[0].mxu0
      %727 = vmatprep.mubr.bf16.mxu0 0
      %728 = vmatmul.mubr.bf16.gmra.mrb[0].mxu0 %v315
      %v729 = vpop.f32.mrb[0].mxu0
      %v730 = vadd.f32 %v515, %v729
      %v731 = vpop.f32.mrb[0].mxu0
      %v732 = vpop.f32.mrb[0].mxu0
      %v733 = vadd.f32 %v518, %v732
      %v734 = vpop.f32.mrb[0].mxu0
      %735 = vmatprep.mubr.bf16.mxu0 0
      %736 = vmatmul.mubr.bf16.gmra.mrb[0].mxu0 %v316
      %v737 = vpop.f32.mrb[0].mxu0
      %v738 = vadd.f32 %v523, %v737
      %v739 = vpop.f32.mrb[0].mxu0
      %v740 = vpop.f32.mrb[0].mxu0
      %v741 = vadd.f32 %v526, %v740
      %v742 = vpop.f32.mrb[0].mxu0
      %743 = vmatprep.mubr.bf16.mxu0 0
      %744 = vmatmul.mubr.bf16.gmra.mrb[0].mxu0 %v317
      %v745 = vpop.f32.mrb[0].mxu0
      %v746 = vadd.f32 %v531, %v745
      %v747 = vpop.f32.mrb[0].mxu0
      %v748 = vpop.f32.mrb[0].mxu0
      %v749 = vadd.f32 %v534, %v748
      %v750 = vpop.f32.mrb[0].mxu0
      %751 = vmatprep.mubr.bf16.mxu0 0
      %752 = vmatmul.mubr.bf16.gmra.mrb[0].mxu0 %v318
      %v753 = vpop.f32.mrb[0].mxu0
      %v754 = vadd.f32 %v539, %v753
      %v755 = vpop.f32.mrb[0].mxu0
      %v756 = vpop.f32.mrb[0].mxu0
      %v757 = vadd.f32 %v542, %v756
      %v758 = vpop.f32.mrb[0].mxu0
      %759 = vdwg.mxu0
      %v760 = vld [vmem:[%s165 + $0x10] sm:$0xf]
      %v761 = vld [vmem:[%s165 + $0x14] sm:$0xf]
      %v762 = vld [vmem:[%s165 + $0x18] sm:$0xf]
      %v763 = vld [vmem:[%s165 + $0x1c] sm:$0xf]
      %v764 = vld [vmem:[%s165 + $0x20] sm:$0xf]
      %v765 = vld [vmem:[%s165 + $0x24] sm:$0xf]
      %v766 = vld [vmem:[%s165 + $0x28] sm:$0xf]
      %v767 = vld [vmem:[%s165 + $0x2c] sm:$0xf]
      %v768 = vld [vmem:[%s165 + $0x30] sm:$0xf]
      %v769 = vld [vmem:[%s165 + $0x34] sm:$0xf]
      %v770 = vld [vmem:[%s165 + $0x38] sm:$0xf]
      %v771 = vld [vmem:[%s165 + $0x3c] sm:$0xf]
      %v772 = vld [vmem:[%s165 + $0x40] sm:$0xf]
      %v773 = vld [vmem:[%s165 + $0x44] sm:$0xf]
      %v774 = vld [vmem:[%s165 + $0x48] sm:$0xf]
      %v775 = vld [vmem:[%s165 + $0x4c] sm:$0xf]
      %v776 = vld [vmem:[%s165 + $0x50] sm:$0xf]
      %v777 = vld [vmem:[%s165 + $0x54] sm:$0xf]
      %v778 = vld [vmem:[%s165 + $0x58] sm:$0xf]
      %v779 = vld [vmem:[%s165 + $0x5c] sm:$0xf]
      %v780 = vld [vmem:[%s165 + $0x60] sm:$0xf]
      %v781 = vld [vmem:[%s165 + $0x64] sm:$0xf]
      %v782 = vld [vmem:[%s165 + $0x68] sm:$0xf]
      %v783 = vld [vmem:[%s165 + $0x6c] sm:$0xf]
      %v784 = vld [vmem:[%s165 + $0x70] sm:$0xf]
      %v785 = vld [vmem:[%s165 + $0x74] sm:$0xf]
      %v786 = vld [vmem:[%s165 + $0x78] sm:$0xf]
      %v787 = vld [vmem:[%s165 + $0x7c] sm:$0xf]
      %v788 = vld [vmem:[%s165 + $0x80] sm:$0xf]
      %v789 = vld [vmem:[%s165 + $0x84] sm:$0xf]
      %v790 = vld [vmem:[%s165 + $0x88] sm:$0xf]
      %v791 = vld [vmem:[%s165 + $0x8c] sm:$0xf]
      %s792 = scalar_lea.vmem %s1, 128
      %v793 = vld [vmem:[%s792] sm:$0xf]
      %v794 = vld [vmem:[%s792 + $0x4] sm:$0xf]
      %v795 = vld [vmem:[%s792 + $0x8] sm:$0xf]
      %v796 = vld [vmem:[%s792 + $0xc] sm:$0xf]
      %v797 = vld [vmem:[%s792 + $0x10] sm:$0xf]
      %v798 = vld [vmem:[%s792 + $0x14] sm:$0xf]
      %v799 = vld [vmem:[%s792 + $0x18] sm:$0xf]
      %v800 = vld [vmem:[%s792 + $0x1c] sm:$0xf]
      %v801 = vld [vmem:[%s792 + $0x20] sm:$0xf]
      %v802 = vld [vmem:[%s792 + $0x24] sm:$0xf]
      %v803 = vld [vmem:[%s792 + $0x28] sm:$0xf]
      %v804 = vld [vmem:[%s792 + $0x2c] sm:$0xf]
      %v805 = vld [vmem:[%s792 + $0x30] sm:$0xf]
      %v806 = vld [vmem:[%s792 + $0x34] sm:$0xf]
      %v807 = vld [vmem:[%s792 + $0x38] sm:$0xf]
      %v808 = vld [vmem:[%s792 + $0x3c] sm:$0xf]
      %v841 = vunpack.c.l.b16 %v760
      %v842 = vunpack.c.l.b16 %v761
      %v843 = vunpack.c.l.b16 %v762
      %v844 = vunpack.c.l.b16 %v763
      %v845 = vunpack.c.l.b16 %v764
      %v846 = vunpack.c.l.b16 %v765
      %v847 = vunpack.c.l.b16 %v766
      %v848 = vunpack.c.l.b16 %v767
      %v849 = vunpack.c.l.b16 %v768
      %v850 = vunpack.c.l.b16 %v769
      %v851 = vunpack.c.l.b16 %v770
      %v852 = vunpack.c.l.b16 %v771
      %v853 = vunpack.c.l.b16 %v772
      %v854 = vunpack.c.l.b16 %v773
      %v855 = vunpack.c.l.b16 %v774
      %v856 = vunpack.c.l.b16 %v775
      %v857 = vunpack.c.l.b16 %v776
      %v858 = vunpack.c.l.b16 %v777
      %v859 = vunpack.c.l.b16 %v778
      %v860 = vunpack.c.l.b16 %v779
      %v861 = vunpack.c.l.b16 %v780
      %v862 = vunpack.c.l.b16 %v781
      %v863 = vunpack.c.l.b16 %v782
      %v864 = vunpack.c.l.b16 %v783
      %v865 = vunpack.c.l.b16 %v784
      %v866 = vunpack.c.l.b16 %v785
      %v867 = vunpack.c.l.b16 %v786
      %v868 = vunpack.c.l.b16 %v787
      %v869 = vunpack.c.l.b16 %v788
      %v870 = vunpack.c.l.b16 %v789
      %v871 = vunpack.c.l.b16 %v790
      %v872 = vunpack.c.l.b16 %v791
      %v873 = vpack.c.b16 %v842, %v841
      %v874 = vpack.c.b16 %v844, %v843
      %v875 = vpack.c.b16 %v846, %v845
      %v876 = vpack.c.b16 %v848, %v847
      %v877 = vpack.c.b16 %v850, %v849
      %v878 = vpack.c.b16 %v852, %v851
      %v879 = vpack.c.b16 %v854, %v853
      %v880 = vpack.c.b16 %v856, %v855
      %v881 = vpack.c.b16 %v858, %v857
      %v882 = vpack.c.b16 %v860, %v859
      %v883 = vpack.c.b16 %v862, %v861
      %v884 = vpack.c.b16 %v864, %v863
      %v885 = vpack.c.b16 %v866, %v865
      %v886 = vpack.c.b16 %v868, %v867
      %v887 = vpack.c.b16 %v870, %v869
      %v888 = vpack.c.b16 %v872, %v871
      %v921 = vunpack.c.l.b16 %v793
      %v922 = vunpack.c.l.b16 %v794
      %v923 = vunpack.c.l.b16 %v795
      %v924 = vunpack.c.l.b16 %v796
      %v925 = vunpack.c.l.b16 %v797
      %v926 = vunpack.c.l.b16 %v798
      %v927 = vunpack.c.l.b16 %v799
      %v928 = vunpack.c.l.b16 %v800
      %v929 = vunpack.c.l.b16 %v801
      %v930 = vunpack.c.l.b16 %v802
      %v931 = vunpack.c.l.b16 %v803
      %v932 = vunpack.c.l.b16 %v804
      %v933 = vunpack.c.l.b16 %v805
      %v934 = vunpack.c.l.b16 %v806
      %v935 = vunpack.c.l.b16 %v807
      %v936 = vunpack.c.l.b16 %v808
      %v937 = vpack.c.b16 %v922, %v921
      %v938 = vpack.c.b16 %v924, %v923
      %v939 = vpack.c.b16 %v926, %v925
      %v940 = vpack.c.b16 %v928, %v927
      %v941 = vpack.c.b16 %v930, %v929
      %v942 = vpack.c.b16 %v932, %v931
      %v943 = vpack.c.b16 %v934, %v933
      %v944 = vpack.c.b16 %v936, %v935
      %953 = vmatprep.subr.bf16.mxu0 0
      %954 = vmatpush1.bf16.msra.mxu0 %v937
      %955 = vmatprep.subr.bf16.mxu0 0
      %956 = vmatpush1.bf16.msra.mxu0 %v938
      %957 = vmatprep.subr.bf16.mxu0 0
      %958 = vmatpush1.bf16.msra.mxu0 %v939
      %959 = vmatprep.subr.bf16.mxu0 0
      %960 = vmatpush1.bf16.msra.mxu0 %v940
      %961 = vmatprep.subr.bf16.mxu0 0
      %962 = vmatpush1.bf16.msra.mxu0 %v941
      %963 = vmatprep.subr.bf16.mxu0 0
      %964 = vmatpush1.bf16.msra.mxu0 %v942
      %965 = vmatprep.subr.bf16.mxu0 0
      %966 = vmatpush1.bf16.msra.mxu0 %v943
      %967 = vmatprep.subr.bf16.mxu0 0
      %968 = vmatpush1.bf16.msra.mxu0 %v944
      %969 = vmatprep.subr.bf16.mxu0 0
      %970 = vmatpush1.bf16.msra.mxu0 0
      %971 = vmatprep.subr.bf16.mxu0 0
      %972 = vmatpush1.bf16.msra.mxu0 0
      %973 = vmatprep.subr.bf16.mxu0 0
      %974 = vmatpush1.bf16.msra.mxu0 0
      %975 = vmatprep.subr.bf16.mxu0 0
      %976 = vmatpush1.bf16.msra.mxu0 0
      %977 = vmatprep.subr.bf16.mxu0 0
      %978 = vmatpush1.bf16.msra.mxu0 0
      %979 = vmatprep.subr.bf16.mxu0 0
      %980 = vmatpush1.bf16.msra.mxu0 0
      %981 = vmatprep.subr.bf16.mxu0 0
      %982 = vmatpush1.bf16.msra.mxu0 0
      %983 = vmatprep.subr.bf16.mxu0 0
      %984 = vmatpush1.bf16.msra.mxu0 0
      %985 = vmatprep.mubr.bf16.mxu0 0
      %986 = vmatmul.mubr.bf16.gmra.mrb[0].mxu0 %v873
      %v987 = vpop.f32.mrb[0].mxu0
      %v988 = vadd.f32 0.0, %v987
      %v989 = vpop.f32.mrb[0].mxu0
      %v990 = vpop.f32.mrb[0].mxu0
      %v991 = vadd.f32 0.0, %v990
      %v992 = vpop.f32.mrb[0].mxu0
      %993 = vmatprep.mubr.bf16.mxu0 0
      %994 = vmatmul.mubr.bf16.gmra.mrb[0].mxu0 %v874
      %v995 = vpop.f32.mrb[0].mxu0
      %v996 = vadd.f32 0.0, %v995
      %v997 = vpop.f32.mrb[0].mxu0
      %v998 = vpop.f32.mrb[0].mxu0
      %v999 = vadd.f32 0.0, %v998
      %v1000 = vpop.f32.mrb[0].mxu0
      %1001 = vmatprep.mubr.bf16.mxu0 0
      %1002 = vmatmul.mubr.bf16.gmra.mrb[0].mxu0 %v875
      %v1003 = vpop.f32.mrb[0].mxu0
      %v1004 = vadd.f32 0.0, %v1003
      %v1005 = vpop.f32.mrb[0].mxu0
      %v1006 = vpop.f32.mrb[0].mxu0
      %v1007 = vadd.f32 0.0, %v1006
      %v1008 = vpop.f32.mrb[0].mxu0
      %1009 = vmatprep.mubr.bf16.mxu0 0
      %1010 = vmatmul.mubr.bf16.gmra.mrb[0].mxu0 %v876
      %v1011 = vpop.f32.mrb[0].mxu0
      %v1012 = vadd.f32 0.0, %v1011
      %v1013 = vpop.f32.mrb[0].mxu0
      %v1014 = vpop.f32.mrb[0].mxu0
      %v1015 = vadd.f32 0.0, %v1014
      %v1016 = vpop.f32.mrb[0].mxu0
      %1017 = vmatprep.mubr.bf16.mxu0 0
      %1018 = vmatmul.mubr.bf16.gmra.mrb[0].mxu0 %v877
      %v1019 = vpop.f32.mrb[0].mxu0
      %v1020 = vadd.f32 0.0, %v1019
      %v1021 = vpop.f32.mrb[0].mxu0
      %v1022 = vpop.f32.mrb[0].mxu0
      %v1023 = vadd.f32 0.0, %v1022
      %v1024 = vpop.f32.mrb[0].mxu0
      %1025 = vmatprep.mubr.bf16.mxu0 0
      %1026 = vmatmul.mubr.bf16.gmra.mrb[0].mxu0 %v878
      %v1027 = vpop.f32.mrb[0].mxu0
      %v1028 = vadd.f32 0.0, %v1027
      %v1029 = vpop.f32.mrb[0].mxu0
      %v1030 = vpop.f32.mrb[0].mxu0
      %v1031 = vadd.f32 0.0, %v1030
      %v1032 = vpop.f32.mrb[0].mxu0
      %1033 = vmatprep.mubr.bf16.mxu0 0
      %1034 = vmatmul.mubr.bf16.gmra.mrb[0].mxu0 %v879
      %v1035 = vpop.f32.mrb[0].mxu0
      %v1036 = vadd.f32 0.0, %v1035
      %v1037 = vpop.f32.mrb[0].mxu0
      %v1038 = vpop.f32.mrb[0].mxu0
      %v1039 = vadd.f32 0.0, %v1038
      %v1040 = vpop.f32.mrb[0].mxu0
      %1041 = vmatprep.mubr.bf16.mxu0 0
      %1042 = vmatmul.mubr.bf16.gmra.mrb[0].mxu0 %v880
      %v1043 = vpop.f32.mrb[0].mxu0
      %v1044 = vadd.f32 0.0, %v1043
      %v1045 = vpop.f32.mrb[0].mxu0
      %v1046 = vpop.f32.mrb[0].mxu0
      %v1047 = vadd.f32 0.0, %v1046
      %v1048 = vpop.f32.mrb[0].mxu0
      %1049 = vmatprep.mubr.bf16.mxu0 0
      %1050 = vmatmul.mubr.bf16.gmra.mrb[0].mxu0 %v881
      %v1051 = vpop.f32.mrb[0].mxu0
      %v1052 = vadd.f32 0.0, %v1051
      %v1053 = vpop.f32.mrb[0].mxu0
      %v1054 = vpop.f32.mrb[0].mxu0
      %v1055 = vadd.f32 0.0, %v1054
      %v1056 = vpop.f32.mrb[0].mxu0
      %1057 = vmatprep.mubr.bf16.mxu0 0
      %1058 = vmatmul.mubr.bf16.gmra.mrb[0].mxu0 %v882
      %v1059 = vpop.f32.mrb[0].mxu0
      %v1060 = vadd.f32 0.0, %v1059
      %v1061 = vpop.f32.mrb[0].mxu0
      %v1062 = vpop.f32.mrb[0].mxu0
      %v1063 = vadd.f32 0.0, %v1062
      %v1064 = vpop.f32.mrb[0].mxu0
      %1065 = vmatprep.mubr.bf16.mxu0 0
      %1066 = vmatmul.mubr.bf16.gmra.mrb[0].mxu0 %v883
      %v1067 = vpop.f32.mrb[0].mxu0
      %v1068 = vadd.f32 0.0, %v1067
      %v1069 = vpop.f32.mrb[0].mxu0
      %v1070 = vpop.f32.mrb[0].mxu0
      %v1071 = vadd.f32 0.0, %v1070
      %v1072 = vpop.f32.mrb[0].mxu0
      %1073 = vmatprep.mubr.bf16.mxu0 0
      %1074 = vmatmul.mubr.bf16.gmra.mrb[0].mxu0 %v884
      %v1075 = vpop.f32.mrb[0].mxu0
      %v1076 = vadd.f32 0.0, %v1075
      %v1077 = vpop.f32.mrb[0].mxu0
      %v1078 = vpop.f32.mrb[0].mxu0
      %v1079 = vadd.f32 0.0, %v1078
      %v1080 = vpop.f32.mrb[0].mxu0
      %1081 = vmatprep.mubr.bf16.mxu0 0
      %1082 = vmatmul.mubr.bf16.gmra.mrb[0].mxu0 %v885
      %v1083 = vpop.f32.mrb[0].mxu0
      %v1084 = vadd.f32 0.0, %v1083
      %v1085 = vpop.f32.mrb[0].mxu0
      %v1086 = vpop.f32.mrb[0].mxu0
      %v1087 = vadd.f32 0.0, %v1086
      %v1088 = vpop.f32.mrb[0].mxu0
      %1089 = vmatprep.mubr.bf16.mxu0 0
      %1090 = vmatmul.mubr.bf16.gmra.mrb[0].mxu0 %v886
      %v1091 = vpop.f32.mrb[0].mxu0
      %v1092 = vadd.f32 0.0, %v1091
      %v1093 = vpop.f32.mrb[0].mxu0
      %v1094 = vpop.f32.mrb[0].mxu0
      %v1095 = vadd.f32 0.0, %v1094
      %v1096 = vpop.f32.mrb[0].mxu0
      %1097 = vmatprep.mubr.bf16.mxu0 0
      %1098 = vmatmul.mubr.bf16.gmra.mrb[0].mxu0 %v887
      %v1099 = vpop.f32.mrb[0].mxu0
      %v1100 = vadd.f32 0.0, %v1099
      %v1101 = vpop.f32.mrb[0].mxu0
      %v1102 = vpop.f32.mrb[0].mxu0
      %v1103 = vadd.f32 0.0, %v1102
      %v1104 = vpop.f32.mrb[0].mxu0
      %1105 = vmatprep.mubr.bf16.mxu0 0
      %1106 = vmatmul.mubr.bf16.gmra.mrb[0].mxu0 %v888
      %v1107 = vpop.f32.mrb[0].mxu0
      %v1108 = vadd.f32 0.0, %v1107
      %v1109 = vpop.f32.mrb[0].mxu0
      %v1110 = vpop.f32.mrb[0].mxu0
      %v1111 = vadd.f32 0.0, %v1110
      %v1112 = vpop.f32.mrb[0].mxu0
      %1113 = vdwg.mxu0
      %v1114 = vadd.f32 %v634, %v988
      %v1115 = vadd.f32 %v637, %v991
      %v1116 = vadd.f32 %v642, %v996
      %v1117 = vadd.f32 %v645, %v999
      %v1118 = vadd.f32 %v650, %v1004
      %v1119 = vadd.f32 %v653, %v1007
      %v1120 = vadd.f32 %v658, %v1012
      %v1121 = vadd.f32 %v661, %v1015
      %v1122 = vadd.f32 %v666, %v1020
      %v1123 = vadd.f32 %v669, %v1023
      %v1124 = vadd.f32 %v674, %v1028
      %v1125 = vadd.f32 %v677, %v1031
      %v1126 = vadd.f32 %v682, %v1036
      %v1127 = vadd.f32 %v685, %v1039
      %v1128 = vadd.f32 %v690, %v1044
      %v1129 = vadd.f32 %v693, %v1047
      %v1130 = vadd.f32 %v698, %v1052
      %v1131 = vadd.f32 %v701, %v1055
      %v1132 = vadd.f32 %v706, %v1060
      %v1133 = vadd.f32 %v709, %v1063
      %v1134 = vadd.f32 %v714, %v1068
      %v1135 = vadd.f32 %v717, %v1071
      %v1136 = vadd.f32 %v722, %v1076
      %v1137 = vadd.f32 %v725, %v1079
      %v1138 = vadd.f32 %v730, %v1084
      %v1139 = vadd.f32 %v733, %v1087
      %v1140 = vadd.f32 %v738, %v1092
      %v1141 = vadd.f32 %v741, %v1095
      %v1142 = vadd.f32 %v746, %v1100
      %v1143 = vadd.f32 %v749, %v1103
      %v1144 = vadd.f32 %v754, %v1108
      %v1145 = vadd.f32 %v757, %v1111
      %v1147 = vlaneseq
      %v1148 = vshrl.u32 %v1147, 7
      %v1149 = vsub.s32 0, %v1148
      %v1150 = vrot.slane %v172, %v1149
      %v1152 = vadd.f32 %v1114, %v1150
      %v1153 = vadd.f32 %v1115, %v1150
      %v1154 = vadd.f32 %v1116, %v1150
      %v1155 = vadd.f32 %v1117, %v1150
      %v1156 = vadd.f32 %v1118, %v1150
      %v1157 = vadd.f32 %v1119, %v1150
      %v1158 = vadd.f32 %v1120, %v1150
      %v1159 = vadd.f32 %v1121, %v1150
      %v1160 = vadd.f32 %v1122, %v1150
      %v1161 = vadd.f32 %v1123, %v1150
      %v1162 = vadd.f32 %v1124, %v1150
      %v1163 = vadd.f32 %v1125, %v1150
      %v1164 = vadd.f32 %v1126, %v1150
      %v1165 = vadd.f32 %v1127, %v1150
      %v1166 = vadd.f32 %v1128, %v1150
      %v1167 = vadd.f32 %v1129, %v1150
      %v1168 = vadd.f32 %v1130, %v1150
      %v1169 = vadd.f32 %v1131, %v1150
      %v1170 = vadd.f32 %v1132, %v1150
      %v1171 = vadd.f32 %v1133, %v1150
      %v1172 = vadd.f32 %v1134, %v1150
      %v1173 = vadd.f32 %v1135, %v1150
      %v1174 = vadd.f32 %v1136, %v1150
      %v1175 = vadd.f32 %v1137, %v1150
      %v1176 = vadd.f32 %v1138, %v1150
      %v1177 = vadd.f32 %v1139, %v1150
      %v1178 = vadd.f32 %v1140, %v1150
      %v1179 = vadd.f32 %v1141, %v1150
      %v1180 = vadd.f32 %v1142, %v1150
      %v1181 = vadd.f32 %v1143, %v1150
      %v1182 = vadd.f32 %v1144, %v1150
      %v1183 = vadd.f32 %v1145, %v1150
      %v1184 = vmax.f32 %v1152, 0.0
      %v1185 = vmax.f32 %v1153, 0.0
      %v1186 = vmax.f32 %v1154, 0.0
      %v1187 = vmax.f32 %v1155, 0.0
      %v1188 = vmax.f32 %v1156, 0.0
      %v1189 = vmax.f32 %v1157, 0.0
      %v1190 = vmax.f32 %v1158, 0.0
      %v1191 = vmax.f32 %v1159, 0.0
      %v1192 = vmax.f32 %v1160, 0.0
      %v1193 = vmax.f32 %v1161, 0.0
      %v1194 = vmax.f32 %v1162, 0.0
      %v1195 = vmax.f32 %v1163, 0.0
      %v1196 = vmax.f32 %v1164, 0.0
      %v1197 = vmax.f32 %v1165, 0.0
      %v1198 = vmax.f32 %v1166, 0.0
      %v1199 = vmax.f32 %v1167, 0.0
      %v1200 = vmax.f32 %v1168, 0.0
      %v1201 = vmax.f32 %v1169, 0.0
      %v1202 = vmax.f32 %v1170, 0.0
      %v1203 = vmax.f32 %v1171, 0.0
      %v1204 = vmax.f32 %v1172, 0.0
      %v1205 = vmax.f32 %v1173, 0.0
      %v1206 = vmax.f32 %v1174, 0.0
      %v1207 = vmax.f32 %v1175, 0.0
      %v1208 = vmax.f32 %v1176, 0.0
      %v1209 = vmax.f32 %v1177, 0.0
      %v1210 = vmax.f32 %v1178, 0.0
      %v1211 = vmax.f32 %v1179, 0.0
      %v1212 = vmax.f32 %v1180, 0.0
      %v1213 = vmax.f32 %v1181, 0.0
      %v1214 = vmax.f32 %v1182, 0.0
      %v1215 = vmax.f32 %v1183, 0.0
      %v1216 = vmax.f32 %v1184, %v1186
      %v1217 = vmax.f32 %v1185, %v1187
      %v1218 = vmax.f32 %v1188, %v1190
      %v1219 = vmax.f32 %v1189, %v1191
      %v1220 = vmax.f32 %v1192, %v1194
      %v1221 = vmax.f32 %v1193, %v1195
      %v1222 = vmax.f32 %v1196, %v1198
      %v1223 = vmax.f32 %v1197, %v1199
      %v1224 = vmax.f32 %v1200, %v1202
      %v1225 = vmax.f32 %v1201, %v1203
      %v1226 = vmax.f32 %v1204, %v1206
      %v1227 = vmax.f32 %v1205, %v1207
      %v1228 = vmax.f32 %v1208, %v1210
      %v1229 = vmax.f32 %v1209, %v1211
      %v1230 = vmax.f32 %v1212, %v1214
      %v1231 = vmax.f32 %v1213, %v1215
      %1232 = vst [vmem:[#allocation2] sm:$0xff] %v1216
      %1233 = vst [vmem:[#allocation2 + $0x8] sm:$0xff] %v1217
      %1234 = vst [vmem:[#allocation2 + $0x10] sm:$0xff] %v1218
      %1235 = vst [vmem:[#allocation2 + $0x18] sm:$0xff] %v1219
      %1236 = vst [vmem:[#allocation2 + $0x20] sm:$0xff] %v1220
      %1237 = vst [vmem:[#allocation2 + $0x28] sm:$0xff] %v1221
      %1238 = vst [vmem:[#allocation2 + $0x30] sm:$0xff] %v1222
      %1239 = vst [vmem:[#allocation2 + $0x38] sm:$0xff] %v1223
      %1240 = vst [vmem:[#allocation2 + $0x40] sm:$0xff] %v1224
      %1241 = vst [vmem:[#allocation2 + $0x48] sm:$0xff] %v1225
      %1242 = vst [vmem:[#allocation2 + $0x50] sm:$0xff] %v1226
      %1243 = vst [vmem:[#allocation2 + $0x58] sm:$0xff] %v1227
      %1244 = vst [vmem:[#allocation2 + $0x60] sm:$0xff] %v1228
      %1245 = vst [vmem:[#allocation2 + $0x68] sm:$0xff] %v1229
      %1246 = vst [vmem:[#allocation2 + $0x70] sm:$0xff] %v1230
      %1247 = vst [vmem:[#allocation2 + $0x78] sm:$0xff] %v1231
      %v1248 = vld [vmem:[#allocation2] ss:$2 sm:$0xff]
      %s1249 = scalar_lea.vmem [#allocation2], 16
      %v1250 = vld [vmem:[%s1249] ss:$2 sm:$0xff]
      %s1251 = scalar_lea.vmem [#allocation2], 32
      %v1252 = vld [vmem:[%s1251] ss:$2 sm:$0xff]
      %s1253 = scalar_lea.vmem [#allocation2], 48
      %v1254 = vld [vmem:[%s1253] ss:$2 sm:$0xff]
      %s1255 = scalar_lea.vmem [#allocation2], 64
      %v1256 = vld [vmem:[%s1255] ss:$2 sm:$0xff]
      %s1257 = scalar_lea.vmem [#allocation2], 80
      %v1258 = vld [vmem:[%s1257] ss:$2 sm:$0xff]
      %s1259 = scalar_lea.vmem [#allocation2], 96
      %v1260 = vld [vmem:[%s1259] ss:$2 sm:$0xff]
      %s1261 = scalar_lea.vmem [#allocation2], 112
      %v1262 = vld [vmem:[%s1261] ss:$2 sm:$0xff]
      %s1263 = scalar_lea.vmem [#allocation2], 1
      %v1264 = vld [vmem:[%s1263] ss:$2 sm:$0xff]
      %s1265 = scalar_lea.vmem [#allocation2], 17
      %v1266 = vld [vmem:[%s1265] ss:$2 sm:$0xff]
      %s1267 = scalar_lea.vmem [#allocation2], 33
      %v1268 = vld [vmem:[%s1267] ss:$2 sm:$0xff]
      %s1269 = scalar_lea.vmem [#allocation2], 49
      %v1270 = vld [vmem:[%s1269] ss:$2 sm:$0xff]
      %s1271 = scalar_lea.vmem [#allocation2], 65
      %v1272 = vld [vmem:[%s1271] ss:$2 sm:$0xff]
      %s1273 = scalar_lea.vmem [#allocation2], 81
      %v1274 = vld [vmem:[%s1273] ss:$2 sm:$0xff]
      %s1275 = scalar_lea.vmem [#allocation2], 97
      %v1276 = vld [vmem:[%s1275] ss:$2 sm:$0xff]
      %s1277 = scalar_lea.vmem [#allocation2], 113
      %v1278 = vld [vmem:[%s1277] ss:$2 sm:$0xff]
      %v1279 = vmax.f32 %v1248, %v1264
      %v1280 = vmax.f32 %v1250, %v1266
      %v1281 = vmax.f32 %v1252, %v1268
      %v1282 = vmax.f32 %v1254, %v1270
      %v1283 = vmax.f32 %v1256, %v1272
      %v1284 = vmax.f32 %v1258, %v1274
      %v1285 = vmax.f32 %v1260, %v1276
      %v1286 = vmax.f32 %v1262, %v1278
      %v1287 = vpack.c.bf16 %v1279, %v1279
      %v1288 = vpack.c.bf16 %v1280, %v1280
      %v1289 = vpack.c.bf16 %v1281, %v1281
      %v1290 = vpack.c.bf16 %v1282, %v1282
      %v1291 = vpack.c.bf16 %v1283, %v1283
      %v1292 = vpack.c.bf16 %v1284, %v1284
      %v1293 = vpack.c.bf16 %v1285, %v1285
      %v1294 = vpack.c.bf16 %v1286, %v1286
      %1295 = vst [vmem:[%s170] sm:$0xf] %v1287
      %1296 = vst [vmem:[%s170 + $0x4] sm:$0xf] %v1288
      %1297 = vst [vmem:[%s170 + $0x8] sm:$0xf] %v1289
      %1298 = vst [vmem:[%s170 + $0xc] sm:$0xf] %v1290
      %1299 = vst [vmem:[%s170 + $0x10] sm:$0xf] %v1291
      %1300 = vst [vmem:[%s170 + $0x14] sm:$0xf] %v1292
      %1301 = vst [vmem:[%s170 + $0x18] sm:$0xf] %v1293
      %1302 = vst [vmem:[%s170 + $0x1c] sm:$0xf] %v1294
      %p1303 = scmp.lt.s32.totalorder %s14, 1
      %s1304 = scalar_select %p1303, %s14, 1
      %s1305 = smul.addr %s1304, 8
      %s1306 = smul.addr %s1305, 4
      %s1307 = scalar_lea.vmem %s3, %s1306
      // Predicated region
      $region33: #{vgg_forward.14} parent=31 // pred_check
        %p1308 = pneg %p100
      $region34: #{vgg_forward.14} parent=31 // pred_check_branch
        %1310 = sbr.rel (%p1308) target = $region36
      $region35: #{vgg_forward.14} parent=31 // pred_region
        _
      $region36: #{vgg_forward.14} parent=31 // pred_fallthru
        _
    $region32: #{vgg_forward.14} parent=5 // pred_fallthru
      _
    %p1311 = scmp.le.s32.totalorder 2, %s9
    // Predicated region
    $region37: #{vgg_forward.14} parent=5 // pred_check
      %p1312 = pneg %p1311
    $region38: #{vgg_forward.14} parent=5 // pred_check_branch
      %1314 = sbr.rel (%p1312) target = $region40
    $region39: #{vgg_forward.14} parent=5 // pred_region
      %s1315 = ssub.s32 %s9, 2
      // Predicated region
      $region41: #{vgg_forward.14} parent=39 // pred_check
        %p1316 = pneg %p106
      $region42: #{vgg_forward.14} parent=39 // pred_check_branch
        %1318 = sbr.rel (%p1316) target = $region44
      $region43: #{vgg_forward.14} parent=39 // pred_region
        %p1319 = scmp.lt.s32.totalorder %s15, 1
        %s1320 = scalar_select %p1319, %s15, 1
        %s1321 = smul.addr %s1320, 8
        %s1322 = smul.addr %s1321, 4
        %s1323 = scalar_lea.vmem %s3, %s1322
      $region44: #{vgg_forward.14} parent=39 // pred_fallthru
        _
    $region40: #{vgg_forward.14} parent=5 // pred_fallthru
      _
  $region6: #{vgg_forward.14} parent=0 // loop_footer
    %s13 = sadd.s32 1, %s9
  $region7: #{vgg_forward.14} parent=0 // loop_footer_branch
    %8 = sbr.rel target = $region3
  $region8: #{vgg_forward.14} parent=0 // loop_exit
    _

// kernel: vgg_forward.15
$region0: #{vgg_forward.15}
  #allocation0 [shape = 'u32[]', space=smem, size = 0x4, offset = 0x4, fixed_abs, tag = 'smem constant byte address 0x4 - core index']
  #allocation1 [shape = 'u32[144,128]{1,0:T(1,128)}', space=vmem, size = 0x12000, scoped, tag = 'internal scratch']
  #allocation2 [shape = 'f32[4,8,128]{2,1,0:T(8,128)}', space=vmem, size = 0x4000, scoped, tag = 'scratch operand']
  %s0 = inlined_call_operand.vmem [shape: bf16[2,80,128], index: 0, kind: input, shape index: {}]
  %s1 = inlined_call_operand.vmem [shape: bf16[3,128,128], index: 1, kind: input, shape index: {}]
  %s2 = inlined_call_operand.vmem [shape: f32[1,128], index: 2, kind: input, shape index: {}]
  %s3 = inlined_call_operand.vmem [shape: bf16[2,64,128], index: 3, kind: output, shape index: {}]
  %s4 = sld [smem:[#allocation0]]
  $region45: #{vgg_forward.15} parent=0
    _
  %s6 = ssub.s32 1, %s4
  %s7 = scalar_select 0, %s6, %s4
  loop: start=0, step=1, limit=4
  $region2: #{vgg_forward.15} parent=0 // loop_pre_header
    _
  $region3: #{vgg_forward.15} parent=0 // loop_header
    %s9 = sphi 0, %s13
    %p10 = scmp.ge.s32.totalorder %s9, 4
    %s19 = sphi 0, %s21
    %s22 = sphi 0, %s19
    %s23 = sphi 0, %s22
    %s39 = sphi 0, %s23
    %s43 = sphi 0, %s43
    %s45 = sphi 0, %s43
    %s46 = sphi 0, %s45
    %s60 = sphi 0, %s46
    %s64 = sphi 0, %s64
    %s66 = sphi 0, %s64
    %s67 = sphi 0, %s66
    %s81 = sphi 0, %s67
    %s87 = sphi 0, %s89
    %s90 = sphi 0, %s87
    %s91 = sphi 0, %s90
    %s107 = sphi 0, %s91
  $region4: #{vgg_forward.15} parent=0 // loop_header_branch
    %12 = sbr.rel (%p10) target = $region8
  $region5: #{vgg_forward.15} parent=0 // loop_body
    %s14 = ssub.s32 %s9, 1
    %s15 = ssub.s32 %s9, 2
    %s16 = sadd.s32 %s9, 1
    %s17 = ssub.s32 %s9, %s16
    %p18 = scmp.eq.s32.totalorder %s17, 0
    %s20 = sadd.s32 %s19, 1
    %s21 = scalar_select %p18, %s19, %s20
    %p24 = pneg %p18
    %p25 = scmp.eq.s32.totalorder %s9, 1
    %p26 = por %p24, %p25
    %p27 = scmp.ne.s32.totalorder %s19, %s22
    %p28 = scmp.eq.s32.totalorder %s9, 0
    %p29 = por %p27, %p28
    %p30 = scmp.ne.s32.totalorder %s19, %s22
    %p31 = scmp.eq.s32.totalorder %s14, 1
    %p32 = por %p30, %p31
    %p33 = scmp.ne.s32.totalorder %s22, %s23
    %p34 = scmp.eq.s32.totalorder %s14, 0
    %p35 = por %p33, %p34
    %p36 = scmp.ne.s32.totalorder %s22, %s23
    %p37 = scmp.eq.s32.totalorder %s15, 1
    %p38 = por %p36, %p37
    %p40 = scmp.ne.s32.totalorder %s23, %s39
    %p41 = scmp.eq.s32.totalorder %s15, 0
    %p42 = por %p40, %p41
    %s44 = sadd.s32 %s43, 1
    %p47 = scmp.eq.s32.totalorder %s9, 1
    %p48 = scmp.ne.s32.totalorder %s43, %s45
    %p49 = scmp.eq.s32.totalorder %s9, 0
    %p50 = por %p48, %p49
    %p51 = scmp.ne.s32.totalorder %s43, %s45
    %p52 = scmp.eq.s32.totalorder %s14, 1
    %p53 = por %p51, %p52
    %p54 = scmp.ne.s32.totalorder %s45, %s46
    %p55 = scmp.eq.s32.totalorder %s14, 0
    %p56 = por %p54, %p55
    %p57 = scmp.ne.s32.totalorder %s45, %s46
    %p58 = scmp.eq.s32.totalorder %s15, 1
    %p59 = por %p57, %p58
    %p61 = scmp.ne.s32.totalorder %s46, %s60
    %p62 = scmp.eq.s32.totalorder %s15, 0
    %p63 = por %p61, %p62
    %s65 = sadd.s32 %s64, 1
    %p68 = scmp.eq.s32.totalorder %s9, 1
    %p69 = scmp.ne.s32.totalorder %s64, %s66
    %p70 = scmp.eq.s32.totalorder %s9, 0
    %p71 = por %p69, %p70
    %p72 = scmp.ne.s32.totalorder %s64, %s66
    %p73 = scmp.eq.s32.totalorder %s14, 1
    %p74 = por %p72, %p73
    %p75 = scmp.ne.s32.totalorder %s66, %s67
    %p76 = scmp.eq.s32.totalorder %s14, 0
    %p77 = por %p75, %p76
    %p78 = scmp.ne.s32.totalorder %s66, %s67
    %p79 = scmp.eq.s32.totalorder %s15, 1
    %p80 = por %p78, %p79
    %p82 = scmp.ne.s32.totalorder %s67, %s81
    %p83 = scmp.eq.s32.totalorder %s15, 0
    %p84 = por %p82, %p83
    %s85 = ssub.s32 %s9, %s16
    %p86 = scmp.eq.s32.totalorder %s85, 0
    %s88 = sadd.s32 %s87, 1
    %s89 = scalar_select %p86, %s87, %s88
    %p92 = pneg %p86
    %p93 = scmp.eq.s32.totalorder %s9, 1
    %p94 = por %p92, %p93
    %p95 = scmp.ne.s32.totalorder %s87, %s90
    %p96 = scmp.eq.s32.totalorder %s9, 0
    %p97 = por %p95, %p96
    %p98 = scmp.ne.s32.totalorder %s87, %s90
    %p99 = scmp.eq.s32.totalorder %s14, 1
    %p100 = por %p98, %p99
    %p101 = scmp.ne.s32.totalorder %s90, %s91
    %p102 = scmp.eq.s32.totalorder %s14, 0
    %p103 = por %p101, %p102
    %p104 = scmp.ne.s32.totalorder %s90, %s91
    %p105 = scmp.eq.s32.totalorder %s15, 1
    %p106 = por %p104, %p105
    %p108 = scmp.ne.s32.totalorder %s91, %s107
    %p109 = scmp.eq.s32.totalorder %s15, 0
    %p110 = por %p108, %p109
    %p111 = scmp.le.s32.totalorder 1, %s9
    %p112 = scmp.lt.s32.totalorder %s9, 3
    %p113 = pnand %p111, %p112
    %p114 = pneg %p113
    // Predicated region
    $region9: #{vgg_forward.15} parent=5 // pred_check
      _
    $region10: #{vgg_forward.15} parent=5 // pred_check_branch
      %116 = sbr.rel (%p113) target = $region12
    $region11: #{vgg_forward.15} parent=5 // pred_region
      %s117 = ssub.s32 %s9, 1
      // Predicated region
      $region13: #{vgg_forward.15} parent=11 // pred_check
        %p118 = pneg %p56
      $region14: #{vgg_forward.15} parent=11 // pred_check_branch
        %120 = sbr.rel (%p118) target = $region16
      $region15: #{vgg_forward.15} parent=11 // pred_region
        _
      $region16: #{vgg_forward.15} parent=11 // pred_fallthru
        _
      // Predicated region
      $region17: #{vgg_forward.15} parent=11 // pred_check
        %p121 = pneg %p77
      $region18: #{vgg_forward.15} parent=11 // pred_check_branch
        %123 = sbr.rel (%p121) target = $region20
      $region19: #{vgg_forward.15} parent=11 // pred_region
        _
      $region20: #{vgg_forward.15} parent=11 // pred_fallthru
        _
    $region12: #{vgg_forward.15} parent=5 // pred_fallthru
      _
    %p124 = scmp.lt.s32.totalorder %s9, 2
    // Predicated region
    $region21: #{vgg_forward.15} parent=5 // pred_check
      %p125 = pneg %p124
    $region22: #{vgg_forward.15} parent=5 // pred_check_branch
      %127 = sbr.rel (%p125) target = $region24
    $region23: #{vgg_forward.15} parent=5 // pred_region
      // Predicated region
      $region25: #{vgg_forward.15} parent=23 // pred_check
        %p128 = pneg %p29
      $region26: #{vgg_forward.15} parent=23 // pred_check_branch
        %130 = sbr.rel (%p128) target = $region28
      $region27: #{vgg_forward.15} parent=23 // pred_region
        %p131 = scmp.lt.s32.totalorder %s9, 1
        %s132 = scalar_select %p131, %s9, 1
        %s133 = smul.addr %s132, 10
        %s134 = smul.addr %s133, 4
        %s135 = scalar_lea.vmem %s0, %s134
      $region28: #{vgg_forward.15} parent=23 // pred_fallthru
        _
    $region24: #{vgg_forward.15} parent=5 // pred_fallthru
      _
    %p136 = scmp.le.s32.totalorder 1, %s9
    %p137 = scmp.lt.s32.totalorder %s9, 3
    %p138 = pnand %p136, %p137
    %p139 = pneg %p138
    // Predicated region
    $region29: #{vgg_forward.15} parent=5 // pred_check
      _
    $region30: #{vgg_forward.15} parent=5 // pred_check_branch
      %141 = sbr.rel (%p138) target = $region32
    $region31: #{vgg_forward.15} parent=5 // pred_region
      %s142 = ssub.s32 %s9, 1
      %p143 = scmp.lt.s32.totalorder %s14, 1
      %s144 = scalar_select %p143, %s14, 1
      %s145 = smul.addr %s144, 10
      %s146 = smul.addr %s145, 4
      %s147 = scalar_lea.vmem %s0, %s146
      %p148 = pneg %p35
      %p149 = pneg %p32
      %p150 = pneg %p56
      %p151 = pneg %p53
      %p152 = pneg %p77
      %p153 = pneg %p74
      %p154 = pneg %p103
      %p155 = pneg %p100
      %p156 = scmp.lt.s32.totalorder %s14, 1
      %s157 = scalar_select %p156, %s14, 1
      %s158 = smul.addr %s157, 8
      %s159 = smul.addr %s158, 4
      %s160 = scalar_lea.vmem %s3, %s159
      %p161 = scmp.lt.s32.totalorder %s14, 1
      %s162 = scalar_select %p161, %s14, 1
      %s163 = smul.addr %s162, 10
      %s164 = smul.addr %s163, 4
      %s165 = scalar_lea.vmem %s0, %s164
      %p166 = scmp.lt.s32.totalorder %s14, 1
      %s167 = scalar_select %p166, %s14, 1
      %s168 = smul.addr %s167, 8
      %s169 = smul.addr %s168, 4
      %s170 = scalar_lea.vmem %s3, %s169
      %v172 = vld [vmem:[%s2] sm:$0x1]
      %v173 = vld [vmem:[%s165] sm:$0xf]
      %v174 = vld [vmem:[%s165 + $0x4] sm:$0xf]
      %v175 = vld [vmem:[%s165 + $0x8] sm:$0xf]
      %v176 = vld [vmem:[%s165 + $0xc] sm:$0xf]
      %v177 = vld [vmem:[%s165 + $0x10] sm:$0xf]
      %v178 = vld [vmem:[%s165 + $0x14] sm:$0xf]
      %v179 = vld [vmem:[%s165 + $0x18] sm:$0xf]
      %v180 = vld [vmem:[%s165 + $0x1c] sm:$0xf]
      %v181 = vld [vmem:[%s1] sm:$0xf]
      %v182 = vld [vmem:[%s1 + $0x4] sm:$0xf]
      %v183 = vld [vmem:[%s1 + $0x8] sm:$0xf]
      %v184 = vld [vmem:[%s1 + $0xc] sm:$0xf]
      %v185 = vld [vmem:[%s1 + $0x10] sm:$0xf]
      %v186 = vld [vmem:[%s1 + $0x14] sm:$0xf]
      %v187 = vld [vmem:[%s1 + $0x18] sm:$0xf]
      %v188 = vld [vmem:[%s1 + $0x1c] sm:$0xf]
      %v189 = vld [vmem:[%s1 + $0x20] sm:$0xf]
      %v190 = vld [vmem:[%s1 + $0x24] sm:$0xf]
      %v191 = vld [vmem:[%s1 + $0x28] sm:$0xf]
      %v192 = vld [vmem:[%s1 + $0x2c] sm:$0xf]
      %v193 = vld [vmem:[%s1 + $0x30] sm:$0xf]
      %v194 = vld [vmem:[%s1 + $0x34] sm:$0xf]
      %v195 = vld [vmem:[%s1 + $0x38] sm:$0xf]
      %v196 = vld [vmem:[%s1 + $0x3c] sm:$0xf]
      %v197 = vld [vmem:[%s165 + $0x20] sm:$0xf]
      %s198 = scalar_lea.vmem %s1, 64
      %v199 = vld [vmem:[%s198] sm:$0xf]
      %v200 = vld [vmem:[%s198 + $0x4] sm:$0xf]
      %v201 = vld [vmem:[%s198 + $0x8] sm:$0xf]
      %v202 = vld [vmem:[%s198 + $0xc] sm:$0xf]
      %v203 = vld [vmem:[%s198 + $0x10] sm:$0xf]
      %v204 = vld [vmem:[%s198 + $0x14] sm:$0xf]
      %v205 = vld [vmem:[%s198 + $0x18] sm:$0xf]
      %v206 = vld [vmem:[%s198 + $0x1c] sm:$0xf]
      %v207 = vld [vmem:[%s198 + $0x20] sm:$0xf]
      %v208 = vld [vmem:[%s198 + $0x24] sm:$0xf]
      %v209 = vld [vmem:[%s198 + $0x28] sm:$0xf]
      %v210 = vld [vmem:[%s198 + $0x2c] sm:$0xf]
      %v211 = vld [vmem:[%s198 + $0x30] sm:$0xf]
      %v212 = vld [vmem:[%s198 + $0x34] sm:$0xf]
      %v213 = vld [vmem:[%s198 + $0x38] sm:$0xf]
      %v214 = vld [vmem:[%s198 + $0x3c] sm:$0xf]
      %v223 = vunpack.c.l.b16 %v174
      %v224 = vunpack.c.l.b16 %v175
      %v225 = vunpack.c.l.b16 %v176
      %v226 = vunpack.c.l.b16 %v177
      %v227 = vunpack.c.l.b16 %v178
      %v228 = vunpack.c.l.b16 %v179
      %v229 = vunpack.c.l.b16 %v180
      %v230 = vunpack.c.l.b16 %v197
      %v231 = vpack.c.b16 %v224, %v223
      %v232 = vpack.c.b16 %v226, %v225
      %v233 = vpack.c.b16 %v228, %v227
      %v234 = vpack.c.b16 %v230, %v229
      %v255 = vunpack.c.l.b16 %v199
      %v256 = vunpack.c.l.b16 %v200
      %v257 = vunpack.c.l.b16 %v201
      %v258 = vunpack.c.l.b16 %v202
      %v259 = vunpack.c.l.b16 %v203
      %v260 = vunpack.c.l.b16 %v204
      %v261 = vunpack.c.l.b16 %v205
      %v262 = vunpack.c.l.b16 %v206
      %v263 = vunpack.c.l.b16 %v207
      %v264 = vunpack.c.l.b16 %v208
      %v265 = vunpack.c.l.b16 %v209
      %v266 = vunpack.c.l.b16 %v210
      %v267 = vunpack.c.l.b16 %v211
      %v268 = vunpack.c.l.b16 %v212
      %v269 = vunpack.c.l.b16 %v213
      %v270 = vunpack.c.l.b16 %v214
      %v271 = vpack.c.b16 %v256, %v255
      %v272 = vpack.c.b16 %v258, %v257
      %v273 = vpack.c.b16 %v260, %v259
      %v274 = vpack.c.b16 %v262, %v261
      %v275 = vpack.c.b16 %v264, %v263
      %v276 = vpack.c.b16 %v266, %v265
      %v277 = vpack.c.b16 %v268, %v267
      %v278 = vpack.c.b16 %v270, %v269
      %287 = vmatprep.subr.bf16.mxu0 0
      %288 = vmatpush1.bf16.msra.mxu0 %v271
      %289 = vmatprep.subr.bf16.mxu0 0
      %290 = vmatpush1.bf16.msra.mxu0 %v272
      %291 = vmatprep.subr.bf16.mxu0 0
      %292 = vmatpush1.bf16.msra.mxu0 %v273
      %293 = vmatprep.subr.bf16.mxu0 0
      %294 = vmatpush1.bf16.msra.mxu0 %v274
      %295 = vmatprep.subr.bf16.mxu0 0
      %296 = vmatpush1.bf16.msra.mxu0 %v275
      %297 = vmatprep.subr.bf16.mxu0 0
      %298 = vmatpush1.bf16.msra.mxu0 %v276
      %299 = vmatprep.subr.bf16.mxu0 0
      %300 = vmatpush1.bf16.msra.mxu0 %v277
      %301 = vmatprep.subr.bf16.mxu0 0
      %302 = vmatpush1.bf16.msra.mxu0 %v278
      %303 = vmatprep.subr.bf16.mxu0 0
      %304 = vmatpush1.bf16.msra.mxu0 0
      %305 = vmatprep.subr.bf16.mxu0 0
      %306 = vmatpush1.bf16.msra.mxu0 0
      %307 = vmatprep.subr.bf16.mxu0 0
      %308 = vmatpush1.bf16.msra.mxu0 0
      %309 = vmatprep.subr.bf16.mxu0 0
      %310 = vmatpush1.bf16.msra.mxu0 0
      %311 = vmatprep.subr.bf16.mxu0 0
      %312 = vmatpush1.bf16.msra.mxu0 0
      %313 = vmatprep.subr.bf16.mxu0 0
      %314 = vmatpush1.bf16.msra.mxu0 0
      %315 = vmatprep.subr.bf16.mxu0 0
      %316 = vmatpush1.bf16.msra.mxu0 0
      %317 = vmatprep.subr.bf16.mxu0 0
      %318 = vmatpush1.bf16.msra.mxu0 0
      %319 = vmatprep.mubr.bf16.mxu0 0
      %320 = vmatmul.mubr.bf16.gmra.mrb[0].mxu0 %v231
      %v321 = vpop.f32.mrb[0].mxu0
      %v322 = vadd.f32 0.0, %v321
      %v323 = vpop.f32.mrb[0].mxu0
      %v324 = vpop.f32.mrb[0].mxu0
      %v325 = vadd.f32 0.0, %v324
      %v326 = vpop.f32.mrb[0].mxu0
      %327 = vmatprep.mubr.bf16.mxu0 0
      %328 = vmatmul.mubr.bf16.gmra.mrb[0].mxu0 %v232
      %v329 = vpop.f32.mrb[0].mxu0
      %v330 = vadd.f32 0.0, %v329
      %v331 = vpop.f32.mrb[0].mxu0
      %v332 = vpop.f32.mrb[0].mxu0
      %v333 = vadd.f32 0.0, %v332
      %v334 = vpop.f32.mrb[0].mxu0
      %335 = vmatprep.mubr.bf16.mxu0 0
      %336 = vmatmul.mubr.bf16.gmra.mrb[0].mxu0 %v233
      %v337 = vpop.f32.mrb[0].mxu0
      %v338 = vadd.f32 0.0, %v337
      %v339 = vpop.f32.mrb[0].mxu0
      %v340 = vpop.f32.mrb[0].mxu0
      %v341 = vadd.f32 0.0, %v340
      %v342 = vpop.f32.mrb[0].mxu0
      %343 = vmatprep.mubr.bf16.mxu0 0
      %344 = vmatmul.mubr.bf16.gmra.mrb[0].mxu0 %v234
      %v345 = vpop.f32.mrb[0].mxu0
      %v346 = vadd.f32 0.0, %v345
      %v347 = vpop.f32.mrb[0].mxu0
      %v348 = vpop.f32.mrb[0].mxu0
      %v349 = vadd.f32 0.0, %v348
      %v350 = vpop.f32.mrb[0].mxu0
      %351 = vdwg.mxu0
      %v353 = vunpack.c.l.b16 %v173
      %v354 = vpack.c.b16 %v223, %v353
      %v355 = vpack.c.b16 %v225, %v224
      %v356 = vpack.c.b16 %v227, %v226
      %v357 = vpack.c.b16 %v229, %v228
      %v378 = vunpack.c.l.b16 %v181
      %v379 = vunpack.c.l.b16 %v182
      %v380 = vunpack.c.l.b16 %v183
      %v381 = vunpack.c.l.b16 %v184
      %v382 = vunpack.c.l.b16 %v185
      %v383 = vunpack.c.l.b16 %v186
      %v384 = vunpack.c.l.b16 %v187
      %v385 = vunpack.c.l.b16 %v188
      %v386 = vunpack.c.l.b16 %v189
      %v387 = vunpack.c.l.b16 %v190
      %v388 = vunpack.c.l.b16 %v191
      %v389 = vunpack.c.l.b16 %v192
      %v390 = vunpack.c.l.b16 %v193
      %v391 = vunpack.c.l.b16 %v194
      %v392 = vunpack.c.l.b16 %v195
      %v393 = vunpack.c.l.b16 %v196
      %v394 = vpack.c.b16 %v379, %v378
      %v395 = vpack.c.b16 %v381, %v380
      %v396 = vpack.c.b16 %v383, %v382
      %v397 = vpack.c.b16 %v385, %v384
      %v398 = vpack.c.b16 %v387, %v386
      %v399 = vpack.c.b16 %v389, %v388
      %v400 = vpack.c.b16 %v391, %v390
      %v401 = vpack.c.b16 %v393, %v392
      %410 = vmatprep.subr.bf16.mxu0 0
      %411 = vmatpush1.bf16.msra.mxu0 %v394
      %412 = vmatprep.subr.bf16.mxu0 0
      %413 = vmatpush1.bf16.msra.mxu0 %v395
      %414 = vmatprep.subr.bf16.mxu0 0
      %415 = vmatpush1.bf16.msra.mxu0 %v396
      %416 = vmatprep.subr.bf16.mxu0 0
      %417 = vmatpush1.bf16.msra.mxu0 %v397
      %418 = vmatprep.subr.bf16.mxu0 0
      %419 = vmatpush1.bf16.msra.mxu0 %v398
      %420 = vmatprep.subr.bf16.mxu0 0
      %421 = vmatpush1.bf16.msra.mxu0 %v399
      %422 = vmatprep.subr.bf16.mxu0 0
      %423 = vmatpush1.bf16.msra.mxu0 %v400
      %424 = vmatprep.subr.bf16.mxu0 0
      %425 = vmatpush1.bf16.msra.mxu0 %v401
      %426 = vmatprep.subr.bf16.mxu0 0
      %427 = vmatpush1.bf16.msra.mxu0 0
      %428 = vmatprep.subr.bf16.mxu0 0
      %429 = vmatpush1.bf16.msra.mxu0 0
      %430 = vmatprep.subr.bf16.mxu0 0
      %431 = vmatpush1.bf16.msra.mxu0 0
      %432 = vmatprep.subr.bf16.mxu0 0
      %433 = vmatpush1.bf16.msra.mxu0 0
      %434 = vmatprep.subr.bf16.mxu0 0
      %435 = vmatpush1.bf16.msra.mxu0 0
      %436 = vmatprep.subr.bf16.mxu0 0
      %437 = vmatpush1.bf16.msra.mxu0 0
      %438 = vmatprep.subr.bf16.mxu0 0
      %439 = vmatpush1.bf16.msra.mxu0 0
      %440 = vmatprep.subr.bf16.mxu0 0
      %441 = vmatpush1.bf16.msra.mxu0 0
      %442 = vmatprep.mubr.bf16.mxu0 0
      %443 = vmatmul.mubr.bf16.gmra.mrb[0].mxu0 %v354
      %v444 = vpop.f32.mrb[0].mxu0
      %v445 = vadd.f32 %v322, %v444
      %v446 = vpop.f32.mrb[0].mxu0
      %v447 = vpop.f32.mrb[0].mxu0
      %v448 = vadd.f32 %v325, %v447
      %v449 = vpop.f32.mrb[0].mxu0
      %450 = vmatprep.mubr.bf16.mxu0 0
      %451 = vmatmul.mubr.bf16.gmra.mrb[0].mxu0 %v355
      %v452 = vpop.f32.mrb[0].mxu0
      %v453 = vadd.f32 %v330, %v452
      %v454 = vpop.f32.mrb[0].mxu0
      %v455 = vpop.f32.mrb[0].mxu0
      %v456 = vadd.f32 %v333, %v455
      %v457 = vpop.f32.mrb[0].mxu0
      %458 = vmatprep.mubr.bf16.mxu0 0
      %459 = vmatmul.mubr.bf16.gmra.mrb[0].mxu0 %v356
      %v460 = vpop.f32.mrb[0].mxu0
      %v461 = vadd.f32 %v338, %v460
      %v462 = vpop.f32.mrb[0].mxu0
      %v463 = vpop.f32.mrb[0].mxu0
      %v464 = vadd.f32 %v341, %v463
      %v465 = vpop.f32.mrb[0].mxu0
      %466 = vmatprep.mubr.bf16.mxu0 0
      %467 = vmatmul.mubr.bf16.gmra.mrb[0].mxu0 %v357
      %v468 = vpop.f32.mrb[0].mxu0
      %v469 = vadd.f32 %v346, %v468
      %v470 = vpop.f32.mrb[0].mxu0
      %v471 = vpop.f32.mrb[0].mxu0
      %v472 = vadd.f32 %v349, %v471
      %v473 = vpop.f32.mrb[0].mxu0
      %474 = vdwg.mxu0
      %v475 = vld [vmem:[%s165 + $0x8] sm:$0xf]
      %v476 = vld [vmem:[%s165 + $0xc] sm:$0xf]
      %v477 = vld [vmem:[%s165 + $0x10] sm:$0xf]
      %v478 = vld [vmem:[%s165 + $0x14] sm:$0xf]
      %v479 = vld [vmem:[%s165 + $0x18] sm:$0xf]
      %v480 = vld [vmem:[%s165 + $0x1c] sm:$0xf]
      %v481 = vld [vmem:[%s165 + $0x20] sm:$0xf]
      %v482 = vld [vmem:[%s165 + $0x24] sm:$0xf]
      %s483 = scalar_lea.vmem %s1, 128
      %v484 = vld [vmem:[%s483] sm:$0xf]
      %v485 = vld [vmem:[%s483 + $0x4] sm:$0xf]
      %v486 = vld [vmem:[%s483 + $0x8] sm:$0xf]
      %v487 = vld [vmem:[%s483 + $0xc] sm:$0xf]
      %v488 = vld [vmem:[%s483 + $0x10] sm:$0xf]
      %v489 = vld [vmem:[%s483 + $0x14] sm:$0xf]
      %v490 = vld [vmem:[%s483 + $0x18] sm:$0xf]
      %v491 = vld [vmem:[%s483 + $0x1c] sm:$0xf]
      %v492 = vld [vmem:[%s483 + $0x20] sm:$0xf]
      %v493 = vld [vmem:[%s483 + $0x24] sm:$0xf]
      %v494 = vld [vmem:[%s483 + $0x28] sm:$0xf]
      %v495 = vld [vmem:[%s483 + $0x2c] sm:$0xf]
      %v496 = vld [vmem:[%s483 + $0x30] sm:$0xf]
      %v497 = vld [vmem:[%s483 + $0x34] sm:$0xf]
      %v498 = vld [vmem:[%s483 + $0x38] sm:$0xf]
      %v499 = vld [vmem:[%s483 + $0x3c] sm:$0xf]
      %v508 = vunpack.c.l.b16 %v475
      %v509 = vunpack.c.l.b16 %v476
      %v510 = vunpack.c.l.b16 %v477
      %v511 = vunpack.c.l.b16 %v478
      %v512 = vunpack.c.l.b16 %v479
      %v513 = vunpack.c.l.b16 %v480
      %v514 = vunpack.c.l.b16 %v481
      %v515 = vunpack.c.l.b16 %v482
      %v516 = vpack.c.b16 %v509, %v508
      %v517 = vpack.c.b16 %v511, %v510
      %v518 = vpack.c.b16 %v513, %v512
      %v519 = vpack.c.b16 %v515, %v514
      %v540 = vunpack.c.l.b16 %v484
      %v541 = vunpack.c.l.b16 %v485
      %v542 = vunpack.c.l.b16 %v486
      %v543 = vunpack.c.l.b16 %v487
      %v544 = vunpack.c.l.b16 %v488
      %v545 = vunpack.c.l.b16 %v489
      %v546 = vunpack.c.l.b16 %v490
      %v547 = vunpack.c.l.b16 %v491
      %v548 = vunpack.c.l.b16 %v492
      %v549 = vunpack.c.l.b16 %v493
      %v550 = vunpack.c.l.b16 %v494
      %v551 = vunpack.c.l.b16 %v495
      %v552 = vunpack.c.l.b16 %v496
      %v553 = vunpack.c.l.b16 %v497
      %v554 = vunpack.c.l.b16 %v498
      %v555 = vunpack.c.l.b16 %v499
      %v556 = vpack.c.b16 %v541, %v540
      %v557 = vpack.c.b16 %v543, %v542
      %v558 = vpack.c.b16 %v545, %v544
      %v559 = vpack.c.b16 %v547, %v546
      %v560 = vpack.c.b16 %v549, %v548
      %v561 = vpack.c.b16 %v551, %v550
      %v562 = vpack.c.b16 %v553, %v552
      %v563 = vpack.c.b16 %v555, %v554
      %572 = vmatprep.subr.bf16.mxu0 0
      %573 = vmatpush1.bf16.msra.mxu0 %v556
      %574 = vmatprep.subr.bf16.mxu0 0
      %575 = vmatpush1.bf16.msra.mxu0 %v557
      %576 = vmatprep.subr.bf16.mxu0 0
      %577 = vmatpush1.bf16.msra.mxu0 %v558
      %578 = vmatprep.subr.bf16.mxu0 0
      %579 = vmatpush1.bf16.msra.mxu0 %v559
      %580 = vmatprep.subr.bf16.mxu0 0
      %581 = vmatpush1.bf16.msra.mxu0 %v560
      %582 = vmatprep.subr.bf16.mxu0 0
      %583 = vmatpush1.bf16.msra.mxu0 %v561
      %584 = vmatprep.subr.bf16.mxu0 0
      %585 = vmatpush1.bf16.msra.mxu0 %v562
      %586 = vmatprep.subr.bf16.mxu0 0
      %587 = vmatpush1.bf16.msra.mxu0 %v563
      %588 = vmatprep.subr.bf16.mxu0 0
      %589 = vmatpush1.bf16.msra.mxu0 0
      %590 = vmatprep.subr.bf16.mxu0 0
      %591 = vmatpush1.bf16.msra.mxu0 0
      %592 = vmatprep.subr.bf16.mxu0 0
      %593 = vmatpush1.bf16.msra.mxu0 0
      %594 = vmatprep.subr.bf16.mxu0 0
      %595 = vmatpush1.bf16.msra.mxu0 0
      %596 = vmatprep.subr.bf16.mxu0 0
      %597 = vmatpush1.bf16.msra.mxu0 0
      %598 = vmatprep.subr.bf16.mxu0 0
      %599 = vmatpush1.bf16.msra.mxu0 0
      %600 = vmatprep.subr.bf16.mxu0 0
      %601 = vmatpush1.bf16.msra.mxu0 0
      %602 = vmatprep.subr.bf16.mxu0 0
      %603 = vmatpush1.bf16.msra.mxu0 0
      %604 = vmatprep.mubr.bf16.mxu0 0
      %605 = vmatmul.mubr.bf16.gmra.mrb[0].mxu0 %v516
      %v606 = vpop.f32.mrb[0].mxu0
      %v607 = vadd.f32 0.0, %v606
      %v608 = vpop.f32.mrb[0].mxu0
      %v609 = vpop.f32.mrb[0].mxu0
      %v610 = vadd.f32 0.0, %v609
      %v611 = vpop.f32.mrb[0].mxu0
      %612 = vmatprep.mubr.bf16.mxu0 0
      %613 = vmatmul.mubr.bf16.gmra.mrb[0].mxu0 %v517
      %v614 = vpop.f32.mrb[0].mxu0
      %v615 = vadd.f32 0.0, %v614
      %v616 = vpop.f32.mrb[0].mxu0
      %v617 = vpop.f32.mrb[0].mxu0
      %v618 = vadd.f32 0.0, %v617
      %v619 = vpop.f32.mrb[0].mxu0
      %620 = vmatprep.mubr.bf16.mxu0 0
      %621 = vmatmul.mubr.bf16.gmra.mrb[0].mxu0 %v518
      %v622 = vpop.f32.mrb[0].mxu0
      %v623 = vadd.f32 0.0, %v622
      %v624 = vpop.f32.mrb[0].mxu0
      %v625 = vpop.f32.mrb[0].mxu0
      %v626 = vadd.f32 0.0, %v625
      %v627 = vpop.f32.mrb[0].mxu0
      %628 = vmatprep.mubr.bf16.mxu0 0
      %629 = vmatmul.mubr.bf16.gmra.mrb[0].mxu0 %v519
      %v630 = vpop.f32.mrb[0].mxu0
      %v631 = vadd.f32 0.0, %v630
      %v632 = vpop.f32.mrb[0].mxu0
      %v633 = vpop.f32.mrb[0].mxu0
      %v634 = vadd.f32 0.0, %v633
      %v635 = vpop.f32.mrb[0].mxu0
      %636 = vdwg.mxu0
      %v637 = vadd.f32 %v445, %v607
      %v638 = vadd.f32 %v448, %v610
      %v639 = vadd.f32 %v453, %v615
      %v640 = vadd.f32 %v456, %v618
      %v641 = vadd.f32 %v461, %v623
      %v642 = vadd.f32 %v464, %v626
      %v643 = vadd.f32 %v469, %v631
      %v644 = vadd.f32 %v472, %v634
      %v646 = vlaneseq
      %v647 = vshrl.u32 %v646, 7
      %v648 = vsub.s32 0, %v647
      %v649 = vrot.slane %v172, %v648
      %v651 = vadd.f32 %v637, %v649
      %v652 = vadd.f32 %v638, %v649
      %v653 = vadd.f32 %v639, %v649
      %v654 = vadd.f32 %v640, %v649
      %v655 = vadd.f32 %v641, %v649
      %v656 = vadd.f32 %v642, %v649
      %v657 = vadd.f32 %v643, %v649
      %v658 = vadd.f32 %v644, %v649
      %v659 = vmax.f32 %v651, 0.0
      %v660 = vmax.f32 %v652, 0.0
      %v661 = vmax.f32 %v653, 0.0
      %v662 = vmax.f32 %v654, 0.0
      %v663 = vmax.f32 %v655, 0.0
      %v664 = vmax.f32 %v656, 0.0
      %v665 = vmax.f32 %v657, 0.0
      %v666 = vmax.f32 %v658, 0.0
      %v667 = vpack.c.bf16 %v660, %v659
      %v668 = vpack.c.bf16 %v662, %v661
      %v669 = vpack.c.bf16 %v664, %v663
      %v670 = vpack.c.bf16 %v666, %v665
      %v675 = vunpack.c.l.b16 %v667
      %v676 = vunpack.c.h.b16 %v667
      %v677 = vunpack.c.l.b16 %v668
      %v678 = vunpack.c.h.b16 %v668
      %v679 = vunpack.c.l.b16 %v669
      %v680 = vunpack.c.h.b16 %v669
      %v681 = vunpack.c.l.b16 %v670
      %v682 = vunpack.c.h.b16 %v670
      %v683 = vpack.c.b16 %v675, %v675
      %v684 = vpack.c.b16 %v676, %v676
      %v685 = vpack.c.b16 %v677, %v677
      %v686 = vpack.c.b16 %v678, %v678
      %v687 = vpack.c.b16 %v679, %v679
      %v688 = vpack.c.b16 %v680, %v680
      %v689 = vpack.c.b16 %v681, %v681
      %v690 = vpack.c.b16 %v682, %v682
      %699 = vst [vmem:[%s170] sm:$0xf] %v683
      %700 = vst [vmem:[%s170 + $0x4] sm:$0xf] %v684
      %701 = vst [vmem:[%s170 + $0x8] sm:$0xf] %v685
      %702 = vst [vmem:[%s170 + $0xc] sm:$0xf] %v686
      %703 = vst [vmem:[%s170 + $0x10] sm:$0xf] %v687
      %704 = vst [vmem:[%s170 + $0x14] sm:$0xf] %v688
      %705 = vst [vmem:[%s170 + $0x18] sm:$0xf] %v689
      %706 = vst [vmem:[%s170 + $0x1c] sm:$0xf] %v690
      %p707 = scmp.lt.s32.totalorder %s14, 1
      %s708 = scalar_select %p707, %s14, 1
      %s709 = smul.addr %s708, 8
      %s710 = smul.addr %s709, 4
      %s711 = scalar_lea.vmem %s3, %s710
      // Predicated region
      $region33: #{vgg_forward.15} parent=31 // pred_check
        %p712 = pneg %p100
      $region34: #{vgg_forward.15} parent=31 // pred_check_branch
        %714 = sbr.rel (%p712) target = $region36
      $region35: #{vgg_forward.15} parent=31 // pred_region
        _
      $region36: #{vgg_forward.15} parent=31 // pred_fallthru
        _
    $region32: #{vgg_forward.15} parent=5 // pred_fallthru
      _
    %p715 = scmp.le.s32.totalorder 2, %s9
    // Predicated region
    $region37: #{vgg_forward.15} parent=5 // pred_check
      %p716 = pneg %p715
    $region38: #{vgg_forward.15} parent=5 // pred_check_branch
      %718 = sbr.rel (%p716) target = $region40
    $region39: #{vgg_forward.15} parent=5 // pred_region
      %s719 = ssub.s32 %s9, 2
      // Predicated region
      $region41: #{vgg_forward.15} parent=39 // pred_check
        %p720 = pneg %p106
      $region42: #{vgg_forward.15} parent=39 // pred_check_branch
        %722 = sbr.rel (%p720) target = $region44
      $region43: #{vgg_forward.15} parent=39 // pred_region
        %p723 = scmp.lt.s32.totalorder %s15, 1
        %s724 = scalar_select %p723, %s15, 1
        %s725 = smul.addr %s724, 8
        %s726 = smul.addr %s725, 4
        %s727 = scalar_lea.vmem %s3, %s726
      $region44: #{vgg_forward.15} parent=39 // pred_fallthru
        _
    $region40: #{vgg_forward.15} parent=5 // pred_fallthru
      _
  $region6: #{vgg_forward.15} parent=0 // loop_footer
    %s13 = sadd.s32 1, %s9
  $region7: #{vgg_forward.15} parent=0 // loop_footer_branch
    %8 = sbr.rel target = $region3
  $region8: #{vgg_forward.15} parent=0 // loop_exit
    _

// kernel: vgg_forward.16
$region0: #{vgg_forward.16}
  #allocation0 [shape = 'u32[]', space=smem, size = 0x4, offset = 0x4, fixed_abs, tag = 'smem constant byte address 0x4 - core index']
  #allocation1 [shape = 'u32[144,128]{1,0:T(1,128)}', space=vmem, size = 0x12000, scoped, tag = 'internal scratch']
  #allocation2 [shape = 'f32[4,8,128]{2,1,0:T(8,128)}', space=vmem, size = 0x4000, scoped, tag = 'scratch operand']
  %s0 = inlined_call_operand.vmem [shape: bf16[2,80,128], index: 0, kind: input, shape index: {}]
  %s1 = inlined_call_operand.vmem [shape: bf16[3,128,128], index: 1, kind: input, shape index: {}]
  %s2 = inlined_call_operand.vmem [shape: f32[1,128], index: 2, kind: input, shape index: {}]
  %s3 = inlined_call_operand.vmem [shape: bf16[2,4,4,128], index: 3, kind: output, shape index: {}]
  %s4 = sld [smem:[#allocation0]]
  $region45: #{vgg_forward.16} parent=0
    _
  %s6 = ssub.s32 1, %s4
  %s7 = scalar_select 0, %s6, %s4
  loop: start=0, step=1, limit=4
  $region2: #{vgg_forward.16} parent=0 // loop_pre_header
    _
  $region3: #{vgg_forward.16} parent=0 // loop_header
    %s9 = sphi 0, %s13
    %p10 = scmp.ge.s32.totalorder %s9, 4
    %s19 = sphi 0, %s21
    %s22 = sphi 0, %s19
    %s23 = sphi 0, %s22
    %s39 = sphi 0, %s23
    %s43 = sphi 0, %s43
    %s45 = sphi 0, %s43
    %s46 = sphi 0, %s45
    %s60 = sphi 0, %s46
    %s64 = sphi 0, %s64
    %s66 = sphi 0, %s64
    %s67 = sphi 0, %s66
    %s81 = sphi 0, %s67
    %s87 = sphi 0, %s89
    %s90 = sphi 0, %s87
    %s91 = sphi 0, %s90
    %s107 = sphi 0, %s91
  $region4: #{vgg_forward.16} parent=0 // loop_header_branch
    %12 = sbr.rel (%p10) target = $region8
  $region5: #{vgg_forward.16} parent=0 // loop_body
    %s14 = ssub.s32 %s9, 1
    %s15 = ssub.s32 %s9, 2
    %s16 = sadd.s32 %s9, 1
    %s17 = ssub.s32 %s9, %s16
    %p18 = scmp.eq.s32.totalorder %s17, 0
    %s20 = sadd.s32 %s19, 1
    %s21 = scalar_select %p18, %s19, %s20
    %p24 = pneg %p18
    %p25 = scmp.eq.s32.totalorder %s9, 1
    %p26 = por %p24, %p25
    %p27 = scmp.ne.s32.totalorder %s19, %s22
    %p28 = scmp.eq.s32.totalorder %s9, 0
    %p29 = por %p27, %p28
    %p30 = scmp.ne.s32.totalorder %s19, %s22
    %p31 = scmp.eq.s32.totalorder %s14, 1
    %p32 = por %p30, %p31
    %p33 = scmp.ne.s32.totalorder %s22, %s23
    %p34 = scmp.eq.s32.totalorder %s14, 0
    %p35 = por %p33, %p34
    %p36 = scmp.ne.s32.totalorder %s22, %s23
    %p37 = scmp.eq.s32.totalorder %s15, 1
    %p38 = por %p36, %p37
    %p40 = scmp.ne.s32.totalorder %s23, %s39
    %p41 = scmp.eq.s32.totalorder %s15, 0
    %p42 = por %p40, %p41
    %s44 = sadd.s32 %s43, 1
    %p47 = scmp.eq.s32.totalorder %s9, 1
    %p48 = scmp.ne.s32.totalorder %s43, %s45
    %p49 = scmp.eq.s32.totalorder %s9, 0
    %p50 = por %p48, %p49
    %p51 = scmp.ne.s32.totalorder %s43, %s45
    %p52 = scmp.eq.s32.totalorder %s14, 1
    %p53 = por %p51, %p52
    %p54 = scmp.ne.s32.totalorder %s45, %s46
    %p55 = scmp.eq.s32.totalorder %s14, 0
    %p56 = por %p54, %p55
    %p57 = scmp.ne.s32.totalorder %s45, %s46
    %p58 = scmp.eq.s32.totalorder %s15, 1
    %p59 = por %p57, %p58
    %p61 = scmp.ne.s32.totalorder %s46, %s60
    %p62 = scmp.eq.s32.totalorder %s15, 0
    %p63 = por %p61, %p62
    %s65 = sadd.s32 %s64, 1
    %p68 = scmp.eq.s32.totalorder %s9, 1
    %p69 = scmp.ne.s32.totalorder %s64, %s66
    %p70 = scmp.eq.s32.totalorder %s9, 0
    %p71 = por %p69, %p70
    %p72 = scmp.ne.s32.totalorder %s64, %s66
    %p73 = scmp.eq.s32.totalorder %s14, 1
    %p74 = por %p72, %p73
    %p75 = scmp.ne.s32.totalorder %s66, %s67
    %p76 = scmp.eq.s32.totalorder %s14, 0
    %p77 = por %p75, %p76
    %p78 = scmp.ne.s32.totalorder %s66, %s67
    %p79 = scmp.eq.s32.totalorder %s15, 1
    %p80 = por %p78, %p79
    %p82 = scmp.ne.s32.totalorder %s67, %s81
    %p83 = scmp.eq.s32.totalorder %s15, 0
    %p84 = por %p82, %p83
    %s85 = ssub.s32 %s9, %s16
    %p86 = scmp.eq.s32.totalorder %s85, 0
    %s88 = sadd.s32 %s87, 1
    %s89 = scalar_select %p86, %s87, %s88
    %p92 = pneg %p86
    %p93 = scmp.eq.s32.totalorder %s9, 1
    %p94 = por %p92, %p93
    %p95 = scmp.ne.s32.totalorder %s87, %s90
    %p96 = scmp.eq.s32.totalorder %s9, 0
    %p97 = por %p95, %p96
    %p98 = scmp.ne.s32.totalorder %s87, %s90
    %p99 = scmp.eq.s32.totalorder %s14, 1
    %p100 = por %p98, %p99
    %p101 = scmp.ne.s32.totalorder %s90, %s91
    %p102 = scmp.eq.s32.totalorder %s14, 0
    %p103 = por %p101, %p102
    %p104 = scmp.ne.s32.totalorder %s90, %s91
    %p105 = scmp.eq.s32.totalorder %s15, 1
    %p106 = por %p104, %p105
    %p108 = scmp.ne.s32.totalorder %s91, %s107
    %p109 = scmp.eq.s32.totalorder %s15, 0
    %p110 = por %p108, %p109
    %p111 = scmp.le.s32.totalorder 1, %s9
    %p112 = scmp.lt.s32.totalorder %s9, 3
    %p113 = pnand %p111, %p112
    %p114 = pneg %p113
    // Predicated region
    $region9: #{vgg_forward.16} parent=5 // pred_check
      _
    $region10: #{vgg_forward.16} parent=5 // pred_check_branch
      %116 = sbr.rel (%p113) target = $region12
    $region11: #{vgg_forward.16} parent=5 // pred_region
      %s117 = ssub.s32 %s9, 1
      // Predicated region
      $region13: #{vgg_forward.16} parent=11 // pred_check
        %p118 = pneg %p56
      $region14: #{vgg_forward.16} parent=11 // pred_check_branch
        %120 = sbr.rel (%p118) target = $region16
      $region15: #{vgg_forward.16} parent=11 // pred_region
        _
      $region16: #{vgg_forward.16} parent=11 // pred_fallthru
        _
      // Predicated region
      $region17: #{vgg_forward.16} parent=11 // pred_check
        %p121 = pneg %p77
      $region18: #{vgg_forward.16} parent=11 // pred_check_branch
        %123 = sbr.rel (%p121) target = $region20
      $region19: #{vgg_forward.16} parent=11 // pred_region
        _
      $region20: #{vgg_forward.16} parent=11 // pred_fallthru
        _
    $region12: #{vgg_forward.16} parent=5 // pred_fallthru
      _
    %p124 = scmp.lt.s32.totalorder %s9, 2
    // Predicated region
    $region21: #{vgg_forward.16} parent=5 // pred_check
      %p125 = pneg %p124
    $region22: #{vgg_forward.16} parent=5 // pred_check_branch
      %127 = sbr.rel (%p125) target = $region24
    $region23: #{vgg_forward.16} parent=5 // pred_region
      // Predicated region
      $region25: #{vgg_forward.16} parent=23 // pred_check
        %p128 = pneg %p29
      $region26: #{vgg_forward.16} parent=23 // pred_check_branch
        %130 = sbr.rel (%p128) target = $region28
      $region27: #{vgg_forward.16} parent=23 // pred_region
        %p131 = scmp.lt.s32.totalorder %s9, 1
        %s132 = scalar_select %p131, %s9, 1
        %s133 = smul.addr %s132, 10
        %s134 = smul.addr %s133, 4
        %s135 = scalar_lea.vmem %s0, %s134
      $region28: #{vgg_forward.16} parent=23 // pred_fallthru
        _
    $region24: #{vgg_forward.16} parent=5 // pred_fallthru
      _
    %p136 = scmp.le.s32.totalorder 1, %s9
    %p137 = scmp.lt.s32.totalorder %s9, 3
    %p138 = pnand %p136, %p137
    %p139 = pneg %p138
    // Predicated region
    $region29: #{vgg_forward.16} parent=5 // pred_check
      _
    $region30: #{vgg_forward.16} parent=5 // pred_check_branch
      %141 = sbr.rel (%p138) target = $region32
    $region31: #{vgg_forward.16} parent=5 // pred_region
      %s142 = ssub.s32 %s9, 1
      %p143 = scmp.lt.s32.totalorder %s14, 1
      %s144 = scalar_select %p143, %s14, 1
      %s145 = smul.addr %s144, 10
      %s146 = smul.addr %s145, 4
      %s147 = scalar_lea.vmem %s0, %s146
      %p148 = pneg %p35
      %p149 = pneg %p32
      %p150 = pneg %p56
      %p151 = pneg %p53
      %p152 = pneg %p77
      %p153 = pneg %p74
      %p154 = pneg %p103
      %p155 = pneg %p100
      %p156 = scmp.lt.s32.totalorder %s14, 1
      %s157 = scalar_select %p156, %s14, 1
      %s158 = smul.addr %s157, 4
      %s159 = smul.addr %s158, 2
      %s160 = scalar_lea.vmem %s3, %s159
      %p161 = scmp.lt.s32.totalorder %s14, 1
      %s162 = scalar_select %p161, %s14, 1
      %s163 = smul.addr %s162, 10
      %s164 = smul.addr %s163, 4
      %s165 = scalar_lea.vmem %s0, %s164
      %p166 = scmp.lt.s32.totalorder %s14, 1
      %s167 = scalar_select %p166, %s14, 1
      %s168 = smul.addr %s167, 4
      %s169 = smul.addr %s168, 2
      %s170 = scalar_lea.vmem %s3, %s169
      %v172 = vld [vmem:[%s2] sm:$0x1]
      %v173 = vld [vmem:[%s165] sm:$0xf]
      %v174 = vld [vmem:[%s165 + $0x4] sm:$0xf]
      %v175 = vld [vmem:[%s165 + $0x8] sm:$0xf]
      %v176 = vld [vmem:[%s165 + $0xc] sm:$0xf]
      %v177 = vld [vmem:[%s165 + $0x10] sm:$0xf]
      %v178 = vld [vmem:[%s165 + $0x14] sm:$0xf]
      %v179 = vld [vmem:[%s165 + $0x18] sm:$0xf]
      %v180 = vld [vmem:[%s165 + $0x1c] sm:$0xf]
      %v181 = vld [vmem:[%s1] sm:$0xf]
      %v182 = vld [vmem:[%s1 + $0x4] sm:$0xf]
      %v183 = vld [vmem:[%s1 + $0x8] sm:$0xf]
      %v184 = vld [vmem:[%s1 + $0xc] sm:$0xf]
      %v185 = vld [vmem:[%s1 + $0x10] sm:$0xf]
      %v186 = vld [vmem:[%s1 + $0x14] sm:$0xf]
      %v187 = vld [vmem:[%s1 + $0x18] sm:$0xf]
      %v188 = vld [vmem:[%s1 + $0x1c] sm:$0xf]
      %v189 = vld [vmem:[%s1 + $0x20] sm:$0xf]
      %v190 = vld [vmem:[%s1 + $0x24] sm:$0xf]
      %v191 = vld [vmem:[%s1 + $0x28] sm:$0xf]
      %v192 = vld [vmem:[%s1 + $0x2c] sm:$0xf]
      %v193 = vld [vmem:[%s1 + $0x30] sm:$0xf]
      %v194 = vld [vmem:[%s1 + $0x34] sm:$0xf]
      %v195 = vld [vmem:[%s1 + $0x38] sm:$0xf]
      %v196 = vld [vmem:[%s1 + $0x3c] sm:$0xf]
      %v197 = vld [vmem:[%s165 + $0x20] sm:$0xf]
      %s198 = scalar_lea.vmem %s1, 64
      %v199 = vld [vmem:[%s198] sm:$0xf]
      %v200 = vld [vmem:[%s198 + $0x4] sm:$0xf]
      %v201 = vld [vmem:[%s198 + $0x8] sm:$0xf]
      %v202 = vld [vmem:[%s198 + $0xc] sm:$0xf]
      %v203 = vld [vmem:[%s198 + $0x10] sm:$0xf]
      %v204 = vld [vmem:[%s198 + $0x14] sm:$0xf]
      %v205 = vld [vmem:[%s198 + $0x18] sm:$0xf]
      %v206 = vld [vmem:[%s198 + $0x1c] sm:$0xf]
      %v207 = vld [vmem:[%s198 + $0x20] sm:$0xf]
      %v208 = vld [vmem:[%s198 + $0x24] sm:$0xf]
      %v209 = vld [vmem:[%s198 + $0x28] sm:$0xf]
      %v210 = vld [vmem:[%s198 + $0x2c] sm:$0xf]
      %v211 = vld [vmem:[%s198 + $0x30] sm:$0xf]
      %v212 = vld [vmem:[%s198 + $0x34] sm:$0xf]
      %v213 = vld [vmem:[%s198 + $0x38] sm:$0xf]
      %v214 = vld [vmem:[%s198 + $0x3c] sm:$0xf]
      %v223 = vunpack.c.l.b16 %v174
      %v224 = vunpack.c.l.b16 %v175
      %v225 = vunpack.c.l.b16 %v176
      %v226 = vunpack.c.l.b16 %v177
      %v227 = vunpack.c.l.b16 %v178
      %v228 = vunpack.c.l.b16 %v179
      %v229 = vunpack.c.l.b16 %v180
      %v230 = vunpack.c.l.b16 %v197
      %v231 = vpack.c.b16 %v224, %v223
      %v232 = vpack.c.b16 %v226, %v225
      %v233 = vpack.c.b16 %v228, %v227
      %v234 = vpack.c.b16 %v230, %v229
      %v255 = vunpack.c.l.b16 %v199
      %v256 = vunpack.c.l.b16 %v200
      %v257 = vunpack.c.l.b16 %v201
      %v258 = vunpack.c.l.b16 %v202
      %v259 = vunpack.c.l.b16 %v203
      %v260 = vunpack.c.l.b16 %v204
      %v261 = vunpack.c.l.b16 %v205
      %v262 = vunpack.c.l.b16 %v206
      %v263 = vunpack.c.l.b16 %v207
      %v264 = vunpack.c.l.b16 %v208
      %v265 = vunpack.c.l.b16 %v209
      %v266 = vunpack.c.l.b16 %v210
      %v267 = vunpack.c.l.b16 %v211
      %v268 = vunpack.c.l.b16 %v212
      %v269 = vunpack.c.l.b16 %v213
      %v270 = vunpack.c.l.b16 %v214
      %v271 = vpack.c.b16 %v256, %v255
      %v272 = vpack.c.b16 %v258, %v257
      %v273 = vpack.c.b16 %v260, %v259
      %v274 = vpack.c.b16 %v262, %v261
      %v275 = vpack.c.b16 %v264, %v263
      %v276 = vpack.c.b16 %v266, %v265
      %v277 = vpack.c.b16 %v268, %v267
      %v278 = vpack.c.b16 %v270, %v269
      %287 = vmatprep.subr.bf16.mxu0 0
      %288 = vmatpush1.bf16.msra.mxu0 %v271
      %289 = vmatprep.subr.bf16.mxu0 0
      %290 = vmatpush1.bf16.msra.mxu0 %v272
      %291 = vmatprep.subr.bf16.mxu0 0
      %292 = vmatpush1.bf16.msra.mxu0 %v273
      %293 = vmatprep.subr.bf16.mxu0 0
      %294 = vmatpush1.bf16.msra.mxu0 %v274
      %295 = vmatprep.subr.bf16.mxu0 0
      %296 = vmatpush1.bf16.msra.mxu0 %v275
      %297 = vmatprep.subr.bf16.mxu0 0
      %298 = vmatpush1.bf16.msra.mxu0 %v276
      %299 = vmatprep.subr.bf16.mxu0 0
      %300 = vmatpush1.bf16.msra.mxu0 %v277
      %301 = vmatprep.subr.bf16.mxu0 0
      %302 = vmatpush1.bf16.msra.mxu0 %v278
      %303 = vmatprep.subr.bf16.mxu0 0
      %304 = vmatpush1.bf16.msra.mxu0 0
      %305 = vmatprep.subr.bf16.mxu0 0
      %306 = vmatpush1.bf16.msra.mxu0 0
      %307 = vmatprep.subr.bf16.mxu0 0
      %308 = vmatpush1.bf16.msra.mxu0 0
      %309 = vmatprep.subr.bf16.mxu0 0
      %310 = vmatpush1.bf16.msra.mxu0 0
      %311 = vmatprep.subr.bf16.mxu0 0
      %312 = vmatpush1.bf16.msra.mxu0 0
      %313 = vmatprep.subr.bf16.mxu0 0
      %314 = vmatpush1.bf16.msra.mxu0 0
      %315 = vmatprep.subr.bf16.mxu0 0
      %316 = vmatpush1.bf16.msra.mxu0 0
      %317 = vmatprep.subr.bf16.mxu0 0
      %318 = vmatpush1.bf16.msra.mxu0 0
      %319 = vmatprep.mubr.bf16.mxu0 0
      %320 = vmatmul.mubr.bf16.gmra.mrb[0].mxu0 %v231
      %v321 = vpop.f32.mrb[0].mxu0
      %v322 = vadd.f32 0.0, %v321
      %v323 = vpop.f32.mrb[0].mxu0
      %v324 = vpop.f32.mrb[0].mxu0
      %v325 = vadd.f32 0.0, %v324
      %v326 = vpop.f32.mrb[0].mxu0
      %327 = vmatprep.mubr.bf16.mxu0 0
      %328 = vmatmul.mubr.bf16.gmra.mrb[0].mxu0 %v232
      %v329 = vpop.f32.mrb[0].mxu0
      %v330 = vadd.f32 0.0, %v329
      %v331 = vpop.f32.mrb[0].mxu0
      %v332 = vpop.f32.mrb[0].mxu0
      %v333 = vadd.f32 0.0, %v332
      %v334 = vpop.f32.mrb[0].mxu0
      %335 = vmatprep.mubr.bf16.mxu0 0
      %336 = vmatmul.mubr.bf16.gmra.mrb[0].mxu0 %v233
      %v337 = vpop.f32.mrb[0].mxu0
      %v338 = vadd.f32 0.0, %v337
      %v339 = vpop.f32.mrb[0].mxu0
      %v340 = vpop.f32.mrb[0].mxu0
      %v341 = vadd.f32 0.0, %v340
      %v342 = vpop.f32.mrb[0].mxu0
      %343 = vmatprep.mubr.bf16.mxu0 0
      %344 = vmatmul.mubr.bf16.gmra.mrb[0].mxu0 %v234
      %v345 = vpop.f32.mrb[0].mxu0
      %v346 = vadd.f32 0.0, %v345
      %v347 = vpop.f32.mrb[0].mxu0
      %v348 = vpop.f32.mrb[0].mxu0
      %v349 = vadd.f32 0.0, %v348
      %v350 = vpop.f32.mrb[0].mxu0
      %351 = vdwg.mxu0
      %v353 = vunpack.c.l.b16 %v173
      %v354 = vpack.c.b16 %v223, %v353
      %v355 = vpack.c.b16 %v225, %v224
      %v356 = vpack.c.b16 %v227, %v226
      %v357 = vpack.c.b16 %v229, %v228
      %v378 = vunpack.c.l.b16 %v181
      %v379 = vunpack.c.l.b16 %v182
      %v380 = vunpack.c.l.b16 %v183
      %v381 = vunpack.c.l.b16 %v184
      %v382 = vunpack.c.l.b16 %v185
      %v383 = vunpack.c.l.b16 %v186
      %v384 = vunpack.c.l.b16 %v187
      %v385 = vunpack.c.l.b16 %v188
      %v386 = vunpack.c.l.b16 %v189
      %v387 = vunpack.c.l.b16 %v190
      %v388 = vunpack.c.l.b16 %v191
      %v389 = vunpack.c.l.b16 %v192
      %v390 = vunpack.c.l.b16 %v193
      %v391 = vunpack.c.l.b16 %v194
      %v392 = vunpack.c.l.b16 %v195
      %v393 = vunpack.c.l.b16 %v196
      %v394 = vpack.c.b16 %v379, %v378
      %v395 = vpack.c.b16 %v381, %v380
      %v396 = vpack.c.b16 %v383, %v382
      %v397 = vpack.c.b16 %v385, %v384
      %v398 = vpack.c.b16 %v387, %v386
      %v399 = vpack.c.b16 %v389, %v388
      %v400 = vpack.c.b16 %v391, %v390
      %v401 = vpack.c.b16 %v393, %v392
      %410 = vmatprep.subr.bf16.mxu0 0
      %411 = vmatpush1.bf16.msra.mxu0 %v394
      %412 = vmatprep.subr.bf16.mxu0 0
      %413 = vmatpush1.bf16.msra.mxu0 %v395
      %414 = vmatprep.subr.bf16.mxu0 0
      %415 = vmatpush1.bf16.msra.mxu0 %v396
      %416 = vmatprep.subr.bf16.mxu0 0
      %417 = vmatpush1.bf16.msra.mxu0 %v397
      %418 = vmatprep.subr.bf16.mxu0 0
      %419 = vmatpush1.bf16.msra.mxu0 %v398
      %420 = vmatprep.subr.bf16.mxu0 0
      %421 = vmatpush1.bf16.msra.mxu0 %v399
      %422 = vmatprep.subr.bf16.mxu0 0
      %423 = vmatpush1.bf16.msra.mxu0 %v400
      %424 = vmatprep.subr.bf16.mxu0 0
      %425 = vmatpush1.bf16.msra.mxu0 %v401
      %426 = vmatprep.subr.bf16.mxu0 0
      %427 = vmatpush1.bf16.msra.mxu0 0
      %428 = vmatprep.subr.bf16.mxu0 0
      %429 = vmatpush1.bf16.msra.mxu0 0
      %430 = vmatprep.subr.bf16.mxu0 0
      %431 = vmatpush1.bf16.msra.mxu0 0
      %432 = vmatprep.subr.bf16.mxu0 0
      %433 = vmatpush1.bf16.msra.mxu0 0
      %434 = vmatprep.subr.bf16.mxu0 0
      %435 = vmatpush1.bf16.msra.mxu0 0
      %436 = vmatprep.subr.bf16.mxu0 0
      %437 = vmatpush1.bf16.msra.mxu0 0
      %438 = vmatprep.subr.bf16.mxu0 0
      %439 = vmatpush1.bf16.msra.mxu0 0
      %440 = vmatprep.subr.bf16.mxu0 0
      %441 = vmatpush1.bf16.msra.mxu0 0
      %442 = vmatprep.mubr.bf16.mxu0 0
      %443 = vmatmul.mubr.bf16.gmra.mrb[0].mxu0 %v354
      %v444 = vpop.f32.mrb[0].mxu0
      %v445 = vadd.f32 %v322, %v444
      %v446 = vpop.f32.mrb[0].mxu0
      %v447 = vpop.f32.mrb[0].mxu0
      %v448 = vadd.f32 %v325, %v447
      %v449 = vpop.f32.mrb[0].mxu0
      %450 = vmatprep.mubr.bf16.mxu0 0
      %451 = vmatmul.mubr.bf16.gmra.mrb[0].mxu0 %v355
      %v452 = vpop.f32.mrb[0].mxu0
      %v453 = vadd.f32 %v330, %v452
      %v454 = vpop.f32.mrb[0].mxu0
      %v455 = vpop.f32.mrb[0].mxu0
      %v456 = vadd.f32 %v333, %v455
      %v457 = vpop.f32.mrb[0].mxu0
      %458 = vmatprep.mubr.bf16.mxu0 0
      %459 = vmatmul.mubr.bf16.gmra.mrb[0].mxu0 %v356
      %v460 = vpop.f32.mrb[0].mxu0
      %v461 = vadd.f32 %v338, %v460
      %v462 = vpop.f32.mrb[0].mxu0
      %v463 = vpop.f32.mrb[0].mxu0
      %v464 = vadd.f32 %v341, %v463
      %v465 = vpop.f32.mrb[0].mxu0
      %466 = vmatprep.mubr.bf16.mxu0 0
      %467 = vmatmul.mubr.bf16.gmra.mrb[0].mxu0 %v357
      %v468 = vpop.f32.mrb[0].mxu0
      %v469 = vadd.f32 %v346, %v468
      %v470 = vpop.f32.mrb[0].mxu0
      %v471 = vpop.f32.mrb[0].mxu0
      %v472 = vadd.f32 %v349, %v471
      %v473 = vpop.f32.mrb[0].mxu0
      %474 = vdwg.mxu0
      %v475 = vld [vmem:[%s165 + $0x8] sm:$0xf]
      %v476 = vld [vmem:[%s165 + $0xc] sm:$0xf]
      %v477 = vld [vmem:[%s165 + $0x10] sm:$0xf]
      %v478 = vld [vmem:[%s165 + $0x14] sm:$0xf]
      %v479 = vld [vmem:[%s165 + $0x18] sm:$0xf]
      %v480 = vld [vmem:[%s165 + $0x1c] sm:$0xf]
      %v481 = vld [vmem:[%s165 + $0x20] sm:$0xf]
      %v482 = vld [vmem:[%s165 + $0x24] sm:$0xf]
      %s483 = scalar_lea.vmem %s1, 128
      %v484 = vld [vmem:[%s483] sm:$0xf]
      %v485 = vld [vmem:[%s483 + $0x4] sm:$0xf]
      %v486 = vld [vmem:[%s483 + $0x8] sm:$0xf]
      %v487 = vld [vmem:[%s483 + $0xc] sm:$0xf]
      %v488 = vld [vmem:[%s483 + $0x10] sm:$0xf]
      %v489 = vld [vmem:[%s483 + $0x14] sm:$0xf]
      %v490 = vld [vmem:[%s483 + $0x18] sm:$0xf]
      %v491 = vld [vmem:[%s483 + $0x1c] sm:$0xf]
      %v492 = vld [vmem:[%s483 + $0x20] sm:$0xf]
      %v493 = vld [vmem:[%s483 + $0x24] sm:$0xf]
      %v494 = vld [vmem:[%s483 + $0x28] sm:$0xf]
      %v495 = vld [vmem:[%s483 + $0x2c] sm:$0xf]
      %v496 = vld [vmem:[%s483 + $0x30] sm:$0xf]
      %v497 = vld [vmem:[%s483 + $0x34] sm:$0xf]
      %v498 = vld [vmem:[%s483 + $0x38] sm:$0xf]
      %v499 = vld [vmem:[%s483 + $0x3c] sm:$0xf]
      %v508 = vunpack.c.l.b16 %v475
      %v509 = vunpack.c.l.b16 %v476
      %v510 = vunpack.c.l.b16 %v477
      %v511 = vunpack.c.l.b16 %v478
      %v512 = vunpack.c.l.b16 %v479
      %v513 = vunpack.c.l.b16 %v480
      %v514 = vunpack.c.l.b16 %v481
      %v515 = vunpack.c.l.b16 %v482
      %v516 = vpack.c.b16 %v509, %v508
      %v517 = vpack.c.b16 %v511, %v510
      %v518 = vpack.c.b16 %v513, %v512
      %v519 = vpack.c.b16 %v515, %v514
      %v540 = vunpack.c.l.b16 %v484
      %v541 = vunpack.c.l.b16 %v485
      %v542 = vunpack.c.l.b16 %v486
      %v543 = vunpack.c.l.b16 %v487
      %v544 = vunpack.c.l.b16 %v488
      %v545 = vunpack.c.l.b16 %v489
      %v546 = vunpack.c.l.b16 %v490
      %v547 = vunpack.c.l.b16 %v491
      %v548 = vunpack.c.l.b16 %v492
      %v549 = vunpack.c.l.b16 %v493
      %v550 = vunpack.c.l.b16 %v494
      %v551 = vunpack.c.l.b16 %v495
      %v552 = vunpack.c.l.b16 %v496
      %v553 = vunpack.c.l.b16 %v497
      %v554 = vunpack.c.l.b16 %v498
      %v555 = vunpack.c.l.b16 %v499
      %v556 = vpack.c.b16 %v541, %v540
      %v557 = vpack.c.b16 %v543, %v542
      %v558 = vpack.c.b16 %v545, %v544
      %v559 = vpack.c.b16 %v547, %v546
      %v560 = vpack.c.b16 %v549, %v548
      %v561 = vpack.c.b16 %v551, %v550
      %v562 = vpack.c.b16 %v553, %v552
      %v563 = vpack.c.b16 %v555, %v554
      %572 = vmatprep.subr.bf16.mxu0 0
      %573 = vmatpush1.bf16.msra.mxu0 %v556
      %574 = vmatprep.subr.bf16.mxu0 0
      %575 = vmatpush1.bf16.msra.mxu0 %v557
      %576 = vmatprep.subr.bf16.mxu0 0
      %577 = vmatpush1.bf16.msra.mxu0 %v558
      %578 = vmatprep.subr.bf16.mxu0 0
      %579 = vmatpush1.bf16.msra.mxu0 %v559
      %580 = vmatprep.subr.bf16.mxu0 0
      %581 = vmatpush1.bf16.msra.mxu0 %v560
      %582 = vmatprep.subr.bf16.mxu0 0
      %583 = vmatpush1.bf16.msra.mxu0 %v561
      %584 = vmatprep.subr.bf16.mxu0 0
      %585 = vmatpush1.bf16.msra.mxu0 %v562
      %586 = vmatprep.subr.bf16.mxu0 0
      %587 = vmatpush1.bf16.msra.mxu0 %v563
      %588 = vmatprep.subr.bf16.mxu0 0
      %589 = vmatpush1.bf16.msra.mxu0 0
      %590 = vmatprep.subr.bf16.mxu0 0
      %591 = vmatpush1.bf16.msra.mxu0 0
      %592 = vmatprep.subr.bf16.mxu0 0
      %593 = vmatpush1.bf16.msra.mxu0 0
      %594 = vmatprep.subr.bf16.mxu0 0
      %595 = vmatpush1.bf16.msra.mxu0 0
      %596 = vmatprep.subr.bf16.mxu0 0
      %597 = vmatpush1.bf16.msra.mxu0 0
      %598 = vmatprep.subr.bf16.mxu0 0
      %599 = vmatpush1.bf16.msra.mxu0 0
      %600 = vmatprep.subr.bf16.mxu0 0
      %601 = vmatpush1.bf16.msra.mxu0 0
      %602 = vmatprep.subr.bf16.mxu0 0
      %603 = vmatpush1.bf16.msra.mxu0 0
      %604 = vmatprep.mubr.bf16.mxu0 0
      %605 = vmatmul.mubr.bf16.gmra.mrb[0].mxu0 %v516
      %v606 = vpop.f32.mrb[0].mxu0
      %v607 = vadd.f32 0.0, %v606
      %v608 = vpop.f32.mrb[0].mxu0
      %v609 = vpop.f32.mrb[0].mxu0
      %v610 = vadd.f32 0.0, %v609
      %v611 = vpop.f32.mrb[0].mxu0
      %612 = vmatprep.mubr.bf16.mxu0 0
      %613 = vmatmul.mubr.bf16.gmra.mrb[0].mxu0 %v517
      %v614 = vpop.f32.mrb[0].mxu0
      %v615 = vadd.f32 0.0, %v614
      %v616 = vpop.f32.mrb[0].mxu0
      %v617 = vpop.f32.mrb[0].mxu0
      %v618 = vadd.f32 0.0, %v617
      %v619 = vpop.f32.mrb[0].mxu0
      %620 = vmatprep.mubr.bf16.mxu0 0
      %621 = vmatmul.mubr.bf16.gmra.mrb[0].mxu0 %v518
      %v622 = vpop.f32.mrb[0].mxu0
      %v623 = vadd.f32 0.0, %v622
      %v624 = vpop.f32.mrb[0].mxu0
      %v625 = vpop.f32.mrb[0].mxu0
      %v626 = vadd.f32 0.0, %v625
      %v627 = vpop.f32.mrb[0].mxu0
      %628 = vmatprep.mubr.bf16.mxu0 0
      %629 = vmatmul.mubr.bf16.gmra.mrb[0].mxu0 %v519
      %v630 = vpop.f32.mrb[0].mxu0
      %v631 = vadd.f32 0.0, %v630
      %v632 = vpop.f32.mrb[0].mxu0
      %v633 = vpop.f32.mrb[0].mxu0
      %v634 = vadd.f32 0.0, %v633
      %v635 = vpop.f32.mrb[0].mxu0
      %636 = vdwg.mxu0
      %v637 = vadd.f32 %v445, %v607
      %v638 = vadd.f32 %v448, %v610
      %v639 = vadd.f32 %v453, %v615
      %v640 = vadd.f32 %v456, %v618
      %v641 = vadd.f32 %v461, %v623
      %v642 = vadd.f32 %v464, %v626
      %v643 = vadd.f32 %v469, %v631
      %v644 = vadd.f32 %v472, %v634
      %v646 = vlaneseq
      %v647 = vshrl.u32 %v646, 7
      %v648 = vsub.s32 0, %v647
      %v649 = vrot.slane %v172, %v648
      %v651 = vadd.f32 %v637, %v649
      %v652 = vadd.f32 %v638, %v649
      %v653 = vadd.f32 %v639, %v649
      %v654 = vadd.f32 %v640, %v649
      %v655 = vadd.f32 %v641, %v649
      %v656 = vadd.f32 %v642, %v649
      %v657 = vadd.f32 %v643, %v649
      %v658 = vadd.f32 %v644, %v649
      %v659 = vmax.f32 %v651, 0.0
      %v660 = vmax.f32 %v652, 0.0
      %v661 = vmax.f32 %v653, 0.0
      %v662 = vmax.f32 %v654, 0.0
      %v663 = vmax.f32 %v655, 0.0
      %v664 = vmax.f32 %v656, 0.0
      %v665 = vmax.f32 %v657, 0.0
      %v666 = vmax.f32 %v658, 0.0
      %v667 = vmax.f32 %v659, %v660
      %v668 = vmax.f32 %v661, %v662
      %v669 = vmax.f32 %v663, %v664
      %v670 = vmax.f32 %v665, %v666
      %671 = vst [vmem:[#allocation2] sm:$0xff] %v667
      %672 = vst [vmem:[#allocation2 + $0x8] sm:$0xff] %v668
      %673 = vst [vmem:[#allocation2 + $0x10] sm:$0xff] %v669
      %674 = vst [vmem:[#allocation2 + $0x18] sm:$0xff] %v670
      %v675 = vld [vmem:[#allocation2] ss:$2 sm:$0xf]
      %s676 = scalar_lea.vmem [#allocation2], 8
      %v677 = vld [vmem:[%s676] ss:$2 sm:$0xf]
      %s678 = scalar_lea.vmem [#allocation2], 16
      %v679 = vld [vmem:[%s678] ss:$2 sm:$0xf]
      %s680 = scalar_lea.vmem [#allocation2], 24
      %v681 = vld [vmem:[%s680] ss:$2 sm:$0xf]
      %s682 = scalar_lea.vmem [#allocation2], 1
      %v683 = vld [vmem:[%s682] ss:$2 sm:$0xf]
      %s684 = scalar_lea.vmem [#allocation2], 9
      %v685 = vld [vmem:[%s684] ss:$2 sm:$0xf]
      %s686 = scalar_lea.vmem [#allocation2], 17
      %v687 = vld [vmem:[%s686] ss:$2 sm:$0xf]
      %s688 = scalar_lea.vmem [#allocation2], 25
      %v689 = vld [vmem:[%s688] ss:$2 sm:$0xf]
      %v690 = vmax.f32 %v675, %v683
      %v691 = vmax.f32 %v677, %v685
      %v692 = vmax.f32 %v679, %v687
      %v693 = vmax.f32 %v681, %v689
      %v694 = vpack.c.bf16 %v690, %v690
      %v695 = vpack.c.bf16 %v691, %v691
      %v696 = vpack.c.bf16 %v692, %v692
      %v697 = vpack.c.bf16 %v693, %v693
      %698 = vst [vmem:[%s170] sm:$0x3] %v694
      %699 = vst [vmem:[%s170 + $0x2] sm:$0x3] %v695
      %700 = vst [vmem:[%s170 + $0x4] sm:$0x3] %v696
      %701 = vst [vmem:[%s170 + $0x6] sm:$0x3] %v697
      %p702 = scmp.lt.s32.totalorder %s14, 1
      %s703 = scalar_select %p702, %s14, 1
      %s704 = smul.addr %s703, 4
      %s705 = smul.addr %s704, 2
      %s706 = scalar_lea.vmem %s3, %s705
      // Predicated region
      $region33: #{vgg_forward.16} parent=31 // pred_check
        %p707 = pneg %p100
      $region34: #{vgg_forward.16} parent=31 // pred_check_branch
        %709 = sbr.rel (%p707) target = $region36
      $region35: #{vgg_forward.16} parent=31 // pred_region
        _
      $region36: #{vgg_forward.16} parent=31 // pred_fallthru
        _
    $region32: #{vgg_forward.16} parent=5 // pred_fallthru
      _
    %p710 = scmp.le.s32.totalorder 2, %s9
    // Predicated region
    $region37: #{vgg_forward.16} parent=5 // pred_check
      %p711 = pneg %p710
    $region38: #{vgg_forward.16} parent=5 // pred_check_branch
      %713 = sbr.rel (%p711) target = $region40
    $region39: #{vgg_forward.16} parent=5 // pred_region
      %s714 = ssub.s32 %s9, 2
      // Predicated region
      $region41: #{vgg_forward.16} parent=39 // pred_check
        %p715 = pneg %p106
      $region42: #{vgg_forward.16} parent=39 // pred_check_branch
        %717 = sbr.rel (%p715) target = $region44
      $region43: #{vgg_forward.16} parent=39 // pred_region
        %p718 = scmp.lt.s32.totalorder %s15, 1
        %s719 = scalar_select %p718, %s15, 1
        %s720 = smul.addr %s719, 4
        %s721 = smul.addr %s720, 2
        %s722 = scalar_lea.vmem %s3, %s721
      $region44: #{vgg_forward.16} parent=39 // pred_fallthru
        _
    $region40: #{vgg_forward.16} parent=5 // pred_fallthru
      _
  $region6: #{vgg_forward.16} parent=0 // loop_footer
    %s13 = sadd.s32 1, %s9
  $region7: #{vgg_forward.16} parent=0 // loop_footer_branch
    %8 = sbr.rel target = $region3
  $region8: #{vgg_forward.16} parent=0 // loop_exit
    _

// kernel: vgg_forward.18
$region0: #{vgg_forward.18}
  #allocation0 [shape = 'u32[]', space=smem, size = 0x4, offset = 0x4, fixed_abs, tag = 'smem constant byte address 0x4 - core index']
  #allocation1 [shape = 'u32[144,128]{1,0:T(1,128)}', space=vmem, size = 0x12000, scoped, tag = 'internal scratch']
  #allocation2 [shape = 'f32[2,4,128]{2,1,0:T(4,128)}', space=vmem, size = 0x1000, scoped, tag = 'scratch operand']
  %s0 = inlined_call_operand.vmem [shape: bf16[2,24,128], index: 0, kind: input, shape index: {}]
  %s1 = inlined_call_operand.vmem [shape: bf16[3,128,128], index: 1, kind: input, shape index: {}]
  %s2 = inlined_call_operand.vmem [shape: f32[1,128], index: 2, kind: input, shape index: {}]
  %s3 = inlined_call_operand.vmem [shape: bf16[2,2,2,128], index: 3, kind: output, shape index: {}]
  %s4 = sld [smem:[#allocation0]]
  $region45: #{vgg_forward.18} parent=0
    _
  %s6 = ssub.s32 1, %s4
  %s7 = scalar_select 0, %s6, %s4
  loop: start=0, step=1, limit=4
  $region2: #{vgg_forward.18} parent=0 // loop_pre_header
    _
  $region3: #{vgg_forward.18} parent=0 // loop_header
    %s9 = sphi 0, %s13
    %p10 = scmp.ge.s32.totalorder %s9, 4
    %s19 = sphi 0, %s21
    %s22 = sphi 0, %s19
    %s23 = sphi 0, %s22
    %s39 = sphi 0, %s23
    %s43 = sphi 0, %s43
    %s45 = sphi 0, %s43
    %s46 = sphi 0, %s45
    %s60 = sphi 0, %s46
    %s64 = sphi 0, %s64
    %s66 = sphi 0, %s64
    %s67 = sphi 0, %s66
    %s81 = sphi 0, %s67
    %s87 = sphi 0, %s89
    %s90 = sphi 0, %s87
    %s91 = sphi 0, %s90
    %s107 = sphi 0, %s91
  $region4: #{vgg_forward.18} parent=0 // loop_header_branch
    %12 = sbr.rel (%p10) target = $region8
  $region5: #{vgg_forward.18} parent=0 // loop_body
    %s14 = ssub.s32 %s9, 1
    %s15 = ssub.s32 %s9, 2
    %s16 = sadd.s32 %s9, 1
    %s17 = ssub.s32 %s9, %s16
    %p18 = scmp.eq.s32.totalorder %s17, 0
    %s20 = sadd.s32 %s19, 1
    %s21 = scalar_select %p18, %s19, %s20
    %p24 = pneg %p18
    %p25 = scmp.eq.s32.totalorder %s9, 1
    %p26 = por %p24, %p25
    %p27 = scmp.ne.s32.totalorder %s19, %s22
    %p28 = scmp.eq.s32.totalorder %s9, 0
    %p29 = por %p27, %p28
    %p30 = scmp.ne.s32.totalorder %s19, %s22
    %p31 = scmp.eq.s32.totalorder %s14, 1
    %p32 = por %p30, %p31
    %p33 = scmp.ne.s32.totalorder %s22, %s23
    %p34 = scmp.eq.s32.totalorder %s14, 0
    %p35 = por %p33, %p34
    %p36 = scmp.ne.s32.totalorder %s22, %s23
    %p37 = scmp.eq.s32.totalorder %s15, 1
    %p38 = por %p36, %p37
    %p40 = scmp.ne.s32.totalorder %s23, %s39
    %p41 = scmp.eq.s32.totalorder %s15, 0
    %p42 = por %p40, %p41
    %s44 = sadd.s32 %s43, 1
    %p47 = scmp.eq.s32.totalorder %s9, 1
    %p48 = scmp.ne.s32.totalorder %s43, %s45
    %p49 = scmp.eq.s32.totalorder %s9, 0
    %p50 = por %p48, %p49
    %p51 = scmp.ne.s32.totalorder %s43, %s45
    %p52 = scmp.eq.s32.totalorder %s14, 1
    %p53 = por %p51, %p52
    %p54 = scmp.ne.s32.totalorder %s45, %s46
    %p55 = scmp.eq.s32.totalorder %s14, 0
    %p56 = por %p54, %p55
    %p57 = scmp.ne.s32.totalorder %s45, %s46
    %p58 = scmp.eq.s32.totalorder %s15, 1
    %p59 = por %p57, %p58
    %p61 = scmp.ne.s32.totalorder %s46, %s60
    %p62 = scmp.eq.s32.totalorder %s15, 0
    %p63 = por %p61, %p62
    %s65 = sadd.s32 %s64, 1
    %p68 = scmp.eq.s32.totalorder %s9, 1
    %p69 = scmp.ne.s32.totalorder %s64, %s66
    %p70 = scmp.eq.s32.totalorder %s9, 0
    %p71 = por %p69, %p70
    %p72 = scmp.ne.s32.totalorder %s64, %s66
    %p73 = scmp.eq.s32.totalorder %s14, 1
    %p74 = por %p72, %p73
    %p75 = scmp.ne.s32.totalorder %s66, %s67
    %p76 = scmp.eq.s32.totalorder %s14, 0
    %p77 = por %p75, %p76
    %p78 = scmp.ne.s32.totalorder %s66, %s67
    %p79 = scmp.eq.s32.totalorder %s15, 1
    %p80 = por %p78, %p79
    %p82 = scmp.ne.s32.totalorder %s67, %s81
    %p83 = scmp.eq.s32.totalorder %s15, 0
    %p84 = por %p82, %p83
    %s85 = ssub.s32 %s9, %s16
    %p86 = scmp.eq.s32.totalorder %s85, 0
    %s88 = sadd.s32 %s87, 1
    %s89 = scalar_select %p86, %s87, %s88
    %p92 = pneg %p86
    %p93 = scmp.eq.s32.totalorder %s9, 1
    %p94 = por %p92, %p93
    %p95 = scmp.ne.s32.totalorder %s87, %s90
    %p96 = scmp.eq.s32.totalorder %s9, 0
    %p97 = por %p95, %p96
    %p98 = scmp.ne.s32.totalorder %s87, %s90
    %p99 = scmp.eq.s32.totalorder %s14, 1
    %p100 = por %p98, %p99
    %p101 = scmp.ne.s32.totalorder %s90, %s91
    %p102 = scmp.eq.s32.totalorder %s14, 0
    %p103 = por %p101, %p102
    %p104 = scmp.ne.s32.totalorder %s90, %s91
    %p105 = scmp.eq.s32.totalorder %s15, 1
    %p106 = por %p104, %p105
    %p108 = scmp.ne.s32.totalorder %s91, %s107
    %p109 = scmp.eq.s32.totalorder %s15, 0
    %p110 = por %p108, %p109
    %p111 = scmp.le.s32.totalorder 1, %s9
    %p112 = scmp.lt.s32.totalorder %s9, 3
    %p113 = pnand %p111, %p112
    %p114 = pneg %p113
    // Predicated region
    $region9: #{vgg_forward.18} parent=5 // pred_check
      _
    $region10: #{vgg_forward.18} parent=5 // pred_check_branch
      %116 = sbr.rel (%p113) target = $region12
    $region11: #{vgg_forward.18} parent=5 // pred_region
      %s117 = ssub.s32 %s9, 1
      // Predicated region
      $region13: #{vgg_forward.18} parent=11 // pred_check
        %p118 = pneg %p56
      $region14: #{vgg_forward.18} parent=11 // pred_check_branch
        %120 = sbr.rel (%p118) target = $region16
      $region15: #{vgg_forward.18} parent=11 // pred_region
        _
      $region16: #{vgg_forward.18} parent=11 // pred_fallthru
        _
      // Predicated region
      $region17: #{vgg_forward.18} parent=11 // pred_check
        %p121 = pneg %p77
      $region18: #{vgg_forward.18} parent=11 // pred_check_branch
        %123 = sbr.rel (%p121) target = $region20
      $region19: #{vgg_forward.18} parent=11 // pred_region
        _
      $region20: #{vgg_forward.18} parent=11 // pred_fallthru
        _
    $region12: #{vgg_forward.18} parent=5 // pred_fallthru
      _
    %p124 = scmp.lt.s32.totalorder %s9, 2
    // Predicated region
    $region21: #{vgg_forward.18} parent=5 // pred_check
      %p125 = pneg %p124
    $region22: #{vgg_forward.18} parent=5 // pred_check_branch
      %127 = sbr.rel (%p125) target = $region24
    $region23: #{vgg_forward.18} parent=5 // pred_region
      // Predicated region
      $region25: #{vgg_forward.18} parent=23 // pred_check
        %p128 = pneg %p29
      $region26: #{vgg_forward.18} parent=23 // pred_check_branch
        %130 = sbr.rel (%p128) target = $region28
      $region27: #{vgg_forward.18} parent=23 // pred_region
        %p131 = scmp.lt.s32.totalorder %s9, 1
        %s132 = scalar_select %p131, %s9, 1
        %s133 = smul.addr %s132, 3
        %s134 = smul.addr %s133, 4
        %s135 = scalar_lea.vmem %s0, %s134
      $region28: #{vgg_forward.18} parent=23 // pred_fallthru
        _
    $region24: #{vgg_forward.18} parent=5 // pred_fallthru
      _
    %p136 = scmp.le.s32.totalorder 1, %s9
    %p137 = scmp.lt.s32.totalorder %s9, 3
    %p138 = pnand %p136, %p137
    %p139 = pneg %p138
    // Predicated region
    $region29: #{vgg_forward.18} parent=5 // pred_check
      _
    $region30: #{vgg_forward.18} parent=5 // pred_check_branch
      %141 = sbr.rel (%p138) target = $region32
    $region31: #{vgg_forward.18} parent=5 // pred_region
      %s142 = ssub.s32 %s9, 1
      %p143 = scmp.lt.s32.totalorder %s14, 1
      %s144 = scalar_select %p143, %s14, 1
      %s145 = smul.addr %s144, 3
      %s146 = smul.addr %s145, 4
      %s147 = scalar_lea.vmem %s0, %s146
      %p148 = pneg %p35
      %p149 = pneg %p32
      %p150 = pneg %p56
      %p151 = pneg %p53
      %p152 = pneg %p77
      %p153 = pneg %p74
      %p154 = pneg %p103
      %p155 = pneg %p100
      %p156 = scmp.lt.s32.totalorder %s14, 1
      %s157 = scalar_select %p156, %s14, 1
      %s158 = smul.addr %s157, 2
      %s159 = scalar_lea.vmem %s3, %s158
      %p160 = scmp.lt.s32.totalorder %s14, 1
      %s161 = scalar_select %p160, %s14, 1
      %s162 = smul.addr %s161, 3
      %s163 = smul.addr %s162, 4
      %s164 = scalar_lea.vmem %s0, %s163
      %p165 = scmp.lt.s32.totalorder %s14, 1
      %s166 = scalar_select %p165, %s14, 1
      %s167 = smul.addr %s166, 2
      %s168 = scalar_lea.vmem %s3, %s167
      %v170 = vld [vmem:[%s2] sm:$0x1]
      %v171 = vld [vmem:[%s164] sm:$0xf]
      %v172 = vld [vmem:[%s164 + $0x4] sm:$0xf]
      %v173 = vld [vmem:[%s1] sm:$0xf]
      %v174 = vld [vmem:[%s1 + $0x4] sm:$0xf]
      %v175 = vld [vmem:[%s1 + $0x8] sm:$0xf]
      %v176 = vld [vmem:[%s1 + $0xc] sm:$0xf]
      %v177 = vld [vmem:[%s1 + $0x10] sm:$0xf]
      %v178 = vld [vmem:[%s1 + $0x14] sm:$0xf]
      %v179 = vld [vmem:[%s1 + $0x18] sm:$0xf]
      %v180 = vld [vmem:[%s1 + $0x1c] sm:$0xf]
      %v181 = vld [vmem:[%s1 + $0x20] sm:$0xf]
      %v182 = vld [vmem:[%s1 + $0x24] sm:$0xf]
      %v183 = vld [vmem:[%s1 + $0x28] sm:$0xf]
      %v184 = vld [vmem:[%s1 + $0x2c] sm:$0xf]
      %v185 = vld [vmem:[%s1 + $0x30] sm:$0xf]
      %v186 = vld [vmem:[%s1 + $0x34] sm:$0xf]
      %v187 = vld [vmem:[%s1 + $0x38] sm:$0xf]
      %v188 = vld [vmem:[%s1 + $0x3c] sm:$0xf]
      %v189 = vld [vmem:[%s164] sm:$0xc]
      %v190 = vld [vmem:[%s164 + $0x4] sm:$0xf]
      %v191 = vld [vmem:[%s164 + $0x8] sm:$0x3]
      %s192 = scalar_lea.vmem %s1, 64
      %v193 = vld [vmem:[%s192] sm:$0xf]
      %v194 = vld [vmem:[%s192 + $0x4] sm:$0xf]
      %v195 = vld [vmem:[%s192 + $0x8] sm:$0xf]
      %v196 = vld [vmem:[%s192 + $0xc] sm:$0xf]
      %v197 = vld [vmem:[%s192 + $0x10] sm:$0xf]
      %v198 = vld [vmem:[%s192 + $0x14] sm:$0xf]
      %v199 = vld [vmem:[%s192 + $0x18] sm:$0xf]
      %v200 = vld [vmem:[%s192 + $0x1c] sm:$0xf]
      %v201 = vld [vmem:[%s192 + $0x20] sm:$0xf]
      %v202 = vld [vmem:[%s192 + $0x24] sm:$0xf]
      %v203 = vld [vmem:[%s192 + $0x28] sm:$0xf]
      %v204 = vld [vmem:[%s192 + $0x2c] sm:$0xf]
      %v205 = vld [vmem:[%s192 + $0x30] sm:$0xf]
      %v206 = vld [vmem:[%s192 + $0x34] sm:$0xf]
      %v207 = vld [vmem:[%s192 + $0x38] sm:$0xf]
      %v208 = vld [vmem:[%s192 + $0x3c] sm:$0xf]
      %v212 = vunpack.c.l.b16 %v189
      %v213 = vunpack.c.l.b16 %v190
      %v214 = vunpack.c.l.b16 %v191
      %v215 = vpack.c.b16 %v213, %v212
      %v216 = vpack.c.b16 %v214, %v214
      %vm217 = vcmask 1045504
      %v218 = vrot.slane %v215, 2
      %v219 = vrot.slane %v216, 2
      %v220 = vsel %vm217, %v218, %v219
      %v238 = vunpack.c.l.b16 %v193
      %v239 = vunpack.c.l.b16 %v194
      %v240 = vunpack.c.l.b16 %v195
      %v241 = vunpack.c.l.b16 %v196
      %v242 = vunpack.c.l.b16 %v197
      %v243 = vunpack.c.l.b16 %v198
      %v244 = vunpack.c.l.b16 %v199
      %v245 = vunpack.c.l.b16 %v200
      %v246 = vunpack.c.l.b16 %v201
      %v247 = vunpack.c.l.b16 %v202
      %v248 = vunpack.c.l.b16 %v203
      %v249 = vunpack.c.l.b16 %v204
      %v250 = vunpack.c.l.b16 %v205
      %v251 = vunpack.c.l.b16 %v206
      %v252 = vunpack.c.l.b16 %v207
      %v253 = vunpack.c.l.b16 %v208
      %v254 = vpack.c.b16 %v239, %v238
      %v255 = vpack.c.b16 %v241, %v240
      %v256 = vpack.c.b16 %v243, %v242
      %v257 = vpack.c.b16 %v245, %v244
      %v258 = vpack.c.b16 %v247, %v246
      %v259 = vpack.c.b16 %v249, %v248
      %v260 = vpack.c.b16 %v251, %v250
      %v261 = vpack.c.b16 %v253, %v252
      %270 = vmatprep.subr.bf16.mxu0 0
      %271 = vmatpush1.bf16.msra.mxu0 %v254
      %272 = vmatprep.subr.bf16.mxu0 0
      %273 = vmatpush1.bf16.msra.mxu0 %v255
      %274 = vmatprep.subr.bf16.mxu0 0
      %275 = vmatpush1.bf16.msra.mxu0 %v256
      %276 = vmatprep.subr.bf16.mxu0 0
      %277 = vmatpush1.bf16.msra.mxu0 %v257
      %278 = vmatprep.subr.bf16.mxu0 0
      %279 = vmatpush1.bf16.msra.mxu0 %v258
      %280 = vmatprep.subr.bf16.mxu0 0
      %281 = vmatpush1.bf16.msra.mxu0 %v259
      %282 = vmatprep.subr.bf16.mxu0 0
      %283 = vmatpush1.bf16.msra.mxu0 %v260
      %284 = vmatprep.subr.bf16.mxu0 0
      %285 = vmatpush1.bf16.msra.mxu0 %v261
      %286 = vmatprep.subr.bf16.mxu0 0
      %287 = vmatpush1.bf16.msra.mxu0 0
      %288 = vmatprep.subr.bf16.mxu0 0
      %289 = vmatpush1.bf16.msra.mxu0 0
      %290 = vmatprep.subr.bf16.mxu0 0
      %291 = vmatpush1.bf16.msra.mxu0 0
      %292 = vmatprep.subr.bf16.mxu0 0
      %293 = vmatpush1.bf16.msra.mxu0 0
      %294 = vmatprep.subr.bf16.mxu0 0
      %295 = vmatpush1.bf16.msra.mxu0 0
      %296 = vmatprep.subr.bf16.mxu0 0
      %297 = vmatpush1.bf16.msra.mxu0 0
      %298 = vmatprep.subr.bf16.mxu0 0
      %299 = vmatpush1.bf16.msra.mxu0 0
      %300 = vmatprep.subr.bf16.mxu0 0
      %301 = vmatpush1.bf16.msra.mxu0 0
      %302 = vmatprep.mubr.bf16.mxu0 0
      %303 = vmatmul.mubr.bf16.gmra.mrb[0].mxu0 %v220
      %v304 = vpop.f32.mrb[0].mxu0
      %v305 = vadd.f32 0.0, %v304
      %v306 = vpop.f32.mrb[0].mxu0
      %v307 = vpop.f32.mrb[0].mxu0
      %v308 = vadd.f32 0.0, %v307
      %v309 = vpop.f32.mrb[0].mxu0
      %310 = vdwg.mxu0
      %v313 = vunpack.c.l.b16 %v171
      %v314 = vunpack.c.l.b16 %v172
      %v315 = vpack.c.b16 %v314, %v313
      %v333 = vunpack.c.l.b16 %v173
      %v334 = vunpack.c.l.b16 %v174
      %v335 = vunpack.c.l.b16 %v175
      %v336 = vunpack.c.l.b16 %v176
      %v337 = vunpack.c.l.b16 %v177
      %v338 = vunpack.c.l.b16 %v178
      %v339 = vunpack.c.l.b16 %v179
      %v340 = vunpack.c.l.b16 %v180
      %v341 = vunpack.c.l.b16 %v181
      %v342 = vunpack.c.l.b16 %v182
      %v343 = vunpack.c.l.b16 %v183
      %v344 = vunpack.c.l.b16 %v184
      %v345 = vunpack.c.l.b16 %v185
      %v346 = vunpack.c.l.b16 %v186
      %v347 = vunpack.c.l.b16 %v187
      %v348 = vunpack.c.l.b16 %v188
      %v349 = vpack.c.b16 %v334, %v333
      %v350 = vpack.c.b16 %v336, %v335
      %v351 = vpack.c.b16 %v338, %v337
      %v352 = vpack.c.b16 %v340, %v339
      %v353 = vpack.c.b16 %v342, %v341
      %v354 = vpack.c.b16 %v344, %v343
      %v355 = vpack.c.b16 %v346, %v345
      %v356 = vpack.c.b16 %v348, %v347
      %365 = vmatprep.subr.bf16.mxu0 0
      %366 = vmatpush1.bf16.msra.mxu0 %v349
      %367 = vmatprep.subr.bf16.mxu0 0
      %368 = vmatpush1.bf16.msra.mxu0 %v350
      %369 = vmatprep.subr.bf16.mxu0 0
      %370 = vmatpush1.bf16.msra.mxu0 %v351
      %371 = vmatprep.subr.bf16.mxu0 0
      %372 = vmatpush1.bf16.msra.mxu0 %v352
      %373 = vmatprep.subr.bf16.mxu0 0
      %374 = vmatpush1.bf16.msra.mxu0 %v353
      %375 = vmatprep.subr.bf16.mxu0 0
      %376 = vmatpush1.bf16.msra.mxu0 %v354
      %377 = vmatprep.subr.bf16.mxu0 0
      %378 = vmatpush1.bf16.msra.mxu0 %v355
      %379 = vmatprep.subr.bf16.mxu0 0
      %380 = vmatpush1.bf16.msra.mxu0 %v356
      %381 = vmatprep.subr.bf16.mxu0 0
      %382 = vmatpush1.bf16.msra.mxu0 0
      %383 = vmatprep.subr.bf16.mxu0 0
      %384 = vmatpush1.bf16.msra.mxu0 0
      %385 = vmatprep.subr.bf16.mxu0 0
      %386 = vmatpush1.bf16.msra.mxu0 0
      %387 = vmatprep.subr.bf16.mxu0 0
      %388 = vmatpush1.bf16.msra.mxu0 0
      %389 = vmatprep.subr.bf16.mxu0 0
      %390 = vmatpush1.bf16.msra.mxu0 0
      %391 = vmatprep.subr.bf16.mxu0 0
      %392 = vmatpush1.bf16.msra.mxu0 0
      %393 = vmatprep.subr.bf16.mxu0 0
      %394 = vmatpush1.bf16.msra.mxu0 0
      %395 = vmatprep.subr.bf16.mxu0 0
      %396 = vmatpush1.bf16.msra.mxu0 0
      %397 = vmatprep.mubr.bf16.mxu0 0
      %398 = vmatmul.mubr.bf16.gmra.mrb[0].mxu0 %v315
      %v399 = vpop.f32.mrb[0].mxu0
      %v400 = vadd.f32 %v305, %v399
      %v401 = vpop.f32.mrb[0].mxu0
      %v402 = vpop.f32.mrb[0].mxu0
      %v403 = vadd.f32 %v308, %v402
      %v404 = vpop.f32.mrb[0].mxu0
      %405 = vdwg.mxu0
      %v406 = vld [vmem:[%s164 + $0x8] sm:$0xf]
      %s407 = scalar_lea.vmem %s1, 128
      %v408 = vld [vmem:[%s407] sm:$0xf]
      %v409 = vld [vmem:[%s407 + $0x4] sm:$0xf]
      %v410 = vld [vmem:[%s407 + $0x8] sm:$0xf]
      %v411 = vld [vmem:[%s407 + $0xc] sm:$0xf]
      %v412 = vld [vmem:[%s407 + $0x10] sm:$0xf]
      %v413 = vld [vmem:[%s407 + $0x14] sm:$0xf]
      %v414 = vld [vmem:[%s407 + $0x18] sm:$0xf]
      %v415 = vld [vmem:[%s407 + $0x1c] sm:$0xf]
      %v416 = vld [vmem:[%s407 + $0x20] sm:$0xf]
      %v417 = vld [vmem:[%s407 + $0x24] sm:$0xf]
      %v418 = vld [vmem:[%s407 + $0x28] sm:$0xf]
      %v419 = vld [vmem:[%s407 + $0x2c] sm:$0xf]
      %v420 = vld [vmem:[%s407 + $0x30] sm:$0xf]
      %v421 = vld [vmem:[%s407 + $0x34] sm:$0xf]
      %v422 = vld [vmem:[%s407 + $0x38] sm:$0xf]
      %v423 = vld [vmem:[%s407 + $0x3c] sm:$0xf]
      %v425 = vunpack.c.l.b16 %v406
      %v426 = vpack.c.b16 %v425, %v213
      %v444 = vunpack.c.l.b16 %v408
      %v445 = vunpack.c.l.b16 %v409
      %v446 = vunpack.c.l.b16 %v410
      %v447 = vunpack.c.l.b16 %v411
      %v448 = vunpack.c.l.b16 %v412
      %v449 = vunpack.c.l.b16 %v413
      %v450 = vunpack.c.l.b16 %v414
      %v451 = vunpack.c.l.b16 %v415
      %v452 = vunpack.c.l.b16 %v416
      %v453 = vunpack.c.l.b16 %v417
      %v454 = vunpack.c.l.b16 %v418
      %v455 = vunpack.c.l.b16 %v419
      %v456 = vunpack.c.l.b16 %v420
      %v457 = vunpack.c.l.b16 %v421
      %v458 = vunpack.c.l.b16 %v422
      %v459 = vunpack.c.l.b16 %v423
      %v460 = vpack.c.b16 %v445, %v444
      %v461 = vpack.c.b16 %v447, %v446
      %v462 = vpack.c.b16 %v449, %v448
      %v463 = vpack.c.b16 %v451, %v450
      %v464 = vpack.c.b16 %v453, %v452
      %v465 = vpack.c.b16 %v455, %v454
      %v466 = vpack.c.b16 %v457, %v456
      %v467 = vpack.c.b16 %v459, %v458
      %476 = vmatprep.subr.bf16.mxu0 0
      %477 = vmatpush1.bf16.msra.mxu0 %v460
      %478 = vmatprep.subr.bf16.mxu0 0
      %479 = vmatpush1.bf16.msra.mxu0 %v461
      %480 = vmatprep.subr.bf16.mxu0 0
      %481 = vmatpush1.bf16.msra.mxu0 %v462
      %482 = vmatprep.subr.bf16.mxu0 0
      %483 = vmatpush1.bf16.msra.mxu0 %v463
      %484 = vmatprep.subr.bf16.mxu0 0
      %485 = vmatpush1.bf16.msra.mxu0 %v464
      %486 = vmatprep.subr.bf16.mxu0 0
      %487 = vmatpush1.bf16.msra.mxu0 %v465
      %488 = vmatprep.subr.bf16.mxu0 0
      %489 = vmatpush1.bf16.msra.mxu0 %v466
      %490 = vmatprep.subr.bf16.mxu0 0
      %491 = vmatpush1.bf16.msra.mxu0 %v467
      %492 = vmatprep.subr.bf16.mxu0 0
      %493 = vmatpush1.bf16.msra.mxu0 0
      %494 = vmatprep.subr.bf16.mxu0 0
      %495 = vmatpush1.bf16.msra.mxu0 0
      %496 = vmatprep.subr.bf16.mxu0 0
      %497 = vmatpush1.bf16.msra.mxu0 0
      %498 = vmatprep.subr.bf16.mxu0 0
      %499 = vmatpush1.bf16.msra.mxu0 0
      %500 = vmatprep.subr.bf16.mxu0 0
      %501 = vmatpush1.bf16.msra.mxu0 0
      %502 = vmatprep.subr.bf16.mxu0 0
      %503 = vmatpush1.bf16.msra.mxu0 0
      %504 = vmatprep.subr.bf16.mxu0 0
      %505 = vmatpush1.bf16.msra.mxu0 0
      %506 = vmatprep.subr.bf16.mxu0 0
      %507 = vmatpush1.bf16.msra.mxu0 0
      %508 = vmatprep.mubr.bf16.mxu0 0
      %509 = vmatmul.mubr.bf16.gmra.mrb[0].mxu0 %v426
      %v510 = vpop.f32.mrb[0].mxu0
      %v511 = vadd.f32 0.0, %v510
      %v512 = vpop.f32.mrb[0].mxu0
      %v513 = vpop.f32.mrb[0].mxu0
      %v514 = vadd.f32 0.0, %v513
      %v515 = vpop.f32.mrb[0].mxu0
      %516 = vdwg.mxu0
      %v517 = vadd.f32 %v400, %v511
      %v518 = vadd.f32 %v403, %v514
      %v520 = vlaneseq
      %v521 = vshrl.u32 %v520, 7
      %v522 = vsub.s32 0, %v521
      %v523 = vrot.slane %v170, %v522
      %v525 = vadd.f32 %v517, %v523
      %v526 = vadd.f32 %v518, %v523
      %v527 = vmax.f32 %v525, 0.0
      %v528 = vmax.f32 %v526, 0.0
      %v531 = vrot.slane %v527, 4
      %v532 = vrot.slane %v528, 4
      %v535 = vmax.f32 %v527, %v531
      %v536 = vmax.f32 %v528, %v532
      %537 = vst [vmem:[#allocation2] sm:$0xf] %v535
      %538 = vst [vmem:[#allocation2 + $0x4] sm:$0xf] %v536
      %v539 = vld [vmem:[#allocation2] ss:$2 sm:$0x3]
      %s540 = scalar_lea.vmem [#allocation2], 4
      %v541 = vld [vmem:[%s540] ss:$2 sm:$0x3]
      %s542 = scalar_lea.vmem [#allocation2], 1
      %v543 = vld [vmem:[%s542] ss:$2 sm:$0x3]
      %s544 = scalar_lea.vmem [#allocation2], 5
      %v545 = vld [vmem:[%s544] ss:$2 sm:$0x3]
      %v546 = vmax.f32 %v539, %v543
      %v547 = vmax.f32 %v541, %v545
      %v548 = vpack.c.bf16 %v546, %v546
      %v549 = vpack.c.bf16 %v547, %v547
      %550 = vst [vmem:[%s168] sm:$0x1] %v548
      %551 = vst [vmem:[%s168 + $0x1] sm:$0x1] %v549
      %p552 = scmp.lt.s32.totalorder %s14, 1
      %s553 = scalar_select %p552, %s14, 1
      %s554 = smul.addr %s553, 2
      %s555 = scalar_lea.vmem %s3, %s554
      // Predicated region
      $region33: #{vgg_forward.18} parent=31 // pred_check
        %p556 = pneg %p100
      $region34: #{vgg_forward.18} parent=31 // pred_check_branch
        %558 = sbr.rel (%p556) target = $region36
      $region35: #{vgg_forward.18} parent=31 // pred_region
        _
      $region36: #{vgg_forward.18} parent=31 // pred_fallthru
        _
    $region32: #{vgg_forward.18} parent=5 // pred_fallthru
      _
    %p559 = scmp.le.s32.totalorder 2, %s9
    // Predicated region
    $region37: #{vgg_forward.18} parent=5 // pred_check
      %p560 = pneg %p559
    $region38: #{vgg_forward.18} parent=5 // pred_check_branch
      %562 = sbr.rel (%p560) target = $region40
    $region39: #{vgg_forward.18} parent=5 // pred_region
      %s563 = ssub.s32 %s9, 2
      // Predicated region
      $region41: #{vgg_forward.18} parent=39 // pred_check
        %p564 = pneg %p106
      $region42: #{vgg_forward.18} parent=39 // pred_check_branch
        %566 = sbr.rel (%p564) target = $region44
      $region43: #{vgg_forward.18} parent=39 // pred_region
        %p567 = scmp.lt.s32.totalorder %s15, 1
        %s568 = scalar_select %p567, %s15, 1
        %s569 = smul.addr %s568, 2
        %s570 = scalar_lea.vmem %s3, %s569
      $region44: #{vgg_forward.18} parent=39 // pred_fallthru
        _
    $region40: #{vgg_forward.18} parent=5 // pred_fallthru
      _
  $region6: #{vgg_forward.18} parent=0 // loop_footer
    %s13 = sadd.s32 1, %s9
  $region7: #{vgg_forward.18} parent=0 // loop_footer_branch
    %8 = sbr.rel target = $region3
  $region8: #{vgg_forward.18} parent=0 // loop_exit
    _

// kernel: vgg_forward.17
$region0: #{vgg_forward.17}
  #allocation0 [shape = 'u32[]', space=smem, size = 0x4, offset = 0x4, fixed_abs, tag = 'smem constant byte address 0x4 - core index']
  #allocation1 [shape = 'u32[144,128]{1,0:T(1,128)}', space=vmem, size = 0x12000, scoped, tag = 'internal scratch']
  #allocation2 [shape = 'f32[2,4,128]{2,1,0:T(4,128)}', space=vmem, size = 0x1000, scoped, tag = 'scratch operand']
  %s0 = inlined_call_operand.vmem [shape: bf16[2,24,128], index: 0, kind: input, shape index: {}]
  %s1 = inlined_call_operand.vmem [shape: bf16[3,128,128], index: 1, kind: input, shape index: {}]
  %s2 = inlined_call_operand.vmem [shape: f32[1,128], index: 2, kind: input, shape index: {}]
  %s3 = inlined_call_operand.vmem [shape: bf16[2,16,128], index: 3, kind: output, shape index: {}]
  %s4 = sld [smem:[#allocation0]]
  $region45: #{vgg_forward.17} parent=0
    _
  %s6 = ssub.s32 1, %s4
  %s7 = scalar_select 0, %s6, %s4
  loop: start=0, step=1, limit=4
  $region2: #{vgg_forward.17} parent=0 // loop_pre_header
    _
  $region3: #{vgg_forward.17} parent=0 // loop_header
    %s9 = sphi 0, %s13
    %p10 = scmp.ge.s32.totalorder %s9, 4
    %s19 = sphi 0, %s21
    %s22 = sphi 0, %s19
    %s23 = sphi 0, %s22
    %s39 = sphi 0, %s23
    %s43 = sphi 0, %s43
    %s45 = sphi 0, %s43
    %s46 = sphi 0, %s45
    %s60 = sphi 0, %s46
    %s64 = sphi 0, %s64
    %s66 = sphi 0, %s64
    %s67 = sphi 0, %s66
    %s81 = sphi 0, %s67
    %s87 = sphi 0, %s89
    %s90 = sphi 0, %s87
    %s91 = sphi 0, %s90
    %s107 = sphi 0, %s91
  $region4: #{vgg_forward.17} parent=0 // loop_header_branch
    %12 = sbr.rel (%p10) target = $region8
  $region5: #{vgg_forward.17} parent=0 // loop_body
    %s14 = ssub.s32 %s9, 1
    %s15 = ssub.s32 %s9, 2
    %s16 = sadd.s32 %s9, 1
    %s17 = ssub.s32 %s9, %s16
    %p18 = scmp.eq.s32.totalorder %s17, 0
    %s20 = sadd.s32 %s19, 1
    %s21 = scalar_select %p18, %s19, %s20
    %p24 = pneg %p18
    %p25 = scmp.eq.s32.totalorder %s9, 1
    %p26 = por %p24, %p25
    %p27 = scmp.ne.s32.totalorder %s19, %s22
    %p28 = scmp.eq.s32.totalorder %s9, 0
    %p29 = por %p27, %p28
    %p30 = scmp.ne.s32.totalorder %s19, %s22
    %p31 = scmp.eq.s32.totalorder %s14, 1
    %p32 = por %p30, %p31
    %p33 = scmp.ne.s32.totalorder %s22, %s23
    %p34 = scmp.eq.s32.totalorder %s14, 0
    %p35 = por %p33, %p34
    %p36 = scmp.ne.s32.totalorder %s22, %s23
    %p37 = scmp.eq.s32.totalorder %s15, 1
    %p38 = por %p36, %p37
    %p40 = scmp.ne.s32.totalorder %s23, %s39
    %p41 = scmp.eq.s32.totalorder %s15, 0
    %p42 = por %p40, %p41
    %s44 = sadd.s32 %s43, 1
    %p47 = scmp.eq.s32.totalorder %s9, 1
    %p48 = scmp.ne.s32.totalorder %s43, %s45
    %p49 = scmp.eq.s32.totalorder %s9, 0
    %p50 = por %p48, %p49
    %p51 = scmp.ne.s32.totalorder %s43, %s45
    %p52 = scmp.eq.s32.totalorder %s14, 1
    %p53 = por %p51, %p52
    %p54 = scmp.ne.s32.totalorder %s45, %s46
    %p55 = scmp.eq.s32.totalorder %s14, 0
    %p56 = por %p54, %p55
    %p57 = scmp.ne.s32.totalorder %s45, %s46
    %p58 = scmp.eq.s32.totalorder %s15, 1
    %p59 = por %p57, %p58
    %p61 = scmp.ne.s32.totalorder %s46, %s60
    %p62 = scmp.eq.s32.totalorder %s15, 0
    %p63 = por %p61, %p62
    %s65 = sadd.s32 %s64, 1
    %p68 = scmp.eq.s32.totalorder %s9, 1
    %p69 = scmp.ne.s32.totalorder %s64, %s66
    %p70 = scmp.eq.s32.totalorder %s9, 0
    %p71 = por %p69, %p70
    %p72 = scmp.ne.s32.totalorder %s64, %s66
    %p73 = scmp.eq.s32.totalorder %s14, 1
    %p74 = por %p72, %p73
    %p75 = scmp.ne.s32.totalorder %s66, %s67
    %p76 = scmp.eq.s32.totalorder %s14, 0
    %p77 = por %p75, %p76
    %p78 = scmp.ne.s32.totalorder %s66, %s67
    %p79 = scmp.eq.s32.totalorder %s15, 1
    %p80 = por %p78, %p79
    %p82 = scmp.ne.s32.totalorder %s67, %s81
    %p83 = scmp.eq.s32.totalorder %s15, 0
    %p84 = por %p82, %p83
    %s85 = ssub.s32 %s9, %s16
    %p86 = scmp.eq.s32.totalorder %s85, 0
    %s88 = sadd.s32 %s87, 1
    %s89 = scalar_select %p86, %s87, %s88
    %p92 = pneg %p86
    %p93 = scmp.eq.s32.totalorder %s9, 1
    %p94 = por %p92, %p93
    %p95 = scmp.ne.s32.totalorder %s87, %s90
    %p96 = scmp.eq.s32.totalorder %s9, 0
    %p97 = por %p95, %p96
    %p98 = scmp.ne.s32.totalorder %s87, %s90
    %p99 = scmp.eq.s32.totalorder %s14, 1
    %p100 = por %p98, %p99
    %p101 = scmp.ne.s32.totalorder %s90, %s91
    %p102 = scmp.eq.s32.totalorder %s14, 0
    %p103 = por %p101, %p102
    %p104 = scmp.ne.s32.totalorder %s90, %s91
    %p105 = scmp.eq.s32.totalorder %s15, 1
    %p106 = por %p104, %p105
    %p108 = scmp.ne.s32.totalorder %s91, %s107
    %p109 = scmp.eq.s32.totalorder %s15, 0
    %p110 = por %p108, %p109
    %p111 = scmp.le.s32.totalorder 1, %s9
    %p112 = scmp.lt.s32.totalorder %s9, 3
    %p113 = pnand %p111, %p112
    %p114 = pneg %p113
    // Predicated region
    $region9: #{vgg_forward.17} parent=5 // pred_check
      _
    $region10: #{vgg_forward.17} parent=5 // pred_check_branch
      %116 = sbr.rel (%p113) target = $region12
    $region11: #{vgg_forward.17} parent=5 // pred_region
      %s117 = ssub.s32 %s9, 1
      // Predicated region
      $region13: #{vgg_forward.17} parent=11 // pred_check
        %p118 = pneg %p56
      $region14: #{vgg_forward.17} parent=11 // pred_check_branch
        %120 = sbr.rel (%p118) target = $region16
      $region15: #{vgg_forward.17} parent=11 // pred_region
        _
      $region16: #{vgg_forward.17} parent=11 // pred_fallthru
        _
      // Predicated region
      $region17: #{vgg_forward.17} parent=11 // pred_check
        %p121 = pneg %p77
      $region18: #{vgg_forward.17} parent=11 // pred_check_branch
        %123 = sbr.rel (%p121) target = $region20
      $region19: #{vgg_forward.17} parent=11 // pred_region
        _
      $region20: #{vgg_forward.17} parent=11 // pred_fallthru
        _
    $region12: #{vgg_forward.17} parent=5 // pred_fallthru
      _
    %p124 = scmp.lt.s32.totalorder %s9, 2
    // Predicated region
    $region21: #{vgg_forward.17} parent=5 // pred_check
      %p125 = pneg %p124
    $region22: #{vgg_forward.17} parent=5 // pred_check_branch
      %127 = sbr.rel (%p125) target = $region24
    $region23: #{vgg_forward.17} parent=5 // pred_region
      // Predicated region
      $region25: #{vgg_forward.17} parent=23 // pred_check
        %p128 = pneg %p29
      $region26: #{vgg_forward.17} parent=23 // pred_check_branch
        %130 = sbr.rel (%p128) target = $region28
      $region27: #{vgg_forward.17} parent=23 // pred_region
        %p131 = scmp.lt.s32.totalorder %s9, 1
        %s132 = scalar_select %p131, %s9, 1
        %s133 = smul.addr %s132, 3
        %s134 = smul.addr %s133, 4
        %s135 = scalar_lea.vmem %s0, %s134
      $region28: #{vgg_forward.17} parent=23 // pred_fallthru
        _
    $region24: #{vgg_forward.17} parent=5 // pred_fallthru
      _
    %p136 = scmp.le.s32.totalorder 1, %s9
    %p137 = scmp.lt.s32.totalorder %s9, 3
    %p138 = pnand %p136, %p137
    %p139 = pneg %p138
    // Predicated region
    $region29: #{vgg_forward.17} parent=5 // pred_check
      _
    $region30: #{vgg_forward.17} parent=5 // pred_check_branch
      %141 = sbr.rel (%p138) target = $region32
    $region31: #{vgg_forward.17} parent=5 // pred_region
      %s142 = ssub.s32 %s9, 1
      %p143 = scmp.lt.s32.totalorder %s14, 1
      %s144 = scalar_select %p143, %s14, 1
      %s145 = smul.addr %s144, 3
      %s146 = smul.addr %s145, 4
      %s147 = scalar_lea.vmem %s0, %s146
      %p148 = pneg %p35
      %p149 = pneg %p32
      %p150 = pneg %p56
      %p151 = pneg %p53
      %p152 = pneg %p77
      %p153 = pneg %p74
      %p154 = pneg %p103
      %p155 = pneg %p100
      %p156 = scmp.lt.s32.totalorder %s14, 1
      %s157 = scalar_select %p156, %s14, 1
      %s158 = smul.addr %s157, 2
      %s159 = smul.addr %s158, 4
      %s160 = scalar_lea.vmem %s3, %s159
      %p161 = scmp.lt.s32.totalorder %s14, 1
      %s162 = scalar_select %p161, %s14, 1
      %s163 = smul.addr %s162, 3
      %s164 = smul.addr %s163, 4
      %s165 = scalar_lea.vmem %s0, %s164
      %p166 = scmp.lt.s32.totalorder %s14, 1
      %s167 = scalar_select %p166, %s14, 1
      %s168 = smul.addr %s167, 2
      %s169 = smul.addr %s168, 4
      %s170 = scalar_lea.vmem %s3, %s169
      %v172 = vld [vmem:[%s2] sm:$0x1]
      %v173 = vld [vmem:[%s165] sm:$0xf]
      %v174 = vld [vmem:[%s165 + $0x4] sm:$0xf]
      %v175 = vld [vmem:[%s1] sm:$0xf]
      %v176 = vld [vmem:[%s1 + $0x4] sm:$0xf]
      %v177 = vld [vmem:[%s1 + $0x8] sm:$0xf]
      %v178 = vld [vmem:[%s1 + $0xc] sm:$0xf]
      %v179 = vld [vmem:[%s1 + $0x10] sm:$0xf]
      %v180 = vld [vmem:[%s1 + $0x14] sm:$0xf]
      %v181 = vld [vmem:[%s1 + $0x18] sm:$0xf]
      %v182 = vld [vmem:[%s1 + $0x1c] sm:$0xf]
      %v183 = vld [vmem:[%s1 + $0x20] sm:$0xf]
      %v184 = vld [vmem:[%s1 + $0x24] sm:$0xf]
      %v185 = vld [vmem:[%s1 + $0x28] sm:$0xf]
      %v186 = vld [vmem:[%s1 + $0x2c] sm:$0xf]
      %v187 = vld [vmem:[%s1 + $0x30] sm:$0xf]
      %v188 = vld [vmem:[%s1 + $0x34] sm:$0xf]
      %v189 = vld [vmem:[%s1 + $0x38] sm:$0xf]
      %v190 = vld [vmem:[%s1 + $0x3c] sm:$0xf]
      %v191 = vld [vmem:[%s165] sm:$0xc]
      %v192 = vld [vmem:[%s165 + $0x4] sm:$0xf]
      %v193 = vld [vmem:[%s165 + $0x8] sm:$0x3]
      %s194 = scalar_lea.vmem %s1, 64
      %v195 = vld [vmem:[%s194] sm:$0xf]
      %v196 = vld [vmem:[%s194 + $0x4] sm:$0xf]
      %v197 = vld [vmem:[%s194 + $0x8] sm:$0xf]
      %v198 = vld [vmem:[%s194 + $0xc] sm:$0xf]
      %v199 = vld [vmem:[%s194 + $0x10] sm:$0xf]
      %v200 = vld [vmem:[%s194 + $0x14] sm:$0xf]
      %v201 = vld [vmem:[%s194 + $0x18] sm:$0xf]
      %v202 = vld [vmem:[%s194 + $0x1c] sm:$0xf]
      %v203 = vld [vmem:[%s194 + $0x20] sm:$0xf]
      %v204 = vld [vmem:[%s194 + $0x24] sm:$0xf]
      %v205 = vld [vmem:[%s194 + $0x28] sm:$0xf]
      %v206 = vld [vmem:[%s194 + $0x2c] sm:$0xf]
      %v207 = vld [vmem:[%s194 + $0x30] sm:$0xf]
      %v208 = vld [vmem:[%s194 + $0x34] sm:$0xf]
      %v209 = vld [vmem:[%s194 + $0x38] sm:$0xf]
      %v210 = vld [vmem:[%s194 + $0x3c] sm:$0xf]
      %v214 = vunpack.c.l.b16 %v191
      %v215 = vunpack.c.l.b16 %v192
      %v216 = vunpack.c.l.b16 %v193
      %v217 = vpack.c.b16 %v215, %v214
      %v218 = vpack.c.b16 %v216, %v216
      %vm219 = vcmask 1045504
      %v220 = vrot.slane %v217, 2
      %v221 = vrot.slane %v218, 2
      %v222 = vsel %vm219, %v220, %v221
      %v240 = vunpack.c.l.b16 %v195
      %v241 = vunpack.c.l.b16 %v196
      %v242 = vunpack.c.l.b16 %v197
      %v243 = vunpack.c.l.b16 %v198
      %v244 = vunpack.c.l.b16 %v199
      %v245 = vunpack.c.l.b16 %v200
      %v246 = vunpack.c.l.b16 %v201
      %v247 = vunpack.c.l.b16 %v202
      %v248 = vunpack.c.l.b16 %v203
      %v249 = vunpack.c.l.b16 %v204
      %v250 = vunpack.c.l.b16 %v205
      %v251 = vunpack.c.l.b16 %v206
      %v252 = vunpack.c.l.b16 %v207
      %v253 = vunpack.c.l.b16 %v208
      %v254 = vunpack.c.l.b16 %v209
      %v255 = vunpack.c.l.b16 %v210
      %v256 = vpack.c.b16 %v241, %v240
      %v257 = vpack.c.b16 %v243, %v242
      %v258 = vpack.c.b16 %v245, %v244
      %v259 = vpack.c.b16 %v247, %v246
      %v260 = vpack.c.b16 %v249, %v248
      %v261 = vpack.c.b16 %v251, %v250
      %v262 = vpack.c.b16 %v253, %v252
      %v263 = vpack.c.b16 %v255, %v254
      %272 = vmatprep.subr.bf16.mxu0 0
      %273 = vmatpush1.bf16.msra.mxu0 %v256
      %274 = vmatprep.subr.bf16.mxu0 0
      %275 = vmatpush1.bf16.msra.mxu0 %v257
      %276 = vmatprep.subr.bf16.mxu0 0
      %277 = vmatpush1.bf16.msra.mxu0 %v258
      %278 = vmatprep.subr.bf16.mxu0 0
      %279 = vmatpush1.bf16.msra.mxu0 %v259
      %280 = vmatprep.subr.bf16.mxu0 0
      %281 = vmatpush1.bf16.msra.mxu0 %v260
      %282 = vmatprep.subr.bf16.mxu0 0
      %283 = vmatpush1.bf16.msra.mxu0 %v261
      %284 = vmatprep.subr.bf16.mxu0 0
      %285 = vmatpush1.bf16.msra.mxu0 %v262
      %286 = vmatprep.subr.bf16.mxu0 0
      %287 = vmatpush1.bf16.msra.mxu0 %v263
      %288 = vmatprep.subr.bf16.mxu0 0
      %289 = vmatpush1.bf16.msra.mxu0 0
      %290 = vmatprep.subr.bf16.mxu0 0
      %291 = vmatpush1.bf16.msra.mxu0 0
      %292 = vmatprep.subr.bf16.mxu0 0
      %293 = vmatpush1.bf16.msra.mxu0 0
      %294 = vmatprep.subr.bf16.mxu0 0
      %295 = vmatpush1.bf16.msra.mxu0 0
      %296 = vmatprep.subr.bf16.mxu0 0
      %297 = vmatpush1.bf16.msra.mxu0 0
      %298 = vmatprep.subr.bf16.mxu0 0
      %299 = vmatpush1.bf16.msra.mxu0 0
      %300 = vmatprep.subr.bf16.mxu0 0
      %301 = vmatpush1.bf16.msra.mxu0 0
      %302 = vmatprep.subr.bf16.mxu0 0
      %303 = vmatpush1.bf16.msra.mxu0 0
      %304 = vmatprep.mubr.bf16.mxu0 0
      %305 = vmatmul.mubr.bf16.gmra.mrb[0].mxu0 %v222
      %v306 = vpop.f32.mrb[0].mxu0
      %v307 = vadd.f32 0.0, %v306
      %v308 = vpop.f32.mrb[0].mxu0
      %v309 = vpop.f32.mrb[0].mxu0
      %v310 = vadd.f32 0.0, %v309
      %v311 = vpop.f32.mrb[0].mxu0
      %312 = vdwg.mxu0
      %v315 = vunpack.c.l.b16 %v173
      %v316 = vunpack.c.l.b16 %v174
      %v317 = vpack.c.b16 %v316, %v315
      %v335 = vunpack.c.l.b16 %v175
      %v336 = vunpack.c.l.b16 %v176
      %v337 = vunpack.c.l.b16 %v177
      %v338 = vunpack.c.l.b16 %v178
      %v339 = vunpack.c.l.b16 %v179
      %v340 = vunpack.c.l.b16 %v180
      %v341 = vunpack.c.l.b16 %v181
      %v342 = vunpack.c.l.b16 %v182
      %v343 = vunpack.c.l.b16 %v183
      %v344 = vunpack.c.l.b16 %v184
      %v345 = vunpack.c.l.b16 %v185
      %v346 = vunpack.c.l.b16 %v186
      %v347 = vunpack.c.l.b16 %v187
      %v348 = vunpack.c.l.b16 %v188
      %v349 = vunpack.c.l.b16 %v189
      %v350 = vunpack.c.l.b16 %v190
      %v351 = vpack.c.b16 %v336, %v335
      %v352 = vpack.c.b16 %v338, %v337
      %v353 = vpack.c.b16 %v340, %v339
      %v354 = vpack.c.b16 %v342, %v341
      %v355 = vpack.c.b16 %v344, %v343
      %v356 = vpack.c.b16 %v346, %v345
      %v357 = vpack.c.b16 %v348, %v347
      %v358 = vpack.c.b16 %v350, %v349
      %367 = vmatprep.subr.bf16.mxu0 0
      %368 = vmatpush1.bf16.msra.mxu0 %v351
      %369 = vmatprep.subr.bf16.mxu0 0
      %370 = vmatpush1.bf16.msra.mxu0 %v352
      %371 = vmatprep.subr.bf16.mxu0 0
      %372 = vmatpush1.bf16.msra.mxu0 %v353
      %373 = vmatprep.subr.bf16.mxu0 0
      %374 = vmatpush1.bf16.msra.mxu0 %v354
      %375 = vmatprep.subr.bf16.mxu0 0
      %376 = vmatpush1.bf16.msra.mxu0 %v355
      %377 = vmatprep.subr.bf16.mxu0 0
      %378 = vmatpush1.bf16.msra.mxu0 %v356
      %379 = vmatprep.subr.bf16.mxu0 0
      %380 = vmatpush1.bf16.msra.mxu0 %v357
      %381 = vmatprep.subr.bf16.mxu0 0
      %382 = vmatpush1.bf16.msra.mxu0 %v358
      %383 = vmatprep.subr.bf16.mxu0 0
      %384 = vmatpush1.bf16.msra.mxu0 0
      %385 = vmatprep.subr.bf16.mxu0 0
      %386 = vmatpush1.bf16.msra.mxu0 0
      %387 = vmatprep.subr.bf16.mxu0 0
      %388 = vmatpush1.bf16.msra.mxu0 0
      %389 = vmatprep.subr.bf16.mxu0 0
      %390 = vmatpush1.bf16.msra.mxu0 0
      %391 = vmatprep.subr.bf16.mxu0 0
      %392 = vmatpush1.bf16.msra.mxu0 0
      %393 = vmatprep.subr.bf16.mxu0 0
      %394 = vmatpush1.bf16.msra.mxu0 0
      %395 = vmatprep.subr.bf16.mxu0 0
      %396 = vmatpush1.bf16.msra.mxu0 0
      %397 = vmatprep.subr.bf16.mxu0 0
      %398 = vmatpush1.bf16.msra.mxu0 0
      %399 = vmatprep.mubr.bf16.mxu0 0
      %400 = vmatmul.mubr.bf16.gmra.mrb[0].mxu0 %v317
      %v401 = vpop.f32.mrb[0].mxu0
      %v402 = vadd.f32 %v307, %v401
      %v403 = vpop.f32.mrb[0].mxu0
      %v404 = vpop.f32.mrb[0].mxu0
      %v405 = vadd.f32 %v310, %v404
      %v406 = vpop.f32.mrb[0].mxu0
      %407 = vdwg.mxu0
      %v408 = vld [vmem:[%s165 + $0x8] sm:$0xf]
      %s409 = scalar_lea.vmem %s1, 128
      %v410 = vld [vmem:[%s409] sm:$0xf]
      %v411 = vld [vmem:[%s409 + $0x4] sm:$0xf]
      %v412 = vld [vmem:[%s409 + $0x8] sm:$0xf]
      %v413 = vld [vmem:[%s409 + $0xc] sm:$0xf]
      %v414 = vld [vmem:[%s409 + $0x10] sm:$0xf]
      %v415 = vld [vmem:[%s409 + $0x14] sm:$0xf]
      %v416 = vld [vmem:[%s409 + $0x18] sm:$0xf]
      %v417 = vld [vmem:[%s409 + $0x1c] sm:$0xf]
      %v418 = vld [vmem:[%s409 + $0x20] sm:$0xf]
      %v419 = vld [vmem:[%s409 + $0x24] sm:$0xf]
      %v420 = vld [vmem:[%s409 + $0x28] sm:$0xf]
      %v421 = vld [vmem:[%s409 + $0x2c] sm:$0xf]
      %v422 = vld [vmem:[%s409 + $0x30] sm:$0xf]
      %v423 = vld [vmem:[%s409 + $0x34] sm:$0xf]
      %v424 = vld [vmem:[%s409 + $0x38] sm:$0xf]
      %v425 = vld [vmem:[%s409 + $0x3c] sm:$0xf]
      %v427 = vunpack.c.l.b16 %v408
      %v428 = vpack.c.b16 %v427, %v215
      %v446 = vunpack.c.l.b16 %v410
      %v447 = vunpack.c.l.b16 %v411
      %v448 = vunpack.c.l.b16 %v412
      %v449 = vunpack.c.l.b16 %v413
      %v450 = vunpack.c.l.b16 %v414
      %v451 = vunpack.c.l.b16 %v415
      %v452 = vunpack.c.l.b16 %v416
      %v453 = vunpack.c.l.b16 %v417
      %v454 = vunpack.c.l.b16 %v418
      %v455 = vunpack.c.l.b16 %v419
      %v456 = vunpack.c.l.b16 %v420
      %v457 = vunpack.c.l.b16 %v421
      %v458 = vunpack.c.l.b16 %v422
      %v459 = vunpack.c.l.b16 %v423
      %v460 = vunpack.c.l.b16 %v424
      %v461 = vunpack.c.l.b16 %v425
      %v462 = vpack.c.b16 %v447, %v446
      %v463 = vpack.c.b16 %v449, %v448
      %v464 = vpack.c.b16 %v451, %v450
      %v465 = vpack.c.b16 %v453, %v452
      %v466 = vpack.c.b16 %v455, %v454
      %v467 = vpack.c.b16 %v457, %v456
      %v468 = vpack.c.b16 %v459, %v458
      %v469 = vpack.c.b16 %v461, %v460
      %478 = vmatprep.subr.bf16.mxu0 0
      %479 = vmatpush1.bf16.msra.mxu0 %v462
      %480 = vmatprep.subr.bf16.mxu0 0
      %481 = vmatpush1.bf16.msra.mxu0 %v463
      %482 = vmatprep.subr.bf16.mxu0 0
      %483 = vmatpush1.bf16.msra.mxu0 %v464
      %484 = vmatprep.subr.bf16.mxu0 0
      %485 = vmatpush1.bf16.msra.mxu0 %v465
      %486 = vmatprep.subr.bf16.mxu0 0
      %487 = vmatpush1.bf16.msra.mxu0 %v466
      %488 = vmatprep.subr.bf16.mxu0 0
      %489 = vmatpush1.bf16.msra.mxu0 %v467
      %490 = vmatprep.subr.bf16.mxu0 0
      %491 = vmatpush1.bf16.msra.mxu0 %v468
      %492 = vmatprep.subr.bf16.mxu0 0
      %493 = vmatpush1.bf16.msra.mxu0 %v469
      %494 = vmatprep.subr.bf16.mxu0 0
      %495 = vmatpush1.bf16.msra.mxu0 0
      %496 = vmatprep.subr.bf16.mxu0 0
      %497 = vmatpush1.bf16.msra.mxu0 0
      %498 = vmatprep.subr.bf16.mxu0 0
      %499 = vmatpush1.bf16.msra.mxu0 0
      %500 = vmatprep.subr.bf16.mxu0 0
      %501 = vmatpush1.bf16.msra.mxu0 0
      %502 = vmatprep.subr.bf16.mxu0 0
      %503 = vmatpush1.bf16.msra.mxu0 0
      %504 = vmatprep.subr.bf16.mxu0 0
      %505 = vmatpush1.bf16.msra.mxu0 0
      %506 = vmatprep.subr.bf16.mxu0 0
      %507 = vmatpush1.bf16.msra.mxu0 0
      %508 = vmatprep.subr.bf16.mxu0 0
      %509 = vmatpush1.bf16.msra.mxu0 0
      %510 = vmatprep.mubr.bf16.mxu0 0
      %511 = vmatmul.mubr.bf16.gmra.mrb[0].mxu0 %v428
      %v512 = vpop.f32.mrb[0].mxu0
      %v513 = vadd.f32 0.0, %v512
      %v514 = vpop.f32.mrb[0].mxu0
      %v515 = vpop.f32.mrb[0].mxu0
      %v516 = vadd.f32 0.0, %v515
      %v517 = vpop.f32.mrb[0].mxu0
      %518 = vdwg.mxu0
      %v519 = vadd.f32 %v402, %v513
      %v520 = vadd.f32 %v405, %v516
      %v522 = vlaneseq
      %v523 = vshrl.u32 %v522, 7
      %v524 = vsub.s32 0, %v523
      %v525 = vrot.slane %v172, %v524
      %v527 = vadd.f32 %v519, %v525
      %v528 = vadd.f32 %v520, %v525
      %v529 = vmax.f32 %v527, 0.0
      %v530 = vmax.f32 %v528, 0.0
      %v531 = vpack.c.bf16 %v530, %v529
      %v533 = vunpack.c.l.b16 %v531
      %v534 = vunpack.c.h.b16 %v531
      %v535 = vpack.c.b16 %v533, %v533
      %v536 = vpack.c.b16 %v534, %v534
      %539 = vst [vmem:[%s170] sm:$0xf] %v535
      %540 = vst [vmem:[%s170 + $0x4] sm:$0xf] %v536
      %p541 = scmp.lt.s32.totalorder %s14, 1
      %s542 = scalar_select %p541, %s14, 1
      %s543 = smul.addr %s542, 2
      %s544 = smul.addr %s543, 4
      %s545 = scalar_lea.vmem %s3, %s544
      // Predicated region
      $region33: #{vgg_forward.17} parent=31 // pred_check
        %p546 = pneg %p100
      $region34: #{vgg_forward.17} parent=31 // pred_check_branch
        %548 = sbr.rel (%p546) target = $region36
      $region35: #{vgg_forward.17} parent=31 // pred_region
        _
      $region36: #{vgg_forward.17} parent=31 // pred_fallthru
        _
    $region32: #{vgg_forward.17} parent=5 // pred_fallthru
      _
    %p549 = scmp.le.s32.totalorder 2, %s9
    // Predicated region
    $region37: #{vgg_forward.17} parent=5 // pred_check
      %p550 = pneg %p549
    $region38: #{vgg_forward.17} parent=5 // pred_check_branch
      %552 = sbr.rel (%p550) target = $region40
    $region39: #{vgg_forward.17} parent=5 // pred_region
      %s553 = ssub.s32 %s9, 2
      // Predicated region
      $region41: #{vgg_forward.17} parent=39 // pred_check
        %p554 = pneg %p106
      $region42: #{vgg_forward.17} parent=39 // pred_check_branch
        %556 = sbr.rel (%p554) target = $region44
      $region43: #{vgg_forward.17} parent=39 // pred_region
        %p557 = scmp.lt.s32.totalorder %s15, 1
        %s558 = scalar_select %p557, %s15, 1
        %s559 = smul.addr %s558, 2
        %s560 = smul.addr %s559, 4
        %s561 = scalar_lea.vmem %s3, %s560
      $region44: #{vgg_forward.17} parent=39 // pred_fallthru
        _
    $region40: #{vgg_forward.17} parent=5 // pred_fallthru
      _
  $region6: #{vgg_forward.17} parent=0 // loop_footer
    %s13 = sadd.s32 1, %s9
  $region7: #{vgg_forward.17} parent=0 // loop_footer_branch
    %8 = sbr.rel target = $region3
  $region8: #{vgg_forward.17} parent=0 // loop_exit
    _

// kernel: vgg_forward.19
$region0: #{vgg_forward.19}
  #allocation0 [shape = 'u32[]', space=smem, size = 0x4, offset = 0x4, fixed_abs, tag = 'smem constant byte address 0x4 - core index']
  #allocation1 [shape = 'u32[144,128]{1,0:T(1,128)}', space=vmem, size = 0x12000, scoped, tag = 'internal scratch']
  #allocation2 [shape = 'f32[1,2,128]{2,1,0:T(2,128)}', space=vmem, size = 0x400, scoped, tag = 'scratch operand']
  %s0 = inlined_call_operand.vmem [shape: bf16[2,8,128], index: 0, kind: input, shape index: {}]
  %s1 = inlined_call_operand.vmem [shape: bf16[3,128,128], index: 1, kind: input, shape index: {}]
  %s2 = inlined_call_operand.vmem [shape: f32[1,128], index: 2, kind: input, shape index: {}]
  %s3 = inlined_call_operand.vmem [shape: bf16[2,4,128], index: 3, kind: output, shape index: {}]
  %s4 = sld [smem:[#allocation0]]
  $region45: #{vgg_forward.19} parent=0
    _
  %s6 = ssub.s32 1, %s4
  %s7 = scalar_select 0, %s6, %s4
  loop: start=0, step=1, limit=4
  $region2: #{vgg_forward.19} parent=0 // loop_pre_header
    _
  $region3: #{vgg_forward.19} parent=0 // loop_header
    %s9 = sphi 0, %s13
    %p10 = scmp.ge.s32.totalorder %s9, 4
    %s19 = sphi 0, %s21
    %s22 = sphi 0, %s19
    %s23 = sphi 0, %s22
    %s39 = sphi 0, %s23
    %s43 = sphi 0, %s43
    %s45 = sphi 0, %s43
    %s46 = sphi 0, %s45
    %s60 = sphi 0, %s46
    %s64 = sphi 0, %s64
    %s66 = sphi 0, %s64
    %s67 = sphi 0, %s66
    %s81 = sphi 0, %s67
    %s87 = sphi 0, %s89
    %s90 = sphi 0, %s87
    %s91 = sphi 0, %s90
    %s107 = sphi 0, %s91
  $region4: #{vgg_forward.19} parent=0 // loop_header_branch
    %12 = sbr.rel (%p10) target = $region8
  $region5: #{vgg_forward.19} parent=0 // loop_body
    %s14 = ssub.s32 %s9, 1
    %s15 = ssub.s32 %s9, 2
    %s16 = sadd.s32 %s9, 1
    %s17 = ssub.s32 %s9, %s16
    %p18 = scmp.eq.s32.totalorder %s17, 0
    %s20 = sadd.s32 %s19, 1
    %s21 = scalar_select %p18, %s19, %s20
    %p24 = pneg %p18
    %p25 = scmp.eq.s32.totalorder %s9, 1
    %p26 = por %p24, %p25
    %p27 = scmp.ne.s32.totalorder %s19, %s22
    %p28 = scmp.eq.s32.totalorder %s9, 0
    %p29 = por %p27, %p28
    %p30 = scmp.ne.s32.totalorder %s19, %s22
    %p31 = scmp.eq.s32.totalorder %s14, 1
    %p32 = por %p30, %p31
    %p33 = scmp.ne.s32.totalorder %s22, %s23
    %p34 = scmp.eq.s32.totalorder %s14, 0
    %p35 = por %p33, %p34
    %p36 = scmp.ne.s32.totalorder %s22, %s23
    %p37 = scmp.eq.s32.totalorder %s15, 1
    %p38 = por %p36, %p37
    %p40 = scmp.ne.s32.totalorder %s23, %s39
    %p41 = scmp.eq.s32.totalorder %s15, 0
    %p42 = por %p40, %p41
    %s44 = sadd.s32 %s43, 1
    %p47 = scmp.eq.s32.totalorder %s9, 1
    %p48 = scmp.ne.s32.totalorder %s43, %s45
    %p49 = scmp.eq.s32.totalorder %s9, 0
    %p50 = por %p48, %p49
    %p51 = scmp.ne.s32.totalorder %s43, %s45
    %p52 = scmp.eq.s32.totalorder %s14, 1
    %p53 = por %p51, %p52
    %p54 = scmp.ne.s32.totalorder %s45, %s46
    %p55 = scmp.eq.s32.totalorder %s14, 0
    %p56 = por %p54, %p55
    %p57 = scmp.ne.s32.totalorder %s45, %s46
    %p58 = scmp.eq.s32.totalorder %s15, 1
    %p59 = por %p57, %p58
    %p61 = scmp.ne.s32.totalorder %s46, %s60
    %p62 = scmp.eq.s32.totalorder %s15, 0
    %p63 = por %p61, %p62
    %s65 = sadd.s32 %s64, 1
    %p68 = scmp.eq.s32.totalorder %s9, 1
    %p69 = scmp.ne.s32.totalorder %s64, %s66
    %p70 = scmp.eq.s32.totalorder %s9, 0
    %p71 = por %p69, %p70
    %p72 = scmp.ne.s32.totalorder %s64, %s66
    %p73 = scmp.eq.s32.totalorder %s14, 1
    %p74 = por %p72, %p73
    %p75 = scmp.ne.s32.totalorder %s66, %s67
    %p76 = scmp.eq.s32.totalorder %s14, 0
    %p77 = por %p75, %p76
    %p78 = scmp.ne.s32.totalorder %s66, %s67
    %p79 = scmp.eq.s32.totalorder %s15, 1
    %p80 = por %p78, %p79
    %p82 = scmp.ne.s32.totalorder %s67, %s81
    %p83 = scmp.eq.s32.totalorder %s15, 0
    %p84 = por %p82, %p83
    %s85 = ssub.s32 %s9, %s16
    %p86 = scmp.eq.s32.totalorder %s85, 0
    %s88 = sadd.s32 %s87, 1
    %s89 = scalar_select %p86, %s87, %s88
    %p92 = pneg %p86
    %p93 = scmp.eq.s32.totalorder %s9, 1
    %p94 = por %p92, %p93
    %p95 = scmp.ne.s32.totalorder %s87, %s90
    %p96 = scmp.eq.s32.totalorder %s9, 0
    %p97 = por %p95, %p96
    %p98 = scmp.ne.s32.totalorder %s87, %s90
    %p99 = scmp.eq.s32.totalorder %s14, 1
    %p100 = por %p98, %p99
    %p101 = scmp.ne.s32.totalorder %s90, %s91
    %p102 = scmp.eq.s32.totalorder %s14, 0
    %p103 = por %p101, %p102
    %p104 = scmp.ne.s32.totalorder %s90, %s91
    %p105 = scmp.eq.s32.totalorder %s15, 1
    %p106 = por %p104, %p105
    %p108 = scmp.ne.s32.totalorder %s91, %s107
    %p109 = scmp.eq.s32.totalorder %s15, 0
    %p110 = por %p108, %p109
    %p111 = scmp.le.s32.totalorder 1, %s9
    %p112 = scmp.lt.s32.totalorder %s9, 3
    %p113 = pnand %p111, %p112
    %p114 = pneg %p113
    // Predicated region
    $region9: #{vgg_forward.19} parent=5 // pred_check
      _
    $region10: #{vgg_forward.19} parent=5 // pred_check_branch
      %116 = sbr.rel (%p113) target = $region12
    $region11: #{vgg_forward.19} parent=5 // pred_region
      %s117 = ssub.s32 %s9, 1
      // Predicated region
      $region13: #{vgg_forward.19} parent=11 // pred_check
        %p118 = pneg %p56
      $region14: #{vgg_forward.19} parent=11 // pred_check_branch
        %120 = sbr.rel (%p118) target = $region16
      $region15: #{vgg_forward.19} parent=11 // pred_region
        _
      $region16: #{vgg_forward.19} parent=11 // pred_fallthru
        _
      // Predicated region
      $region17: #{vgg_forward.19} parent=11 // pred_check
        %p121 = pneg %p77
      $region18: #{vgg_forward.19} parent=11 // pred_check_branch
        %123 = sbr.rel (%p121) target = $region20
      $region19: #{vgg_forward.19} parent=11 // pred_region
        _
      $region20: #{vgg_forward.19} parent=11 // pred_fallthru
        _
    $region12: #{vgg_forward.19} parent=5 // pred_fallthru
      _
    %p124 = scmp.lt.s32.totalorder %s9, 2
    // Predicated region
    $region21: #{vgg_forward.19} parent=5 // pred_check
      %p125 = pneg %p124
    $region22: #{vgg_forward.19} parent=5 // pred_check_branch
      %127 = sbr.rel (%p125) target = $region24
    $region23: #{vgg_forward.19} parent=5 // pred_region
      // Predicated region
      $region25: #{vgg_forward.19} parent=23 // pred_check
        %p128 = pneg %p29
      $region26: #{vgg_forward.19} parent=23 // pred_check_branch
        %130 = sbr.rel (%p128) target = $region28
      $region27: #{vgg_forward.19} parent=23 // pred_region
        %p131 = scmp.lt.s32.totalorder %s9, 1
        %s132 = scalar_select %p131, %s9, 1
        %s133 = smul.addr %s132, 4
        %s134 = scalar_lea.vmem %s0, %s133
      $region28: #{vgg_forward.19} parent=23 // pred_fallthru
        _
    $region24: #{vgg_forward.19} parent=5 // pred_fallthru
      _
    %p135 = scmp.le.s32.totalorder 1, %s9
    %p136 = scmp.lt.s32.totalorder %s9, 3
    %p137 = pnand %p135, %p136
    %p138 = pneg %p137
    // Predicated region
    $region29: #{vgg_forward.19} parent=5 // pred_check
      _
    $region30: #{vgg_forward.19} parent=5 // pred_check_branch
      %140 = sbr.rel (%p137) target = $region32
    $region31: #{vgg_forward.19} parent=5 // pred_region
      %s141 = ssub.s32 %s9, 1
      %p142 = scmp.lt.s32.totalorder %s14, 1
      %s143 = scalar_select %p142, %s14, 1
      %s144 = smul.addr %s143, 4
      %s145 = scalar_lea.vmem %s0, %s144
      %p146 = pneg %p35
      %p147 = pneg %p32
      %p148 = pneg %p56
      %p149 = pneg %p53
      %p150 = pneg %p77
      %p151 = pneg %p74
      %p152 = pneg %p103
      %p153 = pneg %p100
      %p154 = scmp.lt.s32.totalorder %s14, 1
      %s155 = scalar_select %p154, %s14, 1
      %s156 = smul.addr %s155, 2
      %s157 = scalar_lea.vmem %s3, %s156
      %p158 = scmp.lt.s32.totalorder %s14, 1
      %s159 = scalar_select %p158, %s14, 1
      %s160 = smul.addr %s159, 4
      %s161 = scalar_lea.vmem %s0, %s160
      %p162 = scmp.lt.s32.totalorder %s14, 1
      %s163 = scalar_select %p162, %s14, 1
      %s164 = smul.addr %s163, 2
      %s165 = scalar_lea.vmem %s3, %s164
      %v167 = vld [vmem:[%s2] sm:$0x1]
      %v168 = vld [vmem:[%s161] sm:$0x3]
      %v169 = vld [vmem:[%s1] sm:$0xf]
      %v170 = vld [vmem:[%s1 + $0x4] sm:$0xf]
      %v171 = vld [vmem:[%s1 + $0x8] sm:$0xf]
      %v172 = vld [vmem:[%s1 + $0xc] sm:$0xf]
      %v173 = vld [vmem:[%s1 + $0x10] sm:$0xf]
      %v174 = vld [vmem:[%s1 + $0x14] sm:$0xf]
      %v175 = vld [vmem:[%s1 + $0x18] sm:$0xf]
      %v176 = vld [vmem:[%s1 + $0x1c] sm:$0xf]
      %v177 = vld [vmem:[%s1 + $0x20] sm:$0xf]
      %v178 = vld [vmem:[%s1 + $0x24] sm:$0xf]
      %v179 = vld [vmem:[%s1 + $0x28] sm:$0xf]
      %v180 = vld [vmem:[%s1 + $0x2c] sm:$0xf]
      %v181 = vld [vmem:[%s1 + $0x30] sm:$0xf]
      %v182 = vld [vmem:[%s1 + $0x34] sm:$0xf]
      %v183 = vld [vmem:[%s1 + $0x38] sm:$0xf]
      %v184 = vld [vmem:[%s1 + $0x3c] sm:$0xf]
      %v185 = vld [vmem:[%s161] sm:$0x6]
      %s186 = scalar_lea.vmem %s1, 64
      %v187 = vld [vmem:[%s186] sm:$0xf]
      %v188 = vld [vmem:[%s186 + $0x4] sm:$0xf]
      %v189 = vld [vmem:[%s186 + $0x8] sm:$0xf]
      %v190 = vld [vmem:[%s186 + $0xc] sm:$0xf]
      %v191 = vld [vmem:[%s186 + $0x10] sm:$0xf]
      %v192 = vld [vmem:[%s186 + $0x14] sm:$0xf]
      %v193 = vld [vmem:[%s186 + $0x18] sm:$0xf]
      %v194 = vld [vmem:[%s186 + $0x1c] sm:$0xf]
      %v195 = vld [vmem:[%s186 + $0x20] sm:$0xf]
      %v196 = vld [vmem:[%s186 + $0x24] sm:$0xf]
      %v197 = vld [vmem:[%s186 + $0x28] sm:$0xf]
      %v198 = vld [vmem:[%s186 + $0x2c] sm:$0xf]
      %v199 = vld [vmem:[%s186 + $0x30] sm:$0xf]
      %v200 = vld [vmem:[%s186 + $0x34] sm:$0xf]
      %v201 = vld [vmem:[%s186 + $0x38] sm:$0xf]
      %v202 = vld [vmem:[%s186 + $0x3c] sm:$0xf]
      %v204 = vunpack.c.l.b16 %v185
      %v205 = vpack.c.b16 %v204, %v204
      %v206 = vrot.slane %v205, 1
      %v224 = vunpack.c.l.b16 %v187
      %v225 = vunpack.c.l.b16 %v188
      %v226 = vunpack.c.l.b16 %v189
      %v227 = vunpack.c.l.b16 %v190
      %v228 = vunpack.c.l.b16 %v191
      %v229 = vunpack.c.l.b16 %v192
      %v230 = vunpack.c.l.b16 %v193
      %v231 = vunpack.c.l.b16 %v194
      %v232 = vunpack.c.l.b16 %v195
      %v233 = vunpack.c.l.b16 %v196
      %v234 = vunpack.c.l.b16 %v197
      %v235 = vunpack.c.l.b16 %v198
      %v236 = vunpack.c.l.b16 %v199
      %v237 = vunpack.c.l.b16 %v200
      %v238 = vunpack.c.l.b16 %v201
      %v239 = vunpack.c.l.b16 %v202
      %v240 = vpack.c.b16 %v225, %v224
      %v241 = vpack.c.b16 %v227, %v226
      %v242 = vpack.c.b16 %v229, %v228
      %v243 = vpack.c.b16 %v231, %v230
      %v244 = vpack.c.b16 %v233, %v232
      %v245 = vpack.c.b16 %v235, %v234
      %v246 = vpack.c.b16 %v237, %v236
      %v247 = vpack.c.b16 %v239, %v238
      %256 = vmatprep.subr.bf16.mxu0 0
      %257 = vmatpush1.bf16.msra.mxu0 %v240
      %258 = vmatprep.subr.bf16.mxu0 0
      %259 = vmatpush1.bf16.msra.mxu0 %v241
      %260 = vmatprep.subr.bf16.mxu0 0
      %261 = vmatpush1.bf16.msra.mxu0 %v242
      %262 = vmatprep.subr.bf16.mxu0 0
      %263 = vmatpush1.bf16.msra.mxu0 %v243
      %264 = vmatprep.subr.bf16.mxu0 0
      %265 = vmatpush1.bf16.msra.mxu0 %v244
      %266 = vmatprep.subr.bf16.mxu0 0
      %267 = vmatpush1.bf16.msra.mxu0 %v245
      %268 = vmatprep.subr.bf16.mxu0 0
      %269 = vmatpush1.bf16.msra.mxu0 %v246
      %270 = vmatprep.subr.bf16.mxu0 0
      %271 = vmatpush1.bf16.msra.mxu0 %v247
      %272 = vmatprep.subr.bf16.mxu0 0
      %273 = vmatpush1.bf16.msra.mxu0 0
      %274 = vmatprep.subr.bf16.mxu0 0
      %275 = vmatpush1.bf16.msra.mxu0 0
      %276 = vmatprep.subr.bf16.mxu0 0
      %277 = vmatpush1.bf16.msra.mxu0 0
      %278 = vmatprep.subr.bf16.mxu0 0
      %279 = vmatpush1.bf16.msra.mxu0 0
      %280 = vmatprep.subr.bf16.mxu0 0
      %281 = vmatpush1.bf16.msra.mxu0 0
      %282 = vmatprep.subr.bf16.mxu0 0
      %283 = vmatpush1.bf16.msra.mxu0 0
      %284 = vmatprep.subr.bf16.mxu0 0
      %285 = vmatpush1.bf16.msra.mxu0 0
      %286 = vmatprep.subr.bf16.mxu0 0
      %287 = vmatpush1.bf16.msra.mxu0 0
      %288 = vmatprep.mubr.bf16.mxu0 0
      %289 = vmatmul.mubr.bf16.gmra.mrb[0].mxu0 %v206
      %v290 = vpop.f32.mrb[0].mxu0
      %v291 = vadd.f32 0.0, %v290
      %v292 = vpop.f32.mrb[0].mxu0
      %v293 = vpop.f32.mrb[0].mxu0
      %v294 = vpop.f32.mrb[0].mxu0
      %295 = vdwg.mxu0
      %v312 = vunpack.c.l.b16 %v169
      %v313 = vunpack.c.l.b16 %v170
      %v314 = vunpack.c.l.b16 %v171
      %v315 = vunpack.c.l.b16 %v172
      %v316 = vunpack.c.l.b16 %v173
      %v317 = vunpack.c.l.b16 %v174
      %v318 = vunpack.c.l.b16 %v175
      %v319 = vunpack.c.l.b16 %v176
      %v320 = vunpack.c.l.b16 %v177
      %v321 = vunpack.c.l.b16 %v178
      %v322 = vunpack.c.l.b16 %v179
      %v323 = vunpack.c.l.b16 %v180
      %v324 = vunpack.c.l.b16 %v181
      %v325 = vunpack.c.l.b16 %v182
      %v326 = vunpack.c.l.b16 %v183
      %v327 = vunpack.c.l.b16 %v184
      %v328 = vpack.c.b16 %v313, %v312
      %v329 = vpack.c.b16 %v315, %v314
      %v330 = vpack.c.b16 %v317, %v316
      %v331 = vpack.c.b16 %v319, %v318
      %v332 = vpack.c.b16 %v321, %v320
      %v333 = vpack.c.b16 %v323, %v322
      %v334 = vpack.c.b16 %v325, %v324
      %v335 = vpack.c.b16 %v327, %v326
      %344 = vmatprep.subr.bf16.mxu0 0
      %345 = vmatpush1.bf16.msra.mxu0 %v328
      %346 = vmatprep.subr.bf16.mxu0 0
      %347 = vmatpush1.bf16.msra.mxu0 %v329
      %348 = vmatprep.subr.bf16.mxu0 0
      %349 = vmatpush1.bf16.msra.mxu0 %v330
      %350 = vmatprep.subr.bf16.mxu0 0
      %351 = vmatpush1.bf16.msra.mxu0 %v331
      %352 = vmatprep.subr.bf16.mxu0 0
      %353 = vmatpush1.bf16.msra.mxu0 %v332
      %354 = vmatprep.subr.bf16.mxu0 0
      %355 = vmatpush1.bf16.msra.mxu0 %v333
      %356 = vmatprep.subr.bf16.mxu0 0
      %357 = vmatpush1.bf16.msra.mxu0 %v334
      %358 = vmatprep.subr.bf16.mxu0 0
      %359 = vmatpush1.bf16.msra.mxu0 %v335
      %360 = vmatprep.subr.bf16.mxu0 0
      %361 = vmatpush1.bf16.msra.mxu0 0
      %362 = vmatprep.subr.bf16.mxu0 0
      %363 = vmatpush1.bf16.msra.mxu0 0
      %364 = vmatprep.subr.bf16.mxu0 0
      %365 = vmatpush1.bf16.msra.mxu0 0
      %366 = vmatprep.subr.bf16.mxu0 0
      %367 = vmatpush1.bf16.msra.mxu0 0
      %368 = vmatprep.subr.bf16.mxu0 0
      %369 = vmatpush1.bf16.msra.mxu0 0
      %370 = vmatprep.subr.bf16.mxu0 0
      %371 = vmatpush1.bf16.msra.mxu0 0
      %372 = vmatprep.subr.bf16.mxu0 0
      %373 = vmatpush1.bf16.msra.mxu0 0
      %374 = vmatprep.subr.bf16.mxu0 0
      %375 = vmatpush1.bf16.msra.mxu0 0
      %376 = vmatprep.mubr.bf16.mxu0 0
      %377 = vmatmul.mubr.bf16.gmra.mrb[0].mxu0 %v168
      %v378 = vpop.f32.mrb[0].mxu0
      %v379 = vadd.f32 %v291, %v378
      %v380 = vpop.f32.mrb[0].mxu0
      %v381 = vpop.f32.mrb[0].mxu0
      %v382 = vpop.f32.mrb[0].mxu0
      %383 = vdwg.mxu0
      %v384 = vld [vmem:[%s161] sm:$0xc]
      %s385 = scalar_lea.vmem %s1, 128
      %v386 = vld [vmem:[%s385] sm:$0xf]
      %v387 = vld [vmem:[%s385 + $0x4] sm:$0xf]
      %v388 = vld [vmem:[%s385 + $0x8] sm:$0xf]
      %v389 = vld [vmem:[%s385 + $0xc] sm:$0xf]
      %v390 = vld [vmem:[%s385 + $0x10] sm:$0xf]
      %v391 = vld [vmem:[%s385 + $0x14] sm:$0xf]
      %v392 = vld [vmem:[%s385 + $0x18] sm:$0xf]
      %v393 = vld [vmem:[%s385 + $0x1c] sm:$0xf]
      %v394 = vld [vmem:[%s385 + $0x20] sm:$0xf]
      %v395 = vld [vmem:[%s385 + $0x24] sm:$0xf]
      %v396 = vld [vmem:[%s385 + $0x28] sm:$0xf]
      %v397 = vld [vmem:[%s385 + $0x2c] sm:$0xf]
      %v398 = vld [vmem:[%s385 + $0x30] sm:$0xf]
      %v399 = vld [vmem:[%s385 + $0x34] sm:$0xf]
      %v400 = vld [vmem:[%s385 + $0x38] sm:$0xf]
      %v401 = vld [vmem:[%s385 + $0x3c] sm:$0xf]
      %v403 = vunpack.c.l.b16 %v384
      %v404 = vpack.c.b16 %v403, %v403
      %v405 = vrot.slane %v404, 2
      %v423 = vunpack.c.l.b16 %v386
      %v424 = vunpack.c.l.b16 %v387
      %v425 = vunpack.c.l.b16 %v388
      %v426 = vunpack.c.l.b16 %v389
      %v427 = vunpack.c.l.b16 %v390
      %v428 = vunpack.c.l.b16 %v391
      %v429 = vunpack.c.l.b16 %v392
      %v430 = vunpack.c.l.b16 %v393
      %v431 = vunpack.c.l.b16 %v394
      %v432 = vunpack.c.l.b16 %v395
      %v433 = vunpack.c.l.b16 %v396
      %v434 = vunpack.c.l.b16 %v397
      %v435 = vunpack.c.l.b16 %v398
      %v436 = vunpack.c.l.b16 %v399
      %v437 = vunpack.c.l.b16 %v400
      %v438 = vunpack.c.l.b16 %v401
      %v439 = vpack.c.b16 %v424, %v423
      %v440 = vpack.c.b16 %v426, %v425
      %v441 = vpack.c.b16 %v428, %v427
      %v442 = vpack.c.b16 %v430, %v429
      %v443 = vpack.c.b16 %v432, %v431
      %v444 = vpack.c.b16 %v434, %v433
      %v445 = vpack.c.b16 %v436, %v435
      %v446 = vpack.c.b16 %v438, %v437
      %455 = vmatprep.subr.bf16.mxu0 0
      %456 = vmatpush1.bf16.msra.mxu0 %v439
      %457 = vmatprep.subr.bf16.mxu0 0
      %458 = vmatpush1.bf16.msra.mxu0 %v440
      %459 = vmatprep.subr.bf16.mxu0 0
      %460 = vmatpush1.bf16.msra.mxu0 %v441
      %461 = vmatprep.subr.bf16.mxu0 0
      %462 = vmatpush1.bf16.msra.mxu0 %v442
      %463 = vmatprep.subr.bf16.mxu0 0
      %464 = vmatpush1.bf16.msra.mxu0 %v443
      %465 = vmatprep.subr.bf16.mxu0 0
      %466 = vmatpush1.bf16.msra.mxu0 %v444
      %467 = vmatprep.subr.bf16.mxu0 0
      %468 = vmatpush1.bf16.msra.mxu0 %v445
      %469 = vmatprep.subr.bf16.mxu0 0
      %470 = vmatpush1.bf16.msra.mxu0 %v446
      %471 = vmatprep.subr.bf16.mxu0 0
      %472 = vmatpush1.bf16.msra.mxu0 0
      %473 = vmatprep.subr.bf16.mxu0 0
      %474 = vmatpush1.bf16.msra.mxu0 0
      %475 = vmatprep.subr.bf16.mxu0 0
      %476 = vmatpush1.bf16.msra.mxu0 0
      %477 = vmatprep.subr.bf16.mxu0 0
      %478 = vmatpush1.bf16.msra.mxu0 0
      %479 = vmatprep.subr.bf16.mxu0 0
      %480 = vmatpush1.bf16.msra.mxu0 0
      %481 = vmatprep.subr.bf16.mxu0 0
      %482 = vmatpush1.bf16.msra.mxu0 0
      %483 = vmatprep.subr.bf16.mxu0 0
      %484 = vmatpush1.bf16.msra.mxu0 0
      %485 = vmatprep.subr.bf16.mxu0 0
      %486 = vmatpush1.bf16.msra.mxu0 0
      %487 = vmatprep.mubr.bf16.mxu0 0
      %488 = vmatmul.mubr.bf16.gmra.mrb[0].mxu0 %v405
      %v489 = vpop.f32.mrb[0].mxu0
      %v490 = vadd.f32 0.0, %v489
      %v491 = vpop.f32.mrb[0].mxu0
      %v492 = vpop.f32.mrb[0].mxu0
      %v493 = vpop.f32.mrb[0].mxu0
      %494 = vdwg.mxu0
      %v495 = vadd.f32 %v379, %v490
      %v497 = vlaneseq
      %v498 = vshrl.u32 %v497, 7
      %v499 = vsub.s32 0, %v498
      %v500 = vrot.slane %v167, %v499
      %v502 = vadd.f32 %v495, %v500
      %v503 = vmax.f32 %v502, 0.0
      %v504 = vpack.c.bf16 %v503, %v503
      %505 = vst [vmem:[%s165] sm:$0x3] %v504
      %p506 = scmp.lt.s32.totalorder %s14, 1
      %s507 = scalar_select %p506, %s14, 1
      %s508 = smul.addr %s507, 2
      %s509 = scalar_lea.vmem %s3, %s508
      // Predicated region
      $region33: #{vgg_forward.19} parent=31 // pred_check
        %p510 = pneg %p100
      $region34: #{vgg_forward.19} parent=31 // pred_check_branch
        %512 = sbr.rel (%p510) target = $region36
      $region35: #{vgg_forward.19} parent=31 // pred_region
        _
      $region36: #{vgg_forward.19} parent=31 // pred_fallthru
        _
    $region32: #{vgg_forward.19} parent=5 // pred_fallthru
      _
    %p513 = scmp.le.s32.totalorder 2, %s9
    // Predicated region
    $region37: #{vgg_forward.19} parent=5 // pred_check
      %p514 = pneg %p513
    $region38: #{vgg_forward.19} parent=5 // pred_check_branch
      %516 = sbr.rel (%p514) target = $region40
    $region39: #{vgg_forward.19} parent=5 // pred_region
      %s517 = ssub.s32 %s9, 2
      // Predicated region
      $region41: #{vgg_forward.19} parent=39 // pred_check
        %p518 = pneg %p106
      $region42: #{vgg_forward.19} parent=39 // pred_check_branch
        %520 = sbr.rel (%p518) target = $region44
      $region43: #{vgg_forward.19} parent=39 // pred_region
        %p521 = scmp.lt.s32.totalorder %s15, 1
        %s522 = scalar_select %p521, %s15, 1
        %s523 = smul.addr %s522, 2
        %s524 = scalar_lea.vmem %s3, %s523
      $region44: #{vgg_forward.19} parent=39 // pred_fallthru
        _
    $region40: #{vgg_forward.19} parent=5 // pred_fallthru
      _
  $region6: #{vgg_forward.19} parent=0 // loop_footer
    %s13 = sadd.s32 1, %s9
  $region7: #{vgg_forward.19} parent=0 // loop_footer_branch
    %8 = sbr.rel target = $region3
  $region8: #{vgg_forward.19} parent=0 // loop_exit
    _

// kernel: vgg_forward.21
$region0: #{vgg_forward.21}
  #allocation0 [shape = 'u32[]', space=smem, size = 0x4, offset = 0x4, fixed_abs, tag = 'smem constant byte address 0x4 - core index']
  #allocation1 [shape = 'u32[144,128]{1,0:T(1,128)}', space=vmem, size = 0x12000, scoped, tag = 'internal scratch']
  %s0 = inlined_call_operand.vmem [shape: bf16[2,128], index: 0, kind: input, shape index: {}]
  %s1 = inlined_call_operand.vmem [shape: bf16[128,128], index: 1, kind: input, shape index: {}]
  %s2 = inlined_call_operand.vmem [shape: f32[1,128], index: 2, kind: input, shape index: {}]
  %s3 = inlined_call_operand.vmem [shape: bf16[128,128], index: 3, kind: input, shape index: {}]
  %s4 = inlined_call_operand.vmem [shape: f32[1,128], index: 4, kind: input, shape index: {}]
  %s5 = inlined_call_operand.vmem [shape: bf16[128,128], index: 5, kind: input, shape index: {}]
  %s6 = inlined_call_operand.vmem [shape: f32[1,128], index: 6, kind: input, shape index: {}]
  %s7 = inlined_call_operand.hbm [shape: f32[2,128], index: 7, kind: output, shape index: {}]
  %s8 = sld [smem:[#allocation0]]
  $region38: #{vgg_forward.21} parent=0
    _
  %s10 = ssub.s32 1, %s8
  %s11 = scalar_select 0, %s10, %s8
  $region1: #{vgg_forward.21} parent=0
    #allocation2 [shape = 'u8[1024]{0}', space=vmem, size = 0x400, scoped, tag = 'output window, operand 0, single buffered']
    #allocation3 [shape = 's32[1]{0}', space=sflag, size = 0x4, scoped, tag = 'scoped memory for vgg_forward.21']
    %12 = vsyncpa [#allocation3], 0
    // Predicated region
    $region2: #{vgg_forward.21} parent=1 // pred_check
      _
    $region3: #{vgg_forward.21} parent=1 // pred_check_branch
      %14 = sbr.rel (0) target = $region5
    $region4: #{vgg_forward.21} parent=1 // pred_region
      _
    $region5: #{vgg_forward.21} parent=1 // pred_fallthru
      _
    // Predicated region
    $region6: #{vgg_forward.21} parent=1 // pred_check
      _
    $region7: #{vgg_forward.21} parent=1 // pred_check_branch
      %16 = sbr.rel (0) target = $region9
    $region8: #{vgg_forward.21} parent=1 // pred_region
      _
    $region9: #{vgg_forward.21} parent=1 // pred_fallthru
      _
    // Predicated region
    $region10: #{vgg_forward.21} parent=1 // pred_check
      _
    $region11: #{vgg_forward.21} parent=1 // pred_check_branch
      %18 = sbr.rel (0) target = $region13
    $region12: #{vgg_forward.21} parent=1 // pred_region
      _
    $region13: #{vgg_forward.21} parent=1 // pred_fallthru
      _
    // Predicated region
    $region14: #{vgg_forward.21} parent=1 // pred_check
      _
    $region15: #{vgg_forward.21} parent=1 // pred_check_branch
      %20 = sbr.rel (0) target = $region17
    $region16: #{vgg_forward.21} parent=1 // pred_region
      _
    $region17: #{vgg_forward.21} parent=1 // pred_fallthru
      _
    // Predicated region
    $region18: #{vgg_forward.21} parent=1 // pred_check
      _
    $region19: #{vgg_forward.21} parent=1 // pred_check_branch
      %22 = sbr.rel (0) target = $region21
    $region20: #{vgg_forward.21} parent=1 // pred_region
      _
    $region21: #{vgg_forward.21} parent=1 // pred_fallthru
      _
    // Predicated region
    $region22: #{vgg_forward.21} parent=1 // pred_check
      _
    $region23: #{vgg_forward.21} parent=1 // pred_check_branch
      %24 = sbr.rel (0) target = $region25
    $region24: #{vgg_forward.21} parent=1 // pred_region
      _
    $region25: #{vgg_forward.21} parent=1 // pred_fallthru
      _
    // Predicated region
    $region26: #{vgg_forward.21} parent=1 // pred_check
      _
    $region27: #{vgg_forward.21} parent=1 // pred_check_branch
      %26 = sbr.rel (0) target = $region29
    $region28: #{vgg_forward.21} parent=1 // pred_region
      _
    $region29: #{vgg_forward.21} parent=1 // pred_fallthru
      _
    %v28 = vld [vmem:[%s0] sm:$0x1]
    %v29 = vld [vmem:[%s1] sm:$0xf]
    %v30 = vld [vmem:[%s1 + $0x4] sm:$0xf]
    %v31 = vld [vmem:[%s1 + $0x8] sm:$0xf]
    %v32 = vld [vmem:[%s1 + $0xc] sm:$0xf]
    %v33 = vld [vmem:[%s1 + $0x10] sm:$0xf]
    %v34 = vld [vmem:[%s1 + $0x14] sm:$0xf]
    %v35 = vld [vmem:[%s1 + $0x18] sm:$0xf]
    %v36 = vld [vmem:[%s1 + $0x1c] sm:$0xf]
    %v37 = vld [vmem:[%s1 + $0x20] sm:$0xf]
    %v38 = vld [vmem:[%s1 + $0x24] sm:$0xf]
    %v39 = vld [vmem:[%s1 + $0x28] sm:$0xf]
    %v40 = vld [vmem:[%s1 + $0x2c] sm:$0xf]
    %v41 = vld [vmem:[%s1 + $0x30] sm:$0xf]
    %v42 = vld [vmem:[%s1 + $0x34] sm:$0xf]
    %v43 = vld [vmem:[%s1 + $0x38] sm:$0xf]
    %v44 = vld [vmem:[%s1 + $0x3c] sm:$0xf]
    %v45 = vld [vmem:[%s2] sm:$0x1]
    %v47 = vlaneseq
    %v48 = vshrl.u32 %v47, 7
    %v49 = vsub.s32 0, %v48
    %v50 = vrot.slane %v45, %v49
    %v68 = vunpack.c.l.b16 %v29
    %v69 = vunpack.c.l.b16 %v30
    %v70 = vunpack.c.l.b16 %v31
    %v71 = vunpack.c.l.b16 %v32
    %v72 = vunpack.c.l.b16 %v33
    %v73 = vunpack.c.l.b16 %v34
    %v74 = vunpack.c.l.b16 %v35
    %v75 = vunpack.c.l.b16 %v36
    %v76 = vunpack.c.l.b16 %v37
    %v77 = vunpack.c.l.b16 %v38
    %v78 = vunpack.c.l.b16 %v39
    %v79 = vunpack.c.l.b16 %v40
    %v80 = vunpack.c.l.b16 %v41
    %v81 = vunpack.c.l.b16 %v42
    %v82 = vunpack.c.l.b16 %v43
    %v83 = vunpack.c.l.b16 %v44
    %v84 = vpack.c.b16 %v69, %v68
    %v85 = vpack.c.b16 %v71, %v70
    %v86 = vpack.c.b16 %v73, %v72
    %v87 = vpack.c.b16 %v75, %v74
    %v88 = vpack.c.b16 %v77, %v76
    %v89 = vpack.c.b16 %v79, %v78
    %v90 = vpack.c.b16 %v81, %v80
    %v91 = vpack.c.b16 %v83, %v82
    %100 = vmatprep.subr.bf16.mxu0 0
    %101 = vmatpush1.bf16.msra.mxu0 %v84
    %102 = vmatprep.subr.bf16.mxu0 0
    %103 = vmatpush1.bf16.msra.mxu0 %v85
    %104 = vmatprep.subr.bf16.mxu0 0
    %105 = vmatpush1.bf16.msra.mxu0 %v86
    %106 = vmatprep.subr.bf16.mxu0 0
    %107 = vmatpush1.bf16.msra.mxu0 %v87
    %108 = vmatprep.subr.bf16.mxu0 0
    %109 = vmatpush1.bf16.msra.mxu0 %v88
    %110 = vmatprep.subr.bf16.mxu0 0
    %111 = vmatpush1.bf16.msra.mxu0 %v89
    %112 = vmatprep.subr.bf16.mxu0 0
    %113 = vmatpush1.bf16.msra.mxu0 %v90
    %114 = vmatprep.subr.bf16.mxu0 0
    %115 = vmatpush1.bf16.msra.mxu0 %v91
    %116 = vmatprep.subr.bf16.mxu0 0
    %117 = vmatpush1.bf16.msra.mxu0 0
    %118 = vmatprep.subr.bf16.mxu0 0
    %119 = vmatpush1.bf16.msra.mxu0 0
    %120 = vmatprep.subr.bf16.mxu0 0
    %121 = vmatpush1.bf16.msra.mxu0 0
    %122 = vmatprep.subr.bf16.mxu0 0
    %123 = vmatpush1.bf16.msra.mxu0 0
    %124 = vmatprep.subr.bf16.mxu0 0
    %125 = vmatpush1.bf16.msra.mxu0 0
    %126 = vmatprep.subr.bf16.mxu0 0
    %127 = vmatpush1.bf16.msra.mxu0 0
    %128 = vmatprep.subr.bf16.mxu0 0
    %129 = vmatpush1.bf16.msra.mxu0 0
    %130 = vmatprep.subr.bf16.mxu0 0
    %131 = vmatpush1.bf16.msra.mxu0 0
    %132 = vmatprep.mubr.bf16.mxu0 0
    %133 = vmatmul.mubr.bf16.gmra.mrb[0].mxu0 %v28
    %v134 = vpop.f32.mrb[0].mxu0
    %v135 = vadd.f32 %v50, %v134
    %v136 = vpop.f32.mrb[0].mxu0
    %v137 = vpop.f32.mrb[0].mxu0
    %v138 = vpop.f32.mrb[0].mxu0
    %139 = vdwg.mxu0
    %v140 = vmax.f32 %v135, 0.0
    %v141 = vpack.c.bf16 %v140, %v140
    %v142 = vld [vmem:[%s3] sm:$0xf]
    %v143 = vld [vmem:[%s3 + $0x4] sm:$0xf]
    %v144 = vld [vmem:[%s3 + $0x8] sm:$0xf]
    %v145 = vld [vmem:[%s3 + $0xc] sm:$0xf]
    %v146 = vld [vmem:[%s3 + $0x10] sm:$0xf]
    %v147 = vld [vmem:[%s3 + $0x14] sm:$0xf]
    %v148 = vld [vmem:[%s3 + $0x18] sm:$0xf]
    %v149 = vld [vmem:[%s3 + $0x1c] sm:$0xf]
    %v150 = vld [vmem:[%s3 + $0x20] sm:$0xf]
    %v151 = vld [vmem:[%s3 + $0x24] sm:$0xf]
    %v152 = vld [vmem:[%s3 + $0x28] sm:$0xf]
    %v153 = vld [vmem:[%s3 + $0x2c] sm:$0xf]
    %v154 = vld [vmem:[%s3 + $0x30] sm:$0xf]
    %v155 = vld [vmem:[%s3 + $0x34] sm:$0xf]
    %v156 = vld [vmem:[%s3 + $0x38] sm:$0xf]
    %v157 = vld [vmem:[%s3 + $0x3c] sm:$0xf]
    %v158 = vld [vmem:[%s4] sm:$0x1]
    %v160 = vlaneseq
    %v161 = vshrl.u32 %v160, 7
    %v162 = vsub.s32 0, %v161
    %v163 = vrot.slane %v158, %v162
    %v181 = vunpack.c.l.b16 %v142
    %v182 = vunpack.c.l.b16 %v143
    %v183 = vunpack.c.l.b16 %v144
    %v184 = vunpack.c.l.b16 %v145
    %v185 = vunpack.c.l.b16 %v146
    %v186 = vunpack.c.l.b16 %v147
    %v187 = vunpack.c.l.b16 %v148
    %v188 = vunpack.c.l.b16 %v149
    %v189 = vunpack.c.l.b16 %v150
    %v190 = vunpack.c.l.b16 %v151
    %v191 = vunpack.c.l.b16 %v152
    %v192 = vunpack.c.l.b16 %v153
    %v193 = vunpack.c.l.b16 %v154
    %v194 = vunpack.c.l.b16 %v155
    %v195 = vunpack.c.l.b16 %v156
    %v196 = vunpack.c.l.b16 %v157
    %v197 = vpack.c.b16 %v182, %v181
    %v198 = vpack.c.b16 %v184, %v183
    %v199 = vpack.c.b16 %v186, %v185
    %v200 = vpack.c.b16 %v188, %v187
    %v201 = vpack.c.b16 %v190, %v189
    %v202 = vpack.c.b16 %v192, %v191
    %v203 = vpack.c.b16 %v194, %v193
    %v204 = vpack.c.b16 %v196, %v195
    %213 = vmatprep.subr.bf16.mxu0 0
    %214 = vmatpush1.bf16.msra.mxu0 %v197
    %215 = vmatprep.subr.bf16.mxu0 0
    %216 = vmatpush1.bf16.msra.mxu0 %v198
    %217 = vmatprep.subr.bf16.mxu0 0
    %218 = vmatpush1.bf16.msra.mxu0 %v199
    %219 = vmatprep.subr.bf16.mxu0 0
    %220 = vmatpush1.bf16.msra.mxu0 %v200
    %221 = vmatprep.subr.bf16.mxu0 0
    %222 = vmatpush1.bf16.msra.mxu0 %v201
    %223 = vmatprep.subr.bf16.mxu0 0
    %224 = vmatpush1.bf16.msra.mxu0 %v202
    %225 = vmatprep.subr.bf16.mxu0 0
    %226 = vmatpush1.bf16.msra.mxu0 %v203
    %227 = vmatprep.subr.bf16.mxu0 0
    %228 = vmatpush1.bf16.msra.mxu0 %v204
    %229 = vmatprep.subr.bf16.mxu0 0
    %230 = vmatpush1.bf16.msra.mxu0 0
    %231 = vmatprep.subr.bf16.mxu0 0
    %232 = vmatpush1.bf16.msra.mxu0 0
    %233 = vmatprep.subr.bf16.mxu0 0
    %234 = vmatpush1.bf16.msra.mxu0 0
    %235 = vmatprep.subr.bf16.mxu0 0
    %236 = vmatpush1.bf16.msra.mxu0 0
    %237 = vmatprep.subr.bf16.mxu0 0
    %238 = vmatpush1.bf16.msra.mxu0 0
    %239 = vmatprep.subr.bf16.mxu0 0
    %240 = vmatpush1.bf16.msra.mxu0 0
    %241 = vmatprep.subr.bf16.mxu0 0
    %242 = vmatpush1.bf16.msra.mxu0 0
    %243 = vmatprep.subr.bf16.mxu0 0
    %244 = vmatpush1.bf16.msra.mxu0 0
    %245 = vmatprep.mubr.bf16.mxu0 0
    %246 = vmatmul.mubr.bf16.gmra.mrb[0].mxu0 %v141
    %v247 = vpop.f32.mrb[0].mxu0
    %v248 = vadd.f32 %v163, %v247
    %v249 = vpop.f32.mrb[0].mxu0
    %v250 = vpop.f32.mrb[0].mxu0
    %v251 = vpop.f32.mrb[0].mxu0
    %252 = vdwg.mxu0
    %v253 = vmax.f32 %v248, 0.0
    %v254 = vpack.c.bf16 %v253, %v253
    %v255 = vld [vmem:[%s5] sm:$0xf]
    %v256 = vld [vmem:[%s5 + $0x4] sm:$0xf]
    %v257 = vld [vmem:[%s5 + $0x8] sm:$0xf]
    %v258 = vld [vmem:[%s5 + $0xc] sm:$0xf]
    %v259 = vld [vmem:[%s5 + $0x10] sm:$0xf]
    %v260 = vld [vmem:[%s5 + $0x14] sm:$0xf]
    %v261 = vld [vmem:[%s5 + $0x18] sm:$0xf]
    %v262 = vld [vmem:[%s5 + $0x1c] sm:$0xf]
    %v263 = vld [vmem:[%s5 + $0x20] sm:$0xf]
    %v264 = vld [vmem:[%s5 + $0x24] sm:$0xf]
    %v265 = vld [vmem:[%s5 + $0x28] sm:$0xf]
    %v266 = vld [vmem:[%s5 + $0x2c] sm:$0xf]
    %v267 = vld [vmem:[%s5 + $0x30] sm:$0xf]
    %v268 = vld [vmem:[%s5 + $0x34] sm:$0xf]
    %v269 = vld [vmem:[%s5 + $0x38] sm:$0xf]
    %v270 = vld [vmem:[%s5 + $0x3c] sm:$0xf]
    %v271 = vld [vmem:[%s6] sm:$0x1]
    %v273 = vlaneseq
    %v274 = vshrl.u32 %v273, 7
    %v275 = vsub.s32 0, %v274
    %v276 = vrot.slane %v271, %v275
    %v294 = vunpack.c.l.b16 %v255
    %v295 = vunpack.c.l.b16 %v256
    %v296 = vunpack.c.l.b16 %v257
    %v297 = vunpack.c.l.b16 %v258
    %v298 = vunpack.c.l.b16 %v259
    %v299 = vunpack.c.l.b16 %v260
    %v300 = vunpack.c.l.b16 %v261
    %v301 = vunpack.c.l.b16 %v262
    %v302 = vunpack.c.l.b16 %v263
    %v303 = vunpack.c.l.b16 %v264
    %v304 = vunpack.c.l.b16 %v265
    %v305 = vunpack.c.l.b16 %v266
    %v306 = vunpack.c.l.b16 %v267
    %v307 = vunpack.c.l.b16 %v268
    %v308 = vunpack.c.l.b16 %v269
    %v309 = vunpack.c.l.b16 %v270
    %v310 = vpack.c.b16 %v295, %v294
    %v311 = vpack.c.b16 %v297, %v296
    %v312 = vpack.c.b16 %v299, %v298
    %v313 = vpack.c.b16 %v301, %v300
    %v314 = vpack.c.b16 %v303, %v302
    %v315 = vpack.c.b16 %v305, %v304
    %v316 = vpack.c.b16 %v307, %v306
    %v317 = vpack.c.b16 %v309, %v308
    %326 = vmatprep.subr.bf16.mxu0 0
    %327 = vmatpush1.bf16.msra.mxu0 %v310
    %328 = vmatprep.subr.bf16.mxu0 0
    %329 = vmatpush1.bf16.msra.mxu0 %v311
    %330 = vmatprep.subr.bf16.mxu0 0
    %331 = vmatpush1.bf16.msra.mxu0 %v312
    %332 = vmatprep.subr.bf16.mxu0 0
    %333 = vmatpush1.bf16.msra.mxu0 %v313
    %334 = vmatprep.subr.bf16.mxu0 0
    %335 = vmatpush1.bf16.msra.mxu0 %v314
    %336 = vmatprep.subr.bf16.mxu0 0
    %337 = vmatpush1.bf16.msra.mxu0 %v315
    %338 = vmatprep.subr.bf16.mxu0 0
    %339 = vmatpush1.bf16.msra.mxu0 %v316
    %340 = vmatprep.subr.bf16.mxu0 0
    %341 = vmatpush1.bf16.msra.mxu0 %v317
    %342 = vmatprep.subr.bf16.mxu0 0
    %343 = vmatpush1.bf16.msra.mxu0 0
    %344 = vmatprep.subr.bf16.mxu0 0
    %345 = vmatpush1.bf16.msra.mxu0 0
    %346 = vmatprep.subr.bf16.mxu0 0
    %347 = vmatpush1.bf16.msra.mxu0 0
    %348 = vmatprep.subr.bf16.mxu0 0
    %349 = vmatpush1.bf16.msra.mxu0 0
    %350 = vmatprep.subr.bf16.mxu0 0
    %351 = vmatpush1.bf16.msra.mxu0 0
    %352 = vmatprep.subr.bf16.mxu0 0
    %353 = vmatpush1.bf16.msra.mxu0 0
    %354 = vmatprep.subr.bf16.mxu0 0
    %355 = vmatpush1.bf16.msra.mxu0 0
    %356 = vmatprep.subr.bf16.mxu0 0
    %357 = vmatpush1.bf16.msra.mxu0 0
    %358 = vmatprep.mubr.bf16.mxu0 0
    %359 = vmatmul.mubr.bf16.gmra.mrb[0].mxu0 %v254
    %v360 = vpop.f32.mrb[0].mxu0
    %v361 = vadd.f32 %v276, %v360
    %v362 = vpop.f32.mrb[0].mxu0
    %v363 = vpop.f32.mrb[0].mxu0
    %v364 = vpop.f32.mrb[0].mxu0
    %365 = vdwg.mxu0
    %366 = vst [vmem:[#allocation2] sm:$0x3] %v361
    // Predicated region
    $region30: #{vgg_forward.21} parent=1 // pred_check
      _
    $region31: #{vgg_forward.21} parent=1 // pred_check_branch
      %368 = sbr.rel (0) target = $region33
    $region32: #{vgg_forward.21} parent=1 // pred_region
      %s370 = ssub.s32 32, 32
      %371 = vsyncadd [#allocation3], %s370
      %s373 = sshll.u32 [#allocation2], 4
      %s374 = int_to_ptr.vmem [resolvable:$true] %s373
      %376 = dma.vmem_to_hbm [thread:$0]  %s374, 32, %s7, [#allocation3]
    $region33: #{vgg_forward.21} parent=1 // pred_fallthru
      _
    // Predicated region
    $region34: #{vgg_forward.21} parent=1 // pred_check
      _
    $region35: #{vgg_forward.21} parent=1 // pred_check_branch
      %378 = sbr.rel (0) target = $region37
    $region36: #{vgg_forward.21} parent=1 // pred_region
      %379 = dma.done [#allocation3], 32
    $region37: #{vgg_forward.21} parent=1 // pred_fallthru
      _
    %380 = vsyncpa [#allocation3], 1

// kernel: vgg_forward.20
$region0: #{vgg_forward.20}
  #allocation0 [shape = 'u32[]', space=smem, size = 0x4, offset = 0x4, fixed_abs, tag = 'smem constant byte address 0x4 - core index']
  #allocation1 [shape = 'u32[144,128]{1,0:T(1,128)}', space=vmem, size = 0x12000, scoped, tag = 'internal scratch']
  #allocation2 [shape = 'f32[1,2,128]{2,1,0:T(2,128)}', space=vmem, size = 0x400, scoped, tag = 'scratch operand']
  %s0 = inlined_call_operand.vmem [shape: bf16[2,8,256], index: 0, kind: input, shape index: {}]
  %s1 = inlined_call_operand.vmem [shape: bf16[3,256,128], index: 1, kind: input, shape index: {}]
  %s2 = inlined_call_operand.vmem [shape: f32[1,128], index: 2, kind: input, shape index: {}]
  %s3 = inlined_call_operand.vmem [shape: bf16[2,1,1,128], index: 3, kind: output, shape index: {}]
  %s4 = sld [smem:[#allocation0]]
  $region45: #{vgg_forward.20} parent=0
    _
  %s6 = ssub.s32 1, %s4
  %s7 = scalar_select 0, %s6, %s4
  loop: start=0, step=1, limit=4
  $region2: #{vgg_forward.20} parent=0 // loop_pre_header
    _
  $region3: #{vgg_forward.20} parent=0 // loop_header
    %s9 = sphi 0, %s13
    %p10 = scmp.ge.s32.totalorder %s9, 4
    %s19 = sphi 0, %s21
    %s22 = sphi 0, %s19
    %s23 = sphi 0, %s22
    %s39 = sphi 0, %s23
    %s43 = sphi 0, %s43
    %s45 = sphi 0, %s43
    %s46 = sphi 0, %s45
    %s60 = sphi 0, %s46
    %s64 = sphi 0, %s64
    %s66 = sphi 0, %s64
    %s67 = sphi 0, %s66
    %s81 = sphi 0, %s67
    %s87 = sphi 0, %s89
    %s90 = sphi 0, %s87
    %s91 = sphi 0, %s90
    %s107 = sphi 0, %s91
  $region4: #{vgg_forward.20} parent=0 // loop_header_branch
    %12 = sbr.rel (%p10) target = $region8
  $region5: #{vgg_forward.20} parent=0 // loop_body
    %s14 = ssub.s32 %s9, 1
    %s15 = ssub.s32 %s9, 2
    %s16 = sadd.s32 %s9, 1
    %s17 = ssub.s32 %s9, %s16
    %p18 = scmp.eq.s32.totalorder %s17, 0
    %s20 = sadd.s32 %s19, 1
    %s21 = scalar_select %p18, %s19, %s20
    %p24 = pneg %p18
    %p25 = scmp.eq.s32.totalorder %s9, 1
    %p26 = por %p24, %p25
    %p27 = scmp.ne.s32.totalorder %s19, %s22
    %p28 = scmp.eq.s32.totalorder %s9, 0
    %p29 = por %p27, %p28
    %p30 = scmp.ne.s32.totalorder %s19, %s22
    %p31 = scmp.eq.s32.totalorder %s14, 1
    %p32 = por %p30, %p31
    %p33 = scmp.ne.s32.totalorder %s22, %s23
    %p34 = scmp.eq.s32.totalorder %s14, 0
    %p35 = por %p33, %p34
    %p36 = scmp.ne.s32.totalorder %s22, %s23
    %p37 = scmp.eq.s32.totalorder %s15, 1
    %p38 = por %p36, %p37
    %p40 = scmp.ne.s32.totalorder %s23, %s39
    %p41 = scmp.eq.s32.totalorder %s15, 0
    %p42 = por %p40, %p41
    %s44 = sadd.s32 %s43, 1
    %p47 = scmp.eq.s32.totalorder %s9, 1
    %p48 = scmp.ne.s32.totalorder %s43, %s45
    %p49 = scmp.eq.s32.totalorder %s9, 0
    %p50 = por %p48, %p49
    %p51 = scmp.ne.s32.totalorder %s43, %s45
    %p52 = scmp.eq.s32.totalorder %s14, 1
    %p53 = por %p51, %p52
    %p54 = scmp.ne.s32.totalorder %s45, %s46
    %p55 = scmp.eq.s32.totalorder %s14, 0
    %p56 = por %p54, %p55
    %p57 = scmp.ne.s32.totalorder %s45, %s46
    %p58 = scmp.eq.s32.totalorder %s15, 1
    %p59 = por %p57, %p58
    %p61 = scmp.ne.s32.totalorder %s46, %s60
    %p62 = scmp.eq.s32.totalorder %s15, 0
    %p63 = por %p61, %p62
    %s65 = sadd.s32 %s64, 1
    %p68 = scmp.eq.s32.totalorder %s9, 1
    %p69 = scmp.ne.s32.totalorder %s64, %s66
    %p70 = scmp.eq.s32.totalorder %s9, 0
    %p71 = por %p69, %p70
    %p72 = scmp.ne.s32.totalorder %s64, %s66
    %p73 = scmp.eq.s32.totalorder %s14, 1
    %p74 = por %p72, %p73
    %p75 = scmp.ne.s32.totalorder %s66, %s67
    %p76 = scmp.eq.s32.totalorder %s14, 0
    %p77 = por %p75, %p76
    %p78 = scmp.ne.s32.totalorder %s66, %s67
    %p79 = scmp.eq.s32.totalorder %s15, 1
    %p80 = por %p78, %p79
    %p82 = scmp.ne.s32.totalorder %s67, %s81
    %p83 = scmp.eq.s32.totalorder %s15, 0
    %p84 = por %p82, %p83
    %s85 = ssub.s32 %s9, %s16
    %p86 = scmp.eq.s32.totalorder %s85, 0
    %s88 = sadd.s32 %s87, 1
    %s89 = scalar_select %p86, %s87, %s88
    %p92 = pneg %p86
    %p93 = scmp.eq.s32.totalorder %s9, 1
    %p94 = por %p92, %p93
    %p95 = scmp.ne.s32.totalorder %s87, %s90
    %p96 = scmp.eq.s32.totalorder %s9, 0
    %p97 = por %p95, %p96
    %p98 = scmp.ne.s32.totalorder %s87, %s90
    %p99 = scmp.eq.s32.totalorder %s14, 1
    %p100 = por %p98, %p99
    %p101 = scmp.ne.s32.totalorder %s90, %s91
    %p102 = scmp.eq.s32.totalorder %s14, 0
    %p103 = por %p101, %p102
    %p104 = scmp.ne.s32.totalorder %s90, %s91
    %p105 = scmp.eq.s32.totalorder %s15, 1
    %p106 = por %p104, %p105
    %p108 = scmp.ne.s32.totalorder %s91, %s107
    %p109 = scmp.eq.s32.totalorder %s15, 0
    %p110 = por %p108, %p109
    %p111 = scmp.le.s32.totalorder 1, %s9
    %p112 = scmp.lt.s32.totalorder %s9, 3
    %p113 = pnand %p111, %p112
    %p114 = pneg %p113
    // Predicated region
    $region9: #{vgg_forward.20} parent=5 // pred_check
      _
    $region10: #{vgg_forward.20} parent=5 // pred_check_branch
      %116 = sbr.rel (%p113) target = $region12
    $region11: #{vgg_forward.20} parent=5 // pred_region
      %s117 = ssub.s32 %s9, 1
      // Predicated region
      $region13: #{vgg_forward.20} parent=11 // pred_check
        %p118 = pneg %p56
      $region14: #{vgg_forward.20} parent=11 // pred_check_branch
        %120 = sbr.rel (%p118) target = $region16
      $region15: #{vgg_forward.20} parent=11 // pred_region
        _
      $region16: #{vgg_forward.20} parent=11 // pred_fallthru
        _
      // Predicated region
      $region17: #{vgg_forward.20} parent=11 // pred_check
        %p121 = pneg %p77
      $region18: #{vgg_forward.20} parent=11 // pred_check_branch
        %123 = sbr.rel (%p121) target = $region20
      $region19: #{vgg_forward.20} parent=11 // pred_region
        _
      $region20: #{vgg_forward.20} parent=11 // pred_fallthru
        _
    $region12: #{vgg_forward.20} parent=5 // pred_fallthru
      _
    %p124 = scmp.lt.s32.totalorder %s9, 2
    // Predicated region
    $region21: #{vgg_forward.20} parent=5 // pred_check
      %p125 = pneg %p124
    $region22: #{vgg_forward.20} parent=5 // pred_check_branch
      %127 = sbr.rel (%p125) target = $region24
    $region23: #{vgg_forward.20} parent=5 // pred_region
      // Predicated region
      $region25: #{vgg_forward.20} parent=23 // pred_check
        %p128 = pneg %p29
      $region26: #{vgg_forward.20} parent=23 // pred_check_branch
        %130 = sbr.rel (%p128) target = $region28
      $region27: #{vgg_forward.20} parent=23 // pred_region
        %p131 = scmp.lt.s32.totalorder %s9, 1
        %s132 = scalar_select %p131, %s9, 1
        %s133 = smul.addr %s132, 2
        %s134 = smul.addr %s133, 4
        %s135 = scalar_lea.vmem %s0, %s134
      $region28: #{vgg_forward.20} parent=23 // pred_fallthru
        _
    $region24: #{vgg_forward.20} parent=5 // pred_fallthru
      _
    %p136 = scmp.le.s32.totalorder 1, %s9
    %p137 = scmp.lt.s32.totalorder %s9, 3
    %p138 = pnand %p136, %p137
    %p139 = pneg %p138
    // Predicated region
    $region29: #{vgg_forward.20} parent=5 // pred_check
      _
    $region30: #{vgg_forward.20} parent=5 // pred_check_branch
      %141 = sbr.rel (%p138) target = $region32
    $region31: #{vgg_forward.20} parent=5 // pred_region
      %s142 = ssub.s32 %s9, 1
      %p143 = scmp.lt.s32.totalorder %s14, 1
      %s144 = scalar_select %p143, %s14, 1
      %s145 = smul.addr %s144, 2
      %s146 = smul.addr %s145, 4
      %s147 = scalar_lea.vmem %s0, %s146
      %p148 = pneg %p35
      %p149 = pneg %p32
      %p150 = pneg %p56
      %p151 = pneg %p53
      %p152 = pneg %p77
      %p153 = pneg %p74
      %p154 = pneg %p103
      %p155 = pneg %p100
      %p156 = scmp.lt.s32.totalorder %s14, 1
      %s157 = scalar_select %p156, %s14, 1
      %s158 = scalar_lea.vmem %s3, %s157
      %p159 = scmp.lt.s32.totalorder %s14, 1
      %s160 = scalar_select %p159, %s14, 1
      %s161 = smul.addr %s160, 2
      %s162 = smul.addr %s161, 4
      %s163 = scalar_lea.vmem %s0, %s162
      %p164 = scmp.lt.s32.totalorder %s14, 1
      %s165 = scalar_select %p164, %s14, 1
      %s166 = scalar_lea.vmem %s3, %s165
      %v168 = vld [vmem:[%s2] sm:$0x1]
      %v169 = vld [vmem:[%s163] sm:$0x33]
      %v170 = vld [vmem:[%s1] sm:$0xf]
      %v171 = vld [vmem:[%s1 + $0x4] sm:$0xf]
      %v172 = vld [vmem:[%s1 + $0x8] sm:$0xf]
      %v173 = vld [vmem:[%s1 + $0xc] sm:$0xf]
      %v174 = vld [vmem:[%s1 + $0x10] sm:$0xf]
      %v175 = vld [vmem:[%s1 + $0x14] sm:$0xf]
      %v176 = vld [vmem:[%s1 + $0x18] sm:$0xf]
      %v177 = vld [vmem:[%s1 + $0x1c] sm:$0xf]
      %v178 = vld [vmem:[%s1 + $0x20] sm:$0xf]
      %v179 = vld [vmem:[%s1 + $0x24] sm:$0xf]
      %v180 = vld [vmem:[%s1 + $0x28] sm:$0xf]
      %v181 = vld [vmem:[%s1 + $0x2c] sm:$0xf]
      %v182 = vld [vmem:[%s1 + $0x30] sm:$0xf]
      %v183 = vld [vmem:[%s1 + $0x34] sm:$0xf]
      %v184 = vld [vmem:[%s1 + $0x38] sm:$0xf]
      %v185 = vld [vmem:[%s1 + $0x3c] sm:$0xf]
      %v186 = vld [vmem:[%s1 + $0x40] sm:$0xf]
      %v187 = vld [vmem:[%s1 + $0x44] sm:$0xf]
      %v188 = vld [vmem:[%s1 + $0x48] sm:$0xf]
      %v189 = vld [vmem:[%s1 + $0x4c] sm:$0xf]
      %v190 = vld [vmem:[%s1 + $0x50] sm:$0xf]
      %v191 = vld [vmem:[%s1 + $0x54] sm:$0xf]
      %v192 = vld [vmem:[%s1 + $0x58] sm:$0xf]
      %v193 = vld [vmem:[%s1 + $0x5c] sm:$0xf]
      %v194 = vld [vmem:[%s1 + $0x60] sm:$0xf]
      %v195 = vld [vmem:[%s1 + $0x64] sm:$0xf]
      %v196 = vld [vmem:[%s1 + $0x68] sm:$0xf]
      %v197 = vld [vmem:[%s1 + $0x6c] sm:$0xf]
      %v198 = vld [vmem:[%s1 + $0x70] sm:$0xf]
      %v199 = vld [vmem:[%s1 + $0x74] sm:$0xf]
      %v200 = vld [vmem:[%s1 + $0x78] sm:$0xf]
      %v201 = vld [vmem:[%s1 + $0x7c] sm:$0xf]
      %v202 = vld [vmem:[%s163] sm:$0x66]
      %s203 = scalar_lea.vmem %s1, 128
      %v204 = vld [vmem:[%s203] sm:$0xf]
      %v205 = vld [vmem:[%s203 + $0x4] sm:$0xf]
      %v206 = vld [vmem:[%s203 + $0x8] sm:$0xf]
      %v207 = vld [vmem:[%s203 + $0xc] sm:$0xf]
      %v208 = vld [vmem:[%s203 + $0x10] sm:$0xf]
      %v209 = vld [vmem:[%s203 + $0x14] sm:$0xf]
      %v210 = vld [vmem:[%s203 + $0x18] sm:$0xf]
      %v211 = vld [vmem:[%s203 + $0x1c] sm:$0xf]
      %v212 = vld [vmem:[%s203 + $0x20] sm:$0xf]
      %v213 = vld [vmem:[%s203 + $0x24] sm:$0xf]
      %v214 = vld [vmem:[%s203 + $0x28] sm:$0xf]
      %v215 = vld [vmem:[%s203 + $0x2c] sm:$0xf]
      %v216 = vld [vmem:[%s203 + $0x30] sm:$0xf]
      %v217 = vld [vmem:[%s203 + $0x34] sm:$0xf]
      %v218 = vld [vmem:[%s203 + $0x38] sm:$0xf]
      %v219 = vld [vmem:[%s203 + $0x3c] sm:$0xf]
      %v220 = vld [vmem:[%s203 + $0x40] sm:$0xf]
      %v221 = vld [vmem:[%s203 + $0x44] sm:$0xf]
      %v222 = vld [vmem:[%s203 + $0x48] sm:$0xf]
      %v223 = vld [vmem:[%s203 + $0x4c] sm:$0xf]
      %v224 = vld [vmem:[%s203 + $0x50] sm:$0xf]
      %v225 = vld [vmem:[%s203 + $0x54] sm:$0xf]
      %v226 = vld [vmem:[%s203 + $0x58] sm:$0xf]
      %v227 = vld [vmem:[%s203 + $0x5c] sm:$0xf]
      %v228 = vld [vmem:[%s203 + $0x60] sm:$0xf]
      %v229 = vld [vmem:[%s203 + $0x64] sm:$0xf]
      %v230 = vld [vmem:[%s203 + $0x68] sm:$0xf]
      %v231 = vld [vmem:[%s203 + $0x6c] sm:$0xf]
      %v232 = vld [vmem:[%s203 + $0x70] sm:$0xf]
      %v233 = vld [vmem:[%s203 + $0x74] sm:$0xf]
      %v234 = vld [vmem:[%s203 + $0x78] sm:$0xf]
      %v235 = vld [vmem:[%s203 + $0x7c] sm:$0xf]
      %v237 = vunpack.c.l.b16 %v202
      %v238 = vunpack.c.h.b16 %v202
      %v239 = vpack.c.b16 %v237, %v237
      %v240 = vpack.c.b16 %v238, %v238
      %v241 = vrot.slane %v239, 1
      %v242 = vrot.slane %v240, 1
      %v277 = vunpack.c.l.b16 %v204
      %v278 = vunpack.c.l.b16 %v205
      %v279 = vunpack.c.l.b16 %v206
      %v280 = vunpack.c.l.b16 %v207
      %v281 = vunpack.c.l.b16 %v208
      %v282 = vunpack.c.l.b16 %v209
      %v283 = vunpack.c.l.b16 %v210
      %v284 = vunpack.c.l.b16 %v211
      %v285 = vunpack.c.l.b16 %v212
      %v286 = vunpack.c.l.b16 %v213
      %v287 = vunpack.c.l.b16 %v214
      %v288 = vunpack.c.l.b16 %v215
      %v289 = vunpack.c.l.b16 %v216
      %v290 = vunpack.c.l.b16 %v217
      %v291 = vunpack.c.l.b16 %v218
      %v292 = vunpack.c.l.b16 %v219
      %v293 = vunpack.c.l.b16 %v220
      %v294 = vunpack.c.l.b16 %v221
      %v295 = vunpack.c.l.b16 %v222
      %v296 = vunpack.c.l.b16 %v223
      %v297 = vunpack.c.l.b16 %v224
      %v298 = vunpack.c.l.b16 %v225
      %v299 = vunpack.c.l.b16 %v226
      %v300 = vunpack.c.l.b16 %v227
      %v301 = vunpack.c.l.b16 %v228
      %v302 = vunpack.c.l.b16 %v229
      %v303 = vunpack.c.l.b16 %v230
      %v304 = vunpack.c.l.b16 %v231
      %v305 = vunpack.c.l.b16 %v232
      %v306 = vunpack.c.l.b16 %v233
      %v307 = vunpack.c.l.b16 %v234
      %v308 = vunpack.c.l.b16 %v235
      %v309 = vpack.c.b16 %v278, %v277
      %v310 = vpack.c.b16 %v280, %v279
      %v311 = vpack.c.b16 %v282, %v281
      %v312 = vpack.c.b16 %v284, %v283
      %v313 = vpack.c.b16 %v286, %v285
      %v314 = vpack.c.b16 %v288, %v287
      %v315 = vpack.c.b16 %v290, %v289
      %v316 = vpack.c.b16 %v292, %v291
      %v317 = vpack.c.b16 %v294, %v293
      %v318 = vpack.c.b16 %v296, %v295
      %v319 = vpack.c.b16 %v298, %v297
      %v320 = vpack.c.b16 %v300, %v299
      %v321 = vpack.c.b16 %v302, %v301
      %v322 = vpack.c.b16 %v304, %v303
      %v323 = vpack.c.b16 %v306, %v305
      %v324 = vpack.c.b16 %v308, %v307
      %341 = vmatprep.subr.bf16.mxu0 0
      %342 = vmatpush1.bf16.msra.mxu0 %v309
      %343 = vmatprep.subr.bf16.mxu0 0
      %344 = vmatpush1.bf16.msra.mxu0 %v310
      %345 = vmatprep.subr.bf16.mxu0 0
      %346 = vmatpush1.bf16.msra.mxu0 %v311
      %347 = vmatprep.subr.bf16.mxu0 0
      %348 = vmatpush1.bf16.msra.mxu0 %v312
      %349 = vmatprep.subr.bf16.mxu0 0
      %350 = vmatpush1.bf16.msra.mxu0 %v313
      %351 = vmatprep.subr.bf16.mxu0 0
      %352 = vmatpush1.bf16.msra.mxu0 %v314
      %353 = vmatprep.subr.bf16.mxu0 0
      %354 = vmatpush1.bf16.msra.mxu0 %v315
      %355 = vmatprep.subr.bf16.mxu0 0
      %356 = vmatpush1.bf16.msra.mxu0 %v316
      %357 = vmatprep.subr.bf16.mxu0 0
      %358 = vmatpush1.bf16.msra.mxu0 %v317
      %359 = vmatprep.subr.bf16.mxu0 0
      %360 = vmatpush1.bf16.msra.mxu0 %v318
      %361 = vmatprep.subr.bf16.mxu0 0
      %362 = vmatpush1.bf16.msra.mxu0 %v319
      %363 = vmatprep.subr.bf16.mxu0 0
      %364 = vmatpush1.bf16.msra.mxu0 %v320
      %365 = vmatprep.subr.bf16.mxu0 0
      %366 = vmatpush1.bf16.msra.mxu0 %v321
      %367 = vmatprep.subr.bf16.mxu0 0
      %368 = vmatpush1.bf16.msra.mxu0 %v322
      %369 = vmatprep.subr.bf16.mxu0 0
      %370 = vmatpush1.bf16.msra.mxu0 %v323
      %371 = vmatprep.subr.bf16.mxu0 0
      %372 = vmatpush1.bf16.msra.mxu0 %v324
      %373 = vmatprep.mubr.bf16.mxu0 %v242
      %374 = vmatmul.mubr.bf16.gmra.mrb[0].mxu0 %v241
      %v375 = vpop.f32.mrb[0].mxu0
      %v376 = vadd.f32 0.0, %v375
      %v377 = vpop.f32.mrb[0].mxu0
      %v378 = vpop.f32.mrb[0].mxu0
      %v379 = vpop.f32.mrb[0].mxu0
      %380 = vdwg.mxu0
      %v382 = vunpack.c.l.b16 %v169
      %v383 = vunpack.c.h.b16 %v169
      %v384 = vpack.c.b16 %v382, %v382
      %v385 = vpack.c.b16 %v383, %v383
      %v420 = vunpack.c.l.b16 %v170
      %v421 = vunpack.c.l.b16 %v171
      %v422 = vunpack.c.l.b16 %v172
      %v423 = vunpack.c.l.b16 %v173
      %v424 = vunpack.c.l.b16 %v174
      %v425 = vunpack.c.l.b16 %v175
      %v426 = vunpack.c.l.b16 %v176
      %v427 = vunpack.c.l.b16 %v177
      %v428 = vunpack.c.l.b16 %v178
      %v429 = vunpack.c.l.b16 %v179
      %v430 = vunpack.c.l.b16 %v180
      %v431 = vunpack.c.l.b16 %v181
      %v432 = vunpack.c.l.b16 %v182
      %v433 = vunpack.c.l.b16 %v183
      %v434 = vunpack.c.l.b16 %v184
      %v435 = vunpack.c.l.b16 %v185
      %v436 = vunpack.c.l.b16 %v186
      %v437 = vunpack.c.l.b16 %v187
      %v438 = vunpack.c.l.b16 %v188
      %v439 = vunpack.c.l.b16 %v189
      %v440 = vunpack.c.l.b16 %v190
      %v441 = vunpack.c.l.b16 %v191
      %v442 = vunpack.c.l.b16 %v192
      %v443 = vunpack.c.l.b16 %v193
      %v444 = vunpack.c.l.b16 %v194
      %v445 = vunpack.c.l.b16 %v195
      %v446 = vunpack.c.l.b16 %v196
      %v447 = vunpack.c.l.b16 %v197
      %v448 = vunpack.c.l.b16 %v198
      %v449 = vunpack.c.l.b16 %v199
      %v450 = vunpack.c.l.b16 %v200
      %v451 = vunpack.c.l.b16 %v201
      %v452 = vpack.c.b16 %v421, %v420
      %v453 = vpack.c.b16 %v423, %v422
      %v454 = vpack.c.b16 %v425, %v424
      %v455 = vpack.c.b16 %v427, %v426
      %v456 = vpack.c.b16 %v429, %v428
      %v457 = vpack.c.b16 %v431, %v430
      %v458 = vpack.c.b16 %v433, %v432
      %v459 = vpack.c.b16 %v435, %v434
      %v460 = vpack.c.b16 %v437, %v436
      %v461 = vpack.c.b16 %v439, %v438
      %v462 = vpack.c.b16 %v441, %v440
      %v463 = vpack.c.b16 %v443, %v442
      %v464 = vpack.c.b16 %v445, %v444
      %v465 = vpack.c.b16 %v447, %v446
      %v466 = vpack.c.b16 %v449, %v448
      %v467 = vpack.c.b16 %v451, %v450
      %484 = vmatprep.subr.bf16.mxu0 0
      %485 = vmatpush1.bf16.msra.mxu0 %v452
      %486 = vmatprep.subr.bf16.mxu0 0
      %487 = vmatpush1.bf16.msra.mxu0 %v453
      %488 = vmatprep.subr.bf16.mxu0 0
      %489 = vmatpush1.bf16.msra.mxu0 %v454
      %490 = vmatprep.subr.bf16.mxu0 0
      %491 = vmatpush1.bf16.msra.mxu0 %v455
      %492 = vmatprep.subr.bf16.mxu0 0
      %493 = vmatpush1.bf16.msra.mxu0 %v456
      %494 = vmatprep.subr.bf16.mxu0 0
      %495 = vmatpush1.bf16.msra.mxu0 %v457
      %496 = vmatprep.subr.bf16.mxu0 0
      %497 = vmatpush1.bf16.msra.mxu0 %v458
      %498 = vmatprep.subr.bf16.mxu0 0
      %499 = vmatpush1.bf16.msra.mxu0 %v459
      %500 = vmatprep.subr.bf16.mxu0 0
      %501 = vmatpush1.bf16.msra.mxu0 %v460
      %502 = vmatprep.subr.bf16.mxu0 0
      %503 = vmatpush1.bf16.msra.mxu0 %v461
      %504 = vmatprep.subr.bf16.mxu0 0
      %505 = vmatpush1.bf16.msra.mxu0 %v462
      %506 = vmatprep.subr.bf16.mxu0 0
      %507 = vmatpush1.bf16.msra.mxu0 %v463
      %508 = vmatprep.subr.bf16.mxu0 0
      %509 = vmatpush1.bf16.msra.mxu0 %v464
      %510 = vmatprep.subr.bf16.mxu0 0
      %511 = vmatpush1.bf16.msra.mxu0 %v465
      %512 = vmatprep.subr.bf16.mxu0 0
      %513 = vmatpush1.bf16.msra.mxu0 %v466
      %514 = vmatprep.subr.bf16.mxu0 0
      %515 = vmatpush1.bf16.msra.mxu0 %v467
      %516 = vmatprep.mubr.bf16.mxu0 %v385
      %517 = vmatmul.mubr.bf16.gmra.mrb[0].mxu0 %v384
      %v518 = vpop.f32.mrb[0].mxu0
      %v519 = vadd.f32 %v376, %v518
      %v520 = vpop.f32.mrb[0].mxu0
      %v521 = vpop.f32.mrb[0].mxu0
      %v522 = vpop.f32.mrb[0].mxu0
      %523 = vdwg.mxu0
      %v524 = vld [vmem:[%s163] sm:$0xcc]
      %s525 = scalar_lea.vmem %s1, 256
      %v526 = vld [vmem:[%s525] sm:$0xf]
      %v527 = vld [vmem:[%s525 + $0x4] sm:$0xf]
      %v528 = vld [vmem:[%s525 + $0x8] sm:$0xf]
      %v529 = vld [vmem:[%s525 + $0xc] sm:$0xf]
      %v530 = vld [vmem:[%s525 + $0x10] sm:$0xf]
      %v531 = vld [vmem:[%s525 + $0x14] sm:$0xf]
      %v532 = vld [vmem:[%s525 + $0x18] sm:$0xf]
      %v533 = vld [vmem:[%s525 + $0x1c] sm:$0xf]
      %v534 = vld [vmem:[%s525 + $0x20] sm:$0xf]
      %v535 = vld [vmem:[%s525 + $0x24] sm:$0xf]
      %v536 = vld [vmem:[%s525 + $0x28] sm:$0xf]
      %v537 = vld [vmem:[%s525 + $0x2c] sm:$0xf]
      %v538 = vld [vmem:[%s525 + $0x30] sm:$0xf]
      %v539 = vld [vmem:[%s525 + $0x34] sm:$0xf]
      %v540 = vld [vmem:[%s525 + $0x38] sm:$0xf]
      %v541 = vld [vmem:[%s525 + $0x3c] sm:$0xf]
      %v542 = vld [vmem:[%s525 + $0x40] sm:$0xf]
      %v543 = vld [vmem:[%s525 + $0x44] sm:$0xf]
      %v544 = vld [vmem:[%s525 + $0x48] sm:$0xf]
      %v545 = vld [vmem:[%s525 + $0x4c] sm:$0xf]
      %v546 = vld [vmem:[%s525 + $0x50] sm:$0xf]
      %v547 = vld [vmem:[%s525 + $0x54] sm:$0xf]
      %v548 = vld [vmem:[%s525 + $0x58] sm:$0xf]
      %v549 = vld [vmem:[%s525 + $0x5c] sm:$0xf]
      %v550 = vld [vmem:[%s525 + $0x60] sm:$0xf]
      %v551 = vld [vmem:[%s525 + $0x64] sm:$0xf]
      %v552 = vld [vmem:[%s525 + $0x68] sm:$0xf]
      %v553 = vld [vmem:[%s525 + $0x6c] sm:$0xf]
      %v554 = vld [vmem:[%s525 + $0x70] sm:$0xf]
      %v555 = vld [vmem:[%s525 + $0x74] sm:$0xf]
      %v556 = vld [vmem:[%s525 + $0x78] sm:$0xf]
      %v557 = vld [vmem:[%s525 + $0x7c] sm:$0xf]
      %v559 = vunpack.c.l.b16 %v524
      %v560 = vunpack.c.h.b16 %v524
      %v561 = vpack.c.b16 %v559, %v559
      %v562 = vpack.c.b16 %v560, %v560
      %v563 = vrot.slane %v561, 2
      %v564 = vrot.slane %v562, 2
      %v599 = vunpack.c.l.b16 %v526
      %v600 = vunpack.c.l.b16 %v527
      %v601 = vunpack.c.l.b16 %v528
      %v602 = vunpack.c.l.b16 %v529
      %v603 = vunpack.c.l.b16 %v530
      %v604 = vunpack.c.l.b16 %v531
      %v605 = vunpack.c.l.b16 %v532
      %v606 = vunpack.c.l.b16 %v533
      %v607 = vunpack.c.l.b16 %v534
      %v608 = vunpack.c.l.b16 %v535
      %v609 = vunpack.c.l.b16 %v536
      %v610 = vunpack.c.l.b16 %v537
      %v611 = vunpack.c.l.b16 %v538
      %v612 = vunpack.c.l.b16 %v539
      %v613 = vunpack.c.l.b16 %v540
      %v614 = vunpack.c.l.b16 %v541
      %v615 = vunpack.c.l.b16 %v542
      %v616 = vunpack.c.l.b16 %v543
      %v617 = vunpack.c.l.b16 %v544
      %v618 = vunpack.c.l.b16 %v545
      %v619 = vunpack.c.l.b16 %v546
      %v620 = vunpack.c.l.b16 %v547
      %v621 = vunpack.c.l.b16 %v548
      %v622 = vunpack.c.l.b16 %v549
      %v623 = vunpack.c.l.b16 %v550
      %v624 = vunpack.c.l.b16 %v551
      %v625 = vunpack.c.l.b16 %v552
      %v626 = vunpack.c.l.b16 %v553
      %v627 = vunpack.c.l.b16 %v554
      %v628 = vunpack.c.l.b16 %v555
      %v629 = vunpack.c.l.b16 %v556
      %v630 = vunpack.c.l.b16 %v557
      %v631 = vpack.c.b16 %v600, %v599
      %v632 = vpack.c.b16 %v602, %v601
      %v633 = vpack.c.b16 %v604, %v603
      %v634 = vpack.c.b16 %v606, %v605
      %v635 = vpack.c.b16 %v608, %v607
      %v636 = vpack.c.b16 %v610, %v609
      %v637 = vpack.c.b16 %v612, %v611
      %v638 = vpack.c.b16 %v614, %v613
      %v639 = vpack.c.b16 %v616, %v615
      %v640 = vpack.c.b16 %v618, %v617
      %v641 = vpack.c.b16 %v620, %v619
      %v642 = vpack.c.b16 %v622, %v621
      %v643 = vpack.c.b16 %v624, %v623
      %v644 = vpack.c.b16 %v626, %v625
      %v645 = vpack.c.b16 %v628, %v627
      %v646 = vpack.c.b16 %v630, %v629
      %663 = vmatprep.subr.bf16.mxu0 0
      %664 = vmatpush1.bf16.msra.mxu0 %v631
      %665 = vmatprep.subr.bf16.mxu0 0
      %666 = vmatpush1.bf16.msra.mxu0 %v632
      %667 = vmatprep.subr.bf16.mxu0 0
      %668 = vmatpush1.bf16.msra.mxu0 %v633
      %669 = vmatprep.subr.bf16.mxu0 0
      %670 = vmatpush1.bf16.msra.mxu0 %v634
      %671 = vmatprep.subr.bf16.mxu0 0
      %672 = vmatpush1.bf16.msra.mxu0 %v635
      %673 = vmatprep.subr.bf16.mxu0 0
      %674 = vmatpush1.bf16.msra.mxu0 %v636
      %675 = vmatprep.subr.bf16.mxu0 0
      %676 = vmatpush1.bf16.msra.mxu0 %v637
      %677 = vmatprep.subr.bf16.mxu0 0
      %678 = vmatpush1.bf16.msra.mxu0 %v638
      %679 = vmatprep.subr.bf16.mxu0 0
      %680 = vmatpush1.bf16.msra.mxu0 %v639
      %681 = vmatprep.subr.bf16.mxu0 0
      %682 = vmatpush1.bf16.msra.mxu0 %v640
      %683 = vmatprep.subr.bf16.mxu0 0
      %684 = vmatpush1.bf16.msra.mxu0 %v641
      %685 = vmatprep.subr.bf16.mxu0 0
      %686 = vmatpush1.bf16.msra.mxu0 %v642
      %687 = vmatprep.subr.bf16.mxu0 0
      %688 = vmatpush1.bf16.msra.mxu0 %v643
      %689 = vmatprep.subr.bf16.mxu0 0
      %690 = vmatpush1.bf16.msra.mxu0 %v644
      %691 = vmatprep.subr.bf16.mxu0 0
      %692 = vmatpush1.bf16.msra.mxu0 %v645
      %693 = vmatprep.subr.bf16.mxu0 0
      %694 = vmatpush1.bf16.msra.mxu0 %v646
      %695 = vmatprep.mubr.bf16.mxu0 %v564
      %696 = vmatmul.mubr.bf16.gmra.mrb[0].mxu0 %v563
      %v697 = vpop.f32.mrb[0].mxu0
      %v698 = vadd.f32 0.0, %v697
      %v699 = vpop.f32.mrb[0].mxu0
      %v700 = vpop.f32.mrb[0].mxu0
      %v701 = vpop.f32.mrb[0].mxu0
      %702 = vdwg.mxu0
      %v703 = vadd.f32 %v519, %v698
      %v705 = vlaneseq
      %v706 = vshrl.u32 %v705, 7
      %v707 = vsub.s32 0, %v706
      %v708 = vrot.slane %v168, %v707
      %v710 = vadd.f32 %v703, %v708
      %v711 = vmax.f32 %v710, 0.0
      %v713 = vrot.slane %v711, 2
      %v715 = vmax.f32 %v711, %v713
      %716 = vst [vmem:[#allocation2] sm:$0x3] %v715
      %v717 = vld [vmem:[#allocation2] ss:$2 sm:$0x1]
      %s718 = scalar_lea.vmem [#allocation2], 1
      %v719 = vld [vmem:[%s718] ss:$2 sm:$0x1]
      %v720 = vmax.f32 %v717, %v719
      %v721 = vpack.c.bf16 %v720, %v720
      %vm722 = vcmask 1040384
      %vm723 = vsmask.f32 256
      %vm724 = vmand %vm722, %vm723
      %v725 = vld [vmem:[%s166] sm:$0x1]
      %v726 = vsel %vm724, %v721, %v725
      %727 = vst [vmem:[%s166] sm:$0x1] %v726
      %p728 = scmp.lt.s32.totalorder %s14, 1
      %s729 = scalar_select %p728, %s14, 1
      %s730 = scalar_lea.vmem %s3, %s729
      // Predicated region
      $region33: #{vgg_forward.20} parent=31 // pred_check
        %p731 = pneg %p100
      $region34: #{vgg_forward.20} parent=31 // pred_check_branch
        %733 = sbr.rel (%p731) target = $region36
      $region35: #{vgg_forward.20} parent=31 // pred_region
        _
      $region36: #{vgg_forward.20} parent=31 // pred_fallthru
        _
    $region32: #{vgg_forward.20} parent=5 // pred_fallthru
      _
    %p734 = scmp.le.s32.totalorder 2, %s9
    // Predicated region
    $region37: #{vgg_forward.20} parent=5 // pred_check
      %p735 = pneg %p734
    $region38: #{vgg_forward.20} parent=5 // pred_check_branch
      %737 = sbr.rel (%p735) target = $region40
    $region39: #{vgg_forward.20} parent=5 // pred_region
      %s738 = ssub.s32 %s9, 2
      // Predicated region
      $region41: #{vgg_forward.20} parent=39 // pred_check
        %p739 = pneg %p106
      $region42: #{vgg_forward.20} parent=39 // pred_check_branch
        %741 = sbr.rel (%p739) target = $region44
      $region43: #{vgg_forward.20} parent=39 // pred_region
        %p742 = scmp.lt.s32.totalorder %s15, 1
        %s743 = scalar_select %p742, %s15, 1
        %s744 = scalar_lea.vmem %s3, %s743
      $region44: #{vgg_forward.20} parent=39 // pred_fallthru
        _
    $region40: #{vgg_forward.20} parent=5 // pred_fallthru
      _
  $region6: #{vgg_forward.20} parent=0 // loop_footer
    %s13 = sadd.s32 1, %s9
  $region7: #{vgg_forward.20} parent=0 // loop_footer_branch
    %8 = sbr.rel target = $region3
  $region8: #{vgg_forward.20} parent=0 // loop_exit
    _

</llo_original>
